<compile_context>
chip_gen: v7x
topology: tpu7x:2x2x1
jax: 0.10.0
libtpu: 0.0.40
codegen_flags: <defaults>
</compile_context>

<pallas_src>
import functools

import jax
import jax.numpy as jnp
from jax.experimental import pallas as pl
from jax.experimental.pallas import tpu as pltpu

EPS = 1e-5
KH = KW = 3  # 3x3 conv, padding 1, stride 1


def _conv_bn_add_kernel(xp_ref, w_ref, g_ref, b_ref, res_ref, out_ref, *,
                        h, w, wp):
  """Fused 3x3 conv + batch-stat BN + residual add on one Cout block.

  xp_ref:  ((h+3)*wp, Cin) f32   flattened zero-padded NHWC input
  w_ref:   (9, Cin, Ct)    bf16  per-tap weight slices (tap = kh*3+kw)
  g_ref:   (1, Ct)         f32   BN gamma slice
  b_ref:   (1, Ct)         f32   BN beta slice
  res_ref: (h*wp, Ct)      f32   residual (padding columns are zero)
  out_ref: (h*wp, Ct)      f32
  """
  rows = h * wp                      # e.g. 14 * 16 = 224
  ct = out_ref.shape[1]

  # --- convolution: 9 shifted-slab accumulating matmuls on the MXU ---------
  acc = jnp.zeros((rows, ct), jnp.float32)
  for kh in range(KH):
    for kw in range(KW):
      off = kh * wp + kw
      lhs = xp_ref[off:off + rows, :].astype(jnp.bfloat16)     # (rows, Cin)
      acc = acc + jnp.dot(lhs, w_ref[kh * KW + kw],
                          preferred_element_type=jnp.float32)  # (rows, Ct)

  # --- batchnorm (training mode): stats over the h*w valid positions -------
  # Padding columns (w <= col < wp) inside each flattened row are masked out.
  col = jax.lax.broadcasted_iota(jnp.int32, (rows, 1), 0) % wp
  valid = col < w
  nvalid = float(h * w)
  mean = jnp.sum(jnp.where(valid, acc, 0.0), axis=0, keepdims=True) / nvalid
  cent = jnp.where(valid, acc - mean, 0.0)
  var = jnp.sum(cent * cent, axis=0, keepdims=True) / nvalid   # biased var
  scale = jax.lax.rsqrt(var + EPS) * g_ref[...]

  # --- normalize + residual add, single lane-dense store -------------------
  y = (acc - mean) * scale + b_ref[...] + res_ref[...]
  out_ref[...] = y.astype(out_ref.dtype)


@jax.jit
def conv_bn_add(x_nchw, res_nchw, w_oihw, gamma, beta):
  """x_nchw, res_nchw: (1, C, H, W) f32; w_oihw: (Cout, Cin, 3, 3)."""
  n, cin, h, w = x_nchw.shape
  cout = w_oihw.shape[0]
  # TODO(synk): batch stats for n > 1 would need a cross-image reduction;
  # the module spec is fixed at n == 1.
  assert n == 1, "kernel specialised for batch size 1 (per module spec)"
  assert w_oihw.shape[2] == KH and w_oihw.shape[3] == KW

  wp = w + 2                         # padded width
  rows = h * wp                      # output rows incl. 2 garbage cols / row

  # NCHW -> NHWC; pad spatially by (top 1, bottom 2) x (left 1, right 1) and
  # flatten so every conv tap is a contiguous slab of the flat array.
  x_nhwc = jnp.transpose(x_nchw, (0, 2, 3, 1))[0]              # (H, W, Cin)
  xp = jnp.pad(x_nhwc, ((1, 2), (1, 1), (0, 0)))               # (H+3, W+2, C)
  xp_flat = xp.reshape((h + 3) * wp, cin)

  # Residual laid out like the kernel's flat output (padding cols = 0).
  res_nhwc = jnp.transpose(res_nchw, (0, 2, 3, 1))[0]          # (H, W, Cout)
  res_flat = jnp.pad(res_nhwc, ((0, 0), (0, 2), (0, 0))).reshape(rows, cout)
  res_flat = res_flat.astype(jnp.float32)

  # OIHW -> (9, Cin, Cout), tap order kh*3+kw; ship in bf16 (dominant DMA).
  w3 = jnp.transpose(w_oihw, (2, 3, 1, 0)).reshape(KH * KW, cin, cout)
  w3 = w3.astype(jnp.bfloat16)

  g = gamma.reshape(1, cout).astype(jnp.float32)
  b = beta.reshape(1, cout).astype(jnp.float32)

  ct = 128 if cout % 128 == 0 else cout    # Cout tile (2 blocks -> v7x 2 TCs)
  kernel = functools.partial(_conv_bn_add_kernel, h=h, w=w, wp=wp)

  out_flat = pl.pallas_call(
      kernel,
      out_shape=jax.ShapeDtypeStruct((rows, cout), jnp.float32),
      grid=(cout // ct,),
      in_specs=[
          pl.BlockSpec(((h + 3) * wp, cin), lambda j: (0, 0)),   # xp (shared)
          pl.BlockSpec((KH * KW, cin, ct), lambda j: (0, 0, j)),  # weights
          pl.BlockSpec((1, ct), lambda j: (0, j)),                # gamma
          pl.BlockSpec((1, ct), lambda j: (0, j)),                # beta
          pl.BlockSpec((rows, ct), lambda j: (0, j)),             # residual
      ],
      out_specs=pl.BlockSpec((rows, ct), lambda j: (0, j)),
      input_output_aliases={4: 0},        # residual buffer reused as output
      compiler_params=pltpu.CompilerParams(
          dimension_semantics=("parallel",)),
  )(xp_flat, w3, g, b, res_flat)

  # Drop the 2 garbage columns per row, back to NCHW.
  out_nhwc = out_flat.reshape(h, wp, cout)[:, :w, :]
  return jnp.transpose(out_nhwc, (2, 0, 1))[None]              # (1,Cout,H,W)


def _reference(x_nchw, res_nchw, w_oihw, gamma, beta):
  """Pure-JAX reference (f32, HIGHEST precision) for correctness checking."""
  conv = jax.lax.conv_general_dilated(
      x_nchw, w_oihw, window_strides=(1, 1), padding=((1, 1), (1, 1)),
      dimension_numbers=('NCHW', 'OIHW', 'NCHW'),
      precision=jax.lax.Precision.HIGHEST)
  mean = jnp.mean(conv, axis=(0, 2, 3), keepdims=True)
  var = jnp.mean(jnp.square(conv - mean), axis=(0, 2, 3), keepdims=True)
  y = (conv - mean) * jax.lax.rsqrt(var + EPS)
  y = y * gamma.reshape(1, -1, 1, 1) + beta.reshape(1, -1, 1, 1)
  return y + res_nchw


if __name__ == "__main__":
  key = jax.random.PRNGKey(0)
  k1, k2, k3 = jax.random.split(key, 3)

  N, C, H, W = 1, 256, 14, 14          # shapes from the PyTorch module
  x58 = jax.random.normal(k1, (N, C, H, W), dtype=jnp.float32)
  x62 = jax.random.normal(k2, (N, C, H, W), dtype=jnp.float32)

  # Deterministic parameters (Conv2d weight ~ small random; BN affine = init)
  w_conv = jax.random.normal(k3, (C, C, KH, KW), dtype=jnp.float32) * 0.05
  gamma = jnp.ones((C,), dtype=jnp.float32)
  beta = jnp.zeros((C,), dtype=jnp.float32)

  out = conv_bn_add(x58, x62, w_conv, gamma, beta)
  out = jax.block_until_ready(out)

  ref = _reference(x58, x62, w_conv, gamma, beta)
  assert out.shape == (N, C, H, W) and out.dtype == jnp.float32
  max_err = float(jnp.max(jnp.abs(out - ref)))
  # bf16 MXU operands with f32 accumulation: expected |err| << 3e-2.
  assert jnp.allclose(out, ref, atol=3e-2, rtol=3e-2), max_err

  print("KERNEL_OK")
</pallas_src>

<mosaic_0001>
module attributes {stable_mosaic.version = 11 : i64} {
  func.func @_conv_bn_add_kernel(%arg0: i32, %arg1: memref<272x256xf32, #tpu.memory_space<vmem>>, %arg2: memref<9x256x128xbf16, #tpu.memory_space<vmem>>, %arg3: memref<1x128xf32, #tpu.memory_space<vmem>>, %arg4: memref<1x128xf32, #tpu.memory_space<vmem>>, %arg5: memref<224x128xf32, #tpu.memory_space<vmem>>, %arg6: memref<224x128xf32, #tpu.memory_space<vmem>>) attributes {dimension_semantics = [#tpu.dimension_semantics<parallel>], iteration_bounds = array<i64: 2>, scalar_prefetch = 0 : i64, scratch_operands = 0 : i64, tpu.core_type = #tpu.core_type<tc>, window_params = [{pipeline_mode = #tpu.pipeline_mode<synchronous>, transform_indices = @transform_0, window_bounds = array<i64: 272, 256>}, {transform_indices = @transform_1, window_bounds = array<i64: 9, 256, 128>}, {transform_indices = @transform_2, window_bounds = array<i64: 1, 128>}, {transform_indices = @transform_3, window_bounds = array<i64: 1, 128>}, {transform_indices = @transform_4, window_bounds = array<i64: 224, 128>}, {transform_indices = @transform_5, window_bounds = array<i64: 224, 128>}]} {
    %cst = arith.constant 0.000000e+00 : f32
    %0 = vector.broadcast %cst : f32 to vector<224x128xf32>
    %c0 = arith.constant 0 : index
    %c0_0 = arith.constant 0 : index
    %1 = vector.load %arg1[%c0, %c0_0] : memref<272x256xf32, #tpu.memory_space<vmem>>, vector<224x256xf32>
    %2 = arith.truncf %1 : vector<224x256xf32> to vector<224x256xbf16>
    %c0_1 = arith.constant 0 : index
    %c0_2 = arith.constant 0 : index
    %c0_3 = arith.constant 0 : index
    %3 = vector.load %arg2[%c0_1, %c0_2, %c0_3] : memref<9x256x128xbf16, #tpu.memory_space<vmem>>, vector<1x256x128xbf16>
    %4 = vector.shape_cast %3 : vector<1x256x128xbf16> to vector<256x128xbf16>
    %cst_4 = arith.constant dense<0.000000e+00> : vector<224x128xf32>
    %5 = tpu.matmul %2, %4, %cst_4 {dimension_numbers = #tpu.dot_dimension_numbers<[1], [0], [0], [1], [0, 0, 1, 1], [], []>} : vector<224x256xbf16>, vector<256x128xbf16>, vector<224x128xf32> -> vector<224x128xf32>
    %6 = arith.addf %0, %5 : vector<224x128xf32>
    %c1 = arith.constant 1 : index
    %c0_5 = arith.constant 0 : index
    %7 = vector.load %arg1[%c1, %c0_5] : memref<272x256xf32, #tpu.memory_space<vmem>>, vector<224x256xf32>
    %8 = arith.truncf %7 : vector<224x256xf32> to vector<224x256xbf16>
    %c1_6 = arith.constant 1 : index
    %c0_7 = arith.constant 0 : index
    %c0_8 = arith.constant 0 : index
    %9 = vector.load %arg2[%c1_6, %c0_7, %c0_8] : memref<9x256x128xbf16, #tpu.memory_space<vmem>>, vector<1x256x128xbf16>
    %10 = vector.shape_cast %9 : vector<1x256x128xbf16> to vector<256x128xbf16>
    %cst_9 = arith.constant dense<0.000000e+00> : vector<224x128xf32>
    %11 = tpu.matmul %8, %10, %cst_9 {dimension_numbers = #tpu.dot_dimension_numbers<[1], [0], [0], [1], [0, 0, 1, 1], [], []>} : vector<224x256xbf16>, vector<256x128xbf16>, vector<224x128xf32> -> vector<224x128xf32>
    %12 = arith.addf %6, %11 : vector<224x128xf32>
    %c2 = arith.constant 2 : index
    %c0_10 = arith.constant 0 : index
    %13 = vector.load %arg1[%c2, %c0_10] : memref<272x256xf32, #tpu.memory_space<vmem>>, vector<224x256xf32>
    %14 = arith.truncf %13 : vector<224x256xf32> to vector<224x256xbf16>
    %c2_11 = arith.constant 2 : index
    %c0_12 = arith.constant 0 : index
    %c0_13 = arith.constant 0 : index
    %15 = vector.load %arg2[%c2_11, %c0_12, %c0_13] : memref<9x256x128xbf16, #tpu.memory_space<vmem>>, vector<1x256x128xbf16>
    %16 = vector.shape_cast %15 : vector<1x256x128xbf16> to vector<256x128xbf16>
    %cst_14 = arith.constant dense<0.000000e+00> : vector<224x128xf32>
    %17 = tpu.matmul %14, %16, %cst_14 {dimension_numbers = #tpu.dot_dimension_numbers<[1], [0], [0], [1], [0, 0, 1, 1], [], []>} : vector<224x256xbf16>, vector<256x128xbf16>, vector<224x128xf32> -> vector<224x128xf32>
    %18 = arith.addf %12, %17 : vector<224x128xf32>
    %c16 = arith.constant 16 : index
    %c0_15 = arith.constant 0 : index
    %19 = vector.load %arg1[%c16, %c0_15] : memref<272x256xf32, #tpu.memory_space<vmem>>, vector<224x256xf32>
    %20 = arith.truncf %19 : vector<224x256xf32> to vector<224x256xbf16>
    %c3 = arith.constant 3 : index
    %c0_16 = arith.constant 0 : index
    %c0_17 = arith.constant 0 : index
    %21 = vector.load %arg2[%c3, %c0_16, %c0_17] : memref<9x256x128xbf16, #tpu.memory_space<vmem>>, vector<1x256x128xbf16>
    %22 = vector.shape_cast %21 : vector<1x256x128xbf16> to vector<256x128xbf16>
    %cst_18 = arith.constant dense<0.000000e+00> : vector<224x128xf32>
    %23 = tpu.matmul %20, %22, %cst_18 {dimension_numbers = #tpu.dot_dimension_numbers<[1], [0], [0], [1], [0, 0, 1, 1], [], []>} : vector<224x256xbf16>, vector<256x128xbf16>, vector<224x128xf32> -> vector<224x128xf32>
    %24 = arith.addf %18, %23 : vector<224x128xf32>
    %c17 = arith.constant 17 : index
    %c0_19 = arith.constant 0 : index
    %25 = vector.load %arg1[%c17, %c0_19] : memref<272x256xf32, #tpu.memory_space<vmem>>, vector<224x256xf32>
    %26 = arith.truncf %25 : vector<224x256xf32> to vector<224x256xbf16>
    %c4 = arith.constant 4 : index
    %c0_20 = arith.constant 0 : index
    %c0_21 = arith.constant 0 : index
    %27 = vector.load %arg2[%c4, %c0_20, %c0_21] : memref<9x256x128xbf16, #tpu.memory_space<vmem>>, vector<1x256x128xbf16>
    %28 = vector.shape_cast %27 : vector<1x256x128xbf16> to vector<256x128xbf16>
    %cst_22 = arith.constant dense<0.000000e+00> : vector<224x128xf32>
    %29 = tpu.matmul %26, %28, %cst_22 {dimension_numbers = #tpu.dot_dimension_numbers<[1], [0], [0], [1], [0, 0, 1, 1], [], []>} : vector<224x256xbf16>, vector<256x128xbf16>, vector<224x128xf32> -> vector<224x128xf32>
    %30 = arith.addf %24, %29 : vector<224x128xf32>
    %c18 = arith.constant 18 : index
    %c0_23 = arith.constant 0 : index
    %31 = vector.load %arg1[%c18, %c0_23] : memref<272x256xf32, #tpu.memory_space<vmem>>, vector<224x256xf32>
    %32 = arith.truncf %31 : vector<224x256xf32> to vector<224x256xbf16>
    %c5 = arith.constant 5 : index
    %c0_24 = arith.constant 0 : index
    %c0_25 = arith.constant 0 : index
    %33 = vector.load %arg2[%c5, %c0_24, %c0_25] : memref<9x256x128xbf16, #tpu.memory_space<vmem>>, vector<1x256x128xbf16>
    %34 = vector.shape_cast %33 : vector<1x256x128xbf16> to vector<256x128xbf16>
    %cst_26 = arith.constant dense<0.000000e+00> : vector<224x128xf32>
    %35 = tpu.matmul %32, %34, %cst_26 {dimension_numbers = #tpu.dot_dimension_numbers<[1], [0], [0], [1], [0, 0, 1, 1], [], []>} : vector<224x256xbf16>, vector<256x128xbf16>, vector<224x128xf32> -> vector<224x128xf32>
    %36 = arith.addf %30, %35 : vector<224x128xf32>
    %c32 = arith.constant 32 : index
    %c0_27 = arith.constant 0 : index
    %37 = vector.load %arg1[%c32, %c0_27] : memref<272x256xf32, #tpu.memory_space<vmem>>, vector<224x256xf32>
    %38 = arith.truncf %37 : vector<224x256xf32> to vector<224x256xbf16>
    %c6 = arith.constant 6 : index
    %c0_28 = arith.constant 0 : index
    %c0_29 = arith.constant 0 : index
    %39 = vector.load %arg2[%c6, %c0_28, %c0_29] : memref<9x256x128xbf16, #tpu.memory_space<vmem>>, vector<1x256x128xbf16>
    %40 = vector.shape_cast %39 : vector<1x256x128xbf16> to vector<256x128xbf16>
    %cst_30 = arith.constant dense<0.000000e+00> : vector<224x128xf32>
    %41 = tpu.matmul %38, %40, %cst_30 {dimension_numbers = #tpu.dot_dimension_numbers<[1], [0], [0], [1], [0, 0, 1, 1], [], []>} : vector<224x256xbf16>, vector<256x128xbf16>, vector<224x128xf32> -> vector<224x128xf32>
    %42 = arith.addf %36, %41 : vector<224x128xf32>
    %c33 = arith.constant 33 : index
    %c0_31 = arith.constant 0 : index
    %43 = vector.load %arg1[%c33, %c0_31] : memref<272x256xf32, #tpu.memory_space<vmem>>, vector<224x256xf32>
    %44 = arith.truncf %43 : vector<224x256xf32> to vector<224x256xbf16>
    %c7 = arith.constant 7 : index
    %c0_32 = arith.constant 0 : index
    %c0_33 = arith.constant 0 : index
    %45 = vector.load %arg2[%c7, %c0_32, %c0_33] : memref<9x256x128xbf16, #tpu.memory_space<vmem>>, vector<1x256x128xbf16>
    %46 = vector.shape_cast %45 : vector<1x256x128xbf16> to vector<256x128xbf16>
    %cst_34 = arith.constant dense<0.000000e+00> : vector<224x128xf32>
    %47 = tpu.matmul %44, %46, %cst_34 {dimension_numbers = #tpu.dot_dimension_numbers<[1], [0], [0], [1], [0, 0, 1, 1], [], []>} : vector<224x256xbf16>, vector<256x128xbf16>, vector<224x128xf32> -> vector<224x128xf32>
    %48 = arith.addf %42, %47 : vector<224x128xf32>
    %c34 = arith.constant 34 : index
    %c0_35 = arith.constant 0 : index
    %49 = vector.load %arg1[%c34, %c0_35] : memref<272x256xf32, #tpu.memory_space<vmem>>, vector<224x256xf32>
    %50 = arith.truncf %49 : vector<224x256xf32> to vector<224x256xbf16>
    %c8 = arith.constant 8 : index
    %c0_36 = arith.constant 0 : index
    %c0_37 = arith.constant 0 : index
    %51 = vector.load %arg2[%c8, %c0_36, %c0_37] : memref<9x256x128xbf16, #tpu.memory_space<vmem>>, vector<1x256x128xbf16>
    %52 = vector.shape_cast %51 : vector<1x256x128xbf16> to vector<256x128xbf16>
    %cst_38 = arith.constant dense<0.000000e+00> : vector<224x128xf32>
    %53 = tpu.matmul %50, %52, %cst_38 {dimension_numbers = #tpu.dot_dimension_numbers<[1], [0], [0], [1], [0, 0, 1, 1], [], []>} : vector<224x256xbf16>, vector<256x128xbf16>, vector<224x128xf32> -> vector<224x128xf32>
    %54 = arith.addf %48, %53 : vector<224x128xf32>
    %55 = tpu.iota {dimensions = array<i32: 0>} : vector<224x1xi32>
    %c16_i32 = arith.constant 16 : i32
    %c0_i32 = arith.constant 0 : i32
    %56 = arith.cmpi eq, %c16_i32, %c0_i32 : i32
    %c1_i32 = arith.constant 1 : i32
    %57 = arith.select %56, %c1_i32, %c16_i32 : i32
    %58 = vector.broadcast %57 : i32 to vector<224x1xi32>
    %59 = arith.remsi %55, %58 : vector<224x1xi32>
    %c0_i32_39 = arith.constant 0 : i32
    %60 = vector.broadcast %c0_i32_39 : i32 to vector<224x1xi32>
    %61 = arith.cmpi ne, %59, %60 : vector<224x1xi32>
    %c0_i32_40 = arith.constant 0 : i32
    %62 = vector.broadcast %c0_i32_40 : i32 to vector<224x1xi32>
    %63 = arith.cmpi slt, %59, %62 : vector<224x1xi32>
    %c0_i32_41 = arith.constant 0 : i32
    %64 = arith.cmpi slt, %57, %c0_i32_41 : i32
    %65 = vector.broadcast %64 : i1 to vector<224x1xi1>
    %66 = vector.broadcast %65 : vector<224x1xi1> to vector<224x1xi1>
    %67 = arith.xori %63, %66 : vector<224x1xi1>
    %68 = arith.andi %67, %61 : vector<224x1xi1>
    %69 = vector.broadcast %57 : i32 to vector<224x1xi32>
    %70 = arith.addi %59, %69 : vector<224x1xi32>
    %71 = arith.select %68, %70, %59 : vector<224x1xi1>, vector<224x1xi32>
    %c14_i32 = arith.constant 14 : i32
    %72 = vector.broadcast %c14_i32 : i32 to vector<224x1xi32>
    %73 = arith.cmpi slt, %71, %72 : vector<224x1xi32>
    %cst_42 = arith.constant 0.000000e+00 : f32
    %74 = vector.shape_cast %73 : vector<224x1xi1> to vector<224x1xi1>
    %75 = vector.broadcast %74 : vector<224x1xi1> to vector<224x128xi1>
    %76 = vector.broadcast %cst_42 : f32 to vector<224x128xf32>
    %77 = arith.select %75, %54, %76 : vector<224x128xi1>, vector<224x128xf32>
    %cst_43 = arith.constant dense<0.000000e+00> : vector<128xf32>
    %78 = vector.multi_reduction <add>, %77, %cst_43 [0] : vector<224x128xf32> to vector<128xf32>
    %79 = vector.shape_cast %78 : vector<128xf32> to vector<1x128xf32>
    %cst_44 = arith.constant 1.960000e+02 : f32
    %80 = vector.broadcast %cst_44 : f32 to vector<1x128xf32>
    %81 = arith.divf %79, %80 : vector<1x128xf32>
    %82 = vector.broadcast %81 : vector<1x128xf32> to vector<224x128xf32>
    %83 = arith.subf %54, %82 : vector<224x128xf32>
    %cst_45 = arith.constant 0.000000e+00 : f32
    %84 = vector.shape_cast %73 : vector<224x1xi1> to vector<224x1xi1>
    %85 = vector.broadcast %84 : vector<224x1xi1> to vector<224x128xi1>
    %86 = vector.broadcast %cst_45 : f32 to vector<224x128xf32>
    %87 = arith.select %85, %83, %86 : vector<224x128xi1>, vector<224x128xf32>
    %88 = arith.mulf %87, %87 : vector<224x128xf32>
    %cst_46 = arith.constant dense<0.000000e+00> : vector<128xf32>
    %89 = vector.multi_reduction <add>, %88, %cst_46 [0] : vector<224x128xf32> to vector<128xf32>
    %90 = vector.shape_cast %89 : vector<128xf32> to vector<1x128xf32>
    %cst_47 = arith.constant 1.960000e+02 : f32
    %91 = vector.broadcast %cst_47 : f32 to vector<1x128xf32>
    %92 = arith.divf %90, %91 : vector<1x128xf32>
    %cst_48 = arith.constant 9.99999974E-6 : f32
    %93 = vector.broadcast %cst_48 : f32 to vector<1x128xf32>
    %94 = arith.addf %92, %93 : vector<1x128xf32>
    %95 = math.rsqrt %94 : vector<1x128xf32>
    %c0_49 = arith.constant 0 : index
    %c0_50 = arith.constant 0 : index
    %96 = vector.load %arg3[%c0_49, %c0_50] : memref<1x128xf32, #tpu.memory_space<vmem>>, vector<1x128xf32>
    %97 = arith.mulf %95, %96 : vector<1x128xf32>
    %98 = vector.broadcast %81 : vector<1x128xf32> to vector<224x128xf32>
    %99 = arith.subf %54, %98 : vector<224x128xf32>
    %100 = vector.broadcast %97 : vector<1x128xf32> to vector<224x128xf32>
    %101 = arith.mulf %99, %100 : vector<224x128xf32>
    %c0_51 = arith.constant 0 : index
    %c0_52 = arith.constant 0 : index
    %102 = vector.load %arg4[%c0_51, %c0_52] : memref<1x128xf32, #tpu.memory_space<vmem>>, vector<1x128xf32>
    %103 = vector.broadcast %102 : vector<1x128xf32> to vector<224x128xf32>
    %104 = arith.addf %101, %103 : vector<224x128xf32>
    %c0_53 = arith.constant 0 : index
    %c0_54 = arith.constant 0 : index
    %105 = vector.load %arg5[%c0_53, %c0_54] : memref<224x128xf32, #tpu.memory_space<vmem>>, vector<224x128xf32>
    %106 = arith.addf %104, %105 : vector<224x128xf32>
    %c0_55 = arith.constant 0 : index
    %c0_56 = arith.constant 0 : index
    %107 = vector.load %arg6[%c0_55, %c0_56] : memref<224x128xf32, #tpu.memory_space<vmem>>, vector<224x128xf32>
    tpu.vector_store %arg6[%c0_55, %c0_56], %106 {strides = array<i32>} : memref<224x128xf32, #tpu.memory_space<vmem>>, vector<224x128xf32>,
    return
  }
  func.func @transform_0(%arg0: i32) -> (i32, i32) {
    %c0_i32 = arith.constant 0 : i32
    %c0_i32_0 = arith.constant 0 : i32
    %c0_i32_1 = arith.constant 0 : i32
    return %c0_i32, %c0_i32_0 : i32, i32
  }
  func.func @transform_1(%arg0: i32) -> (i32, i32, i32) {
    %c0_i32 = arith.constant 0 : i32
    %c0_i32_0 = arith.constant 0 : i32
    %c0_i32_1 = arith.constant 0 : i32
    return %c0_i32, %c0_i32_0, %arg0 : i32, i32, i32
  }
  func.func @transform_2(%arg0: i32) -> (i32, i32) {
    %c0_i32 = arith.constant 0 : i32
    %c0_i32_0 = arith.constant 0 : i32
    return %c0_i32, %arg0 : i32, i32
  }
  func.func @transform_3(%arg0: i32) -> (i32, i32) {
    %c0_i32 = arith.constant 0 : i32
    %c0_i32_0 = arith.constant 0 : i32
    return %c0_i32, %arg0 : i32, i32
  }
  func.func @transform_4(%arg0: i32) -> (i32, i32) {
    %c0_i32 = arith.constant 0 : i32
    %c0_i32_0 = arith.constant 0 : i32
    return %c0_i32, %arg0 : i32, i32
  }
  func.func @transform_5(%arg0: i32) -> (i32, i32) {
    %c0_i32 = arith.constant 0 : i32
    %c0_i32_0 = arith.constant 0 : i32
    return %c0_i32, %arg0 : i32, i32
  }
}

</mosaic_0001>

<llo_original>
// kernel: conv_bn_add.1
$region0: #{conv_bn_add.1}
  #allocation0 [shape = 'u32[]', space=smem, size = 0x4, offset = 0x4, fixed_abs, tag = 'smem constant byte address 0x4 - core index']
  #allocation1 [shape = 'u32[144,128]{1,0:T(1,128)}', space=vmem, size = 0x12000, scoped, tag = 'internal scratch']
  %s0 = inlined_call_operand.vmem [shape: f32[272,256], index: 0, kind: input, shape index: {}]
  %s1 = inlined_call_operand.vmem [shape: bf16[9,256,256], index: 1, kind: input, shape index: {}]
  %s2 = inlined_call_operand.vmem [shape: f32[1,256], index: 2, kind: input, shape index: {}]
  %s3 = inlined_call_operand.vmem [shape: f32[1,256], index: 3, kind: input, shape index: {}]
  %s4 = inlined_call_operand.vmem [shape: f32[224,256], index: 4, kind: input, shape index: {}, may-alias: {4,5}]
  %s5 = inlined_call_operand.vmem [shape: f32[224,256], index: 5, kind: output, shape index: {}, may-alias: {4,5}]
  %s6 = sld [smem:[#allocation0]]
  $region166: #{conv_bn_add.1} parent=0
    _
  %s8 = ssub.s32 1, %s6
  %s9 = scalar_select 0, %s8, %s6
  $region1: #{conv_bn_add.1} parent=0
    #allocation2 [shape = 'u8[1179648]{0}', space=vmem, size = 0x120000, scoped, tag = 'input window, operand 1']
    #allocation3 [shape = 'u8[229376]{0}', space=vmem, size = 0x38000, scoped, tag = 'input window, operand 4']
    #allocation4 [shape = 'u8[229376]{0}', space=vmem, size = 0x38000, scoped, tag = 'output window, operand 0']
    loop: start=0, step=1, limit=4
    $region2: #{conv_bn_add.1} parent=1 // loop_pre_header
      _
    $region3: #{conv_bn_add.1} parent=1 // loop_header
      %s11 = sphi 0, %s15
      %p12 = scmp.ge.s32.totalorder %s11, 4
      %s19 = sphi 0, %s19
      %s21 = sphi 0, %s19
      %s22 = sphi 0, %s21
      %s36 = sphi 0, %s22
      %s42 = sphi 0, %s44
      %s45 = sphi 0, %s42
      %s46 = sphi 0, %s45
      %s62 = sphi 0, %s46
      %s68 = sphi 0, %s70
      %s71 = sphi 0, %s68
      %s72 = sphi 0, %s71
      %s88 = sphi 0, %s72
      %s94 = sphi 0, %s96
      %s97 = sphi 0, %s94
      %s98 = sphi 0, %s97
      %s114 = sphi 0, %s98
      %s120 = sphi 0, %s122
      %s123 = sphi 0, %s120
      %s124 = sphi 0, %s123
      %s140 = sphi 0, %s124
      %s146 = sphi 0, %s148
      %s149 = sphi 0, %s146
      %s150 = sphi 0, %s149
      %s166 = sphi 0, %s150
    $region4: #{conv_bn_add.1} parent=1 // loop_header_branch
      %14 = sbr.rel (%p12) target = $region8
    $region5: #{conv_bn_add.1} parent=1 // loop_body
      %s16 = ssub.s32 %s11, 1
      %s17 = ssub.s32 %s11, 2
      %s18 = sadd.s32 %s11, 1
      %s20 = sadd.s32 %s19, 1
      %p23 = scmp.eq.s32.totalorder %s11, 1
      %p24 = scmp.ne.s32.totalorder %s19, %s21
      %p25 = scmp.eq.s32.totalorder %s11, 0
      %p26 = por %p24, %p25
      %p27 = scmp.ne.s32.totalorder %s19, %s21
      %p28 = scmp.eq.s32.totalorder %s16, 1
      %p29 = por %p27, %p28
      %p30 = scmp.ne.s32.totalorder %s21, %s22
      %p31 = scmp.eq.s32.totalorder %s16, 0
      %p32 = por %p30, %p31
      %p33 = scmp.ne.s32.totalorder %s21, %s22
      %p34 = scmp.eq.s32.totalorder %s17, 1
      %p35 = por %p33, %p34
      %p37 = scmp.ne.s32.totalorder %s22, %s36
      %p38 = scmp.eq.s32.totalorder %s17, 0
      %p39 = por %p37, %p38
      %s40 = ssub.s32 %s11, %s18
      %p41 = scmp.eq.s32.totalorder %s40, 0
      %s43 = sadd.s32 %s42, 1
      %s44 = scalar_select %p41, %s42, %s43
      %p47 = pneg %p41
      %p48 = scmp.eq.s32.totalorder %s11, 1
      %p49 = por %p47, %p48
      %p50 = scmp.ne.s32.totalorder %s42, %s45
      %p51 = scmp.eq.s32.totalorder %s11, 0
      %p52 = por %p50, %p51
      %p53 = scmp.ne.s32.totalorder %s42, %s45
      %p54 = scmp.eq.s32.totalorder %s16, 1
      %p55 = por %p53, %p54
      %p56 = scmp.ne.s32.totalorder %s45, %s46
      %p57 = scmp.eq.s32.totalorder %s16, 0
      %p58 = por %p56, %p57
      %p59 = scmp.ne.s32.totalorder %s45, %s46
      %p60 = scmp.eq.s32.totalorder %s17, 1
      %p61 = por %p59, %p60
      %p63 = scmp.ne.s32.totalorder %s46, %s62
      %p64 = scmp.eq.s32.totalorder %s17, 0
      %p65 = por %p63, %p64
      %s66 = ssub.s32 %s11, %s18
      %p67 = scmp.eq.s32.totalorder %s66, 0
      %s69 = sadd.s32 %s68, 1
      %s70 = scalar_select %p67, %s68, %s69
      %p73 = pneg %p67
      %p74 = scmp.eq.s32.totalorder %s11, 1
      %p75 = por %p73, %p74
      %p76 = scmp.ne.s32.totalorder %s68, %s71
      %p77 = scmp.eq.s32.totalorder %s11, 0
      %p78 = por %p76, %p77
      %p79 = scmp.ne.s32.totalorder %s68, %s71
      %p80 = scmp.eq.s32.totalorder %s16, 1
      %p81 = por %p79, %p80
      %p82 = scmp.ne.s32.totalorder %s71, %s72
      %p83 = scmp.eq.s32.totalorder %s16, 0
      %p84 = por %p82, %p83
      %p85 = scmp.ne.s32.totalorder %s71, %s72
      %p86 = scmp.eq.s32.totalorder %s17, 1
      %p87 = por %p85, %p86
      %p89 = scmp.ne.s32.totalorder %s72, %s88
      %p90 = scmp.eq.s32.totalorder %s17, 0
      %p91 = por %p89, %p90
      %s92 = ssub.s32 %s11, %s18
      %p93 = scmp.eq.s32.totalorder %s92, 0
      %s95 = sadd.s32 %s94, 1
      %s96 = scalar_select %p93, %s94, %s95
      %p99 = pneg %p93
      %p100 = scmp.eq.s32.totalorder %s11, 1
      %p101 = por %p99, %p100
      %p102 = scmp.ne.s32.totalorder %s94, %s97
      %p103 = scmp.eq.s32.totalorder %s11, 0
      %p104 = por %p102, %p103
      %p105 = scmp.ne.s32.totalorder %s94, %s97
      %p106 = scmp.eq.s32.totalorder %s16, 1
      %p107 = por %p105, %p106
      %p108 = scmp.ne.s32.totalorder %s97, %s98
      %p109 = scmp.eq.s32.totalorder %s16, 0
      %p110 = por %p108, %p109
      %p111 = scmp.ne.s32.totalorder %s97, %s98
      %p112 = scmp.eq.s32.totalorder %s17, 1
      %p113 = por %p111, %p112
      %p115 = scmp.ne.s32.totalorder %s98, %s114
      %p116 = scmp.eq.s32.totalorder %s17, 0
      %p117 = por %p115, %p116
      %s118 = ssub.s32 %s11, %s18
      %p119 = scmp.eq.s32.totalorder %s118, 0
      %s121 = sadd.s32 %s120, 1
      %s122 = scalar_select %p119, %s120, %s121
      %p125 = pneg %p119
      %p126 = scmp.eq.s32.totalorder %s11, 1
      %p127 = por %p125, %p126
      %p128 = scmp.ne.s32.totalorder %s120, %s123
      %p129 = scmp.eq.s32.totalorder %s11, 0
      %p130 = por %p128, %p129
      %p131 = scmp.ne.s32.totalorder %s120, %s123
      %p132 = scmp.eq.s32.totalorder %s16, 1
      %p133 = por %p131, %p132
      %p134 = scmp.ne.s32.totalorder %s123, %s124
      %p135 = scmp.eq.s32.totalorder %s16, 0
      %p136 = por %p134, %p135
      %p137 = scmp.ne.s32.totalorder %s123, %s124
      %p138 = scmp.eq.s32.totalorder %s17, 1
      %p139 = por %p137, %p138
      %p141 = scmp.ne.s32.totalorder %s124, %s140
      %p142 = scmp.eq.s32.totalorder %s17, 0
      %p143 = por %p141, %p142
      %s144 = ssub.s32 %s11, %s18
      %p145 = scmp.eq.s32.totalorder %s144, 0
      %s147 = sadd.s32 %s146, 1
      %s148 = scalar_select %p145, %s146, %s147
      %p151 = pneg %p145
      %p152 = scmp.eq.s32.totalorder %s11, 1
      %p153 = por %p151, %p152
      %p154 = scmp.ne.s32.totalorder %s146, %s149
      %p155 = scmp.eq.s32.totalorder %s11, 0
      %p156 = por %p154, %p155
      %p157 = scmp.ne.s32.totalorder %s146, %s149
      %p158 = scmp.eq.s32.totalorder %s16, 1
      %p159 = por %p157, %p158
      %p160 = scmp.ne.s32.totalorder %s149, %s150
      %p161 = scmp.eq.s32.totalorder %s16, 0
      %p162 = por %p160, %p161
      %p163 = scmp.ne.s32.totalorder %s149, %s150
      %p164 = scmp.eq.s32.totalorder %s17, 1
      %p165 = por %p163, %p164
      %p167 = scmp.ne.s32.totalorder %s150, %s166
      %p168 = scmp.eq.s32.totalorder %s17, 0
      %p169 = por %p167, %p168
      %p170 = scmp.le.s32.totalorder 1, %s11
      %p171 = scmp.lt.s32.totalorder %s11, 3
      %p172 = pnand %p170, %p171
      %p173 = pneg %p172
      // Predicated region
      $region9: #{conv_bn_add.1} parent=5 // pred_check
        _
      $region10: #{conv_bn_add.1} parent=5 // pred_check_branch
        %175 = sbr.rel (%p172) target = $region12
      $region11: #{conv_bn_add.1} parent=5 // pred_region
        %s176 = ssub.s32 %s11, 1
        // Predicated region
        $region13: #{conv_bn_add.1} parent=11 // pred_check
          %p177 = pneg %p32
        $region14: #{conv_bn_add.1} parent=11 // pred_check_branch
          %179 = sbr.rel (%p177) target = $region16
        $region15: #{conv_bn_add.1} parent=11 // pred_region
          _
        $region16: #{conv_bn_add.1} parent=11 // pred_fallthru
          _
      $region12: #{conv_bn_add.1} parent=5 // pred_fallthru
        _
      %p180 = scmp.lt.s32.totalorder %s11, 2
      // Predicated region
      $region17: #{conv_bn_add.1} parent=5 // pred_check
        %p181 = pneg %p180
      $region18: #{conv_bn_add.1} parent=5 // pred_check_branch
        %183 = sbr.rel (%p181) target = $region20
      $region19: #{conv_bn_add.1} parent=5 // pred_region
        // Predicated region
        $region21: #{conv_bn_add.1} parent=19 // pred_check
          %p184 = pneg %p52
        $region22: #{conv_bn_add.1} parent=19 // pred_check_branch
          %186 = sbr.rel (%p184) target = $region24
        $region23: #{conv_bn_add.1} parent=19 // pred_region
          %s187 = sand.u32 %s42, 1
          %s188 = sand.u32 %s42, 1
          %s189 = smul.addr %s188, 1152
          %s190 = scalar_lea.vmem [#allocation2], %s189
          %s191 = smul.addr %s11, 4
          %s192 = scalar_lea.vmem %s1, %s191
          // Predicated region
          $region25: #{conv_bn_add.1} parent=23 // pred_check
            _
          $region26: #{conv_bn_add.1} parent=23 // pred_check_branch
            %194 = sbr.rel (0) target = $region28
          $region27: #{conv_bn_add.1} parent=23 // pred_region
            // Predicated region
            $region29: #{conv_bn_add.1} parent=27 // pred_check
              _
            $region30: #{conv_bn_add.1} parent=27 // pred_check_branch
              %196 = sbr.rel target = $region32
            $region31: #{conv_bn_add.1} parent=27 // pred_region
              // Predicated region
              $region44: #{conv_bn_add.1} parent=31 // pred_check
                _
              $region45: #{conv_bn_add.1} parent=31 // pred_check_branch
                %785 = sbr.rel (0) target = $region47
              $region46: #{conv_bn_add.1} parent=31 // pred_region
                loop: start=0, step=1, limit=1
                $region48: #{conv_bn_add.1} parent=46 // loop_pre_header
                  _
                $region49: #{conv_bn_add.1} parent=46 // loop_header
                  %s787 = sphi 0, %s791
                  %p788 = scmp.ge.s32.totalorder %s787, 1
                  %s792 = sphi %s192, %s192
                  %s793 = sphi %s190, %s190
                $region50: #{conv_bn_add.1} parent=46 // loop_header_branch
                  %790 = sbr.rel (%p788) target = $region54
                $region51: #{conv_bn_add.1} parent=46 // loop_body
                  _
                $region52: #{conv_bn_add.1} parent=46 // loop_footer
                  %s791 = sadd.s32 1, %s787
                $region53: #{conv_bn_add.1} parent=46 // loop_footer_branch
                  %786 = sbr.rel target = $region49
                $region54: #{conv_bn_add.1} parent=46 // loop_exit
                  _
                loop: start=0, step=1, limit=1
                $region55: #{conv_bn_add.1} parent=46 // loop_pre_header
                  _
                $region56: #{conv_bn_add.1} parent=46 // loop_header
                  %s796 = sphi 0, %s800
                  %p797 = scmp.ge.s32.totalorder %s796, 1
                  %s801 = sphi %s192, %s192
                  %s802 = sphi %s190, %s190
                $region57: #{conv_bn_add.1} parent=46 // loop_header_branch
                  %799 = sbr.rel (%p797) target = $region61
                $region58: #{conv_bn_add.1} parent=46 // loop_body
                  %v803 = vld [vmem:[%s801] sm:$0xf]
                  %804 = vst [vmem:[%s802] sm:$0xf] %v803
                  %v805 = vld [vmem:[%s801 + $0x8] sm:$0xf]
                  %806 = vst [vmem:[%s802 + $0x4] sm:$0xf] %v805
                  %v807 = vld [vmem:[%s801 + $0x10] sm:$0xf]
                  %808 = vst [vmem:[%s802 + $0x8] sm:$0xf] %v807
                  %v809 = vld [vmem:[%s801 + $0x18] sm:$0xf]
                  %810 = vst [vmem:[%s802 + $0xc] sm:$0xf] %v809
                  %v811 = vld [vmem:[%s801 + $0x20] sm:$0xf]
                  %812 = vst [vmem:[%s802 + $0x10] sm:$0xf] %v811
                  %v813 = vld [vmem:[%s801 + $0x28] sm:$0xf]
                  %814 = vst [vmem:[%s802 + $0x14] sm:$0xf] %v813
                  %v815 = vld [vmem:[%s801 + $0x30] sm:$0xf]
                  %816 = vst [vmem:[%s802 + $0x18] sm:$0xf] %v815
                  %v817 = vld [vmem:[%s801 + $0x38] sm:$0xf]
                  %818 = vst [vmem:[%s802 + $0x1c] sm:$0xf] %v817
                  %v819 = vld [vmem:[%s801 + $0x40] sm:$0xf]
                  %820 = vst [vmem:[%s802 + $0x20] sm:$0xf] %v819
                  %v821 = vld [vmem:[%s801 + $0x48] sm:$0xf]
                  %822 = vst [vmem:[%s802 + $0x24] sm:$0xf] %v821
                  %v823 = vld [vmem:[%s801 + $0x50] sm:$0xf]
                  %824 = vst [vmem:[%s802 + $0x28] sm:$0xf] %v823
                  %v825 = vld [vmem:[%s801 + $0x58] sm:$0xf]
                  %826 = vst [vmem:[%s802 + $0x2c] sm:$0xf] %v825
                  %v827 = vld [vmem:[%s801 + $0x60] sm:$0xf]
                  %828 = vst [vmem:[%s802 + $0x30] sm:$0xf] %v827
                  %v829 = vld [vmem:[%s801 + $0x68] sm:$0xf]
                  %830 = vst [vmem:[%s802 + $0x34] sm:$0xf] %v829
                  %v831 = vld [vmem:[%s801 + $0x70] sm:$0xf]
                  %832 = vst [vmem:[%s802 + $0x38] sm:$0xf] %v831
                  %v833 = vld [vmem:[%s801 + $0x78] sm:$0xf]
                  %834 = vst [vmem:[%s802 + $0x3c] sm:$0xf] %v833
                  %v835 = vld [vmem:[%s801 + $0x80] sm:$0xf]
                  %836 = vst [vmem:[%s802 + $0x40] sm:$0xf] %v835
                  %v837 = vld [vmem:[%s801 + $0x88] sm:$0xf]
                  %838 = vst [vmem:[%s802 + $0x44] sm:$0xf] %v837
                  %v839 = vld [vmem:[%s801 + $0x90] sm:$0xf]
                  %840 = vst [vmem:[%s802 + $0x48] sm:$0xf] %v839
                  %v841 = vld [vmem:[%s801 + $0x98] sm:$0xf]
                  %842 = vst [vmem:[%s802 + $0x4c] sm:$0xf] %v841
                  %v843 = vld [vmem:[%s801 + $0xa0] sm:$0xf]
                  %844 = vst [vmem:[%s802 + $0x50] sm:$0xf] %v843
                  %v845 = vld [vmem:[%s801 + $0xa8] sm:$0xf]
                  %846 = vst [vmem:[%s802 + $0x54] sm:$0xf] %v845
                  %v847 = vld [vmem:[%s801 + $0xb0] sm:$0xf]
                  %848 = vst [vmem:[%s802 + $0x58] sm:$0xf] %v847
                  %v849 = vld [vmem:[%s801 + $0xb8] sm:$0xf]
                  %850 = vst [vmem:[%s802 + $0x5c] sm:$0xf] %v849
                  %v851 = vld [vmem:[%s801 + $0xc0] sm:$0xf]
                  %852 = vst [vmem:[%s802 + $0x60] sm:$0xf] %v851
                  %v853 = vld [vmem:[%s801 + $0xc8] sm:$0xf]
                  %854 = vst [vmem:[%s802 + $0x64] sm:$0xf] %v853
                  %v855 = vld [vmem:[%s801 + $0xd0] sm:$0xf]
                  %856 = vst [vmem:[%s802 + $0x68] sm:$0xf] %v855
                  %v857 = vld [vmem:[%s801 + $0xd8] sm:$0xf]
                  %858 = vst [vmem:[%s802 + $0x6c] sm:$0xf] %v857
                  %v859 = vld [vmem:[%s801 + $0xe0] sm:$0xf]
                  %860 = vst [vmem:[%s802 + $0x70] sm:$0xf] %v859
                  %v861 = vld [vmem:[%s801 + $0xe8] sm:$0xf]
                  %862 = vst [vmem:[%s802 + $0x74] sm:$0xf] %v861
                  %v863 = vld [vmem:[%s801 + $0xf0] sm:$0xf]
                  %864 = vst [vmem:[%s802 + $0x78] sm:$0xf] %v863
                  %v865 = vld [vmem:[%s801 + $0xf8] sm:$0xf]
                  %866 = vst [vmem:[%s802 + $0x7c] sm:$0xf] %v865
                  %v867 = vld [vmem:[%s801 + $0x100] sm:$0xf]
                  %868 = vst [vmem:[%s802 + $0x80] sm:$0xf] %v867
                  %v869 = vld [vmem:[%s801 + $0x108] sm:$0xf]
                  %870 = vst [vmem:[%s802 + $0x84] sm:$0xf] %v869
                  %v871 = vld [vmem:[%s801 + $0x110] sm:$0xf]
                  %872 = vst [vmem:[%s802 + $0x88] sm:$0xf] %v871
                  %v873 = vld [vmem:[%s801 + $0x118] sm:$0xf]
                  %874 = vst [vmem:[%s802 + $0x8c] sm:$0xf] %v873
                  %v875 = vld [vmem:[%s801 + $0x120] sm:$0xf]
                  %876 = vst [vmem:[%s802 + $0x90] sm:$0xf] %v875
                  %v877 = vld [vmem:[%s801 + $0x128] sm:$0xf]
                  %878 = vst [vmem:[%s802 + $0x94] sm:$0xf] %v877
                  %v879 = vld [vmem:[%s801 + $0x130] sm:$0xf]
                  %880 = vst [vmem:[%s802 + $0x98] sm:$0xf] %v879
                  %v881 = vld [vmem:[%s801 + $0x138] sm:$0xf]
                  %882 = vst [vmem:[%s802 + $0x9c] sm:$0xf] %v881
                  %v883 = vld [vmem:[%s801 + $0x140] sm:$0xf]
                  %884 = vst [vmem:[%s802 + $0xa0] sm:$0xf] %v883
                  %v885 = vld [vmem:[%s801 + $0x148] sm:$0xf]
                  %886 = vst [vmem:[%s802 + $0xa4] sm:$0xf] %v885
                  %v887 = vld [vmem:[%s801 + $0x150] sm:$0xf]
                  %888 = vst [vmem:[%s802 + $0xa8] sm:$0xf] %v887
                  %v889 = vld [vmem:[%s801 + $0x158] sm:$0xf]
                  %890 = vst [vmem:[%s802 + $0xac] sm:$0xf] %v889
                  %v891 = vld [vmem:[%s801 + $0x160] sm:$0xf]
                  %892 = vst [vmem:[%s802 + $0xb0] sm:$0xf] %v891
                  %v893 = vld [vmem:[%s801 + $0x168] sm:$0xf]
                  %894 = vst [vmem:[%s802 + $0xb4] sm:$0xf] %v893
                  %v895 = vld [vmem:[%s801 + $0x170] sm:$0xf]
                  %896 = vst [vmem:[%s802 + $0xb8] sm:$0xf] %v895
                  %v897 = vld [vmem:[%s801 + $0x178] sm:$0xf]
                  %898 = vst [vmem:[%s802 + $0xbc] sm:$0xf] %v897
                  %v899 = vld [vmem:[%s801 + $0x180] sm:$0xf]
                  %900 = vst [vmem:[%s802 + $0xc0] sm:$0xf] %v899
                  %v901 = vld [vmem:[%s801 + $0x188] sm:$0xf]
                  %902 = vst [vmem:[%s802 + $0xc4] sm:$0xf] %v901
                  %v903 = vld [vmem:[%s801 + $0x190] sm:$0xf]
                  %904 = vst [vmem:[%s802 + $0xc8] sm:$0xf] %v903
                  %v905 = vld [vmem:[%s801 + $0x198] sm:$0xf]
                  %906 = vst [vmem:[%s802 + $0xcc] sm:$0xf] %v905
                  %v907 = vld [vmem:[%s801 + $0x1a0] sm:$0xf]
                  %908 = vst [vmem:[%s802 + $0xd0] sm:$0xf] %v907
                  %v909 = vld [vmem:[%s801 + $0x1a8] sm:$0xf]
                  %910 = vst [vmem:[%s802 + $0xd4] sm:$0xf] %v909
                  %v911 = vld [vmem:[%s801 + $0x1b0] sm:$0xf]
                  %912 = vst [vmem:[%s802 + $0xd8] sm:$0xf] %v911
                  %v913 = vld [vmem:[%s801 + $0x1b8] sm:$0xf]
                  %914 = vst [vmem:[%s802 + $0xdc] sm:$0xf] %v913
                  %v915 = vld [vmem:[%s801 + $0x1c0] sm:$0xf]
                  %916 = vst [vmem:[%s802 + $0xe0] sm:$0xf] %v915
                  %v917 = vld [vmem:[%s801 + $0x1c8] sm:$0xf]
                  %918 = vst [vmem:[%s802 + $0xe4] sm:$0xf] %v917
                  %v919 = vld [vmem:[%s801 + $0x1d0] sm:$0xf]
                  %920 = vst [vmem:[%s802 + $0xe8] sm:$0xf] %v919
                  %v921 = vld [vmem:[%s801 + $0x1d8] sm:$0xf]
                  %922 = vst [vmem:[%s802 + $0xec] sm:$0xf] %v921
                  %v923 = vld [vmem:[%s801 + $0x1e0] sm:$0xf]
                  %924 = vst [vmem:[%s802 + $0xf0] sm:$0xf] %v923
                  %v925 = vld [vmem:[%s801 + $0x1e8] sm:$0xf]
                  %926 = vst [vmem:[%s802 + $0xf4] sm:$0xf] %v925
                  %v927 = vld [vmem:[%s801 + $0x1f0] sm:$0xf]
                  %928 = vst [vmem:[%s802 + $0xf8] sm:$0xf] %v927
                  %v929 = vld [vmem:[%s801 + $0x1f8] sm:$0xf]
                  %930 = vst [vmem:[%s802 + $0xfc] sm:$0xf] %v929
                  %v931 = vld [vmem:[%s801 + $0x200] sm:$0xf]
                  %932 = vst [vmem:[%s802 + $0x100] sm:$0xf] %v931
                  %v933 = vld [vmem:[%s801 + $0x208] sm:$0xf]
                  %934 = vst [vmem:[%s802 + $0x104] sm:$0xf] %v933
                  %v935 = vld [vmem:[%s801 + $0x210] sm:$0xf]
                  %936 = vst [vmem:[%s802 + $0x108] sm:$0xf] %v935
                  %v937 = vld [vmem:[%s801 + $0x218] sm:$0xf]
                  %938 = vst [vmem:[%s802 + $0x10c] sm:$0xf] %v937
                  %v939 = vld [vmem:[%s801 + $0x220] sm:$0xf]
                  %940 = vst [vmem:[%s802 + $0x110] sm:$0xf] %v939
                  %v941 = vld [vmem:[%s801 + $0x228] sm:$0xf]
                  %942 = vst [vmem:[%s802 + $0x114] sm:$0xf] %v941
                  %v943 = vld [vmem:[%s801 + $0x230] sm:$0xf]
                  %944 = vst [vmem:[%s802 + $0x118] sm:$0xf] %v943
                  %v945 = vld [vmem:[%s801 + $0x238] sm:$0xf]
                  %946 = vst [vmem:[%s802 + $0x11c] sm:$0xf] %v945
                  %v947 = vld [vmem:[%s801 + $0x240] sm:$0xf]
                  %948 = vst [vmem:[%s802 + $0x120] sm:$0xf] %v947
                  %v949 = vld [vmem:[%s801 + $0x248] sm:$0xf]
                  %950 = vst [vmem:[%s802 + $0x124] sm:$0xf] %v949
                  %v951 = vld [vmem:[%s801 + $0x250] sm:$0xf]
                  %952 = vst [vmem:[%s802 + $0x128] sm:$0xf] %v951
                  %v953 = vld [vmem:[%s801 + $0x258] sm:$0xf]
                  %954 = vst [vmem:[%s802 + $0x12c] sm:$0xf] %v953
                  %v955 = vld [vmem:[%s801 + $0x260] sm:$0xf]
                  %956 = vst [vmem:[%s802 + $0x130] sm:$0xf] %v955
                  %v957 = vld [vmem:[%s801 + $0x268] sm:$0xf]
                  %958 = vst [vmem:[%s802 + $0x134] sm:$0xf] %v957
                  %v959 = vld [vmem:[%s801 + $0x270] sm:$0xf]
                  %960 = vst [vmem:[%s802 + $0x138] sm:$0xf] %v959
                  %v961 = vld [vmem:[%s801 + $0x278] sm:$0xf]
                  %962 = vst [vmem:[%s802 + $0x13c] sm:$0xf] %v961
                  %v963 = vld [vmem:[%s801 + $0x280] sm:$0xf]
                  %964 = vst [vmem:[%s802 + $0x140] sm:$0xf] %v963
                  %v965 = vld [vmem:[%s801 + $0x288] sm:$0xf]
                  %966 = vst [vmem:[%s802 + $0x144] sm:$0xf] %v965
                  %v967 = vld [vmem:[%s801 + $0x290] sm:$0xf]
                  %968 = vst [vmem:[%s802 + $0x148] sm:$0xf] %v967
                  %v969 = vld [vmem:[%s801 + $0x298] sm:$0xf]
                  %970 = vst [vmem:[%s802 + $0x14c] sm:$0xf] %v969
                  %v971 = vld [vmem:[%s801 + $0x2a0] sm:$0xf]
                  %972 = vst [vmem:[%s802 + $0x150] sm:$0xf] %v971
                  %v973 = vld [vmem:[%s801 + $0x2a8] sm:$0xf]
                  %974 = vst [vmem:[%s802 + $0x154] sm:$0xf] %v973
                  %v975 = vld [vmem:[%s801 + $0x2b0] sm:$0xf]
                  %976 = vst [vmem:[%s802 + $0x158] sm:$0xf] %v975
                  %v977 = vld [vmem:[%s801 + $0x2b8] sm:$0xf]
                  %978 = vst [vmem:[%s802 + $0x15c] sm:$0xf] %v977
                  %v979 = vld [vmem:[%s801 + $0x2c0] sm:$0xf]
                  %980 = vst [vmem:[%s802 + $0x160] sm:$0xf] %v979
                  %v981 = vld [vmem:[%s801 + $0x2c8] sm:$0xf]
                  %982 = vst [vmem:[%s802 + $0x164] sm:$0xf] %v981
                  %v983 = vld [vmem:[%s801 + $0x2d0] sm:$0xf]
                  %984 = vst [vmem:[%s802 + $0x168] sm:$0xf] %v983
                  %v985 = vld [vmem:[%s801 + $0x2d8] sm:$0xf]
                  %986 = vst [vmem:[%s802 + $0x16c] sm:$0xf] %v985
                  %v987 = vld [vmem:[%s801 + $0x2e0] sm:$0xf]
                  %988 = vst [vmem:[%s802 + $0x170] sm:$0xf] %v987
                  %v989 = vld [vmem:[%s801 + $0x2e8] sm:$0xf]
                  %990 = vst [vmem:[%s802 + $0x174] sm:$0xf] %v989
                  %v991 = vld [vmem:[%s801 + $0x2f0] sm:$0xf]
                  %992 = vst [vmem:[%s802 + $0x178] sm:$0xf] %v991
                  %v993 = vld [vmem:[%s801 + $0x2f8] sm:$0xf]
                  %994 = vst [vmem:[%s802 + $0x17c] sm:$0xf] %v993
                  %v995 = vld [vmem:[%s801 + $0x300] sm:$0xf]
                  %996 = vst [vmem:[%s802 + $0x180] sm:$0xf] %v995
                  %v997 = vld [vmem:[%s801 + $0x308] sm:$0xf]
                  %998 = vst [vmem:[%s802 + $0x184] sm:$0xf] %v997
                  %v999 = vld [vmem:[%s801 + $0x310] sm:$0xf]
                  %1000 = vst [vmem:[%s802 + $0x188] sm:$0xf] %v999
                  %v1001 = vld [vmem:[%s801 + $0x318] sm:$0xf]
                  %1002 = vst [vmem:[%s802 + $0x18c] sm:$0xf] %v1001
                  %v1003 = vld [vmem:[%s801 + $0x320] sm:$0xf]
                  %1004 = vst [vmem:[%s802 + $0x190] sm:$0xf] %v1003
                  %v1005 = vld [vmem:[%s801 + $0x328] sm:$0xf]
                  %1006 = vst [vmem:[%s802 + $0x194] sm:$0xf] %v1005
                  %v1007 = vld [vmem:[%s801 + $0x330] sm:$0xf]
                  %1008 = vst [vmem:[%s802 + $0x198] sm:$0xf] %v1007
                  %v1009 = vld [vmem:[%s801 + $0x338] sm:$0xf]
                  %1010 = vst [vmem:[%s802 + $0x19c] sm:$0xf] %v1009
                  %v1011 = vld [vmem:[%s801 + $0x340] sm:$0xf]
                  %1012 = vst [vmem:[%s802 + $0x1a0] sm:$0xf] %v1011
                  %v1013 = vld [vmem:[%s801 + $0x348] sm:$0xf]
                  %1014 = vst [vmem:[%s802 + $0x1a4] sm:$0xf] %v1013
                  %v1015 = vld [vmem:[%s801 + $0x350] sm:$0xf]
                  %1016 = vst [vmem:[%s802 + $0x1a8] sm:$0xf] %v1015
                  %v1017 = vld [vmem:[%s801 + $0x358] sm:$0xf]
                  %1018 = vst [vmem:[%s802 + $0x1ac] sm:$0xf] %v1017
                  %v1019 = vld [vmem:[%s801 + $0x360] sm:$0xf]
                  %1020 = vst [vmem:[%s802 + $0x1b0] sm:$0xf] %v1019
                  %v1021 = vld [vmem:[%s801 + $0x368] sm:$0xf]
                  %1022 = vst [vmem:[%s802 + $0x1b4] sm:$0xf] %v1021
                  %v1023 = vld [vmem:[%s801 + $0x370] sm:$0xf]
                  %1024 = vst [vmem:[%s802 + $0x1b8] sm:$0xf] %v1023
                  %v1025 = vld [vmem:[%s801 + $0x378] sm:$0xf]
                  %1026 = vst [vmem:[%s802 + $0x1bc] sm:$0xf] %v1025
                  %v1027 = vld [vmem:[%s801 + $0x380] sm:$0xf]
                  %1028 = vst [vmem:[%s802 + $0x1c0] sm:$0xf] %v1027
                  %v1029 = vld [vmem:[%s801 + $0x388] sm:$0xf]
                  %1030 = vst [vmem:[%s802 + $0x1c4] sm:$0xf] %v1029
                  %v1031 = vld [vmem:[%s801 + $0x390] sm:$0xf]
                  %1032 = vst [vmem:[%s802 + $0x1c8] sm:$0xf] %v1031
                  %v1033 = vld [vmem:[%s801 + $0x398] sm:$0xf]
                  %1034 = vst [vmem:[%s802 + $0x1cc] sm:$0xf] %v1033
                  %v1035 = vld [vmem:[%s801 + $0x3a0] sm:$0xf]
                  %1036 = vst [vmem:[%s802 + $0x1d0] sm:$0xf] %v1035
                  %v1037 = vld [vmem:[%s801 + $0x3a8] sm:$0xf]
                  %1038 = vst [vmem:[%s802 + $0x1d4] sm:$0xf] %v1037
                  %v1039 = vld [vmem:[%s801 + $0x3b0] sm:$0xf]
                  %1040 = vst [vmem:[%s802 + $0x1d8] sm:$0xf] %v1039
                  %v1041 = vld [vmem:[%s801 + $0x3b8] sm:$0xf]
                  %1042 = vst [vmem:[%s802 + $0x1dc] sm:$0xf] %v1041
                  %v1043 = vld [vmem:[%s801 + $0x3c0] sm:$0xf]
                  %1044 = vst [vmem:[%s802 + $0x1e0] sm:$0xf] %v1043
                  %v1045 = vld [vmem:[%s801 + $0x3c8] sm:$0xf]
                  %1046 = vst [vmem:[%s802 + $0x1e4] sm:$0xf] %v1045
                  %v1047 = vld [vmem:[%s801 + $0x3d0] sm:$0xf]
                  %1048 = vst [vmem:[%s802 + $0x1e8] sm:$0xf] %v1047
                  %v1049 = vld [vmem:[%s801 + $0x3d8] sm:$0xf]
                  %1050 = vst [vmem:[%s802 + $0x1ec] sm:$0xf] %v1049
                  %v1051 = vld [vmem:[%s801 + $0x3e0] sm:$0xf]
                  %1052 = vst [vmem:[%s802 + $0x1f0] sm:$0xf] %v1051
                  %v1053 = vld [vmem:[%s801 + $0x3e8] sm:$0xf]
                  %1054 = vst [vmem:[%s802 + $0x1f4] sm:$0xf] %v1053
                  %v1055 = vld [vmem:[%s801 + $0x3f0] sm:$0xf]
                  %1056 = vst [vmem:[%s802 + $0x1f8] sm:$0xf] %v1055
                  %v1057 = vld [vmem:[%s801 + $0x3f8] sm:$0xf]
                  %1058 = vst [vmem:[%s802 + $0x1fc] sm:$0xf] %v1057
                  %v1059 = vld [vmem:[%s801 + $0x400] sm:$0xf]
                  %1060 = vst [vmem:[%s802 + $0x200] sm:$0xf] %v1059
                  %v1061 = vld [vmem:[%s801 + $0x408] sm:$0xf]
                  %1062 = vst [vmem:[%s802 + $0x204] sm:$0xf] %v1061
                  %v1063 = vld [vmem:[%s801 + $0x410] sm:$0xf]
                  %1064 = vst [vmem:[%s802 + $0x208] sm:$0xf] %v1063
                  %v1065 = vld [vmem:[%s801 + $0x418] sm:$0xf]
                  %1066 = vst [vmem:[%s802 + $0x20c] sm:$0xf] %v1065
                  %v1067 = vld [vmem:[%s801 + $0x420] sm:$0xf]
                  %1068 = vst [vmem:[%s802 + $0x210] sm:$0xf] %v1067
                  %v1069 = vld [vmem:[%s801 + $0x428] sm:$0xf]
                  %1070 = vst [vmem:[%s802 + $0x214] sm:$0xf] %v1069
                  %v1071 = vld [vmem:[%s801 + $0x430] sm:$0xf]
                  %1072 = vst [vmem:[%s802 + $0x218] sm:$0xf] %v1071
                  %v1073 = vld [vmem:[%s801 + $0x438] sm:$0xf]
                  %1074 = vst [vmem:[%s802 + $0x21c] sm:$0xf] %v1073
                  %v1075 = vld [vmem:[%s801 + $0x440] sm:$0xf]
                  %1076 = vst [vmem:[%s802 + $0x220] sm:$0xf] %v1075
                  %v1077 = vld [vmem:[%s801 + $0x448] sm:$0xf]
                  %1078 = vst [vmem:[%s802 + $0x224] sm:$0xf] %v1077
                  %v1079 = vld [vmem:[%s801 + $0x450] sm:$0xf]
                  %1080 = vst [vmem:[%s802 + $0x228] sm:$0xf] %v1079
                  %v1081 = vld [vmem:[%s801 + $0x458] sm:$0xf]
                  %1082 = vst [vmem:[%s802 + $0x22c] sm:$0xf] %v1081
                  %v1083 = vld [vmem:[%s801 + $0x460] sm:$0xf]
                  %1084 = vst [vmem:[%s802 + $0x230] sm:$0xf] %v1083
                  %v1085 = vld [vmem:[%s801 + $0x468] sm:$0xf]
                  %1086 = vst [vmem:[%s802 + $0x234] sm:$0xf] %v1085
                  %v1087 = vld [vmem:[%s801 + $0x470] sm:$0xf]
                  %1088 = vst [vmem:[%s802 + $0x238] sm:$0xf] %v1087
                  %v1089 = vld [vmem:[%s801 + $0x478] sm:$0xf]
                  %1090 = vst [vmem:[%s802 + $0x23c] sm:$0xf] %v1089
                  %v1091 = vld [vmem:[%s801 + $0x480] sm:$0xf]
                  %1092 = vst [vmem:[%s802 + $0x240] sm:$0xf] %v1091
                  %v1093 = vld [vmem:[%s801 + $0x488] sm:$0xf]
                  %1094 = vst [vmem:[%s802 + $0x244] sm:$0xf] %v1093
                  %v1095 = vld [vmem:[%s801 + $0x490] sm:$0xf]
                  %1096 = vst [vmem:[%s802 + $0x248] sm:$0xf] %v1095
                  %v1097 = vld [vmem:[%s801 + $0x498] sm:$0xf]
                  %1098 = vst [vmem:[%s802 + $0x24c] sm:$0xf] %v1097
                  %v1099 = vld [vmem:[%s801 + $0x4a0] sm:$0xf]
                  %1100 = vst [vmem:[%s802 + $0x250] sm:$0xf] %v1099
                  %v1101 = vld [vmem:[%s801 + $0x4a8] sm:$0xf]
                  %1102 = vst [vmem:[%s802 + $0x254] sm:$0xf] %v1101
                  %v1103 = vld [vmem:[%s801 + $0x4b0] sm:$0xf]
                  %1104 = vst [vmem:[%s802 + $0x258] sm:$0xf] %v1103
                  %v1105 = vld [vmem:[%s801 + $0x4b8] sm:$0xf]
                  %1106 = vst [vmem:[%s802 + $0x25c] sm:$0xf] %v1105
                  %v1107 = vld [vmem:[%s801 + $0x4c0] sm:$0xf]
                  %1108 = vst [vmem:[%s802 + $0x260] sm:$0xf] %v1107
                  %v1109 = vld [vmem:[%s801 + $0x4c8] sm:$0xf]
                  %1110 = vst [vmem:[%s802 + $0x264] sm:$0xf] %v1109
                  %v1111 = vld [vmem:[%s801 + $0x4d0] sm:$0xf]
                  %1112 = vst [vmem:[%s802 + $0x268] sm:$0xf] %v1111
                  %v1113 = vld [vmem:[%s801 + $0x4d8] sm:$0xf]
                  %1114 = vst [vmem:[%s802 + $0x26c] sm:$0xf] %v1113
                  %v1115 = vld [vmem:[%s801 + $0x4e0] sm:$0xf]
                  %1116 = vst [vmem:[%s802 + $0x270] sm:$0xf] %v1115
                  %v1117 = vld [vmem:[%s801 + $0x4e8] sm:$0xf]
                  %1118 = vst [vmem:[%s802 + $0x274] sm:$0xf] %v1117
                  %v1119 = vld [vmem:[%s801 + $0x4f0] sm:$0xf]
                  %1120 = vst [vmem:[%s802 + $0x278] sm:$0xf] %v1119
                  %v1121 = vld [vmem:[%s801 + $0x4f8] sm:$0xf]
                  %1122 = vst [vmem:[%s802 + $0x27c] sm:$0xf] %v1121
                  %v1123 = vld [vmem:[%s801 + $0x500] sm:$0xf]
                  %1124 = vst [vmem:[%s802 + $0x280] sm:$0xf] %v1123
                  %v1125 = vld [vmem:[%s801 + $0x508] sm:$0xf]
                  %1126 = vst [vmem:[%s802 + $0x284] sm:$0xf] %v1125
                  %v1127 = vld [vmem:[%s801 + $0x510] sm:$0xf]
                  %1128 = vst [vmem:[%s802 + $0x288] sm:$0xf] %v1127
                  %v1129 = vld [vmem:[%s801 + $0x518] sm:$0xf]
                  %1130 = vst [vmem:[%s802 + $0x28c] sm:$0xf] %v1129
                  %v1131 = vld [vmem:[%s801 + $0x520] sm:$0xf]
                  %1132 = vst [vmem:[%s802 + $0x290] sm:$0xf] %v1131
                  %v1133 = vld [vmem:[%s801 + $0x528] sm:$0xf]
                  %1134 = vst [vmem:[%s802 + $0x294] sm:$0xf] %v1133
                  %v1135 = vld [vmem:[%s801 + $0x530] sm:$0xf]
                  %1136 = vst [vmem:[%s802 + $0x298] sm:$0xf] %v1135
                  %v1137 = vld [vmem:[%s801 + $0x538] sm:$0xf]
                  %1138 = vst [vmem:[%s802 + $0x29c] sm:$0xf] %v1137
                  %v1139 = vld [vmem:[%s801 + $0x540] sm:$0xf]
                  %1140 = vst [vmem:[%s802 + $0x2a0] sm:$0xf] %v1139
                  %v1141 = vld [vmem:[%s801 + $0x548] sm:$0xf]
                  %1142 = vst [vmem:[%s802 + $0x2a4] sm:$0xf] %v1141
                  %v1143 = vld [vmem:[%s801 + $0x550] sm:$0xf]
                  %1144 = vst [vmem:[%s802 + $0x2a8] sm:$0xf] %v1143
                  %v1145 = vld [vmem:[%s801 + $0x558] sm:$0xf]
                  %1146 = vst [vmem:[%s802 + $0x2ac] sm:$0xf] %v1145
                  %v1147 = vld [vmem:[%s801 + $0x560] sm:$0xf]
                  %1148 = vst [vmem:[%s802 + $0x2b0] sm:$0xf] %v1147
                  %v1149 = vld [vmem:[%s801 + $0x568] sm:$0xf]
                  %1150 = vst [vmem:[%s802 + $0x2b4] sm:$0xf] %v1149
                  %v1151 = vld [vmem:[%s801 + $0x570] sm:$0xf]
                  %1152 = vst [vmem:[%s802 + $0x2b8] sm:$0xf] %v1151
                  %v1153 = vld [vmem:[%s801 + $0x578] sm:$0xf]
                  %1154 = vst [vmem:[%s802 + $0x2bc] sm:$0xf] %v1153
                  %v1155 = vld [vmem:[%s801 + $0x580] sm:$0xf]
                  %1156 = vst [vmem:[%s802 + $0x2c0] sm:$0xf] %v1155
                  %v1157 = vld [vmem:[%s801 + $0x588] sm:$0xf]
                  %1158 = vst [vmem:[%s802 + $0x2c4] sm:$0xf] %v1157
                  %v1159 = vld [vmem:[%s801 + $0x590] sm:$0xf]
                  %1160 = vst [vmem:[%s802 + $0x2c8] sm:$0xf] %v1159
                  %v1161 = vld [vmem:[%s801 + $0x598] sm:$0xf]
                  %1162 = vst [vmem:[%s802 + $0x2cc] sm:$0xf] %v1161
                  %v1163 = vld [vmem:[%s801 + $0x5a0] sm:$0xf]
                  %1164 = vst [vmem:[%s802 + $0x2d0] sm:$0xf] %v1163
                  %v1165 = vld [vmem:[%s801 + $0x5a8] sm:$0xf]
                  %1166 = vst [vmem:[%s802 + $0x2d4] sm:$0xf] %v1165
                  %v1167 = vld [vmem:[%s801 + $0x5b0] sm:$0xf]
                  %1168 = vst [vmem:[%s802 + $0x2d8] sm:$0xf] %v1167
                  %v1169 = vld [vmem:[%s801 + $0x5b8] sm:$0xf]
                  %1170 = vst [vmem:[%s802 + $0x2dc] sm:$0xf] %v1169
                  %v1171 = vld [vmem:[%s801 + $0x5c0] sm:$0xf]
                  %1172 = vst [vmem:[%s802 + $0x2e0] sm:$0xf] %v1171
                  %v1173 = vld [vmem:[%s801 + $0x5c8] sm:$0xf]
                  %1174 = vst [vmem:[%s802 + $0x2e4] sm:$0xf] %v1173
                  %v1175 = vld [vmem:[%s801 + $0x5d0] sm:$0xf]
                  %1176 = vst [vmem:[%s802 + $0x2e8] sm:$0xf] %v1175
                  %v1177 = vld [vmem:[%s801 + $0x5d8] sm:$0xf]
                  %1178 = vst [vmem:[%s802 + $0x2ec] sm:$0xf] %v1177
                  %v1179 = vld [vmem:[%s801 + $0x5e0] sm:$0xf]
                  %1180 = vst [vmem:[%s802 + $0x2f0] sm:$0xf] %v1179
                  %v1181 = vld [vmem:[%s801 + $0x5e8] sm:$0xf]
                  %1182 = vst [vmem:[%s802 + $0x2f4] sm:$0xf] %v1181
                  %v1183 = vld [vmem:[%s801 + $0x5f0] sm:$0xf]
                  %1184 = vst [vmem:[%s802 + $0x2f8] sm:$0xf] %v1183
                  %v1185 = vld [vmem:[%s801 + $0x5f8] sm:$0xf]
                  %1186 = vst [vmem:[%s802 + $0x2fc] sm:$0xf] %v1185
                  %v1187 = vld [vmem:[%s801 + $0x600] sm:$0xf]
                  %1188 = vst [vmem:[%s802 + $0x300] sm:$0xf] %v1187
                  %v1189 = vld [vmem:[%s801 + $0x608] sm:$0xf]
                  %1190 = vst [vmem:[%s802 + $0x304] sm:$0xf] %v1189
                  %v1191 = vld [vmem:[%s801 + $0x610] sm:$0xf]
                  %1192 = vst [vmem:[%s802 + $0x308] sm:$0xf] %v1191
                  %v1193 = vld [vmem:[%s801 + $0x618] sm:$0xf]
                  %1194 = vst [vmem:[%s802 + $0x30c] sm:$0xf] %v1193
                  %v1195 = vld [vmem:[%s801 + $0x620] sm:$0xf]
                  %1196 = vst [vmem:[%s802 + $0x310] sm:$0xf] %v1195
                  %v1197 = vld [vmem:[%s801 + $0x628] sm:$0xf]
                  %1198 = vst [vmem:[%s802 + $0x314] sm:$0xf] %v1197
                  %v1199 = vld [vmem:[%s801 + $0x630] sm:$0xf]
                  %1200 = vst [vmem:[%s802 + $0x318] sm:$0xf] %v1199
                  %v1201 = vld [vmem:[%s801 + $0x638] sm:$0xf]
                  %1202 = vst [vmem:[%s802 + $0x31c] sm:$0xf] %v1201
                  %v1203 = vld [vmem:[%s801 + $0x640] sm:$0xf]
                  %1204 = vst [vmem:[%s802 + $0x320] sm:$0xf] %v1203
                  %v1205 = vld [vmem:[%s801 + $0x648] sm:$0xf]
                  %1206 = vst [vmem:[%s802 + $0x324] sm:$0xf] %v1205
                  %v1207 = vld [vmem:[%s801 + $0x650] sm:$0xf]
                  %1208 = vst [vmem:[%s802 + $0x328] sm:$0xf] %v1207
                  %v1209 = vld [vmem:[%s801 + $0x658] sm:$0xf]
                  %1210 = vst [vmem:[%s802 + $0x32c] sm:$0xf] %v1209
                  %v1211 = vld [vmem:[%s801 + $0x660] sm:$0xf]
                  %1212 = vst [vmem:[%s802 + $0x330] sm:$0xf] %v1211
                  %v1213 = vld [vmem:[%s801 + $0x668] sm:$0xf]
                  %1214 = vst [vmem:[%s802 + $0x334] sm:$0xf] %v1213
                  %v1215 = vld [vmem:[%s801 + $0x670] sm:$0xf]
                  %1216 = vst [vmem:[%s802 + $0x338] sm:$0xf] %v1215
                  %v1217 = vld [vmem:[%s801 + $0x678] sm:$0xf]
                  %1218 = vst [vmem:[%s802 + $0x33c] sm:$0xf] %v1217
                  %v1219 = vld [vmem:[%s801 + $0x680] sm:$0xf]
                  %1220 = vst [vmem:[%s802 + $0x340] sm:$0xf] %v1219
                  %v1221 = vld [vmem:[%s801 + $0x688] sm:$0xf]
                  %1222 = vst [vmem:[%s802 + $0x344] sm:$0xf] %v1221
                  %v1223 = vld [vmem:[%s801 + $0x690] sm:$0xf]
                  %1224 = vst [vmem:[%s802 + $0x348] sm:$0xf] %v1223
                  %v1225 = vld [vmem:[%s801 + $0x698] sm:$0xf]
                  %1226 = vst [vmem:[%s802 + $0x34c] sm:$0xf] %v1225
                  %v1227 = vld [vmem:[%s801 + $0x6a0] sm:$0xf]
                  %1228 = vst [vmem:[%s802 + $0x350] sm:$0xf] %v1227
                  %v1229 = vld [vmem:[%s801 + $0x6a8] sm:$0xf]
                  %1230 = vst [vmem:[%s802 + $0x354] sm:$0xf] %v1229
                  %v1231 = vld [vmem:[%s801 + $0x6b0] sm:$0xf]
                  %1232 = vst [vmem:[%s802 + $0x358] sm:$0xf] %v1231
                  %v1233 = vld [vmem:[%s801 + $0x6b8] sm:$0xf]
                  %1234 = vst [vmem:[%s802 + $0x35c] sm:$0xf] %v1233
                  %v1235 = vld [vmem:[%s801 + $0x6c0] sm:$0xf]
                  %1236 = vst [vmem:[%s802 + $0x360] sm:$0xf] %v1235
                  %v1237 = vld [vmem:[%s801 + $0x6c8] sm:$0xf]
                  %1238 = vst [vmem:[%s802 + $0x364] sm:$0xf] %v1237
                  %v1239 = vld [vmem:[%s801 + $0x6d0] sm:$0xf]
                  %1240 = vst [vmem:[%s802 + $0x368] sm:$0xf] %v1239
                  %v1241 = vld [vmem:[%s801 + $0x6d8] sm:$0xf]
                  %1242 = vst [vmem:[%s802 + $0x36c] sm:$0xf] %v1241
                  %v1243 = vld [vmem:[%s801 + $0x6e0] sm:$0xf]
                  %1244 = vst [vmem:[%s802 + $0x370] sm:$0xf] %v1243
                  %v1245 = vld [vmem:[%s801 + $0x6e8] sm:$0xf]
                  %1246 = vst [vmem:[%s802 + $0x374] sm:$0xf] %v1245
                  %v1247 = vld [vmem:[%s801 + $0x6f0] sm:$0xf]
                  %1248 = vst [vmem:[%s802 + $0x378] sm:$0xf] %v1247
                  %v1249 = vld [vmem:[%s801 + $0x6f8] sm:$0xf]
                  %1250 = vst [vmem:[%s802 + $0x37c] sm:$0xf] %v1249
                  %v1251 = vld [vmem:[%s801 + $0x700] sm:$0xf]
                  %1252 = vst [vmem:[%s802 + $0x380] sm:$0xf] %v1251
                  %v1253 = vld [vmem:[%s801 + $0x708] sm:$0xf]
                  %1254 = vst [vmem:[%s802 + $0x384] sm:$0xf] %v1253
                  %v1255 = vld [vmem:[%s801 + $0x710] sm:$0xf]
                  %1256 = vst [vmem:[%s802 + $0x388] sm:$0xf] %v1255
                  %v1257 = vld [vmem:[%s801 + $0x718] sm:$0xf]
                  %1258 = vst [vmem:[%s802 + $0x38c] sm:$0xf] %v1257
                  %v1259 = vld [vmem:[%s801 + $0x720] sm:$0xf]
                  %1260 = vst [vmem:[%s802 + $0x390] sm:$0xf] %v1259
                  %v1261 = vld [vmem:[%s801 + $0x728] sm:$0xf]
                  %1262 = vst [vmem:[%s802 + $0x394] sm:$0xf] %v1261
                  %v1263 = vld [vmem:[%s801 + $0x730] sm:$0xf]
                  %1264 = vst [vmem:[%s802 + $0x398] sm:$0xf] %v1263
                  %v1265 = vld [vmem:[%s801 + $0x738] sm:$0xf]
                  %1266 = vst [vmem:[%s802 + $0x39c] sm:$0xf] %v1265
                  %v1267 = vld [vmem:[%s801 + $0x740] sm:$0xf]
                  %1268 = vst [vmem:[%s802 + $0x3a0] sm:$0xf] %v1267
                  %v1269 = vld [vmem:[%s801 + $0x748] sm:$0xf]
                  %1270 = vst [vmem:[%s802 + $0x3a4] sm:$0xf] %v1269
                  %v1271 = vld [vmem:[%s801 + $0x750] sm:$0xf]
                  %1272 = vst [vmem:[%s802 + $0x3a8] sm:$0xf] %v1271
                  %v1273 = vld [vmem:[%s801 + $0x758] sm:$0xf]
                  %1274 = vst [vmem:[%s802 + $0x3ac] sm:$0xf] %v1273
                  %v1275 = vld [vmem:[%s801 + $0x760] sm:$0xf]
                  %1276 = vst [vmem:[%s802 + $0x3b0] sm:$0xf] %v1275
                  %v1277 = vld [vmem:[%s801 + $0x768] sm:$0xf]
                  %1278 = vst [vmem:[%s802 + $0x3b4] sm:$0xf] %v1277
                  %v1279 = vld [vmem:[%s801 + $0x770] sm:$0xf]
                  %1280 = vst [vmem:[%s802 + $0x3b8] sm:$0xf] %v1279
                  %v1281 = vld [vmem:[%s801 + $0x778] sm:$0xf]
                  %1282 = vst [vmem:[%s802 + $0x3bc] sm:$0xf] %v1281
                  %v1283 = vld [vmem:[%s801 + $0x780] sm:$0xf]
                  %1284 = vst [vmem:[%s802 + $0x3c0] sm:$0xf] %v1283
                  %v1285 = vld [vmem:[%s801 + $0x788] sm:$0xf]
                  %1286 = vst [vmem:[%s802 + $0x3c4] sm:$0xf] %v1285
                  %v1287 = vld [vmem:[%s801 + $0x790] sm:$0xf]
                  %1288 = vst [vmem:[%s802 + $0x3c8] sm:$0xf] %v1287
                  %v1289 = vld [vmem:[%s801 + $0x798] sm:$0xf]
                  %1290 = vst [vmem:[%s802 + $0x3cc] sm:$0xf] %v1289
                  %v1291 = vld [vmem:[%s801 + $0x7a0] sm:$0xf]
                  %1292 = vst [vmem:[%s802 + $0x3d0] sm:$0xf] %v1291
                  %v1293 = vld [vmem:[%s801 + $0x7a8] sm:$0xf]
                  %1294 = vst [vmem:[%s802 + $0x3d4] sm:$0xf] %v1293
                  %v1295 = vld [vmem:[%s801 + $0x7b0] sm:$0xf]
                  %1296 = vst [vmem:[%s802 + $0x3d8] sm:$0xf] %v1295
                  %v1297 = vld [vmem:[%s801 + $0x7b8] sm:$0xf]
                  %1298 = vst [vmem:[%s802 + $0x3dc] sm:$0xf] %v1297
                  %v1299 = vld [vmem:[%s801 + $0x7c0] sm:$0xf]
                  %1300 = vst [vmem:[%s802 + $0x3e0] sm:$0xf] %v1299
                  %v1301 = vld [vmem:[%s801 + $0x7c8] sm:$0xf]
                  %1302 = vst [vmem:[%s802 + $0x3e4] sm:$0xf] %v1301
                  %v1303 = vld [vmem:[%s801 + $0x7d0] sm:$0xf]
                  %1304 = vst [vmem:[%s802 + $0x3e8] sm:$0xf] %v1303
                  %v1305 = vld [vmem:[%s801 + $0x7d8] sm:$0xf]
                  %1306 = vst [vmem:[%s802 + $0x3ec] sm:$0xf] %v1305
                  %v1307 = vld [vmem:[%s801 + $0x7e0] sm:$0xf]
                  %1308 = vst [vmem:[%s802 + $0x3f0] sm:$0xf] %v1307
                  %v1309 = vld [vmem:[%s801 + $0x7e8] sm:$0xf]
                  %1310 = vst [vmem:[%s802 + $0x3f4] sm:$0xf] %v1309
                  %v1311 = vld [vmem:[%s801 + $0x7f0] sm:$0xf]
                  %1312 = vst [vmem:[%s802 + $0x3f8] sm:$0xf] %v1311
                  %v1313 = vld [vmem:[%s801 + $0x7f8] sm:$0xf]
                  %1314 = vst [vmem:[%s802 + $0x3fc] sm:$0xf] %v1313
                  %v1315 = vld [vmem:[%s801 + $0x800] sm:$0xf]
                  %1316 = vst [vmem:[%s802 + $0x400] sm:$0xf] %v1315
                  %v1317 = vld [vmem:[%s801 + $0x808] sm:$0xf]
                  %1318 = vst [vmem:[%s802 + $0x404] sm:$0xf] %v1317
                  %v1319 = vld [vmem:[%s801 + $0x810] sm:$0xf]
                  %1320 = vst [vmem:[%s802 + $0x408] sm:$0xf] %v1319
                  %v1321 = vld [vmem:[%s801 + $0x818] sm:$0xf]
                  %1322 = vst [vmem:[%s802 + $0x40c] sm:$0xf] %v1321
                  %v1323 = vld [vmem:[%s801 + $0x820] sm:$0xf]
                  %1324 = vst [vmem:[%s802 + $0x410] sm:$0xf] %v1323
                  %v1325 = vld [vmem:[%s801 + $0x828] sm:$0xf]
                  %1326 = vst [vmem:[%s802 + $0x414] sm:$0xf] %v1325
                  %v1327 = vld [vmem:[%s801 + $0x830] sm:$0xf]
                  %1328 = vst [vmem:[%s802 + $0x418] sm:$0xf] %v1327
                  %v1329 = vld [vmem:[%s801 + $0x838] sm:$0xf]
                  %1330 = vst [vmem:[%s802 + $0x41c] sm:$0xf] %v1329
                  %v1331 = vld [vmem:[%s801 + $0x840] sm:$0xf]
                  %1332 = vst [vmem:[%s802 + $0x420] sm:$0xf] %v1331
                  %v1333 = vld [vmem:[%s801 + $0x848] sm:$0xf]
                  %1334 = vst [vmem:[%s802 + $0x424] sm:$0xf] %v1333
                  %v1335 = vld [vmem:[%s801 + $0x850] sm:$0xf]
                  %1336 = vst [vmem:[%s802 + $0x428] sm:$0xf] %v1335
                  %v1337 = vld [vmem:[%s801 + $0x858] sm:$0xf]
                  %1338 = vst [vmem:[%s802 + $0x42c] sm:$0xf] %v1337
                  %v1339 = vld [vmem:[%s801 + $0x860] sm:$0xf]
                  %1340 = vst [vmem:[%s802 + $0x430] sm:$0xf] %v1339
                  %v1341 = vld [vmem:[%s801 + $0x868] sm:$0xf]
                  %1342 = vst [vmem:[%s802 + $0x434] sm:$0xf] %v1341
                  %v1343 = vld [vmem:[%s801 + $0x870] sm:$0xf]
                  %1344 = vst [vmem:[%s802 + $0x438] sm:$0xf] %v1343
                  %v1345 = vld [vmem:[%s801 + $0x878] sm:$0xf]
                  %1346 = vst [vmem:[%s802 + $0x43c] sm:$0xf] %v1345
                  %v1347 = vld [vmem:[%s801 + $0x880] sm:$0xf]
                  %1348 = vst [vmem:[%s802 + $0x440] sm:$0xf] %v1347
                  %v1349 = vld [vmem:[%s801 + $0x888] sm:$0xf]
                  %1350 = vst [vmem:[%s802 + $0x444] sm:$0xf] %v1349
                  %v1351 = vld [vmem:[%s801 + $0x890] sm:$0xf]
                  %1352 = vst [vmem:[%s802 + $0x448] sm:$0xf] %v1351
                  %v1353 = vld [vmem:[%s801 + $0x898] sm:$0xf]
                  %1354 = vst [vmem:[%s802 + $0x44c] sm:$0xf] %v1353
                  %v1355 = vld [vmem:[%s801 + $0x8a0] sm:$0xf]
                  %1356 = vst [vmem:[%s802 + $0x450] sm:$0xf] %v1355
                  %v1357 = vld [vmem:[%s801 + $0x8a8] sm:$0xf]
                  %1358 = vst [vmem:[%s802 + $0x454] sm:$0xf] %v1357
                  %v1359 = vld [vmem:[%s801 + $0x8b0] sm:$0xf]
                  %1360 = vst [vmem:[%s802 + $0x458] sm:$0xf] %v1359
                  %v1361 = vld [vmem:[%s801 + $0x8b8] sm:$0xf]
                  %1362 = vst [vmem:[%s802 + $0x45c] sm:$0xf] %v1361
                  %v1363 = vld [vmem:[%s801 + $0x8c0] sm:$0xf]
                  %1364 = vst [vmem:[%s802 + $0x460] sm:$0xf] %v1363
                  %v1365 = vld [vmem:[%s801 + $0x8c8] sm:$0xf]
                  %1366 = vst [vmem:[%s802 + $0x464] sm:$0xf] %v1365
                  %v1367 = vld [vmem:[%s801 + $0x8d0] sm:$0xf]
                  %1368 = vst [vmem:[%s802 + $0x468] sm:$0xf] %v1367
                  %v1369 = vld [vmem:[%s801 + $0x8d8] sm:$0xf]
                  %1370 = vst [vmem:[%s802 + $0x46c] sm:$0xf] %v1369
                  %v1371 = vld [vmem:[%s801 + $0x8e0] sm:$0xf]
                  %1372 = vst [vmem:[%s802 + $0x470] sm:$0xf] %v1371
                  %v1373 = vld [vmem:[%s801 + $0x8e8] sm:$0xf]
                  %1374 = vst [vmem:[%s802 + $0x474] sm:$0xf] %v1373
                  %v1375 = vld [vmem:[%s801 + $0x8f0] sm:$0xf]
                  %1376 = vst [vmem:[%s802 + $0x478] sm:$0xf] %v1375
                  %v1377 = vld [vmem:[%s801 + $0x8f8] sm:$0xf]
                  %1378 = vst [vmem:[%s802 + $0x47c] sm:$0xf] %v1377
                $region59: #{conv_bn_add.1} parent=46 // loop_footer
                  %s800 = sadd.s32 1, %s796
                $region60: #{conv_bn_add.1} parent=46 // loop_footer_branch
                  %795 = sbr.rel target = $region56
                $region61: #{conv_bn_add.1} parent=46 // loop_exit
                  _
              $region47: #{conv_bn_add.1} parent=31 // pred_fallthru
                _
            $region32: #{conv_bn_add.1} parent=27 // pred_fallthru
              _
            // Predicated region
            $region33: #{conv_bn_add.1} parent=27 // pred_check
              _
            $region34: #{conv_bn_add.1} parent=27 // pred_check_branch
              %198 = sbr.rel (0) target = $region36
            $region35: #{conv_bn_add.1} parent=27 // pred_region
              loop: start=0, step=1, limit=1
              $region37: #{conv_bn_add.1} parent=35 // loop_pre_header
                _
              $region38: #{conv_bn_add.1} parent=35 // loop_header
                %s201 = sphi 0, %s205
                %p202 = scmp.ge.s32.totalorder %s201, 1
                %s206 = sphi %s192, %s192
                %s207 = sphi %s190, %s190
              $region39: #{conv_bn_add.1} parent=35 // loop_header_branch
                %204 = sbr.rel (%p202) target = $region43
              $region40: #{conv_bn_add.1} parent=35 // loop_body
                %v208 = vld [vmem:[%s206] sm:$0xf]
                %209 = vst [vmem:[%s207] sm:$0xf] %v208
                %v210 = vld [vmem:[%s206 + $0x8] sm:$0xf]
                %211 = vst [vmem:[%s207 + $0x4] sm:$0xf] %v210
                %v212 = vld [vmem:[%s206 + $0x10] sm:$0xf]
                %213 = vst [vmem:[%s207 + $0x8] sm:$0xf] %v212
                %v214 = vld [vmem:[%s206 + $0x18] sm:$0xf]
                %215 = vst [vmem:[%s207 + $0xc] sm:$0xf] %v214
                %v216 = vld [vmem:[%s206 + $0x20] sm:$0xf]
                %217 = vst [vmem:[%s207 + $0x10] sm:$0xf] %v216
                %v218 = vld [vmem:[%s206 + $0x28] sm:$0xf]
                %219 = vst [vmem:[%s207 + $0x14] sm:$0xf] %v218
                %v220 = vld [vmem:[%s206 + $0x30] sm:$0xf]
                %221 = vst [vmem:[%s207 + $0x18] sm:$0xf] %v220
                %v222 = vld [vmem:[%s206 + $0x38] sm:$0xf]
                %223 = vst [vmem:[%s207 + $0x1c] sm:$0xf] %v222
                %v224 = vld [vmem:[%s206 + $0x40] sm:$0xf]
                %225 = vst [vmem:[%s207 + $0x20] sm:$0xf] %v224
                %v226 = vld [vmem:[%s206 + $0x48] sm:$0xf]
                %227 = vst [vmem:[%s207 + $0x24] sm:$0xf] %v226
                %v228 = vld [vmem:[%s206 + $0x50] sm:$0xf]
                %229 = vst [vmem:[%s207 + $0x28] sm:$0xf] %v228
                %v230 = vld [vmem:[%s206 + $0x58] sm:$0xf]
                %231 = vst [vmem:[%s207 + $0x2c] sm:$0xf] %v230
                %v232 = vld [vmem:[%s206 + $0x60] sm:$0xf]
                %233 = vst [vmem:[%s207 + $0x30] sm:$0xf] %v232
                %v234 = vld [vmem:[%s206 + $0x68] sm:$0xf]
                %235 = vst [vmem:[%s207 + $0x34] sm:$0xf] %v234
                %v236 = vld [vmem:[%s206 + $0x70] sm:$0xf]
                %237 = vst [vmem:[%s207 + $0x38] sm:$0xf] %v236
                %v238 = vld [vmem:[%s206 + $0x78] sm:$0xf]
                %239 = vst [vmem:[%s207 + $0x3c] sm:$0xf] %v238
                %v240 = vld [vmem:[%s206 + $0x80] sm:$0xf]
                %241 = vst [vmem:[%s207 + $0x40] sm:$0xf] %v240
                %v242 = vld [vmem:[%s206 + $0x88] sm:$0xf]
                %243 = vst [vmem:[%s207 + $0x44] sm:$0xf] %v242
                %v244 = vld [vmem:[%s206 + $0x90] sm:$0xf]
                %245 = vst [vmem:[%s207 + $0x48] sm:$0xf] %v244
                %v246 = vld [vmem:[%s206 + $0x98] sm:$0xf]
                %247 = vst [vmem:[%s207 + $0x4c] sm:$0xf] %v246
                %v248 = vld [vmem:[%s206 + $0xa0] sm:$0xf]
                %249 = vst [vmem:[%s207 + $0x50] sm:$0xf] %v248
                %v250 = vld [vmem:[%s206 + $0xa8] sm:$0xf]
                %251 = vst [vmem:[%s207 + $0x54] sm:$0xf] %v250
                %v252 = vld [vmem:[%s206 + $0xb0] sm:$0xf]
                %253 = vst [vmem:[%s207 + $0x58] sm:$0xf] %v252
                %v254 = vld [vmem:[%s206 + $0xb8] sm:$0xf]
                %255 = vst [vmem:[%s207 + $0x5c] sm:$0xf] %v254
                %v256 = vld [vmem:[%s206 + $0xc0] sm:$0xf]
                %257 = vst [vmem:[%s207 + $0x60] sm:$0xf] %v256
                %v258 = vld [vmem:[%s206 + $0xc8] sm:$0xf]
                %259 = vst [vmem:[%s207 + $0x64] sm:$0xf] %v258
                %v260 = vld [vmem:[%s206 + $0xd0] sm:$0xf]
                %261 = vst [vmem:[%s207 + $0x68] sm:$0xf] %v260
                %v262 = vld [vmem:[%s206 + $0xd8] sm:$0xf]
                %263 = vst [vmem:[%s207 + $0x6c] sm:$0xf] %v262
                %v264 = vld [vmem:[%s206 + $0xe0] sm:$0xf]
                %265 = vst [vmem:[%s207 + $0x70] sm:$0xf] %v264
                %v266 = vld [vmem:[%s206 + $0xe8] sm:$0xf]
                %267 = vst [vmem:[%s207 + $0x74] sm:$0xf] %v266
                %v268 = vld [vmem:[%s206 + $0xf0] sm:$0xf]
                %269 = vst [vmem:[%s207 + $0x78] sm:$0xf] %v268
                %v270 = vld [vmem:[%s206 + $0xf8] sm:$0xf]
                %271 = vst [vmem:[%s207 + $0x7c] sm:$0xf] %v270
                %v272 = vld [vmem:[%s206 + $0x100] sm:$0xf]
                %273 = vst [vmem:[%s207 + $0x80] sm:$0xf] %v272
                %v274 = vld [vmem:[%s206 + $0x108] sm:$0xf]
                %275 = vst [vmem:[%s207 + $0x84] sm:$0xf] %v274
                %v276 = vld [vmem:[%s206 + $0x110] sm:$0xf]
                %277 = vst [vmem:[%s207 + $0x88] sm:$0xf] %v276
                %v278 = vld [vmem:[%s206 + $0x118] sm:$0xf]
                %279 = vst [vmem:[%s207 + $0x8c] sm:$0xf] %v278
                %v280 = vld [vmem:[%s206 + $0x120] sm:$0xf]
                %281 = vst [vmem:[%s207 + $0x90] sm:$0xf] %v280
                %v282 = vld [vmem:[%s206 + $0x128] sm:$0xf]
                %283 = vst [vmem:[%s207 + $0x94] sm:$0xf] %v282
                %v284 = vld [vmem:[%s206 + $0x130] sm:$0xf]
                %285 = vst [vmem:[%s207 + $0x98] sm:$0xf] %v284
                %v286 = vld [vmem:[%s206 + $0x138] sm:$0xf]
                %287 = vst [vmem:[%s207 + $0x9c] sm:$0xf] %v286
                %v288 = vld [vmem:[%s206 + $0x140] sm:$0xf]
                %289 = vst [vmem:[%s207 + $0xa0] sm:$0xf] %v288
                %v290 = vld [vmem:[%s206 + $0x148] sm:$0xf]
                %291 = vst [vmem:[%s207 + $0xa4] sm:$0xf] %v290
                %v292 = vld [vmem:[%s206 + $0x150] sm:$0xf]
                %293 = vst [vmem:[%s207 + $0xa8] sm:$0xf] %v292
                %v294 = vld [vmem:[%s206 + $0x158] sm:$0xf]
                %295 = vst [vmem:[%s207 + $0xac] sm:$0xf] %v294
                %v296 = vld [vmem:[%s206 + $0x160] sm:$0xf]
                %297 = vst [vmem:[%s207 + $0xb0] sm:$0xf] %v296
                %v298 = vld [vmem:[%s206 + $0x168] sm:$0xf]
                %299 = vst [vmem:[%s207 + $0xb4] sm:$0xf] %v298
                %v300 = vld [vmem:[%s206 + $0x170] sm:$0xf]
                %301 = vst [vmem:[%s207 + $0xb8] sm:$0xf] %v300
                %v302 = vld [vmem:[%s206 + $0x178] sm:$0xf]
                %303 = vst [vmem:[%s207 + $0xbc] sm:$0xf] %v302
                %v304 = vld [vmem:[%s206 + $0x180] sm:$0xf]
                %305 = vst [vmem:[%s207 + $0xc0] sm:$0xf] %v304
                %v306 = vld [vmem:[%s206 + $0x188] sm:$0xf]
                %307 = vst [vmem:[%s207 + $0xc4] sm:$0xf] %v306
                %v308 = vld [vmem:[%s206 + $0x190] sm:$0xf]
                %309 = vst [vmem:[%s207 + $0xc8] sm:$0xf] %v308
                %v310 = vld [vmem:[%s206 + $0x198] sm:$0xf]
                %311 = vst [vmem:[%s207 + $0xcc] sm:$0xf] %v310
                %v312 = vld [vmem:[%s206 + $0x1a0] sm:$0xf]
                %313 = vst [vmem:[%s207 + $0xd0] sm:$0xf] %v312
                %v314 = vld [vmem:[%s206 + $0x1a8] sm:$0xf]
                %315 = vst [vmem:[%s207 + $0xd4] sm:$0xf] %v314
                %v316 = vld [vmem:[%s206 + $0x1b0] sm:$0xf]
                %317 = vst [vmem:[%s207 + $0xd8] sm:$0xf] %v316
                %v318 = vld [vmem:[%s206 + $0x1b8] sm:$0xf]
                %319 = vst [vmem:[%s207 + $0xdc] sm:$0xf] %v318
                %v320 = vld [vmem:[%s206 + $0x1c0] sm:$0xf]
                %321 = vst [vmem:[%s207 + $0xe0] sm:$0xf] %v320
                %v322 = vld [vmem:[%s206 + $0x1c8] sm:$0xf]
                %323 = vst [vmem:[%s207 + $0xe4] sm:$0xf] %v322
                %v324 = vld [vmem:[%s206 + $0x1d0] sm:$0xf]
                %325 = vst [vmem:[%s207 + $0xe8] sm:$0xf] %v324
                %v326 = vld [vmem:[%s206 + $0x1d8] sm:$0xf]
                %327 = vst [vmem:[%s207 + $0xec] sm:$0xf] %v326
                %v328 = vld [vmem:[%s206 + $0x1e0] sm:$0xf]
                %329 = vst [vmem:[%s207 + $0xf0] sm:$0xf] %v328
                %v330 = vld [vmem:[%s206 + $0x1e8] sm:$0xf]
                %331 = vst [vmem:[%s207 + $0xf4] sm:$0xf] %v330
                %v332 = vld [vmem:[%s206 + $0x1f0] sm:$0xf]
                %333 = vst [vmem:[%s207 + $0xf8] sm:$0xf] %v332
                %v334 = vld [vmem:[%s206 + $0x1f8] sm:$0xf]
                %335 = vst [vmem:[%s207 + $0xfc] sm:$0xf] %v334
                %v336 = vld [vmem:[%s206 + $0x200] sm:$0xf]
                %337 = vst [vmem:[%s207 + $0x100] sm:$0xf] %v336
                %v338 = vld [vmem:[%s206 + $0x208] sm:$0xf]
                %339 = vst [vmem:[%s207 + $0x104] sm:$0xf] %v338
                %v340 = vld [vmem:[%s206 + $0x210] sm:$0xf]
                %341 = vst [vmem:[%s207 + $0x108] sm:$0xf] %v340
                %v342 = vld [vmem:[%s206 + $0x218] sm:$0xf]
                %343 = vst [vmem:[%s207 + $0x10c] sm:$0xf] %v342
                %v344 = vld [vmem:[%s206 + $0x220] sm:$0xf]
                %345 = vst [vmem:[%s207 + $0x110] sm:$0xf] %v344
                %v346 = vld [vmem:[%s206 + $0x228] sm:$0xf]
                %347 = vst [vmem:[%s207 + $0x114] sm:$0xf] %v346
                %v348 = vld [vmem:[%s206 + $0x230] sm:$0xf]
                %349 = vst [vmem:[%s207 + $0x118] sm:$0xf] %v348
                %v350 = vld [vmem:[%s206 + $0x238] sm:$0xf]
                %351 = vst [vmem:[%s207 + $0x11c] sm:$0xf] %v350
                %v352 = vld [vmem:[%s206 + $0x240] sm:$0xf]
                %353 = vst [vmem:[%s207 + $0x120] sm:$0xf] %v352
                %v354 = vld [vmem:[%s206 + $0x248] sm:$0xf]
                %355 = vst [vmem:[%s207 + $0x124] sm:$0xf] %v354
                %v356 = vld [vmem:[%s206 + $0x250] sm:$0xf]
                %357 = vst [vmem:[%s207 + $0x128] sm:$0xf] %v356
                %v358 = vld [vmem:[%s206 + $0x258] sm:$0xf]
                %359 = vst [vmem:[%s207 + $0x12c] sm:$0xf] %v358
                %v360 = vld [vmem:[%s206 + $0x260] sm:$0xf]
                %361 = vst [vmem:[%s207 + $0x130] sm:$0xf] %v360
                %v362 = vld [vmem:[%s206 + $0x268] sm:$0xf]
                %363 = vst [vmem:[%s207 + $0x134] sm:$0xf] %v362
                %v364 = vld [vmem:[%s206 + $0x270] sm:$0xf]
                %365 = vst [vmem:[%s207 + $0x138] sm:$0xf] %v364
                %v366 = vld [vmem:[%s206 + $0x278] sm:$0xf]
                %367 = vst [vmem:[%s207 + $0x13c] sm:$0xf] %v366
                %v368 = vld [vmem:[%s206 + $0x280] sm:$0xf]
                %369 = vst [vmem:[%s207 + $0x140] sm:$0xf] %v368
                %v370 = vld [vmem:[%s206 + $0x288] sm:$0xf]
                %371 = vst [vmem:[%s207 + $0x144] sm:$0xf] %v370
                %v372 = vld [vmem:[%s206 + $0x290] sm:$0xf]
                %373 = vst [vmem:[%s207 + $0x148] sm:$0xf] %v372
                %v374 = vld [vmem:[%s206 + $0x298] sm:$0xf]
                %375 = vst [vmem:[%s207 + $0x14c] sm:$0xf] %v374
                %v376 = vld [vmem:[%s206 + $0x2a0] sm:$0xf]
                %377 = vst [vmem:[%s207 + $0x150] sm:$0xf] %v376
                %v378 = vld [vmem:[%s206 + $0x2a8] sm:$0xf]
                %379 = vst [vmem:[%s207 + $0x154] sm:$0xf] %v378
                %v380 = vld [vmem:[%s206 + $0x2b0] sm:$0xf]
                %381 = vst [vmem:[%s207 + $0x158] sm:$0xf] %v380
                %v382 = vld [vmem:[%s206 + $0x2b8] sm:$0xf]
                %383 = vst [vmem:[%s207 + $0x15c] sm:$0xf] %v382
                %v384 = vld [vmem:[%s206 + $0x2c0] sm:$0xf]
                %385 = vst [vmem:[%s207 + $0x160] sm:$0xf] %v384
                %v386 = vld [vmem:[%s206 + $0x2c8] sm:$0xf]
                %387 = vst [vmem:[%s207 + $0x164] sm:$0xf] %v386
                %v388 = vld [vmem:[%s206 + $0x2d0] sm:$0xf]
                %389 = vst [vmem:[%s207 + $0x168] sm:$0xf] %v388
                %v390 = vld [vmem:[%s206 + $0x2d8] sm:$0xf]
                %391 = vst [vmem:[%s207 + $0x16c] sm:$0xf] %v390
                %v392 = vld [vmem:[%s206 + $0x2e0] sm:$0xf]
                %393 = vst [vmem:[%s207 + $0x170] sm:$0xf] %v392
                %v394 = vld [vmem:[%s206 + $0x2e8] sm:$0xf]
                %395 = vst [vmem:[%s207 + $0x174] sm:$0xf] %v394
                %v396 = vld [vmem:[%s206 + $0x2f0] sm:$0xf]
                %397 = vst [vmem:[%s207 + $0x178] sm:$0xf] %v396
                %v398 = vld [vmem:[%s206 + $0x2f8] sm:$0xf]
                %399 = vst [vmem:[%s207 + $0x17c] sm:$0xf] %v398
                %v400 = vld [vmem:[%s206 + $0x300] sm:$0xf]
                %401 = vst [vmem:[%s207 + $0x180] sm:$0xf] %v400
                %v402 = vld [vmem:[%s206 + $0x308] sm:$0xf]
                %403 = vst [vmem:[%s207 + $0x184] sm:$0xf] %v402
                %v404 = vld [vmem:[%s206 + $0x310] sm:$0xf]
                %405 = vst [vmem:[%s207 + $0x188] sm:$0xf] %v404
                %v406 = vld [vmem:[%s206 + $0x318] sm:$0xf]
                %407 = vst [vmem:[%s207 + $0x18c] sm:$0xf] %v406
                %v408 = vld [vmem:[%s206 + $0x320] sm:$0xf]
                %409 = vst [vmem:[%s207 + $0x190] sm:$0xf] %v408
                %v410 = vld [vmem:[%s206 + $0x328] sm:$0xf]
                %411 = vst [vmem:[%s207 + $0x194] sm:$0xf] %v410
                %v412 = vld [vmem:[%s206 + $0x330] sm:$0xf]
                %413 = vst [vmem:[%s207 + $0x198] sm:$0xf] %v412
                %v414 = vld [vmem:[%s206 + $0x338] sm:$0xf]
                %415 = vst [vmem:[%s207 + $0x19c] sm:$0xf] %v414
                %v416 = vld [vmem:[%s206 + $0x340] sm:$0xf]
                %417 = vst [vmem:[%s207 + $0x1a0] sm:$0xf] %v416
                %v418 = vld [vmem:[%s206 + $0x348] sm:$0xf]
                %419 = vst [vmem:[%s207 + $0x1a4] sm:$0xf] %v418
                %v420 = vld [vmem:[%s206 + $0x350] sm:$0xf]
                %421 = vst [vmem:[%s207 + $0x1a8] sm:$0xf] %v420
                %v422 = vld [vmem:[%s206 + $0x358] sm:$0xf]
                %423 = vst [vmem:[%s207 + $0x1ac] sm:$0xf] %v422
                %v424 = vld [vmem:[%s206 + $0x360] sm:$0xf]
                %425 = vst [vmem:[%s207 + $0x1b0] sm:$0xf] %v424
                %v426 = vld [vmem:[%s206 + $0x368] sm:$0xf]
                %427 = vst [vmem:[%s207 + $0x1b4] sm:$0xf] %v426
                %v428 = vld [vmem:[%s206 + $0x370] sm:$0xf]
                %429 = vst [vmem:[%s207 + $0x1b8] sm:$0xf] %v428
                %v430 = vld [vmem:[%s206 + $0x378] sm:$0xf]
                %431 = vst [vmem:[%s207 + $0x1bc] sm:$0xf] %v430
                %v432 = vld [vmem:[%s206 + $0x380] sm:$0xf]
                %433 = vst [vmem:[%s207 + $0x1c0] sm:$0xf] %v432
                %v434 = vld [vmem:[%s206 + $0x388] sm:$0xf]
                %435 = vst [vmem:[%s207 + $0x1c4] sm:$0xf] %v434
                %v436 = vld [vmem:[%s206 + $0x390] sm:$0xf]
                %437 = vst [vmem:[%s207 + $0x1c8] sm:$0xf] %v436
                %v438 = vld [vmem:[%s206 + $0x398] sm:$0xf]
                %439 = vst [vmem:[%s207 + $0x1cc] sm:$0xf] %v438
                %v440 = vld [vmem:[%s206 + $0x3a0] sm:$0xf]
                %441 = vst [vmem:[%s207 + $0x1d0] sm:$0xf] %v440
                %v442 = vld [vmem:[%s206 + $0x3a8] sm:$0xf]
                %443 = vst [vmem:[%s207 + $0x1d4] sm:$0xf] %v442
                %v444 = vld [vmem:[%s206 + $0x3b0] sm:$0xf]
                %445 = vst [vmem:[%s207 + $0x1d8] sm:$0xf] %v444
                %v446 = vld [vmem:[%s206 + $0x3b8] sm:$0xf]
                %447 = vst [vmem:[%s207 + $0x1dc] sm:$0xf] %v446
                %v448 = vld [vmem:[%s206 + $0x3c0] sm:$0xf]
                %449 = vst [vmem:[%s207 + $0x1e0] sm:$0xf] %v448
                %v450 = vld [vmem:[%s206 + $0x3c8] sm:$0xf]
                %451 = vst [vmem:[%s207 + $0x1e4] sm:$0xf] %v450
                %v452 = vld [vmem:[%s206 + $0x3d0] sm:$0xf]
                %453 = vst [vmem:[%s207 + $0x1e8] sm:$0xf] %v452
                %v454 = vld [vmem:[%s206 + $0x3d8] sm:$0xf]
                %455 = vst [vmem:[%s207 + $0x1ec] sm:$0xf] %v454
                %v456 = vld [vmem:[%s206 + $0x3e0] sm:$0xf]
                %457 = vst [vmem:[%s207 + $0x1f0] sm:$0xf] %v456
                %v458 = vld [vmem:[%s206 + $0x3e8] sm:$0xf]
                %459 = vst [vmem:[%s207 + $0x1f4] sm:$0xf] %v458
                %v460 = vld [vmem:[%s206 + $0x3f0] sm:$0xf]
                %461 = vst [vmem:[%s207 + $0x1f8] sm:$0xf] %v460
                %v462 = vld [vmem:[%s206 + $0x3f8] sm:$0xf]
                %463 = vst [vmem:[%s207 + $0x1fc] sm:$0xf] %v462
                %v464 = vld [vmem:[%s206 + $0x400] sm:$0xf]
                %465 = vst [vmem:[%s207 + $0x200] sm:$0xf] %v464
                %v466 = vld [vmem:[%s206 + $0x408] sm:$0xf]
                %467 = vst [vmem:[%s207 + $0x204] sm:$0xf] %v466
                %v468 = vld [vmem:[%s206 + $0x410] sm:$0xf]
                %469 = vst [vmem:[%s207 + $0x208] sm:$0xf] %v468
                %v470 = vld [vmem:[%s206 + $0x418] sm:$0xf]
                %471 = vst [vmem:[%s207 + $0x20c] sm:$0xf] %v470
                %v472 = vld [vmem:[%s206 + $0x420] sm:$0xf]
                %473 = vst [vmem:[%s207 + $0x210] sm:$0xf] %v472
                %v474 = vld [vmem:[%s206 + $0x428] sm:$0xf]
                %475 = vst [vmem:[%s207 + $0x214] sm:$0xf] %v474
                %v476 = vld [vmem:[%s206 + $0x430] sm:$0xf]
                %477 = vst [vmem:[%s207 + $0x218] sm:$0xf] %v476
                %v478 = vld [vmem:[%s206 + $0x438] sm:$0xf]
                %479 = vst [vmem:[%s207 + $0x21c] sm:$0xf] %v478
                %v480 = vld [vmem:[%s206 + $0x440] sm:$0xf]
                %481 = vst [vmem:[%s207 + $0x220] sm:$0xf] %v480
                %v482 = vld [vmem:[%s206 + $0x448] sm:$0xf]
                %483 = vst [vmem:[%s207 + $0x224] sm:$0xf] %v482
                %v484 = vld [vmem:[%s206 + $0x450] sm:$0xf]
                %485 = vst [vmem:[%s207 + $0x228] sm:$0xf] %v484
                %v486 = vld [vmem:[%s206 + $0x458] sm:$0xf]
                %487 = vst [vmem:[%s207 + $0x22c] sm:$0xf] %v486
                %v488 = vld [vmem:[%s206 + $0x460] sm:$0xf]
                %489 = vst [vmem:[%s207 + $0x230] sm:$0xf] %v488
                %v490 = vld [vmem:[%s206 + $0x468] sm:$0xf]
                %491 = vst [vmem:[%s207 + $0x234] sm:$0xf] %v490
                %v492 = vld [vmem:[%s206 + $0x470] sm:$0xf]
                %493 = vst [vmem:[%s207 + $0x238] sm:$0xf] %v492
                %v494 = vld [vmem:[%s206 + $0x478] sm:$0xf]
                %495 = vst [vmem:[%s207 + $0x23c] sm:$0xf] %v494
                %v496 = vld [vmem:[%s206 + $0x480] sm:$0xf]
                %497 = vst [vmem:[%s207 + $0x240] sm:$0xf] %v496
                %v498 = vld [vmem:[%s206 + $0x488] sm:$0xf]
                %499 = vst [vmem:[%s207 + $0x244] sm:$0xf] %v498
                %v500 = vld [vmem:[%s206 + $0x490] sm:$0xf]
                %501 = vst [vmem:[%s207 + $0x248] sm:$0xf] %v500
                %v502 = vld [vmem:[%s206 + $0x498] sm:$0xf]
                %503 = vst [vmem:[%s207 + $0x24c] sm:$0xf] %v502
                %v504 = vld [vmem:[%s206 + $0x4a0] sm:$0xf]
                %505 = vst [vmem:[%s207 + $0x250] sm:$0xf] %v504
                %v506 = vld [vmem:[%s206 + $0x4a8] sm:$0xf]
                %507 = vst [vmem:[%s207 + $0x254] sm:$0xf] %v506
                %v508 = vld [vmem:[%s206 + $0x4b0] sm:$0xf]
                %509 = vst [vmem:[%s207 + $0x258] sm:$0xf] %v508
                %v510 = vld [vmem:[%s206 + $0x4b8] sm:$0xf]
                %511 = vst [vmem:[%s207 + $0x25c] sm:$0xf] %v510
                %v512 = vld [vmem:[%s206 + $0x4c0] sm:$0xf]
                %513 = vst [vmem:[%s207 + $0x260] sm:$0xf] %v512
                %v514 = vld [vmem:[%s206 + $0x4c8] sm:$0xf]
                %515 = vst [vmem:[%s207 + $0x264] sm:$0xf] %v514
                %v516 = vld [vmem:[%s206 + $0x4d0] sm:$0xf]
                %517 = vst [vmem:[%s207 + $0x268] sm:$0xf] %v516
                %v518 = vld [vmem:[%s206 + $0x4d8] sm:$0xf]
                %519 = vst [vmem:[%s207 + $0x26c] sm:$0xf] %v518
                %v520 = vld [vmem:[%s206 + $0x4e0] sm:$0xf]
                %521 = vst [vmem:[%s207 + $0x270] sm:$0xf] %v520
                %v522 = vld [vmem:[%s206 + $0x4e8] sm:$0xf]
                %523 = vst [vmem:[%s207 + $0x274] sm:$0xf] %v522
                %v524 = vld [vmem:[%s206 + $0x4f0] sm:$0xf]
                %525 = vst [vmem:[%s207 + $0x278] sm:$0xf] %v524
                %v526 = vld [vmem:[%s206 + $0x4f8] sm:$0xf]
                %527 = vst [vmem:[%s207 + $0x27c] sm:$0xf] %v526
                %v528 = vld [vmem:[%s206 + $0x500] sm:$0xf]
                %529 = vst [vmem:[%s207 + $0x280] sm:$0xf] %v528
                %v530 = vld [vmem:[%s206 + $0x508] sm:$0xf]
                %531 = vst [vmem:[%s207 + $0x284] sm:$0xf] %v530
                %v532 = vld [vmem:[%s206 + $0x510] sm:$0xf]
                %533 = vst [vmem:[%s207 + $0x288] sm:$0xf] %v532
                %v534 = vld [vmem:[%s206 + $0x518] sm:$0xf]
                %535 = vst [vmem:[%s207 + $0x28c] sm:$0xf] %v534
                %v536 = vld [vmem:[%s206 + $0x520] sm:$0xf]
                %537 = vst [vmem:[%s207 + $0x290] sm:$0xf] %v536
                %v538 = vld [vmem:[%s206 + $0x528] sm:$0xf]
                %539 = vst [vmem:[%s207 + $0x294] sm:$0xf] %v538
                %v540 = vld [vmem:[%s206 + $0x530] sm:$0xf]
                %541 = vst [vmem:[%s207 + $0x298] sm:$0xf] %v540
                %v542 = vld [vmem:[%s206 + $0x538] sm:$0xf]
                %543 = vst [vmem:[%s207 + $0x29c] sm:$0xf] %v542
                %v544 = vld [vmem:[%s206 + $0x540] sm:$0xf]
                %545 = vst [vmem:[%s207 + $0x2a0] sm:$0xf] %v544
                %v546 = vld [vmem:[%s206 + $0x548] sm:$0xf]
                %547 = vst [vmem:[%s207 + $0x2a4] sm:$0xf] %v546
                %v548 = vld [vmem:[%s206 + $0x550] sm:$0xf]
                %549 = vst [vmem:[%s207 + $0x2a8] sm:$0xf] %v548
                %v550 = vld [vmem:[%s206 + $0x558] sm:$0xf]
                %551 = vst [vmem:[%s207 + $0x2ac] sm:$0xf] %v550
                %v552 = vld [vmem:[%s206 + $0x560] sm:$0xf]
                %553 = vst [vmem:[%s207 + $0x2b0] sm:$0xf] %v552
                %v554 = vld [vmem:[%s206 + $0x568] sm:$0xf]
                %555 = vst [vmem:[%s207 + $0x2b4] sm:$0xf] %v554
                %v556 = vld [vmem:[%s206 + $0x570] sm:$0xf]
                %557 = vst [vmem:[%s207 + $0x2b8] sm:$0xf] %v556
                %v558 = vld [vmem:[%s206 + $0x578] sm:$0xf]
                %559 = vst [vmem:[%s207 + $0x2bc] sm:$0xf] %v558
                %v560 = vld [vmem:[%s206 + $0x580] sm:$0xf]
                %561 = vst [vmem:[%s207 + $0x2c0] sm:$0xf] %v560
                %v562 = vld [vmem:[%s206 + $0x588] sm:$0xf]
                %563 = vst [vmem:[%s207 + $0x2c4] sm:$0xf] %v562
                %v564 = vld [vmem:[%s206 + $0x590] sm:$0xf]
                %565 = vst [vmem:[%s207 + $0x2c8] sm:$0xf] %v564
                %v566 = vld [vmem:[%s206 + $0x598] sm:$0xf]
                %567 = vst [vmem:[%s207 + $0x2cc] sm:$0xf] %v566
                %v568 = vld [vmem:[%s206 + $0x5a0] sm:$0xf]
                %569 = vst [vmem:[%s207 + $0x2d0] sm:$0xf] %v568
                %v570 = vld [vmem:[%s206 + $0x5a8] sm:$0xf]
                %571 = vst [vmem:[%s207 + $0x2d4] sm:$0xf] %v570
                %v572 = vld [vmem:[%s206 + $0x5b0] sm:$0xf]
                %573 = vst [vmem:[%s207 + $0x2d8] sm:$0xf] %v572
                %v574 = vld [vmem:[%s206 + $0x5b8] sm:$0xf]
                %575 = vst [vmem:[%s207 + $0x2dc] sm:$0xf] %v574
                %v576 = vld [vmem:[%s206 + $0x5c0] sm:$0xf]
                %577 = vst [vmem:[%s207 + $0x2e0] sm:$0xf] %v576
                %v578 = vld [vmem:[%s206 + $0x5c8] sm:$0xf]
                %579 = vst [vmem:[%s207 + $0x2e4] sm:$0xf] %v578
                %v580 = vld [vmem:[%s206 + $0x5d0] sm:$0xf]
                %581 = vst [vmem:[%s207 + $0x2e8] sm:$0xf] %v580
                %v582 = vld [vmem:[%s206 + $0x5d8] sm:$0xf]
                %583 = vst [vmem:[%s207 + $0x2ec] sm:$0xf] %v582
                %v584 = vld [vmem:[%s206 + $0x5e0] sm:$0xf]
                %585 = vst [vmem:[%s207 + $0x2f0] sm:$0xf] %v584
                %v586 = vld [vmem:[%s206 + $0x5e8] sm:$0xf]
                %587 = vst [vmem:[%s207 + $0x2f4] sm:$0xf] %v586
                %v588 = vld [vmem:[%s206 + $0x5f0] sm:$0xf]
                %589 = vst [vmem:[%s207 + $0x2f8] sm:$0xf] %v588
                %v590 = vld [vmem:[%s206 + $0x5f8] sm:$0xf]
                %591 = vst [vmem:[%s207 + $0x2fc] sm:$0xf] %v590
                %v592 = vld [vmem:[%s206 + $0x600] sm:$0xf]
                %593 = vst [vmem:[%s207 + $0x300] sm:$0xf] %v592
                %v594 = vld [vmem:[%s206 + $0x608] sm:$0xf]
                %595 = vst [vmem:[%s207 + $0x304] sm:$0xf] %v594
                %v596 = vld [vmem:[%s206 + $0x610] sm:$0xf]
                %597 = vst [vmem:[%s207 + $0x308] sm:$0xf] %v596
                %v598 = vld [vmem:[%s206 + $0x618] sm:$0xf]
                %599 = vst [vmem:[%s207 + $0x30c] sm:$0xf] %v598
                %v600 = vld [vmem:[%s206 + $0x620] sm:$0xf]
                %601 = vst [vmem:[%s207 + $0x310] sm:$0xf] %v600
                %v602 = vld [vmem:[%s206 + $0x628] sm:$0xf]
                %603 = vst [vmem:[%s207 + $0x314] sm:$0xf] %v602
                %v604 = vld [vmem:[%s206 + $0x630] sm:$0xf]
                %605 = vst [vmem:[%s207 + $0x318] sm:$0xf] %v604
                %v606 = vld [vmem:[%s206 + $0x638] sm:$0xf]
                %607 = vst [vmem:[%s207 + $0x31c] sm:$0xf] %v606
                %v608 = vld [vmem:[%s206 + $0x640] sm:$0xf]
                %609 = vst [vmem:[%s207 + $0x320] sm:$0xf] %v608
                %v610 = vld [vmem:[%s206 + $0x648] sm:$0xf]
                %611 = vst [vmem:[%s207 + $0x324] sm:$0xf] %v610
                %v612 = vld [vmem:[%s206 + $0x650] sm:$0xf]
                %613 = vst [vmem:[%s207 + $0x328] sm:$0xf] %v612
                %v614 = vld [vmem:[%s206 + $0x658] sm:$0xf]
                %615 = vst [vmem:[%s207 + $0x32c] sm:$0xf] %v614
                %v616 = vld [vmem:[%s206 + $0x660] sm:$0xf]
                %617 = vst [vmem:[%s207 + $0x330] sm:$0xf] %v616
                %v618 = vld [vmem:[%s206 + $0x668] sm:$0xf]
                %619 = vst [vmem:[%s207 + $0x334] sm:$0xf] %v618
                %v620 = vld [vmem:[%s206 + $0x670] sm:$0xf]
                %621 = vst [vmem:[%s207 + $0x338] sm:$0xf] %v620
                %v622 = vld [vmem:[%s206 + $0x678] sm:$0xf]
                %623 = vst [vmem:[%s207 + $0x33c] sm:$0xf] %v622
                %v624 = vld [vmem:[%s206 + $0x680] sm:$0xf]
                %625 = vst [vmem:[%s207 + $0x340] sm:$0xf] %v624
                %v626 = vld [vmem:[%s206 + $0x688] sm:$0xf]
                %627 = vst [vmem:[%s207 + $0x344] sm:$0xf] %v626
                %v628 = vld [vmem:[%s206 + $0x690] sm:$0xf]
                %629 = vst [vmem:[%s207 + $0x348] sm:$0xf] %v628
                %v630 = vld [vmem:[%s206 + $0x698] sm:$0xf]
                %631 = vst [vmem:[%s207 + $0x34c] sm:$0xf] %v630
                %v632 = vld [vmem:[%s206 + $0x6a0] sm:$0xf]
                %633 = vst [vmem:[%s207 + $0x350] sm:$0xf] %v632
                %v634 = vld [vmem:[%s206 + $0x6a8] sm:$0xf]
                %635 = vst [vmem:[%s207 + $0x354] sm:$0xf] %v634
                %v636 = vld [vmem:[%s206 + $0x6b0] sm:$0xf]
                %637 = vst [vmem:[%s207 + $0x358] sm:$0xf] %v636
                %v638 = vld [vmem:[%s206 + $0x6b8] sm:$0xf]
                %639 = vst [vmem:[%s207 + $0x35c] sm:$0xf] %v638
                %v640 = vld [vmem:[%s206 + $0x6c0] sm:$0xf]
                %641 = vst [vmem:[%s207 + $0x360] sm:$0xf] %v640
                %v642 = vld [vmem:[%s206 + $0x6c8] sm:$0xf]
                %643 = vst [vmem:[%s207 + $0x364] sm:$0xf] %v642
                %v644 = vld [vmem:[%s206 + $0x6d0] sm:$0xf]
                %645 = vst [vmem:[%s207 + $0x368] sm:$0xf] %v644
                %v646 = vld [vmem:[%s206 + $0x6d8] sm:$0xf]
                %647 = vst [vmem:[%s207 + $0x36c] sm:$0xf] %v646
                %v648 = vld [vmem:[%s206 + $0x6e0] sm:$0xf]
                %649 = vst [vmem:[%s207 + $0x370] sm:$0xf] %v648
                %v650 = vld [vmem:[%s206 + $0x6e8] sm:$0xf]
                %651 = vst [vmem:[%s207 + $0x374] sm:$0xf] %v650
                %v652 = vld [vmem:[%s206 + $0x6f0] sm:$0xf]
                %653 = vst [vmem:[%s207 + $0x378] sm:$0xf] %v652
                %v654 = vld [vmem:[%s206 + $0x6f8] sm:$0xf]
                %655 = vst [vmem:[%s207 + $0x37c] sm:$0xf] %v654
                %v656 = vld [vmem:[%s206 + $0x700] sm:$0xf]
                %657 = vst [vmem:[%s207 + $0x380] sm:$0xf] %v656
                %v658 = vld [vmem:[%s206 + $0x708] sm:$0xf]
                %659 = vst [vmem:[%s207 + $0x384] sm:$0xf] %v658
                %v660 = vld [vmem:[%s206 + $0x710] sm:$0xf]
                %661 = vst [vmem:[%s207 + $0x388] sm:$0xf] %v660
                %v662 = vld [vmem:[%s206 + $0x718] sm:$0xf]
                %663 = vst [vmem:[%s207 + $0x38c] sm:$0xf] %v662
                %v664 = vld [vmem:[%s206 + $0x720] sm:$0xf]
                %665 = vst [vmem:[%s207 + $0x390] sm:$0xf] %v664
                %v666 = vld [vmem:[%s206 + $0x728] sm:$0xf]
                %667 = vst [vmem:[%s207 + $0x394] sm:$0xf] %v666
                %v668 = vld [vmem:[%s206 + $0x730] sm:$0xf]
                %669 = vst [vmem:[%s207 + $0x398] sm:$0xf] %v668
                %v670 = vld [vmem:[%s206 + $0x738] sm:$0xf]
                %671 = vst [vmem:[%s207 + $0x39c] sm:$0xf] %v670
                %v672 = vld [vmem:[%s206 + $0x740] sm:$0xf]
                %673 = vst [vmem:[%s207 + $0x3a0] sm:$0xf] %v672
                %v674 = vld [vmem:[%s206 + $0x748] sm:$0xf]
                %675 = vst [vmem:[%s207 + $0x3a4] sm:$0xf] %v674
                %v676 = vld [vmem:[%s206 + $0x750] sm:$0xf]
                %677 = vst [vmem:[%s207 + $0x3a8] sm:$0xf] %v676
                %v678 = vld [vmem:[%s206 + $0x758] sm:$0xf]
                %679 = vst [vmem:[%s207 + $0x3ac] sm:$0xf] %v678
                %v680 = vld [vmem:[%s206 + $0x760] sm:$0xf]
                %681 = vst [vmem:[%s207 + $0x3b0] sm:$0xf] %v680
                %v682 = vld [vmem:[%s206 + $0x768] sm:$0xf]
                %683 = vst [vmem:[%s207 + $0x3b4] sm:$0xf] %v682
                %v684 = vld [vmem:[%s206 + $0x770] sm:$0xf]
                %685 = vst [vmem:[%s207 + $0x3b8] sm:$0xf] %v684
                %v686 = vld [vmem:[%s206 + $0x778] sm:$0xf]
                %687 = vst [vmem:[%s207 + $0x3bc] sm:$0xf] %v686
                %v688 = vld [vmem:[%s206 + $0x780] sm:$0xf]
                %689 = vst [vmem:[%s207 + $0x3c0] sm:$0xf] %v688
                %v690 = vld [vmem:[%s206 + $0x788] sm:$0xf]
                %691 = vst [vmem:[%s207 + $0x3c4] sm:$0xf] %v690
                %v692 = vld [vmem:[%s206 + $0x790] sm:$0xf]
                %693 = vst [vmem:[%s207 + $0x3c8] sm:$0xf] %v692
                %v694 = vld [vmem:[%s206 + $0x798] sm:$0xf]
                %695 = vst [vmem:[%s207 + $0x3cc] sm:$0xf] %v694
                %v696 = vld [vmem:[%s206 + $0x7a0] sm:$0xf]
                %697 = vst [vmem:[%s207 + $0x3d0] sm:$0xf] %v696
                %v698 = vld [vmem:[%s206 + $0x7a8] sm:$0xf]
                %699 = vst [vmem:[%s207 + $0x3d4] sm:$0xf] %v698
                %v700 = vld [vmem:[%s206 + $0x7b0] sm:$0xf]
                %701 = vst [vmem:[%s207 + $0x3d8] sm:$0xf] %v700
                %v702 = vld [vmem:[%s206 + $0x7b8] sm:$0xf]
                %703 = vst [vmem:[%s207 + $0x3dc] sm:$0xf] %v702
                %v704 = vld [vmem:[%s206 + $0x7c0] sm:$0xf]
                %705 = vst [vmem:[%s207 + $0x3e0] sm:$0xf] %v704
                %v706 = vld [vmem:[%s206 + $0x7c8] sm:$0xf]
                %707 = vst [vmem:[%s207 + $0x3e4] sm:$0xf] %v706
                %v708 = vld [vmem:[%s206 + $0x7d0] sm:$0xf]
                %709 = vst [vmem:[%s207 + $0x3e8] sm:$0xf] %v708
                %v710 = vld [vmem:[%s206 + $0x7d8] sm:$0xf]
                %711 = vst [vmem:[%s207 + $0x3ec] sm:$0xf] %v710
                %v712 = vld [vmem:[%s206 + $0x7e0] sm:$0xf]
                %713 = vst [vmem:[%s207 + $0x3f0] sm:$0xf] %v712
                %v714 = vld [vmem:[%s206 + $0x7e8] sm:$0xf]
                %715 = vst [vmem:[%s207 + $0x3f4] sm:$0xf] %v714
                %v716 = vld [vmem:[%s206 + $0x7f0] sm:$0xf]
                %717 = vst [vmem:[%s207 + $0x3f8] sm:$0xf] %v716
                %v718 = vld [vmem:[%s206 + $0x7f8] sm:$0xf]
                %719 = vst [vmem:[%s207 + $0x3fc] sm:$0xf] %v718
                %v720 = vld [vmem:[%s206 + $0x800] sm:$0xf]
                %721 = vst [vmem:[%s207 + $0x400] sm:$0xf] %v720
                %v722 = vld [vmem:[%s206 + $0x808] sm:$0xf]
                %723 = vst [vmem:[%s207 + $0x404] sm:$0xf] %v722
                %v724 = vld [vmem:[%s206 + $0x810] sm:$0xf]
                %725 = vst [vmem:[%s207 + $0x408] sm:$0xf] %v724
                %v726 = vld [vmem:[%s206 + $0x818] sm:$0xf]
                %727 = vst [vmem:[%s207 + $0x40c] sm:$0xf] %v726
                %v728 = vld [vmem:[%s206 + $0x820] sm:$0xf]
                %729 = vst [vmem:[%s207 + $0x410] sm:$0xf] %v728
                %v730 = vld [vmem:[%s206 + $0x828] sm:$0xf]
                %731 = vst [vmem:[%s207 + $0x414] sm:$0xf] %v730
                %v732 = vld [vmem:[%s206 + $0x830] sm:$0xf]
                %733 = vst [vmem:[%s207 + $0x418] sm:$0xf] %v732
                %v734 = vld [vmem:[%s206 + $0x838] sm:$0xf]
                %735 = vst [vmem:[%s207 + $0x41c] sm:$0xf] %v734
                %v736 = vld [vmem:[%s206 + $0x840] sm:$0xf]
                %737 = vst [vmem:[%s207 + $0x420] sm:$0xf] %v736
                %v738 = vld [vmem:[%s206 + $0x848] sm:$0xf]
                %739 = vst [vmem:[%s207 + $0x424] sm:$0xf] %v738
                %v740 = vld [vmem:[%s206 + $0x850] sm:$0xf]
                %741 = vst [vmem:[%s207 + $0x428] sm:$0xf] %v740
                %v742 = vld [vmem:[%s206 + $0x858] sm:$0xf]
                %743 = vst [vmem:[%s207 + $0x42c] sm:$0xf] %v742
                %v744 = vld [vmem:[%s206 + $0x860] sm:$0xf]
                %745 = vst [vmem:[%s207 + $0x430] sm:$0xf] %v744
                %v746 = vld [vmem:[%s206 + $0x868] sm:$0xf]
                %747 = vst [vmem:[%s207 + $0x434] sm:$0xf] %v746
                %v748 = vld [vmem:[%s206 + $0x870] sm:$0xf]
                %749 = vst [vmem:[%s207 + $0x438] sm:$0xf] %v748
                %v750 = vld [vmem:[%s206 + $0x878] sm:$0xf]
                %751 = vst [vmem:[%s207 + $0x43c] sm:$0xf] %v750
                %v752 = vld [vmem:[%s206 + $0x880] sm:$0xf]
                %753 = vst [vmem:[%s207 + $0x440] sm:$0xf] %v752
                %v754 = vld [vmem:[%s206 + $0x888] sm:$0xf]
                %755 = vst [vmem:[%s207 + $0x444] sm:$0xf] %v754
                %v756 = vld [vmem:[%s206 + $0x890] sm:$0xf]
                %757 = vst [vmem:[%s207 + $0x448] sm:$0xf] %v756
                %v758 = vld [vmem:[%s206 + $0x898] sm:$0xf]
                %759 = vst [vmem:[%s207 + $0x44c] sm:$0xf] %v758
                %v760 = vld [vmem:[%s206 + $0x8a0] sm:$0xf]
                %761 = vst [vmem:[%s207 + $0x450] sm:$0xf] %v760
                %v762 = vld [vmem:[%s206 + $0x8a8] sm:$0xf]
                %763 = vst [vmem:[%s207 + $0x454] sm:$0xf] %v762
                %v764 = vld [vmem:[%s206 + $0x8b0] sm:$0xf]
                %765 = vst [vmem:[%s207 + $0x458] sm:$0xf] %v764
                %v766 = vld [vmem:[%s206 + $0x8b8] sm:$0xf]
                %767 = vst [vmem:[%s207 + $0x45c] sm:$0xf] %v766
                %v768 = vld [vmem:[%s206 + $0x8c0] sm:$0xf]
                %769 = vst [vmem:[%s207 + $0x460] sm:$0xf] %v768
                %v770 = vld [vmem:[%s206 + $0x8c8] sm:$0xf]
                %771 = vst [vmem:[%s207 + $0x464] sm:$0xf] %v770
                %v772 = vld [vmem:[%s206 + $0x8d0] sm:$0xf]
                %773 = vst [vmem:[%s207 + $0x468] sm:$0xf] %v772
                %v774 = vld [vmem:[%s206 + $0x8d8] sm:$0xf]
                %775 = vst [vmem:[%s207 + $0x46c] sm:$0xf] %v774
                %v776 = vld [vmem:[%s206 + $0x8e0] sm:$0xf]
                %777 = vst [vmem:[%s207 + $0x470] sm:$0xf] %v776
                %v778 = vld [vmem:[%s206 + $0x8e8] sm:$0xf]
                %779 = vst [vmem:[%s207 + $0x474] sm:$0xf] %v778
                %v780 = vld [vmem:[%s206 + $0x8f0] sm:$0xf]
                %781 = vst [vmem:[%s207 + $0x478] sm:$0xf] %v780
                %v782 = vld [vmem:[%s206 + $0x8f8] sm:$0xf]
                %783 = vst [vmem:[%s207 + $0x47c] sm:$0xf] %v782
              $region41: #{conv_bn_add.1} parent=35 // loop_footer
                %s205 = sadd.s32 1, %s201
              $region42: #{conv_bn_add.1} parent=35 // loop_footer_branch
                %200 = sbr.rel target = $region38
              $region43: #{conv_bn_add.1} parent=35 // loop_exit
                _
            $region36: #{conv_bn_add.1} parent=27 // pred_fallthru
              _
          $region28: #{conv_bn_add.1} parent=23 // pred_fallthru
            _
          %1379 = vnop
        $region24: #{conv_bn_add.1} parent=19 // pred_fallthru
          _
        // Predicated region
        $region62: #{conv_bn_add.1} parent=19 // pred_check
          %p1380 = pneg %p78
        $region63: #{conv_bn_add.1} parent=19 // pred_check_branch
          %1382 = sbr.rel (%p1380) target = $region65
        $region64: #{conv_bn_add.1} parent=19 // pred_region
          %p1383 = scmp.lt.s32.totalorder %s11, 1
          %s1384 = scalar_select %p1383, %s11, 1
          %s1385 = scalar_lea.vmem %s2, %s1384
        $region65: #{conv_bn_add.1} parent=19 // pred_fallthru
          _
        // Predicated region
        $region66: #{conv_bn_add.1} parent=19 // pred_check
          %p1386 = pneg %p104
        $region67: #{conv_bn_add.1} parent=19 // pred_check_branch
          %1388 = sbr.rel (%p1386) target = $region69
        $region68: #{conv_bn_add.1} parent=19 // pred_region
          %p1389 = scmp.lt.s32.totalorder %s11, 1
          %s1390 = scalar_select %p1389, %s11, 1
          %s1391 = scalar_lea.vmem %s3, %s1390
        $region69: #{conv_bn_add.1} parent=19 // pred_fallthru
          _
        // Predicated region
        $region70: #{conv_bn_add.1} parent=19 // pred_check
          %p1392 = pneg %p130
        $region71: #{conv_bn_add.1} parent=19 // pred_check_branch
          %1394 = sbr.rel (%p1392) target = $region73
        $region72: #{conv_bn_add.1} parent=19 // pred_region
          %s1395 = sand.u32 %s120, 1
          %s1396 = sand.u32 %s120, 1
          %s1397 = smul.addr %s1396, 224
          %s1398 = scalar_lea.vmem [#allocation3], %s1397
          %s1399 = smul.addr %s11, 8
          %s1400 = scalar_lea.vmem %s4, %s1399
          // Predicated region
          $region74: #{conv_bn_add.1} parent=72 // pred_check
            _
          $region75: #{conv_bn_add.1} parent=72 // pred_check_branch
            %1402 = sbr.rel (0) target = $region77
          $region76: #{conv_bn_add.1} parent=72 // pred_region
            // Predicated region
            $region78: #{conv_bn_add.1} parent=76 // pred_check
              _
            $region79: #{conv_bn_add.1} parent=76 // pred_check_branch
              %1404 = sbr.rel (0) target = $region81
            $region80: #{conv_bn_add.1} parent=76 // pred_region
              // Predicated region
              $region93: #{conv_bn_add.1} parent=80 // pred_check
                _
              $region94: #{conv_bn_add.1} parent=80 // pred_check_branch
                %1473 = sbr.rel (0) target = $region96
              $region95: #{conv_bn_add.1} parent=80 // pred_region
                loop: start=0, step=1, limit=1
                $region97: #{conv_bn_add.1} parent=95 // loop_pre_header
                  _
                $region98: #{conv_bn_add.1} parent=95 // loop_header
                  %s1475 = sphi 0, %s1479
                  %p1476 = scmp.ge.s32.totalorder %s1475, 1
                  %s1480 = sphi %s1400, %s1400
                  %s1481 = sphi %s1398, %s1398
                $region99: #{conv_bn_add.1} parent=95 // loop_header_branch
                  %1478 = sbr.rel (%p1476) target = $region103
                $region100: #{conv_bn_add.1} parent=95 // loop_body
                  %v1482 = vld [vmem:[%s1480] sm:$0xff]
                  %1483 = vst [vmem:[%s1481] sm:$0xff] %v1482
                  %v1484 = vld [vmem:[%s1480 + $0x10] sm:$0xff]
                  %1485 = vst [vmem:[%s1481 + $0x8] sm:$0xff] %v1484
                  %v1486 = vld [vmem:[%s1480 + $0x20] sm:$0xff]
                  %1487 = vst [vmem:[%s1481 + $0x10] sm:$0xff] %v1486
                  %v1488 = vld [vmem:[%s1480 + $0x30] sm:$0xff]
                  %1489 = vst [vmem:[%s1481 + $0x18] sm:$0xff] %v1488
                  %v1490 = vld [vmem:[%s1480 + $0x40] sm:$0xff]
                  %1491 = vst [vmem:[%s1481 + $0x20] sm:$0xff] %v1490
                  %v1492 = vld [vmem:[%s1480 + $0x50] sm:$0xff]
                  %1493 = vst [vmem:[%s1481 + $0x28] sm:$0xff] %v1492
                  %v1494 = vld [vmem:[%s1480 + $0x60] sm:$0xff]
                  %1495 = vst [vmem:[%s1481 + $0x30] sm:$0xff] %v1494
                  %v1496 = vld [vmem:[%s1480 + $0x70] sm:$0xff]
                  %1497 = vst [vmem:[%s1481 + $0x38] sm:$0xff] %v1496
                  %v1498 = vld [vmem:[%s1480 + $0x80] sm:$0xff]
                  %1499 = vst [vmem:[%s1481 + $0x40] sm:$0xff] %v1498
                  %v1500 = vld [vmem:[%s1480 + $0x90] sm:$0xff]
                  %1501 = vst [vmem:[%s1481 + $0x48] sm:$0xff] %v1500
                  %v1502 = vld [vmem:[%s1480 + $0xa0] sm:$0xff]
                  %1503 = vst [vmem:[%s1481 + $0x50] sm:$0xff] %v1502
                  %v1504 = vld [vmem:[%s1480 + $0xb0] sm:$0xff]
                  %1505 = vst [vmem:[%s1481 + $0x58] sm:$0xff] %v1504
                  %v1506 = vld [vmem:[%s1480 + $0xc0] sm:$0xff]
                  %1507 = vst [vmem:[%s1481 + $0x60] sm:$0xff] %v1506
                  %v1508 = vld [vmem:[%s1480 + $0xd0] sm:$0xff]
                  %1509 = vst [vmem:[%s1481 + $0x68] sm:$0xff] %v1508
                  %v1510 = vld [vmem:[%s1480 + $0xe0] sm:$0xff]
                  %1511 = vst [vmem:[%s1481 + $0x70] sm:$0xff] %v1510
                  %v1512 = vld [vmem:[%s1480 + $0xf0] sm:$0xff]
                  %1513 = vst [vmem:[%s1481 + $0x78] sm:$0xff] %v1512
                  %v1514 = vld [vmem:[%s1480 + $0x100] sm:$0xff]
                  %1515 = vst [vmem:[%s1481 + $0x80] sm:$0xff] %v1514
                  %v1516 = vld [vmem:[%s1480 + $0x110] sm:$0xff]
                  %1517 = vst [vmem:[%s1481 + $0x88] sm:$0xff] %v1516
                  %v1518 = vld [vmem:[%s1480 + $0x120] sm:$0xff]
                  %1519 = vst [vmem:[%s1481 + $0x90] sm:$0xff] %v1518
                  %v1520 = vld [vmem:[%s1480 + $0x130] sm:$0xff]
                  %1521 = vst [vmem:[%s1481 + $0x98] sm:$0xff] %v1520
                  %v1522 = vld [vmem:[%s1480 + $0x140] sm:$0xff]
                  %1523 = vst [vmem:[%s1481 + $0xa0] sm:$0xff] %v1522
                  %v1524 = vld [vmem:[%s1480 + $0x150] sm:$0xff]
                  %1525 = vst [vmem:[%s1481 + $0xa8] sm:$0xff] %v1524
                  %v1526 = vld [vmem:[%s1480 + $0x160] sm:$0xff]
                  %1527 = vst [vmem:[%s1481 + $0xb0] sm:$0xff] %v1526
                  %v1528 = vld [vmem:[%s1480 + $0x170] sm:$0xff]
                  %1529 = vst [vmem:[%s1481 + $0xb8] sm:$0xff] %v1528
                  %v1530 = vld [vmem:[%s1480 + $0x180] sm:$0xff]
                  %1531 = vst [vmem:[%s1481 + $0xc0] sm:$0xff] %v1530
                  %v1532 = vld [vmem:[%s1480 + $0x190] sm:$0xff]
                  %1533 = vst [vmem:[%s1481 + $0xc8] sm:$0xff] %v1532
                  %v1534 = vld [vmem:[%s1480 + $0x1a0] sm:$0xff]
                  %1535 = vst [vmem:[%s1481 + $0xd0] sm:$0xff] %v1534
                  %v1536 = vld [vmem:[%s1480 + $0x1b0] sm:$0xff]
                  %1537 = vst [vmem:[%s1481 + $0xd8] sm:$0xff] %v1536
                $region101: #{conv_bn_add.1} parent=95 // loop_footer
                  %s1479 = sadd.s32 1, %s1475
                $region102: #{conv_bn_add.1} parent=95 // loop_footer_branch
                  %1474 = sbr.rel target = $region98
                $region103: #{conv_bn_add.1} parent=95 // loop_exit
                  _
              $region96: #{conv_bn_add.1} parent=80 // pred_fallthru
                _
              // Predicated region
              $region104: #{conv_bn_add.1} parent=80 // pred_check
                _
              $region105: #{conv_bn_add.1} parent=80 // pred_check_branch
                %1539 = sbr.rel target = $region107
              $region106: #{conv_bn_add.1} parent=80 // pred_region
                _
              $region107: #{conv_bn_add.1} parent=80 // pred_fallthru
                _
            $region81: #{conv_bn_add.1} parent=76 // pred_fallthru
              _
            // Predicated region
            $region82: #{conv_bn_add.1} parent=76 // pred_check
              _
            $region83: #{conv_bn_add.1} parent=76 // pred_check_branch
              %1406 = sbr.rel target = $region85
            $region84: #{conv_bn_add.1} parent=76 // pred_region
              loop: start=0, step=1, limit=1
              $region86: #{conv_bn_add.1} parent=84 // loop_pre_header
                _
              $region87: #{conv_bn_add.1} parent=84 // loop_header
                %s1409 = sphi 0, %s1413
                %p1410 = scmp.ge.s32.totalorder %s1409, 1
                %s1414 = sphi %s1400, %s1400
                %s1415 = sphi %s1398, %s1398
              $region88: #{conv_bn_add.1} parent=84 // loop_header_branch
                %1412 = sbr.rel (%p1410) target = $region92
              $region89: #{conv_bn_add.1} parent=84 // loop_body
                %v1416 = vld [vmem:[%s1414] sm:$0xff]
                %1417 = vst [vmem:[%s1415] sm:$0xff] %v1416
                %v1418 = vld [vmem:[%s1414 + $0x10] sm:$0xff]
                %1419 = vst [vmem:[%s1415 + $0x8] sm:$0xff] %v1418
                %v1420 = vld [vmem:[%s1414 + $0x20] sm:$0xff]
                %1421 = vst [vmem:[%s1415 + $0x10] sm:$0xff] %v1420
                %v1422 = vld [vmem:[%s1414 + $0x30] sm:$0xff]
                %1423 = vst [vmem:[%s1415 + $0x18] sm:$0xff] %v1422
                %v1424 = vld [vmem:[%s1414 + $0x40] sm:$0xff]
                %1425 = vst [vmem:[%s1415 + $0x20] sm:$0xff] %v1424
                %v1426 = vld [vmem:[%s1414 + $0x50] sm:$0xff]
                %1427 = vst [vmem:[%s1415 + $0x28] sm:$0xff] %v1426
                %v1428 = vld [vmem:[%s1414 + $0x60] sm:$0xff]
                %1429 = vst [vmem:[%s1415 + $0x30] sm:$0xff] %v1428
                %v1430 = vld [vmem:[%s1414 + $0x70] sm:$0xff]
                %1431 = vst [vmem:[%s1415 + $0x38] sm:$0xff] %v1430
                %v1432 = vld [vmem:[%s1414 + $0x80] sm:$0xff]
                %1433 = vst [vmem:[%s1415 + $0x40] sm:$0xff] %v1432
                %v1434 = vld [vmem:[%s1414 + $0x90] sm:$0xff]
                %1435 = vst [vmem:[%s1415 + $0x48] sm:$0xff] %v1434
                %v1436 = vld [vmem:[%s1414 + $0xa0] sm:$0xff]
                %1437 = vst [vmem:[%s1415 + $0x50] sm:$0xff] %v1436
                %v1438 = vld [vmem:[%s1414 + $0xb0] sm:$0xff]
                %1439 = vst [vmem:[%s1415 + $0x58] sm:$0xff] %v1438
                %v1440 = vld [vmem:[%s1414 + $0xc0] sm:$0xff]
                %1441 = vst [vmem:[%s1415 + $0x60] sm:$0xff] %v1440
                %v1442 = vld [vmem:[%s1414 + $0xd0] sm:$0xff]
                %1443 = vst [vmem:[%s1415 + $0x68] sm:$0xff] %v1442
                %v1444 = vld [vmem:[%s1414 + $0xe0] sm:$0xff]
                %1445 = vst [vmem:[%s1415 + $0x70] sm:$0xff] %v1444
                %v1446 = vld [vmem:[%s1414 + $0xf0] sm:$0xff]
                %1447 = vst [vmem:[%s1415 + $0x78] sm:$0xff] %v1446
                %v1448 = vld [vmem:[%s1414 + $0x100] sm:$0xff]
                %1449 = vst [vmem:[%s1415 + $0x80] sm:$0xff] %v1448
                %v1450 = vld [vmem:[%s1414 + $0x110] sm:$0xff]
                %1451 = vst [vmem:[%s1415 + $0x88] sm:$0xff] %v1450
                %v1452 = vld [vmem:[%s1414 + $0x120] sm:$0xff]
                %1453 = vst [vmem:[%s1415 + $0x90] sm:$0xff] %v1452
                %v1454 = vld [vmem:[%s1414 + $0x130] sm:$0xff]
                %1455 = vst [vmem:[%s1415 + $0x98] sm:$0xff] %v1454
                %v1456 = vld [vmem:[%s1414 + $0x140] sm:$0xff]
                %1457 = vst [vmem:[%s1415 + $0xa0] sm:$0xff] %v1456
                %v1458 = vld [vmem:[%s1414 + $0x150] sm:$0xff]
                %1459 = vst [vmem:[%s1415 + $0xa8] sm:$0xff] %v1458
                %v1460 = vld [vmem:[%s1414 + $0x160] sm:$0xff]
                %1461 = vst [vmem:[%s1415 + $0xb0] sm:$0xff] %v1460
                %v1462 = vld [vmem:[%s1414 + $0x170] sm:$0xff]
                %1463 = vst [vmem:[%s1415 + $0xb8] sm:$0xff] %v1462
                %v1464 = vld [vmem:[%s1414 + $0x180] sm:$0xff]
                %1465 = vst [vmem:[%s1415 + $0xc0] sm:$0xff] %v1464
                %v1466 = vld [vmem:[%s1414 + $0x190] sm:$0xff]
                %1467 = vst [vmem:[%s1415 + $0xc8] sm:$0xff] %v1466
                %v1468 = vld [vmem:[%s1414 + $0x1a0] sm:$0xff]
                %1469 = vst [vmem:[%s1415 + $0xd0] sm:$0xff] %v1468
                %v1470 = vld [vmem:[%s1414 + $0x1b0] sm:$0xff]
                %1471 = vst [vmem:[%s1415 + $0xd8] sm:$0xff] %v1470
              $region90: #{conv_bn_add.1} parent=84 // loop_footer
                %s1413 = sadd.s32 1, %s1409
              $region91: #{conv_bn_add.1} parent=84 // loop_footer_branch
                %1408 = sbr.rel target = $region87
              $region92: #{conv_bn_add.1} parent=84 // loop_exit
                _
            $region85: #{conv_bn_add.1} parent=76 // pred_fallthru
              _
          $region77: #{conv_bn_add.1} parent=72 // pred_fallthru
            _
          %1540 = vnop
        $region73: #{conv_bn_add.1} parent=19 // pred_fallthru
          _
      $region20: #{conv_bn_add.1} parent=5 // pred_fallthru
        _
      %p1541 = scmp.le.s32.totalorder 1, %s11
      %p1542 = scmp.lt.s32.totalorder %s11, 3
      %p1543 = pnand %p1541, %p1542
      %p1544 = pneg %p1543
      // Predicated region
      $region108: #{conv_bn_add.1} parent=5 // pred_check
        _
      $region109: #{conv_bn_add.1} parent=5 // pred_check_branch
        %1546 = sbr.rel (%p1543) target = $region111
      $region110: #{conv_bn_add.1} parent=5 // pred_region
        %s1547 = ssub.s32 %s11, 1
        %s1548 = sand.u32 %s45, 1
        %s1549 = sand.u32 %s45, 1
        %s1550 = smul.addr %s1549, 1152
        %s1551 = scalar_lea.vmem [#allocation2], %s1550
        // Predicated region
        $region112: #{conv_bn_add.1} parent=110 // pred_check
          %p1552 = pneg %p58
        $region113: #{conv_bn_add.1} parent=110 // pred_check_branch
          %1554 = sbr.rel (%p1552) target = $region115
        $region114: #{conv_bn_add.1} parent=110 // pred_region
          _
        $region115: #{conv_bn_add.1} parent=110 // pred_fallthru
          _
        %s1555 = sand.u32 %s123, 1
        %s1556 = sand.u32 %s123, 1
        %s1557 = smul.addr %s1556, 224
        %s1558 = scalar_lea.vmem [#allocation3], %s1557
        // Predicated region
        $region116: #{conv_bn_add.1} parent=110 // pred_check
          %p1559 = pneg %p136
        $region117: #{conv_bn_add.1} parent=110 // pred_check_branch
          %1561 = sbr.rel (%p1559) target = $region119
        $region118: #{conv_bn_add.1} parent=110 // pred_region
          _
        $region119: #{conv_bn_add.1} parent=110 // pred_fallthru
          _
        %p1562 = pneg %p32
        %p1563 = pneg %p29
        %s1564 = sand.u32 %s45, 1
        %s1565 = sand.u32 %s45, 1
        %s1566 = smul.addr %s1565, 1152
        %s1567 = scalar_lea.vmem [#allocation2], %s1566
        %p1568 = pneg %p58
        %p1569 = pneg %p55
        %p1570 = scmp.lt.s32.totalorder %s16, 1
        %s1571 = scalar_select %p1570, %s16, 1
        %s1572 = scalar_lea.vmem %s2, %s1571
        %p1573 = pneg %p84
        %p1574 = pneg %p81
        %p1575 = scmp.lt.s32.totalorder %s16, 1
        %s1576 = scalar_select %p1575, %s16, 1
        %s1577 = scalar_lea.vmem %s3, %s1576
        %p1578 = pneg %p110
        %p1579 = pneg %p107
        %s1580 = sand.u32 %s123, 1
        %s1581 = sand.u32 %s123, 1
        %s1582 = smul.addr %s1581, 224
        %s1583 = scalar_lea.vmem [#allocation3], %s1582
        %p1584 = pneg %p136
        %p1585 = pneg %p133
        %p1586 = pneg %p162
        %p1587 = pneg %p159
        %s1588 = sand.u32 %s149, 1
        %s1589 = sand.u32 %s149, 1
        %s1590 = smul.addr %s1589, 224
        %s1591 = scalar_lea.vmem [#allocation4], %s1590
        %p1592 = scmp.lt.s32.totalorder %s16, 1
        %s1593 = scalar_select %p1592, %s16, 1
        %s1594 = scalar_lea.vmem %s2, %s1593
        %p1595 = scmp.lt.s32.totalorder %s16, 1
        %s1596 = scalar_select %p1595, %s16, 1
        %s1597 = scalar_lea.vmem %s3, %s1596
        %v1599 = vld [vmem:[%s0] sm:$0xff]
        %v1600 = vld [vmem:[%s0 + $0x8] sm:$0xff]
        %v1601 = vld [vmem:[%s0 + $0x10] sm:$0xff]
        %v1602 = vld [vmem:[%s0 + $0x18] sm:$0xff]
        %v1603 = vld [vmem:[%s0 + $0x20] sm:$0xff]
        %v1604 = vld [vmem:[%s0 + $0x28] sm:$0xff]
        %v1605 = vld [vmem:[%s0 + $0x30] sm:$0xff]
        %v1606 = vld [vmem:[%s0 + $0x38] sm:$0xff]
        %v1607 = vld [vmem:[%s0 + $0x40] sm:$0xff]
        %v1608 = vld [vmem:[%s0 + $0x48] sm:$0xff]
        %v1609 = vld [vmem:[%s0 + $0x50] sm:$0xff]
        %v1610 = vld [vmem:[%s0 + $0x58] sm:$0xff]
        %v1611 = vld [vmem:[%s0 + $0x60] sm:$0xff]
        %v1612 = vld [vmem:[%s0 + $0x68] sm:$0xff]
        %v1613 = vld [vmem:[%s0 + $0x70] sm:$0xff]
        %v1614 = vld [vmem:[%s0 + $0x78] sm:$0xff]
        %v1615 = vld [vmem:[%s0 + $0x80] sm:$0xff]
        %v1616 = vld [vmem:[%s0 + $0x88] sm:$0xff]
        %v1617 = vld [vmem:[%s0 + $0x90] sm:$0xff]
        %v1618 = vld [vmem:[%s0 + $0x98] sm:$0xff]
        %v1619 = vld [vmem:[%s0 + $0xa0] sm:$0xff]
        %v1620 = vld [vmem:[%s0 + $0xa8] sm:$0xff]
        %v1621 = vld [vmem:[%s0 + $0xb0] sm:$0xff]
        %v1622 = vld [vmem:[%s0 + $0xb8] sm:$0xff]
        %v1623 = vld [vmem:[%s0 + $0xc0] sm:$0xff]
        %v1624 = vld [vmem:[%s0 + $0xc8] sm:$0xff]
        %v1625 = vld [vmem:[%s0 + $0xd0] sm:$0xff]
        %v1626 = vld [vmem:[%s0 + $0xd8] sm:$0xff]
        %v1627 = vld [vmem:[%s0 + $0xe0] sm:$0xff]
        %v1628 = vld [vmem:[%s0 + $0xe8] sm:$0xff]
        %v1629 = vld [vmem:[%s0 + $0xf0] sm:$0xff]
        %v1630 = vld [vmem:[%s0 + $0xf8] sm:$0xff]
        %v1631 = vld [vmem:[%s0 + $0x100] sm:$0xff]
        %v1632 = vld [vmem:[%s0 + $0x108] sm:$0xff]
        %v1633 = vld [vmem:[%s0 + $0x110] sm:$0xff]
        %v1634 = vld [vmem:[%s0 + $0x118] sm:$0xff]
        %v1635 = vld [vmem:[%s0 + $0x120] sm:$0xff]
        %v1636 = vld [vmem:[%s0 + $0x128] sm:$0xff]
        %v1637 = vld [vmem:[%s0 + $0x130] sm:$0xff]
        %v1638 = vld [vmem:[%s0 + $0x138] sm:$0xff]
        %v1639 = vld [vmem:[%s0 + $0x140] sm:$0xff]
        %v1640 = vld [vmem:[%s0 + $0x148] sm:$0xff]
        %v1641 = vld [vmem:[%s0 + $0x150] sm:$0xff]
        %v1642 = vld [vmem:[%s0 + $0x158] sm:$0xff]
        %v1643 = vld [vmem:[%s0 + $0x160] sm:$0xff]
        %v1644 = vld [vmem:[%s0 + $0x168] sm:$0xff]
        %v1645 = vld [vmem:[%s0 + $0x170] sm:$0xff]
        %v1646 = vld [vmem:[%s0 + $0x178] sm:$0xff]
        %v1647 = vld [vmem:[%s0 + $0x180] sm:$0xff]
        %v1648 = vld [vmem:[%s0 + $0x188] sm:$0xff]
        %v1649 = vld [vmem:[%s0 + $0x190] sm:$0xff]
        %v1650 = vld [vmem:[%s0 + $0x198] sm:$0xff]
        %v1651 = vld [vmem:[%s0 + $0x1a0] sm:$0xff]
        %v1652 = vld [vmem:[%s0 + $0x1a8] sm:$0xff]
        %v1653 = vld [vmem:[%s0 + $0x1b0] sm:$0xff]
        %v1654 = vld [vmem:[%s0 + $0x1b8] sm:$0xff]
        %v1655 = vpack.c.bf16 %v1601, %v1599
        %v1656 = vpack.c.bf16 %v1602, %v1600
        %v1657 = vpack.c.bf16 %v1605, %v1603
        %v1658 = vpack.c.bf16 %v1606, %v1604
        %v1659 = vpack.c.bf16 %v1609, %v1607
        %v1660 = vpack.c.bf16 %v1610, %v1608
        %v1661 = vpack.c.bf16 %v1613, %v1611
        %v1662 = vpack.c.bf16 %v1614, %v1612
        %v1663 = vpack.c.bf16 %v1617, %v1615
        %v1664 = vpack.c.bf16 %v1618, %v1616
        %v1665 = vpack.c.bf16 %v1621, %v1619
        %v1666 = vpack.c.bf16 %v1622, %v1620
        %v1667 = vpack.c.bf16 %v1625, %v1623
        %v1668 = vpack.c.bf16 %v1626, %v1624
        %v1669 = vpack.c.bf16 %v1629, %v1627
        %v1670 = vpack.c.bf16 %v1630, %v1628
        %v1671 = vpack.c.bf16 %v1633, %v1631
        %v1672 = vpack.c.bf16 %v1634, %v1632
        %v1673 = vpack.c.bf16 %v1637, %v1635
        %v1674 = vpack.c.bf16 %v1638, %v1636
        %v1675 = vpack.c.bf16 %v1641, %v1639
        %v1676 = vpack.c.bf16 %v1642, %v1640
        %v1677 = vpack.c.bf16 %v1645, %v1643
        %v1678 = vpack.c.bf16 %v1646, %v1644
        %v1679 = vpack.c.bf16 %v1649, %v1647
        %v1680 = vpack.c.bf16 %v1650, %v1648
        %v1681 = vpack.c.bf16 %v1653, %v1651
        %v1682 = vpack.c.bf16 %v1654, %v1652
        %v1683 = vld [vmem:[%s1551] sm:$0xf]
        %v1684 = vld [vmem:[%s1551 + $0x4] sm:$0xf]
        %v1685 = vld [vmem:[%s1551 + $0x8] sm:$0xf]
        %v1686 = vld [vmem:[%s1551 + $0xc] sm:$0xf]
        %v1687 = vld [vmem:[%s1551 + $0x10] sm:$0xf]
        %v1688 = vld [vmem:[%s1551 + $0x14] sm:$0xf]
        %v1689 = vld [vmem:[%s1551 + $0x18] sm:$0xf]
        %v1690 = vld [vmem:[%s1551 + $0x1c] sm:$0xf]
        %v1691 = vld [vmem:[%s1551 + $0x20] sm:$0xf]
        %v1692 = vld [vmem:[%s1551 + $0x24] sm:$0xf]
        %v1693 = vld [vmem:[%s1551 + $0x28] sm:$0xf]
        %v1694 = vld [vmem:[%s1551 + $0x2c] sm:$0xf]
        %v1695 = vld [vmem:[%s1551 + $0x30] sm:$0xf]
        %v1696 = vld [vmem:[%s1551 + $0x34] sm:$0xf]
        %v1697 = vld [vmem:[%s1551 + $0x38] sm:$0xf]
        %v1698 = vld [vmem:[%s1551 + $0x3c] sm:$0xf]
        %v1699 = vld [vmem:[%s1551 + $0x40] sm:$0xf]
        %v1700 = vld [vmem:[%s1551 + $0x44] sm:$0xf]
        %v1701 = vld [vmem:[%s1551 + $0x48] sm:$0xf]
        %v1702 = vld [vmem:[%s1551 + $0x4c] sm:$0xf]
        %v1703 = vld [vmem:[%s1551 + $0x50] sm:$0xf]
        %v1704 = vld [vmem:[%s1551 + $0x54] sm:$0xf]
        %v1705 = vld [vmem:[%s1551 + $0x58] sm:$0xf]
        %v1706 = vld [vmem:[%s1551 + $0x5c] sm:$0xf]
        %v1707 = vld [vmem:[%s1551 + $0x60] sm:$0xf]
        %v1708 = vld [vmem:[%s1551 + $0x64] sm:$0xf]
        %v1709 = vld [vmem:[%s1551 + $0x68] sm:$0xf]
        %v1710 = vld [vmem:[%s1551 + $0x6c] sm:$0xf]
        %v1711 = vld [vmem:[%s1551 + $0x70] sm:$0xf]
        %v1712 = vld [vmem:[%s1551 + $0x74] sm:$0xf]
        %v1713 = vld [vmem:[%s1551 + $0x78] sm:$0xf]
        %v1714 = vld [vmem:[%s1551 + $0x7c] sm:$0xf]
        %v1715 = vld [vmem:[%s0] sm:$0xfe]
        %v1716 = vld [vmem:[%s0 + $0x8] sm:$0xfe]
        %v1717 = vld [vmem:[%s0 + $0x1c0] sm:$0x1]
        %v1718 = vld [vmem:[%s0 + $0x1c8] sm:$0x1]
        %v1719 = vpack.c.bf16 %v1601, %v1715
        %v1720 = vpack.c.bf16 %v1602, %v1716
        %v1721 = vpack.c.bf16 %v1717, %v1717
        %v1722 = vpack.c.bf16 %v1718, %v1718
        %s1723 = scalar_lea.vmem %s1551, 128 [#allocation2]
        %v1724 = vld [vmem:[%s1723] sm:$0xf]
        %v1725 = vld [vmem:[%s1723 + $0x4] sm:$0xf]
        %v1726 = vld [vmem:[%s1723 + $0x8] sm:$0xf]
        %v1727 = vld [vmem:[%s1723 + $0xc] sm:$0xf]
        %v1728 = vld [vmem:[%s1723 + $0x10] sm:$0xf]
        %v1729 = vld [vmem:[%s1723 + $0x14] sm:$0xf]
        %v1730 = vld [vmem:[%s1723 + $0x18] sm:$0xf]
        %v1731 = vld [vmem:[%s1723 + $0x1c] sm:$0xf]
        %v1732 = vld [vmem:[%s1723 + $0x20] sm:$0xf]
        %v1733 = vld [vmem:[%s1723 + $0x24] sm:$0xf]
        %v1734 = vld [vmem:[%s1723 + $0x28] sm:$0xf]
        %v1735 = vld [vmem:[%s1723 + $0x2c] sm:$0xf]
        %v1736 = vld [vmem:[%s1723 + $0x30] sm:$0xf]
        %v1737 = vld [vmem:[%s1723 + $0x34] sm:$0xf]
        %v1738 = vld [vmem:[%s1723 + $0x38] sm:$0xf]
        %v1739 = vld [vmem:[%s1723 + $0x3c] sm:$0xf]
        %v1740 = vld [vmem:[%s1723 + $0x40] sm:$0xf]
        %v1741 = vld [vmem:[%s1723 + $0x44] sm:$0xf]
        %v1742 = vld [vmem:[%s1723 + $0x48] sm:$0xf]
        %v1743 = vld [vmem:[%s1723 + $0x4c] sm:$0xf]
        %v1744 = vld [vmem:[%s1723 + $0x50] sm:$0xf]
        %v1745 = vld [vmem:[%s1723 + $0x54] sm:$0xf]
        %v1746 = vld [vmem:[%s1723 + $0x58] sm:$0xf]
        %v1747 = vld [vmem:[%s1723 + $0x5c] sm:$0xf]
        %v1748 = vld [vmem:[%s1723 + $0x60] sm:$0xf]
        %v1749 = vld [vmem:[%s1723 + $0x64] sm:$0xf]
        %v1750 = vld [vmem:[%s1723 + $0x68] sm:$0xf]
        %v1751 = vld [vmem:[%s1723 + $0x6c] sm:$0xf]
        %v1752 = vld [vmem:[%s1723 + $0x70] sm:$0xf]
        %v1753 = vld [vmem:[%s1723 + $0x74] sm:$0xf]
        %v1754 = vld [vmem:[%s1723 + $0x78] sm:$0xf]
        %v1755 = vld [vmem:[%s1723 + $0x7c] sm:$0xf]
        %vm1756 = vsmask.f32 7424
        %v1758 = vshrl.u32 %v1719, 16
        %v1760 = vshll.u32 %v1719, 16
        %v1762 = vrot.slane %v1760, 1
        %v1763 = vor.u32 %v1758, %v1762
        %v1765 = vshll.u32 %v1657, 16
        %v1767 = vrot.slane %v1765, 1
        %v1768 = vsel %vm1756, %v1763, %v1767
        %v1770 = vshrl.u32 %v1720, 16
        %v1772 = vshll.u32 %v1720, 16
        %v1774 = vrot.slane %v1772, 1
        %v1775 = vor.u32 %v1770, %v1774
        %v1777 = vshll.u32 %v1658, 16
        %v1779 = vrot.slane %v1777, 1
        %v1780 = vsel %vm1756, %v1775, %v1779
        %v1781 = vshrl.u32 %v1657, 16
        %v1783 = vor.u32 %v1781, %v1767
        %v1785 = vshll.u32 %v1659, 16
        %v1787 = vrot.slane %v1785, 1
        %v1788 = vsel %vm1756, %v1783, %v1787
        %v1789 = vshrl.u32 %v1658, 16
        %v1791 = vor.u32 %v1789, %v1779
        %v1793 = vshll.u32 %v1660, 16
        %v1795 = vrot.slane %v1793, 1
        %v1796 = vsel %vm1756, %v1791, %v1795
        %v1797 = vshrl.u32 %v1659, 16
        %v1799 = vor.u32 %v1797, %v1787
        %v1801 = vshll.u32 %v1661, 16
        %v1803 = vrot.slane %v1801, 1
        %v1804 = vsel %vm1756, %v1799, %v1803
        %v1805 = vshrl.u32 %v1660, 16
        %v1807 = vor.u32 %v1805, %v1795
        %v1809 = vshll.u32 %v1662, 16
        %v1811 = vrot.slane %v1809, 1
        %v1812 = vsel %vm1756, %v1807, %v1811
        %v1813 = vshrl.u32 %v1661, 16
        %v1815 = vor.u32 %v1813, %v1803
        %v1817 = vshll.u32 %v1663, 16
        %v1819 = vrot.slane %v1817, 1
        %v1820 = vsel %vm1756, %v1815, %v1819
        %v1821 = vshrl.u32 %v1662, 16
        %v1823 = vor.u32 %v1821, %v1811
        %v1825 = vshll.u32 %v1664, 16
        %v1827 = vrot.slane %v1825, 1
        %v1828 = vsel %vm1756, %v1823, %v1827
        %v1829 = vshrl.u32 %v1663, 16
        %v1831 = vor.u32 %v1829, %v1819
        %v1833 = vshll.u32 %v1665, 16
        %v1835 = vrot.slane %v1833, 1
        %v1836 = vsel %vm1756, %v1831, %v1835
        %v1837 = vshrl.u32 %v1664, 16
        %v1839 = vor.u32 %v1837, %v1827
        %v1841 = vshll.u32 %v1666, 16
        %v1843 = vrot.slane %v1841, 1
        %v1844 = vsel %vm1756, %v1839, %v1843
        %v1845 = vshrl.u32 %v1665, 16
        %v1847 = vor.u32 %v1845, %v1835
        %v1849 = vshll.u32 %v1667, 16
        %v1851 = vrot.slane %v1849, 1
        %v1852 = vsel %vm1756, %v1847, %v1851
        %v1853 = vshrl.u32 %v1666, 16
        %v1855 = vor.u32 %v1853, %v1843
        %v1857 = vshll.u32 %v1668, 16
        %v1859 = vrot.slane %v1857, 1
        %v1860 = vsel %vm1756, %v1855, %v1859
        %v1861 = vshrl.u32 %v1667, 16
        %v1863 = vor.u32 %v1861, %v1851
        %v1865 = vshll.u32 %v1669, 16
        %v1867 = vrot.slane %v1865, 1
        %v1868 = vsel %vm1756, %v1863, %v1867
        %v1869 = vshrl.u32 %v1668, 16
        %v1871 = vor.u32 %v1869, %v1859
        %v1873 = vshll.u32 %v1670, 16
        %v1875 = vrot.slane %v1873, 1
        %v1876 = vsel %vm1756, %v1871, %v1875
        %v1877 = vshrl.u32 %v1669, 16
        %v1879 = vor.u32 %v1877, %v1867
        %v1881 = vshll.u32 %v1671, 16
        %v1883 = vrot.slane %v1881, 1
        %v1884 = vsel %vm1756, %v1879, %v1883
        %v1885 = vshrl.u32 %v1670, 16
        %v1887 = vor.u32 %v1885, %v1875
        %v1889 = vshll.u32 %v1672, 16
        %v1891 = vrot.slane %v1889, 1
        %v1892 = vsel %vm1756, %v1887, %v1891
        %v1893 = vshrl.u32 %v1671, 16
        %v1895 = vor.u32 %v1893, %v1883
        %v1897 = vshll.u32 %v1673, 16
        %v1899 = vrot.slane %v1897, 1
        %v1900 = vsel %vm1756, %v1895, %v1899
        %v1901 = vshrl.u32 %v1672, 16
        %v1903 = vor.u32 %v1901, %v1891
        %v1905 = vshll.u32 %v1674, 16
        %v1907 = vrot.slane %v1905, 1
        %v1908 = vsel %vm1756, %v1903, %v1907
        %v1909 = vshrl.u32 %v1673, 16
        %v1911 = vor.u32 %v1909, %v1899
        %v1913 = vshll.u32 %v1675, 16
        %v1915 = vrot.slane %v1913, 1
        %v1916 = vsel %vm1756, %v1911, %v1915
        %v1917 = vshrl.u32 %v1674, 16
        %v1919 = vor.u32 %v1917, %v1907
        %v1921 = vshll.u32 %v1676, 16
        %v1923 = vrot.slane %v1921, 1
        %v1924 = vsel %vm1756, %v1919, %v1923
        %v1925 = vshrl.u32 %v1675, 16
        %v1927 = vor.u32 %v1925, %v1915
        %v1929 = vshll.u32 %v1677, 16
        %v1931 = vrot.slane %v1929, 1
        %v1932 = vsel %vm1756, %v1927, %v1931
        %v1933 = vshrl.u32 %v1676, 16
        %v1935 = vor.u32 %v1933, %v1923
        %v1937 = vshll.u32 %v1678, 16
        %v1939 = vrot.slane %v1937, 1
        %v1940 = vsel %vm1756, %v1935, %v1939
        %v1941 = vshrl.u32 %v1677, 16
        %v1943 = vor.u32 %v1941, %v1931
        %v1945 = vshll.u32 %v1679, 16
        %v1947 = vrot.slane %v1945, 1
        %v1948 = vsel %vm1756, %v1943, %v1947
        %v1949 = vshrl.u32 %v1678, 16
        %v1951 = vor.u32 %v1949, %v1939
        %v1953 = vshll.u32 %v1680, 16
        %v1955 = vrot.slane %v1953, 1
        %v1956 = vsel %vm1756, %v1951, %v1955
        %v1957 = vshrl.u32 %v1679, 16
        %v1959 = vor.u32 %v1957, %v1947
        %v1961 = vshll.u32 %v1681, 16
        %v1963 = vrot.slane %v1961, 1
        %v1964 = vsel %vm1756, %v1959, %v1963
        %v1965 = vshrl.u32 %v1680, 16
        %v1967 = vor.u32 %v1965, %v1955
        %v1969 = vshll.u32 %v1682, 16
        %v1971 = vrot.slane %v1969, 1
        %v1972 = vsel %vm1756, %v1967, %v1971
        %v1973 = vshrl.u32 %v1681, 16
        %v1975 = vor.u32 %v1973, %v1963
        %v1977 = vshll.u32 %v1721, 16
        %v1979 = vrot.slane %v1977, 1
        %v1980 = vsel %vm1756, %v1975, %v1979
        %v1981 = vshrl.u32 %v1682, 16
        %v1983 = vor.u32 %v1981, %v1971
        %v1985 = vshll.u32 %v1722, 16
        %v1987 = vrot.slane %v1985, 1
        %v1988 = vsel %vm1756, %v1983, %v1987
        %v2049 = vunpack.c.l.b16 %v1724
        %v2050 = vunpack.c.l.b16 %v1725
        %v2051 = vunpack.c.l.b16 %v1726
        %v2052 = vunpack.c.l.b16 %v1727
        %v2053 = vunpack.c.l.b16 %v1728
        %v2054 = vunpack.c.l.b16 %v1729
        %v2055 = vunpack.c.l.b16 %v1730
        %v2056 = vunpack.c.l.b16 %v1731
        %v2057 = vunpack.c.l.b16 %v1732
        %v2058 = vunpack.c.l.b16 %v1733
        %v2059 = vunpack.c.l.b16 %v1734
        %v2060 = vunpack.c.l.b16 %v1735
        %v2061 = vunpack.c.l.b16 %v1736
        %v2062 = vunpack.c.l.b16 %v1737
        %v2063 = vunpack.c.l.b16 %v1738
        %v2064 = vunpack.c.l.b16 %v1739
        %v2065 = vunpack.c.l.b16 %v1740
        %v2066 = vunpack.c.l.b16 %v1741
        %v2067 = vunpack.c.l.b16 %v1742
        %v2068 = vunpack.c.l.b16 %v1743
        %v2069 = vunpack.c.l.b16 %v1744
        %v2070 = vunpack.c.l.b16 %v1745
        %v2071 = vunpack.c.l.b16 %v1746
        %v2072 = vunpack.c.l.b16 %v1747
        %v2073 = vunpack.c.l.b16 %v1748
        %v2074 = vunpack.c.l.b16 %v1749
        %v2075 = vunpack.c.l.b16 %v1750
        %v2076 = vunpack.c.l.b16 %v1751
        %v2077 = vunpack.c.l.b16 %v1752
        %v2078 = vunpack.c.l.b16 %v1753
        %v2079 = vunpack.c.l.b16 %v1754
        %v2080 = vunpack.c.l.b16 %v1755
        %v2081 = vpack.c.b16 %v2050, %v2049
        %v2082 = vpack.c.b16 %v2052, %v2051
        %v2083 = vpack.c.b16 %v2054, %v2053
        %v2084 = vpack.c.b16 %v2056, %v2055
        %v2085 = vpack.c.b16 %v2058, %v2057
        %v2086 = vpack.c.b16 %v2060, %v2059
        %v2087 = vpack.c.b16 %v2062, %v2061
        %v2088 = vpack.c.b16 %v2064, %v2063
        %v2089 = vpack.c.b16 %v2066, %v2065
        %v2090 = vpack.c.b16 %v2068, %v2067
        %v2091 = vpack.c.b16 %v2070, %v2069
        %v2092 = vpack.c.b16 %v2072, %v2071
        %v2093 = vpack.c.b16 %v2074, %v2073
        %v2094 = vpack.c.b16 %v2076, %v2075
        %v2095 = vpack.c.b16 %v2078, %v2077
        %v2096 = vpack.c.b16 %v2080, %v2079
        %2113 = vmatprep.subr.bf16.mxu0 0
        %2114 = vmatpush1.bf16.msra.mxu0 %v2081
        %2115 = vmatprep.subr.bf16.mxu0 0
        %2116 = vmatpush1.bf16.msra.mxu0 %v2082
        %2117 = vmatprep.subr.bf16.mxu0 0
        %2118 = vmatpush1.bf16.msra.mxu0 %v2083
        %2119 = vmatprep.subr.bf16.mxu0 0
        %2120 = vmatpush1.bf16.msra.mxu0 %v2084
        %2121 = vmatprep.subr.bf16.mxu0 0
        %2122 = vmatpush1.bf16.msra.mxu0 %v2085
        %2123 = vmatprep.subr.bf16.mxu0 0
        %2124 = vmatpush1.bf16.msra.mxu0 %v2086
        %2125 = vmatprep.subr.bf16.mxu0 0
        %2126 = vmatpush1.bf16.msra.mxu0 %v2087
        %2127 = vmatprep.subr.bf16.mxu0 0
        %2128 = vmatpush1.bf16.msra.mxu0 %v2088
        %2129 = vmatprep.subr.bf16.mxu0 0
        %2130 = vmatpush1.bf16.msra.mxu0 %v2089
        %2131 = vmatprep.subr.bf16.mxu0 0
        %2132 = vmatpush1.bf16.msra.mxu0 %v2090
        %2133 = vmatprep.subr.bf16.mxu0 0
        %2134 = vmatpush1.bf16.msra.mxu0 %v2091
        %2135 = vmatprep.subr.bf16.mxu0 0
        %2136 = vmatpush1.bf16.msra.mxu0 %v2092
        %2137 = vmatprep.subr.bf16.mxu0 0
        %2138 = vmatpush1.bf16.msra.mxu0 %v2093
        %2139 = vmatprep.subr.bf16.mxu0 0
        %2140 = vmatpush1.bf16.msra.mxu0 %v2094
        %2141 = vmatprep.subr.bf16.mxu0 0
        %2142 = vmatpush1.bf16.msra.mxu0 %v2095
        %2143 = vmatprep.subr.bf16.mxu0 0
        %2144 = vmatpush1.bf16.msra.mxu0 %v2096
        %2145 = vmatprep.mubr.bf16.mxu0 %v1780
        %2146 = vmatmul.mubr.bf16.gmra.mrb[0].mxu0 %v1768
        %v2147 = vpop.f32.mrb[0].mxu0
        %v2148 = vadd.f32 0.0, %v2147
        %v2149 = vpop.f32.mrb[0].mxu0
        %v2150 = vpop.f32.mrb[0].mxu0
        %v2151 = vadd.f32 0.0, %v2150
        %v2152 = vpop.f32.mrb[0].mxu0
        %2153 = vmatprep.mubr.bf16.mxu0 %v1796
        %2154 = vmatmul.mubr.bf16.gmra.mrb[0].mxu0 %v1788
        %v2155 = vpop.f32.mrb[0].mxu0
        %v2156 = vadd.f32 0.0, %v2155
        %v2157 = vpop.f32.mrb[0].mxu0
        %v2158 = vpop.f32.mrb[0].mxu0
        %v2159 = vadd.f32 0.0, %v2158
        %v2160 = vpop.f32.mrb[0].mxu0
        %2161 = vmatprep.mubr.bf16.mxu0 %v1812
        %2162 = vmatmul.mubr.bf16.gmra.mrb[0].mxu0 %v1804
        %v2163 = vpop.f32.mrb[0].mxu0
        %v2164 = vadd.f32 0.0, %v2163
        %v2165 = vpop.f32.mrb[0].mxu0
        %v2166 = vpop.f32.mrb[0].mxu0
        %v2167 = vadd.f32 0.0, %v2166
        %v2168 = vpop.f32.mrb[0].mxu0
        %2169 = vmatprep.mubr.bf16.mxu0 %v1828
        %2170 = vmatmul.mubr.bf16.gmra.mrb[0].mxu0 %v1820
        %v2171 = vpop.f32.mrb[0].mxu0
        %v2172 = vadd.f32 0.0, %v2171
        %v2173 = vpop.f32.mrb[0].mxu0
        %v2174 = vpop.f32.mrb[0].mxu0
        %v2175 = vadd.f32 0.0, %v2174
        %v2176 = vpop.f32.mrb[0].mxu0
        %2177 = vmatprep.mubr.bf16.mxu0 %v1844
        %2178 = vmatmul.mubr.bf16.gmra.mrb[0].mxu0 %v1836
        %v2179 = vpop.f32.mrb[0].mxu0
        %v2180 = vadd.f32 0.0, %v2179
        %v2181 = vpop.f32.mrb[0].mxu0
        %v2182 = vpop.f32.mrb[0].mxu0
        %v2183 = vadd.f32 0.0, %v2182
        %v2184 = vpop.f32.mrb[0].mxu0
        %2185 = vmatprep.mubr.bf16.mxu0 %v1860
        %2186 = vmatmul.mubr.bf16.gmra.mrb[0].mxu0 %v1852
        %v2187 = vpop.f32.mrb[0].mxu0
        %v2188 = vadd.f32 0.0, %v2187
        %v2189 = vpop.f32.mrb[0].mxu0
        %v2190 = vpop.f32.mrb[0].mxu0
        %v2191 = vadd.f32 0.0, %v2190
        %v2192 = vpop.f32.mrb[0].mxu0
        %2193 = vmatprep.mubr.bf16.mxu0 %v1876
        %2194 = vmatmul.mubr.bf16.gmra.mrb[0].mxu0 %v1868
        %v2195 = vpop.f32.mrb[0].mxu0
        %v2196 = vadd.f32 0.0, %v2195
        %v2197 = vpop.f32.mrb[0].mxu0
        %v2198 = vpop.f32.mrb[0].mxu0
        %v2199 = vadd.f32 0.0, %v2198
        %v2200 = vpop.f32.mrb[0].mxu0
        %2201 = vmatprep.mubr.bf16.mxu0 %v1892
        %2202 = vmatmul.mubr.bf16.gmra.mrb[0].mxu0 %v1884
        %v2203 = vpop.f32.mrb[0].mxu0
        %v2204 = vadd.f32 0.0, %v2203
        %v2205 = vpop.f32.mrb[0].mxu0
        %v2206 = vpop.f32.mrb[0].mxu0
        %v2207 = vadd.f32 0.0, %v2206
        %v2208 = vpop.f32.mrb[0].mxu0
        %2209 = vmatprep.mubr.bf16.mxu0 %v1908
        %2210 = vmatmul.mubr.bf16.gmra.mrb[0].mxu0 %v1900
        %v2211 = vpop.f32.mrb[0].mxu0
        %v2212 = vadd.f32 0.0, %v2211
        %v2213 = vpop.f32.mrb[0].mxu0
        %v2214 = vpop.f32.mrb[0].mxu0
        %v2215 = vadd.f32 0.0, %v2214
        %v2216 = vpop.f32.mrb[0].mxu0
        %2217 = vmatprep.mubr.bf16.mxu0 %v1924
        %2218 = vmatmul.mubr.bf16.gmra.mrb[0].mxu0 %v1916
        %v2219 = vpop.f32.mrb[0].mxu0
        %v2220 = vadd.f32 0.0, %v2219
        %v2221 = vpop.f32.mrb[0].mxu0
        %v2222 = vpop.f32.mrb[0].mxu0
        %v2223 = vadd.f32 0.0, %v2222
        %v2224 = vpop.f32.mrb[0].mxu0
        %2225 = vmatprep.mubr.bf16.mxu0 %v1940
        %2226 = vmatmul.mubr.bf16.gmra.mrb[0].mxu0 %v1932
        %v2227 = vpop.f32.mrb[0].mxu0
        %v2228 = vadd.f32 0.0, %v2227
        %v2229 = vpop.f32.mrb[0].mxu0
        %v2230 = vpop.f32.mrb[0].mxu0
        %v2231 = vadd.f32 0.0, %v2230
        %v2232 = vpop.f32.mrb[0].mxu0
        %2233 = vmatprep.mubr.bf16.mxu0 %v1956
        %2234 = vmatmul.mubr.bf16.gmra.mrb[0].mxu0 %v1948
        %v2235 = vpop.f32.mrb[0].mxu0
        %v2236 = vadd.f32 0.0, %v2235
        %v2237 = vpop.f32.mrb[0].mxu0
        %v2238 = vpop.f32.mrb[0].mxu0
        %v2239 = vadd.f32 0.0, %v2238
        %v2240 = vpop.f32.mrb[0].mxu0
        %2241 = vmatprep.mubr.bf16.mxu0 %v1972
        %2242 = vmatmul.mubr.bf16.gmra.mrb[0].mxu0 %v1964
        %v2243 = vpop.f32.mrb[0].mxu0
        %v2244 = vadd.f32 0.0, %v2243
        %v2245 = vpop.f32.mrb[0].mxu0
        %v2246 = vpop.f32.mrb[0].mxu0
        %v2247 = vadd.f32 0.0, %v2246
        %v2248 = vpop.f32.mrb[0].mxu0
        %2249 = vmatprep.mubr.bf16.mxu0 %v1988
        %2250 = vmatmul.mubr.bf16.gmra.mrb[0].mxu0 %v1980
        %v2251 = vpop.f32.mrb[0].mxu0
        %v2252 = vadd.f32 0.0, %v2251
        %v2253 = vpop.f32.mrb[0].mxu0
        %v2254 = vpop.f32.mrb[0].mxu0
        %v2255 = vadd.f32 0.0, %v2254
        %v2256 = vpop.f32.mrb[0].mxu0
        %2257 = vdwg.mxu0
        %v2290 = vunpack.c.l.b16 %v1683
        %v2291 = vunpack.c.l.b16 %v1684
        %v2292 = vunpack.c.l.b16 %v1685
        %v2293 = vunpack.c.l.b16 %v1686
        %v2294 = vunpack.c.l.b16 %v1687
        %v2295 = vunpack.c.l.b16 %v1688
        %v2296 = vunpack.c.l.b16 %v1689
        %v2297 = vunpack.c.l.b16 %v1690
        %v2298 = vunpack.c.l.b16 %v1691
        %v2299 = vunpack.c.l.b16 %v1692
        %v2300 = vunpack.c.l.b16 %v1693
        %v2301 = vunpack.c.l.b16 %v1694
        %v2302 = vunpack.c.l.b16 %v1695
        %v2303 = vunpack.c.l.b16 %v1696
        %v2304 = vunpack.c.l.b16 %v1697
        %v2305 = vunpack.c.l.b16 %v1698
        %v2306 = vunpack.c.l.b16 %v1699
        %v2307 = vunpack.c.l.b16 %v1700
        %v2308 = vunpack.c.l.b16 %v1701
        %v2309 = vunpack.c.l.b16 %v1702
        %v2310 = vunpack.c.l.b16 %v1703
        %v2311 = vunpack.c.l.b16 %v1704
        %v2312 = vunpack.c.l.b16 %v1705
        %v2313 = vunpack.c.l.b16 %v1706
        %v2314 = vunpack.c.l.b16 %v1707
        %v2315 = vunpack.c.l.b16 %v1708
        %v2316 = vunpack.c.l.b16 %v1709
        %v2317 = vunpack.c.l.b16 %v1710
        %v2318 = vunpack.c.l.b16 %v1711
        %v2319 = vunpack.c.l.b16 %v1712
        %v2320 = vunpack.c.l.b16 %v1713
        %v2321 = vunpack.c.l.b16 %v1714
        %v2322 = vpack.c.b16 %v2291, %v2290
        %v2323 = vpack.c.b16 %v2293, %v2292
        %v2324 = vpack.c.b16 %v2295, %v2294
        %v2325 = vpack.c.b16 %v2297, %v2296
        %v2326 = vpack.c.b16 %v2299, %v2298
        %v2327 = vpack.c.b16 %v2301, %v2300
        %v2328 = vpack.c.b16 %v2303, %v2302
        %v2329 = vpack.c.b16 %v2305, %v2304
        %v2330 = vpack.c.b16 %v2307, %v2306
        %v2331 = vpack.c.b16 %v2309, %v2308
        %v2332 = vpack.c.b16 %v2311, %v2310
        %v2333 = vpack.c.b16 %v2313, %v2312
        %v2334 = vpack.c.b16 %v2315, %v2314
        %v2335 = vpack.c.b16 %v2317, %v2316
        %v2336 = vpack.c.b16 %v2319, %v2318
        %v2337 = vpack.c.b16 %v2321, %v2320
        %2354 = vmatprep.subr.bf16.mxu0 0
        %2355 = vmatpush1.bf16.msra.mxu0 %v2322
        %2356 = vmatprep.subr.bf16.mxu0 0
        %2357 = vmatpush1.bf16.msra.mxu0 %v2323
        %2358 = vmatprep.subr.bf16.mxu0 0
        %2359 = vmatpush1.bf16.msra.mxu0 %v2324
        %2360 = vmatprep.subr.bf16.mxu0 0
        %2361 = vmatpush1.bf16.msra.mxu0 %v2325
        %2362 = vmatprep.subr.bf16.mxu0 0
        %2363 = vmatpush1.bf16.msra.mxu0 %v2326
        %2364 = vmatprep.subr.bf16.mxu0 0
        %2365 = vmatpush1.bf16.msra.mxu0 %v2327
        %2366 = vmatprep.subr.bf16.mxu0 0
        %2367 = vmatpush1.bf16.msra.mxu0 %v2328
        %2368 = vmatprep.subr.bf16.mxu0 0
        %2369 = vmatpush1.bf16.msra.mxu0 %v2329
        %2370 = vmatprep.subr.bf16.mxu0 0
        %2371 = vmatpush1.bf16.msra.mxu0 %v2330
        %2372 = vmatprep.subr.bf16.mxu0 0
        %2373 = vmatpush1.bf16.msra.mxu0 %v2331
        %2374 = vmatprep.subr.bf16.mxu0 0
        %2375 = vmatpush1.bf16.msra.mxu0 %v2332
        %2376 = vmatprep.subr.bf16.mxu0 0
        %2377 = vmatpush1.bf16.msra.mxu0 %v2333
        %2378 = vmatprep.subr.bf16.mxu0 0
        %2379 = vmatpush1.bf16.msra.mxu0 %v2334
        %2380 = vmatprep.subr.bf16.mxu0 0
        %2381 = vmatpush1.bf16.msra.mxu0 %v2335
        %2382 = vmatprep.subr.bf16.mxu0 0
        %2383 = vmatpush1.bf16.msra.mxu0 %v2336
        %2384 = vmatprep.subr.bf16.mxu0 0
        %2385 = vmatpush1.bf16.msra.mxu0 %v2337
        %2386 = vmatprep.mubr.bf16.mxu0 %v1656
        %2387 = vmatmul.mubr.bf16.gmra.mrb[0].mxu0 %v1655
        %v2388 = vpop.f32.mrb[0].mxu0
        %v2389 = vadd.f32 %v2148, %v2388
        %v2390 = vpop.f32.mrb[0].mxu0
        %v2391 = vpop.f32.mrb[0].mxu0
        %v2392 = vadd.f32 %v2151, %v2391
        %v2393 = vpop.f32.mrb[0].mxu0
        %2394 = vmatprep.mubr.bf16.mxu0 %v1658
        %2395 = vmatmul.mubr.bf16.gmra.mrb[0].mxu0 %v1657
        %v2396 = vpop.f32.mrb[0].mxu0
        %v2397 = vadd.f32 %v2156, %v2396
        %v2398 = vpop.f32.mrb[0].mxu0
        %v2399 = vpop.f32.mrb[0].mxu0
        %v2400 = vadd.f32 %v2159, %v2399
        %v2401 = vpop.f32.mrb[0].mxu0
        %2402 = vmatprep.mubr.bf16.mxu0 %v1660
        %2403 = vmatmul.mubr.bf16.gmra.mrb[0].mxu0 %v1659
        %v2404 = vpop.f32.mrb[0].mxu0
        %v2405 = vadd.f32 %v2164, %v2404
        %v2406 = vpop.f32.mrb[0].mxu0
        %v2407 = vpop.f32.mrb[0].mxu0
        %v2408 = vadd.f32 %v2167, %v2407
        %v2409 = vpop.f32.mrb[0].mxu0
        %2410 = vmatprep.mubr.bf16.mxu0 %v1662
        %2411 = vmatmul.mubr.bf16.gmra.mrb[0].mxu0 %v1661
        %v2412 = vpop.f32.mrb[0].mxu0
        %v2413 = vadd.f32 %v2172, %v2412
        %v2414 = vpop.f32.mrb[0].mxu0
        %v2415 = vpop.f32.mrb[0].mxu0
        %v2416 = vadd.f32 %v2175, %v2415
        %v2417 = vpop.f32.mrb[0].mxu0
        %2418 = vmatprep.mubr.bf16.mxu0 %v1664
        %2419 = vmatmul.mubr.bf16.gmra.mrb[0].mxu0 %v1663
        %v2420 = vpop.f32.mrb[0].mxu0
        %v2421 = vadd.f32 %v2180, %v2420
        %v2422 = vpop.f32.mrb[0].mxu0
        %v2423 = vpop.f32.mrb[0].mxu0
        %v2424 = vadd.f32 %v2183, %v2423
        %v2425 = vpop.f32.mrb[0].mxu0
        %2426 = vmatprep.mubr.bf16.mxu0 %v1666
        %2427 = vmatmul.mubr.bf16.gmra.mrb[0].mxu0 %v1665
        %v2428 = vpop.f32.mrb[0].mxu0
        %v2429 = vadd.f32 %v2188, %v2428
        %v2430 = vpop.f32.mrb[0].mxu0
        %v2431 = vpop.f32.mrb[0].mxu0
        %v2432 = vadd.f32 %v2191, %v2431
        %v2433 = vpop.f32.mrb[0].mxu0
        %2434 = vmatprep.mubr.bf16.mxu0 %v1668
        %2435 = vmatmul.mubr.bf16.gmra.mrb[0].mxu0 %v1667
        %v2436 = vpop.f32.mrb[0].mxu0
        %v2437 = vadd.f32 %v2196, %v2436
        %v2438 = vpop.f32.mrb[0].mxu0
        %v2439 = vpop.f32.mrb[0].mxu0
        %v2440 = vadd.f32 %v2199, %v2439
        %v2441 = vpop.f32.mrb[0].mxu0
        %2442 = vmatprep.mubr.bf16.mxu0 %v1670
        %2443 = vmatmul.mubr.bf16.gmra.mrb[0].mxu0 %v1669
        %v2444 = vpop.f32.mrb[0].mxu0
        %v2445 = vadd.f32 %v2204, %v2444
        %v2446 = vpop.f32.mrb[0].mxu0
        %v2447 = vpop.f32.mrb[0].mxu0
        %v2448 = vadd.f32 %v2207, %v2447
        %v2449 = vpop.f32.mrb[0].mxu0
        %2450 = vmatprep.mubr.bf16.mxu0 %v1672
        %2451 = vmatmul.mubr.bf16.gmra.mrb[0].mxu0 %v1671
        %v2452 = vpop.f32.mrb[0].mxu0
        %v2453 = vadd.f32 %v2212, %v2452
        %v2454 = vpop.f32.mrb[0].mxu0
        %v2455 = vpop.f32.mrb[0].mxu0
        %v2456 = vadd.f32 %v2215, %v2455
        %v2457 = vpop.f32.mrb[0].mxu0
        %2458 = vmatprep.mubr.bf16.mxu0 %v1674
        %2459 = vmatmul.mubr.bf16.gmra.mrb[0].mxu0 %v1673
        %v2460 = vpop.f32.mrb[0].mxu0
        %v2461 = vadd.f32 %v2220, %v2460
        %v2462 = vpop.f32.mrb[0].mxu0
        %v2463 = vpop.f32.mrb[0].mxu0
        %v2464 = vadd.f32 %v2223, %v2463
        %v2465 = vpop.f32.mrb[0].mxu0
        %2466 = vmatprep.mubr.bf16.mxu0 %v1676
        %2467 = vmatmul.mubr.bf16.gmra.mrb[0].mxu0 %v1675
        %v2468 = vpop.f32.mrb[0].mxu0
        %v2469 = vadd.f32 %v2228, %v2468
        %v2470 = vpop.f32.mrb[0].mxu0
        %v2471 = vpop.f32.mrb[0].mxu0
        %v2472 = vadd.f32 %v2231, %v2471
        %v2473 = vpop.f32.mrb[0].mxu0
        %2474 = vmatprep.mubr.bf16.mxu0 %v1678
        %2475 = vmatmul.mubr.bf16.gmra.mrb[0].mxu0 %v1677
        %v2476 = vpop.f32.mrb[0].mxu0
        %v2477 = vadd.f32 %v2236, %v2476
        %v2478 = vpop.f32.mrb[0].mxu0
        %v2479 = vpop.f32.mrb[0].mxu0
        %v2480 = vadd.f32 %v2239, %v2479
        %v2481 = vpop.f32.mrb[0].mxu0
        %2482 = vmatprep.mubr.bf16.mxu0 %v1680
        %2483 = vmatmul.mubr.bf16.gmra.mrb[0].mxu0 %v1679
        %v2484 = vpop.f32.mrb[0].mxu0
        %v2485 = vadd.f32 %v2244, %v2484
        %v2486 = vpop.f32.mrb[0].mxu0
        %v2487 = vpop.f32.mrb[0].mxu0
        %v2488 = vadd.f32 %v2247, %v2487
        %v2489 = vpop.f32.mrb[0].mxu0
        %2490 = vmatprep.mubr.bf16.mxu0 %v1682
        %2491 = vmatmul.mubr.bf16.gmra.mrb[0].mxu0 %v1681
        %v2492 = vpop.f32.mrb[0].mxu0
        %v2493 = vadd.f32 %v2252, %v2492
        %v2494 = vpop.f32.mrb[0].mxu0
        %v2495 = vpop.f32.mrb[0].mxu0
        %v2496 = vadd.f32 %v2255, %v2495
        %v2497 = vpop.f32.mrb[0].mxu0
        %2498 = vdwg.mxu0
        %v2499 = vld [vmem:[%s0] sm:$0xfc]
        %v2500 = vld [vmem:[%s0 + $0x8] sm:$0xfc]
        %v2501 = vld [vmem:[%s0 + $0x1c0] sm:$0x3]
        %v2502 = vld [vmem:[%s0 + $0x1c8] sm:$0x3]
        %v2503 = vpack.c.bf16 %v1601, %v2499
        %v2504 = vpack.c.bf16 %v1602, %v2500
        %v2505 = vpack.c.bf16 %v2501, %v2501
        %v2506 = vpack.c.bf16 %v2502, %v2502
        %s2507 = scalar_lea.vmem %s1551, 256 [#allocation2]
        %v2508 = vld [vmem:[%s2507] sm:$0xf]
        %v2509 = vld [vmem:[%s2507 + $0x4] sm:$0xf]
        %v2510 = vld [vmem:[%s2507 + $0x8] sm:$0xf]
        %v2511 = vld [vmem:[%s2507 + $0xc] sm:$0xf]
        %v2512 = vld [vmem:[%s2507 + $0x10] sm:$0xf]
        %v2513 = vld [vmem:[%s2507 + $0x14] sm:$0xf]
        %v2514 = vld [vmem:[%s2507 + $0x18] sm:$0xf]
        %v2515 = vld [vmem:[%s2507 + $0x1c] sm:$0xf]
        %v2516 = vld [vmem:[%s2507 + $0x20] sm:$0xf]
        %v2517 = vld [vmem:[%s2507 + $0x24] sm:$0xf]
        %v2518 = vld [vmem:[%s2507 + $0x28] sm:$0xf]
        %v2519 = vld [vmem:[%s2507 + $0x2c] sm:$0xf]
        %v2520 = vld [vmem:[%s2507 + $0x30] sm:$0xf]
        %v2521 = vld [vmem:[%s2507 + $0x34] sm:$0xf]
        %v2522 = vld [vmem:[%s2507 + $0x38] sm:$0xf]
        %v2523 = vld [vmem:[%s2507 + $0x3c] sm:$0xf]
        %v2524 = vld [vmem:[%s2507 + $0x40] sm:$0xf]
        %v2525 = vld [vmem:[%s2507 + $0x44] sm:$0xf]
        %v2526 = vld [vmem:[%s2507 + $0x48] sm:$0xf]
        %v2527 = vld [vmem:[%s2507 + $0x4c] sm:$0xf]
        %v2528 = vld [vmem:[%s2507 + $0x50] sm:$0xf]
        %v2529 = vld [vmem:[%s2507 + $0x54] sm:$0xf]
        %v2530 = vld [vmem:[%s2507 + $0x58] sm:$0xf]
        %v2531 = vld [vmem:[%s2507 + $0x5c] sm:$0xf]
        %v2532 = vld [vmem:[%s2507 + $0x60] sm:$0xf]
        %v2533 = vld [vmem:[%s2507 + $0x64] sm:$0xf]
        %v2534 = vld [vmem:[%s2507 + $0x68] sm:$0xf]
        %v2535 = vld [vmem:[%s2507 + $0x6c] sm:$0xf]
        %v2536 = vld [vmem:[%s2507 + $0x70] sm:$0xf]
        %v2537 = vld [vmem:[%s2507 + $0x74] sm:$0xf]
        %v2538 = vld [vmem:[%s2507 + $0x78] sm:$0xf]
        %v2539 = vld [vmem:[%s2507 + $0x7c] sm:$0xf]
        %vm2570 = vcmask 1046528
        %v2571 = vrot.slane %v2503, 1
        %v2572 = vrot.slane %v1657, 1
        %v2573 = vsel %vm2570, %v2571, %v2572
        %v2574 = vrot.slane %v2504, 1
        %v2575 = vrot.slane %v1658, 1
        %v2576 = vsel %vm2570, %v2574, %v2575
        %v2577 = vrot.slane %v1659, 1
        %v2578 = vsel %vm2570, %v2572, %v2577
        %v2579 = vrot.slane %v1660, 1
        %v2580 = vsel %vm2570, %v2575, %v2579
        %v2581 = vrot.slane %v1661, 1
        %v2582 = vsel %vm2570, %v2577, %v2581
        %v2583 = vrot.slane %v1662, 1
        %v2584 = vsel %vm2570, %v2579, %v2583
        %v2585 = vrot.slane %v1663, 1
        %v2586 = vsel %vm2570, %v2581, %v2585
        %v2587 = vrot.slane %v1664, 1
        %v2588 = vsel %vm2570, %v2583, %v2587
        %v2589 = vrot.slane %v1665, 1
        %v2590 = vsel %vm2570, %v2585, %v2589
        %v2591 = vrot.slane %v1666, 1
        %v2592 = vsel %vm2570, %v2587, %v2591
        %v2593 = vrot.slane %v1667, 1
        %v2594 = vsel %vm2570, %v2589, %v2593
        %v2595 = vrot.slane %v1668, 1
        %v2596 = vsel %vm2570, %v2591, %v2595
        %v2597 = vrot.slane %v1669, 1
        %v2598 = vsel %vm2570, %v2593, %v2597
        %v2599 = vrot.slane %v1670, 1
        %v2600 = vsel %vm2570, %v2595, %v2599
        %v2601 = vrot.slane %v1671, 1
        %v2602 = vsel %vm2570, %v2597, %v2601
        %v2603 = vrot.slane %v1672, 1
        %v2604 = vsel %vm2570, %v2599, %v2603
        %v2605 = vrot.slane %v1673, 1
        %v2606 = vsel %vm2570, %v2601, %v2605
        %v2607 = vrot.slane %v1674, 1
        %v2608 = vsel %vm2570, %v2603, %v2607
        %v2609 = vrot.slane %v1675, 1
        %v2610 = vsel %vm2570, %v2605, %v2609
        %v2611 = vrot.slane %v1676, 1
        %v2612 = vsel %vm2570, %v2607, %v2611
        %v2613 = vrot.slane %v1677, 1
        %v2614 = vsel %vm2570, %v2609, %v2613
        %v2615 = vrot.slane %v1678, 1
        %v2616 = vsel %vm2570, %v2611, %v2615
        %v2617 = vrot.slane %v1679, 1
        %v2618 = vsel %vm2570, %v2613, %v2617
        %v2619 = vrot.slane %v1680, 1
        %v2620 = vsel %vm2570, %v2615, %v2619
        %v2621 = vrot.slane %v1681, 1
        %v2622 = vsel %vm2570, %v2617, %v2621
        %v2623 = vrot.slane %v1682, 1
        %v2624 = vsel %vm2570, %v2619, %v2623
        %v2625 = vrot.slane %v2505, 1
        %v2626 = vsel %vm2570, %v2621, %v2625
        %v2627 = vrot.slane %v2506, 1
        %v2628 = vsel %vm2570, %v2623, %v2627
        %v2689 = vunpack.c.l.b16 %v2508
        %v2690 = vunpack.c.l.b16 %v2509
        %v2691 = vunpack.c.l.b16 %v2510
        %v2692 = vunpack.c.l.b16 %v2511
        %v2693 = vunpack.c.l.b16 %v2512
        %v2694 = vunpack.c.l.b16 %v2513
        %v2695 = vunpack.c.l.b16 %v2514
        %v2696 = vunpack.c.l.b16 %v2515
        %v2697 = vunpack.c.l.b16 %v2516
        %v2698 = vunpack.c.l.b16 %v2517
        %v2699 = vunpack.c.l.b16 %v2518
        %v2700 = vunpack.c.l.b16 %v2519
        %v2701 = vunpack.c.l.b16 %v2520
        %v2702 = vunpack.c.l.b16 %v2521
        %v2703 = vunpack.c.l.b16 %v2522
        %v2704 = vunpack.c.l.b16 %v2523
        %v2705 = vunpack.c.l.b16 %v2524
        %v2706 = vunpack.c.l.b16 %v2525
        %v2707 = vunpack.c.l.b16 %v2526
        %v2708 = vunpack.c.l.b16 %v2527
        %v2709 = vunpack.c.l.b16 %v2528
        %v2710 = vunpack.c.l.b16 %v2529
        %v2711 = vunpack.c.l.b16 %v2530
        %v2712 = vunpack.c.l.b16 %v2531
        %v2713 = vunpack.c.l.b16 %v2532
        %v2714 = vunpack.c.l.b16 %v2533
        %v2715 = vunpack.c.l.b16 %v2534
        %v2716 = vunpack.c.l.b16 %v2535
        %v2717 = vunpack.c.l.b16 %v2536
        %v2718 = vunpack.c.l.b16 %v2537
        %v2719 = vunpack.c.l.b16 %v2538
        %v2720 = vunpack.c.l.b16 %v2539
        %v2721 = vpack.c.b16 %v2690, %v2689
        %v2722 = vpack.c.b16 %v2692, %v2691
        %v2723 = vpack.c.b16 %v2694, %v2693
        %v2724 = vpack.c.b16 %v2696, %v2695
        %v2725 = vpack.c.b16 %v2698, %v2697
        %v2726 = vpack.c.b16 %v2700, %v2699
        %v2727 = vpack.c.b16 %v2702, %v2701
        %v2728 = vpack.c.b16 %v2704, %v2703
        %v2729 = vpack.c.b16 %v2706, %v2705
        %v2730 = vpack.c.b16 %v2708, %v2707
        %v2731 = vpack.c.b16 %v2710, %v2709
        %v2732 = vpack.c.b16 %v2712, %v2711
        %v2733 = vpack.c.b16 %v2714, %v2713
        %v2734 = vpack.c.b16 %v2716, %v2715
        %v2735 = vpack.c.b16 %v2718, %v2717
        %v2736 = vpack.c.b16 %v2720, %v2719
        %2753 = vmatprep.subr.bf16.mxu0 0
        %2754 = vmatpush1.bf16.msra.mxu0 %v2721
        %2755 = vmatprep.subr.bf16.mxu0 0
        %2756 = vmatpush1.bf16.msra.mxu0 %v2722
        %2757 = vmatprep.subr.bf16.mxu0 0
        %2758 = vmatpush1.bf16.msra.mxu0 %v2723
        %2759 = vmatprep.subr.bf16.mxu0 0
        %2760 = vmatpush1.bf16.msra.mxu0 %v2724
        %2761 = vmatprep.subr.bf16.mxu0 0
        %2762 = vmatpush1.bf16.msra.mxu0 %v2725
        %2763 = vmatprep.subr.bf16.mxu0 0
        %2764 = vmatpush1.bf16.msra.mxu0 %v2726
        %2765 = vmatprep.subr.bf16.mxu0 0
        %2766 = vmatpush1.bf16.msra.mxu0 %v2727
        %2767 = vmatprep.subr.bf16.mxu0 0
        %2768 = vmatpush1.bf16.msra.mxu0 %v2728
        %2769 = vmatprep.subr.bf16.mxu0 0
        %2770 = vmatpush1.bf16.msra.mxu0 %v2729
        %2771 = vmatprep.subr.bf16.mxu0 0
        %2772 = vmatpush1.bf16.msra.mxu0 %v2730
        %2773 = vmatprep.subr.bf16.mxu0 0
        %2774 = vmatpush1.bf16.msra.mxu0 %v2731
        %2775 = vmatprep.subr.bf16.mxu0 0
        %2776 = vmatpush1.bf16.msra.mxu0 %v2732
        %2777 = vmatprep.subr.bf16.mxu0 0
        %2778 = vmatpush1.bf16.msra.mxu0 %v2733
        %2779 = vmatprep.subr.bf16.mxu0 0
        %2780 = vmatpush1.bf16.msra.mxu0 %v2734
        %2781 = vmatprep.subr.bf16.mxu0 0
        %2782 = vmatpush1.bf16.msra.mxu0 %v2735
        %2783 = vmatprep.subr.bf16.mxu0 0
        %2784 = vmatpush1.bf16.msra.mxu0 %v2736
        %2785 = vmatprep.mubr.bf16.mxu0 %v2576
        %2786 = vmatmul.mubr.bf16.gmra.mrb[0].mxu0 %v2573
        %v2787 = vpop.f32.mrb[0].mxu0
        %v2788 = vadd.f32 0.0, %v2787
        %v2789 = vpop.f32.mrb[0].mxu0
        %v2790 = vpop.f32.mrb[0].mxu0
        %v2791 = vadd.f32 0.0, %v2790
        %v2792 = vpop.f32.mrb[0].mxu0
        %2793 = vmatprep.mubr.bf16.mxu0 %v2580
        %2794 = vmatmul.mubr.bf16.gmra.mrb[0].mxu0 %v2578
        %v2795 = vpop.f32.mrb[0].mxu0
        %v2796 = vadd.f32 0.0, %v2795
        %v2797 = vpop.f32.mrb[0].mxu0
        %v2798 = vpop.f32.mrb[0].mxu0
        %v2799 = vadd.f32 0.0, %v2798
        %v2800 = vpop.f32.mrb[0].mxu0
        %2801 = vmatprep.mubr.bf16.mxu0 %v2584
        %2802 = vmatmul.mubr.bf16.gmra.mrb[0].mxu0 %v2582
        %v2803 = vpop.f32.mrb[0].mxu0
        %v2804 = vadd.f32 0.0, %v2803
        %v2805 = vpop.f32.mrb[0].mxu0
        %v2806 = vpop.f32.mrb[0].mxu0
        %v2807 = vadd.f32 0.0, %v2806
        %v2808 = vpop.f32.mrb[0].mxu0
        %2809 = vmatprep.mubr.bf16.mxu0 %v2588
        %2810 = vmatmul.mubr.bf16.gmra.mrb[0].mxu0 %v2586
        %v2811 = vpop.f32.mrb[0].mxu0
        %v2812 = vadd.f32 0.0, %v2811
        %v2813 = vpop.f32.mrb[0].mxu0
        %v2814 = vpop.f32.mrb[0].mxu0
        %v2815 = vadd.f32 0.0, %v2814
        %v2816 = vpop.f32.mrb[0].mxu0
        %2817 = vmatprep.mubr.bf16.mxu0 %v2592
        %2818 = vmatmul.mubr.bf16.gmra.mrb[0].mxu0 %v2590
        %v2819 = vpop.f32.mrb[0].mxu0
        %v2820 = vadd.f32 0.0, %v2819
        %v2821 = vpop.f32.mrb[0].mxu0
        %v2822 = vpop.f32.mrb[0].mxu0
        %v2823 = vadd.f32 0.0, %v2822
        %v2824 = vpop.f32.mrb[0].mxu0
        %2825 = vmatprep.mubr.bf16.mxu0 %v2596
        %2826 = vmatmul.mubr.bf16.gmra.mrb[0].mxu0 %v2594
        %v2827 = vpop.f32.mrb[0].mxu0
        %v2828 = vadd.f32 0.0, %v2827
        %v2829 = vpop.f32.mrb[0].mxu0
        %v2830 = vpop.f32.mrb[0].mxu0
        %v2831 = vadd.f32 0.0, %v2830
        %v2832 = vpop.f32.mrb[0].mxu0
        %2833 = vmatprep.mubr.bf16.mxu0 %v2600
        %2834 = vmatmul.mubr.bf16.gmra.mrb[0].mxu0 %v2598
        %v2835 = vpop.f32.mrb[0].mxu0
        %v2836 = vadd.f32 0.0, %v2835
        %v2837 = vpop.f32.mrb[0].mxu0
        %v2838 = vpop.f32.mrb[0].mxu0
        %v2839 = vadd.f32 0.0, %v2838
        %v2840 = vpop.f32.mrb[0].mxu0
        %2841 = vmatprep.mubr.bf16.mxu0 %v2604
        %2842 = vmatmul.mubr.bf16.gmra.mrb[0].mxu0 %v2602
        %v2843 = vpop.f32.mrb[0].mxu0
        %v2844 = vadd.f32 0.0, %v2843
        %v2845 = vpop.f32.mrb[0].mxu0
        %v2846 = vpop.f32.mrb[0].mxu0
        %v2847 = vadd.f32 0.0, %v2846
        %v2848 = vpop.f32.mrb[0].mxu0
        %2849 = vmatprep.mubr.bf16.mxu0 %v2608
        %2850 = vmatmul.mubr.bf16.gmra.mrb[0].mxu0 %v2606
        %v2851 = vpop.f32.mrb[0].mxu0
        %v2852 = vadd.f32 0.0, %v2851
        %v2853 = vpop.f32.mrb[0].mxu0
        %v2854 = vpop.f32.mrb[0].mxu0
        %v2855 = vadd.f32 0.0, %v2854
        %v2856 = vpop.f32.mrb[0].mxu0
        %2857 = vmatprep.mubr.bf16.mxu0 %v2612
        %2858 = vmatmul.mubr.bf16.gmra.mrb[0].mxu0 %v2610
        %v2859 = vpop.f32.mrb[0].mxu0
        %v2860 = vadd.f32 0.0, %v2859
        %v2861 = vpop.f32.mrb[0].mxu0
        %v2862 = vpop.f32.mrb[0].mxu0
        %v2863 = vadd.f32 0.0, %v2862
        %v2864 = vpop.f32.mrb[0].mxu0
        %2865 = vmatprep.mubr.bf16.mxu0 %v2616
        %2866 = vmatmul.mubr.bf16.gmra.mrb[0].mxu0 %v2614
        %v2867 = vpop.f32.mrb[0].mxu0
        %v2868 = vadd.f32 0.0, %v2867
        %v2869 = vpop.f32.mrb[0].mxu0
        %v2870 = vpop.f32.mrb[0].mxu0
        %v2871 = vadd.f32 0.0, %v2870
        %v2872 = vpop.f32.mrb[0].mxu0
        %2873 = vmatprep.mubr.bf16.mxu0 %v2620
        %2874 = vmatmul.mubr.bf16.gmra.mrb[0].mxu0 %v2618
        %v2875 = vpop.f32.mrb[0].mxu0
        %v2876 = vadd.f32 0.0, %v2875
        %v2877 = vpop.f32.mrb[0].mxu0
        %v2878 = vpop.f32.mrb[0].mxu0
        %v2879 = vadd.f32 0.0, %v2878
        %v2880 = vpop.f32.mrb[0].mxu0
        %2881 = vmatprep.mubr.bf16.mxu0 %v2624
        %2882 = vmatmul.mubr.bf16.gmra.mrb[0].mxu0 %v2622
        %v2883 = vpop.f32.mrb[0].mxu0
        %v2884 = vadd.f32 0.0, %v2883
        %v2885 = vpop.f32.mrb[0].mxu0
        %v2886 = vpop.f32.mrb[0].mxu0
        %v2887 = vadd.f32 0.0, %v2886
        %v2888 = vpop.f32.mrb[0].mxu0
        %2889 = vmatprep.mubr.bf16.mxu0 %v2628
        %2890 = vmatmul.mubr.bf16.gmra.mrb[0].mxu0 %v2626
        %v2891 = vpop.f32.mrb[0].mxu0
        %v2892 = vadd.f32 0.0, %v2891
        %v2893 = vpop.f32.mrb[0].mxu0
        %v2894 = vpop.f32.mrb[0].mxu0
        %v2895 = vadd.f32 0.0, %v2894
        %v2896 = vpop.f32.mrb[0].mxu0
        %2897 = vdwg.mxu0
        %v2898 = vadd.f32 %v2389, %v2788
        %v2899 = vadd.f32 %v2392, %v2791
        %v2900 = vadd.f32 %v2397, %v2796
        %v2901 = vadd.f32 %v2400, %v2799
        %v2902 = vadd.f32 %v2405, %v2804
        %v2903 = vadd.f32 %v2408, %v2807
        %v2904 = vadd.f32 %v2413, %v2812
        %v2905 = vadd.f32 %v2416, %v2815
        %v2906 = vadd.f32 %v2421, %v2820
        %v2907 = vadd.f32 %v2424, %v2823
        %v2908 = vadd.f32 %v2429, %v2828
        %v2909 = vadd.f32 %v2432, %v2831
        %v2910 = vadd.f32 %v2437, %v2836
        %v2911 = vadd.f32 %v2440, %v2839
        %v2912 = vadd.f32 %v2445, %v2844
        %v2913 = vadd.f32 %v2448, %v2847
        %v2914 = vadd.f32 %v2453, %v2852
        %v2915 = vadd.f32 %v2456, %v2855
        %v2916 = vadd.f32 %v2461, %v2860
        %v2917 = vadd.f32 %v2464, %v2863
        %v2918 = vadd.f32 %v2469, %v2868
        %v2919 = vadd.f32 %v2472, %v2871
        %v2920 = vadd.f32 %v2477, %v2876
        %v2921 = vadd.f32 %v2480, %v2879
        %v2922 = vadd.f32 %v2485, %v2884
        %v2923 = vadd.f32 %v2488, %v2887
        %v2924 = vadd.f32 %v2493, %v2892
        %v2925 = vadd.f32 %v2496, %v2895
        %v2926 = vld [vmem:[%s0 + $0x20] sm:$0xff]
        %v2927 = vld [vmem:[%s0 + $0x28] sm:$0xff]
        %v2928 = vld [vmem:[%s0 + $0x30] sm:$0xff]
        %v2929 = vld [vmem:[%s0 + $0x38] sm:$0xff]
        %v2930 = vld [vmem:[%s0 + $0x40] sm:$0xff]
        %v2931 = vld [vmem:[%s0 + $0x48] sm:$0xff]
        %v2932 = vld [vmem:[%s0 + $0x50] sm:$0xff]
        %v2933 = vld [vmem:[%s0 + $0x58] sm:$0xff]
        %v2934 = vld [vmem:[%s0 + $0x60] sm:$0xff]
        %v2935 = vld [vmem:[%s0 + $0x68] sm:$0xff]
        %v2936 = vld [vmem:[%s0 + $0x70] sm:$0xff]
        %v2937 = vld [vmem:[%s0 + $0x78] sm:$0xff]
        %v2938 = vld [vmem:[%s0 + $0x80] sm:$0xff]
        %v2939 = vld [vmem:[%s0 + $0x88] sm:$0xff]
        %v2940 = vld [vmem:[%s0 + $0x90] sm:$0xff]
        %v2941 = vld [vmem:[%s0 + $0x98] sm:$0xff]
        %v2942 = vld [vmem:[%s0 + $0xa0] sm:$0xff]
        %v2943 = vld [vmem:[%s0 + $0xa8] sm:$0xff]
        %v2944 = vld [vmem:[%s0 + $0xb0] sm:$0xff]
        %v2945 = vld [vmem:[%s0 + $0xb8] sm:$0xff]
        %v2946 = vld [vmem:[%s0 + $0xc0] sm:$0xff]
        %v2947 = vld [vmem:[%s0 + $0xc8] sm:$0xff]
        %v2948 = vld [vmem:[%s0 + $0xd0] sm:$0xff]
        %v2949 = vld [vmem:[%s0 + $0xd8] sm:$0xff]
        %v2950 = vld [vmem:[%s0 + $0xe0] sm:$0xff]
        %v2951 = vld [vmem:[%s0 + $0xe8] sm:$0xff]
        %v2952 = vld [vmem:[%s0 + $0xf0] sm:$0xff]
        %v2953 = vld [vmem:[%s0 + $0xf8] sm:$0xff]
        %v2954 = vld [vmem:[%s0 + $0x100] sm:$0xff]
        %v2955 = vld [vmem:[%s0 + $0x108] sm:$0xff]
        %v2956 = vld [vmem:[%s0 + $0x110] sm:$0xff]
        %v2957 = vld [vmem:[%s0 + $0x118] sm:$0xff]
        %v2958 = vld [vmem:[%s0 + $0x120] sm:$0xff]
        %v2959 = vld [vmem:[%s0 + $0x128] sm:$0xff]
        %v2960 = vld [vmem:[%s0 + $0x130] sm:$0xff]
        %v2961 = vld [vmem:[%s0 + $0x138] sm:$0xff]
        %v2962 = vld [vmem:[%s0 + $0x140] sm:$0xff]
        %v2963 = vld [vmem:[%s0 + $0x148] sm:$0xff]
        %v2964 = vld [vmem:[%s0 + $0x150] sm:$0xff]
        %v2965 = vld [vmem:[%s0 + $0x158] sm:$0xff]
        %v2966 = vld [vmem:[%s0 + $0x160] sm:$0xff]
        %v2967 = vld [vmem:[%s0 + $0x168] sm:$0xff]
        %v2968 = vld [vmem:[%s0 + $0x170] sm:$0xff]
        %v2969 = vld [vmem:[%s0 + $0x178] sm:$0xff]
        %v2970 = vld [vmem:[%s0 + $0x180] sm:$0xff]
        %v2971 = vld [vmem:[%s0 + $0x188] sm:$0xff]
        %v2972 = vld [vmem:[%s0 + $0x190] sm:$0xff]
        %v2973 = vld [vmem:[%s0 + $0x198] sm:$0xff]
        %v2974 = vld [vmem:[%s0 + $0x1a0] sm:$0xff]
        %v2975 = vld [vmem:[%s0 + $0x1a8] sm:$0xff]
        %v2976 = vld [vmem:[%s0 + $0x1b0] sm:$0xff]
        %v2977 = vld [vmem:[%s0 + $0x1b8] sm:$0xff]
        %v2978 = vld [vmem:[%s0 + $0x1c0] sm:$0xff]
        %v2979 = vld [vmem:[%s0 + $0x1c8] sm:$0xff]
        %v2980 = vld [vmem:[%s0 + $0x1d0] sm:$0xff]
        %v2981 = vld [vmem:[%s0 + $0x1d8] sm:$0xff]
        %v2982 = vpack.c.bf16 %v2928, %v2926
        %v2983 = vpack.c.bf16 %v2929, %v2927
        %v2984 = vpack.c.bf16 %v2932, %v2930
        %v2985 = vpack.c.bf16 %v2933, %v2931
        %v2986 = vpack.c.bf16 %v2936, %v2934
        %v2987 = vpack.c.bf16 %v2937, %v2935
        %v2988 = vpack.c.bf16 %v2940, %v2938
        %v2989 = vpack.c.bf16 %v2941, %v2939
        %v2990 = vpack.c.bf16 %v2944, %v2942
        %v2991 = vpack.c.bf16 %v2945, %v2943
        %v2992 = vpack.c.bf16 %v2948, %v2946
        %v2993 = vpack.c.bf16 %v2949, %v2947
        %v2994 = vpack.c.bf16 %v2952, %v2950
        %v2995 = vpack.c.bf16 %v2953, %v2951
        %v2996 = vpack.c.bf16 %v2956, %v2954
        %v2997 = vpack.c.bf16 %v2957, %v2955
        %v2998 = vpack.c.bf16 %v2960, %v2958
        %v2999 = vpack.c.bf16 %v2961, %v2959
        %v3000 = vpack.c.bf16 %v2964, %v2962
        %v3001 = vpack.c.bf16 %v2965, %v2963
        %v3002 = vpack.c.bf16 %v2968, %v2966
        %v3003 = vpack.c.bf16 %v2969, %v2967
        %v3004 = vpack.c.bf16 %v2972, %v2970
        %v3005 = vpack.c.bf16 %v2973, %v2971
        %v3006 = vpack.c.bf16 %v2976, %v2974
        %v3007 = vpack.c.bf16 %v2977, %v2975
        %v3008 = vpack.c.bf16 %v2980, %v2978
        %v3009 = vpack.c.bf16 %v2981, %v2979
        %s3010 = scalar_lea.vmem %s1551, 384 [#allocation2]
        %v3011 = vld [vmem:[%s3010] sm:$0xf]
        %v3012 = vld [vmem:[%s3010 + $0x4] sm:$0xf]
        %v3013 = vld [vmem:[%s3010 + $0x8] sm:$0xf]
        %v3014 = vld [vmem:[%s3010 + $0xc] sm:$0xf]
        %v3015 = vld [vmem:[%s3010 + $0x10] sm:$0xf]
        %v3016 = vld [vmem:[%s3010 + $0x14] sm:$0xf]
        %v3017 = vld [vmem:[%s3010 + $0x18] sm:$0xf]
        %v3018 = vld [vmem:[%s3010 + $0x1c] sm:$0xf]
        %v3019 = vld [vmem:[%s3010 + $0x20] sm:$0xf]
        %v3020 = vld [vmem:[%s3010 + $0x24] sm:$0xf]
        %v3021 = vld [vmem:[%s3010 + $0x28] sm:$0xf]
        %v3022 = vld [vmem:[%s3010 + $0x2c] sm:$0xf]
        %v3023 = vld [vmem:[%s3010 + $0x30] sm:$0xf]
        %v3024 = vld [vmem:[%s3010 + $0x34] sm:$0xf]
        %v3025 = vld [vmem:[%s3010 + $0x38] sm:$0xf]
        %v3026 = vld [vmem:[%s3010 + $0x3c] sm:$0xf]
        %v3027 = vld [vmem:[%s3010 + $0x40] sm:$0xf]
        %v3028 = vld [vmem:[%s3010 + $0x44] sm:$0xf]
        %v3029 = vld [vmem:[%s3010 + $0x48] sm:$0xf]
        %v3030 = vld [vmem:[%s3010 + $0x4c] sm:$0xf]
        %v3031 = vld [vmem:[%s3010 + $0x50] sm:$0xf]
        %v3032 = vld [vmem:[%s3010 + $0x54] sm:$0xf]
        %v3033 = vld [vmem:[%s3010 + $0x58] sm:$0xf]
        %v3034 = vld [vmem:[%s3010 + $0x5c] sm:$0xf]
        %v3035 = vld [vmem:[%s3010 + $0x60] sm:$0xf]
        %v3036 = vld [vmem:[%s3010 + $0x64] sm:$0xf]
        %v3037 = vld [vmem:[%s3010 + $0x68] sm:$0xf]
        %v3038 = vld [vmem:[%s3010 + $0x6c] sm:$0xf]
        %v3039 = vld [vmem:[%s3010 + $0x70] sm:$0xf]
        %v3040 = vld [vmem:[%s3010 + $0x74] sm:$0xf]
        %v3041 = vld [vmem:[%s3010 + $0x78] sm:$0xf]
        %v3042 = vld [vmem:[%s3010 + $0x7c] sm:$0xf]
        %v3075 = vunpack.c.l.b16 %v3011
        %v3076 = vunpack.c.l.b16 %v3012
        %v3077 = vunpack.c.l.b16 %v3013
        %v3078 = vunpack.c.l.b16 %v3014
        %v3079 = vunpack.c.l.b16 %v3015
        %v3080 = vunpack.c.l.b16 %v3016
        %v3081 = vunpack.c.l.b16 %v3017
        %v3082 = vunpack.c.l.b16 %v3018
        %v3083 = vunpack.c.l.b16 %v3019
        %v3084 = vunpack.c.l.b16 %v3020
        %v3085 = vunpack.c.l.b16 %v3021
        %v3086 = vunpack.c.l.b16 %v3022
        %v3087 = vunpack.c.l.b16 %v3023
        %v3088 = vunpack.c.l.b16 %v3024
        %v3089 = vunpack.c.l.b16 %v3025
        %v3090 = vunpack.c.l.b16 %v3026
        %v3091 = vunpack.c.l.b16 %v3027
        %v3092 = vunpack.c.l.b16 %v3028
        %v3093 = vunpack.c.l.b16 %v3029
        %v3094 = vunpack.c.l.b16 %v3030
        %v3095 = vunpack.c.l.b16 %v3031
        %v3096 = vunpack.c.l.b16 %v3032
        %v3097 = vunpack.c.l.b16 %v3033
        %v3098 = vunpack.c.l.b16 %v3034
        %v3099 = vunpack.c.l.b16 %v3035
        %v3100 = vunpack.c.l.b16 %v3036
        %v3101 = vunpack.c.l.b16 %v3037
        %v3102 = vunpack.c.l.b16 %v3038
        %v3103 = vunpack.c.l.b16 %v3039
        %v3104 = vunpack.c.l.b16 %v3040
        %v3105 = vunpack.c.l.b16 %v3041
        %v3106 = vunpack.c.l.b16 %v3042
        %v3107 = vpack.c.b16 %v3076, %v3075
        %v3108 = vpack.c.b16 %v3078, %v3077
        %v3109 = vpack.c.b16 %v3080, %v3079
        %v3110 = vpack.c.b16 %v3082, %v3081
        %v3111 = vpack.c.b16 %v3084, %v3083
        %v3112 = vpack.c.b16 %v3086, %v3085
        %v3113 = vpack.c.b16 %v3088, %v3087
        %v3114 = vpack.c.b16 %v3090, %v3089
        %v3115 = vpack.c.b16 %v3092, %v3091
        %v3116 = vpack.c.b16 %v3094, %v3093
        %v3117 = vpack.c.b16 %v3096, %v3095
        %v3118 = vpack.c.b16 %v3098, %v3097
        %v3119 = vpack.c.b16 %v3100, %v3099
        %v3120 = vpack.c.b16 %v3102, %v3101
        %v3121 = vpack.c.b16 %v3104, %v3103
        %v3122 = vpack.c.b16 %v3106, %v3105
        %3139 = vmatprep.subr.bf16.mxu0 0
        %3140 = vmatpush1.bf16.msra.mxu0 %v3107
        %3141 = vmatprep.subr.bf16.mxu0 0
        %3142 = vmatpush1.bf16.msra.mxu0 %v3108
        %3143 = vmatprep.subr.bf16.mxu0 0
        %3144 = vmatpush1.bf16.msra.mxu0 %v3109
        %3145 = vmatprep.subr.bf16.mxu0 0
        %3146 = vmatpush1.bf16.msra.mxu0 %v3110
        %3147 = vmatprep.subr.bf16.mxu0 0
        %3148 = vmatpush1.bf16.msra.mxu0 %v3111
        %3149 = vmatprep.subr.bf16.mxu0 0
        %3150 = vmatpush1.bf16.msra.mxu0 %v3112
        %3151 = vmatprep.subr.bf16.mxu0 0
        %3152 = vmatpush1.bf16.msra.mxu0 %v3113
        %3153 = vmatprep.subr.bf16.mxu0 0
        %3154 = vmatpush1.bf16.msra.mxu0 %v3114
        %3155 = vmatprep.subr.bf16.mxu0 0
        %3156 = vmatpush1.bf16.msra.mxu0 %v3115
        %3157 = vmatprep.subr.bf16.mxu0 0
        %3158 = vmatpush1.bf16.msra.mxu0 %v3116
        %3159 = vmatprep.subr.bf16.mxu0 0
        %3160 = vmatpush1.bf16.msra.mxu0 %v3117
        %3161 = vmatprep.subr.bf16.mxu0 0
        %3162 = vmatpush1.bf16.msra.mxu0 %v3118
        %3163 = vmatprep.subr.bf16.mxu0 0
        %3164 = vmatpush1.bf16.msra.mxu0 %v3119
        %3165 = vmatprep.subr.bf16.mxu0 0
        %3166 = vmatpush1.bf16.msra.mxu0 %v3120
        %3167 = vmatprep.subr.bf16.mxu0 0
        %3168 = vmatpush1.bf16.msra.mxu0 %v3121
        %3169 = vmatprep.subr.bf16.mxu0 0
        %3170 = vmatpush1.bf16.msra.mxu0 %v3122
        %3171 = vmatprep.mubr.bf16.mxu0 %v2983
        %3172 = vmatmul.mubr.bf16.gmra.mrb[0].mxu0 %v2982
        %v3173 = vpop.f32.mrb[0].mxu0
        %v3174 = vadd.f32 0.0, %v3173
        %v3175 = vpop.f32.mrb[0].mxu0
        %v3176 = vpop.f32.mrb[0].mxu0
        %v3177 = vadd.f32 0.0, %v3176
        %v3178 = vpop.f32.mrb[0].mxu0
        %3179 = vmatprep.mubr.bf16.mxu0 %v2985
        %3180 = vmatmul.mubr.bf16.gmra.mrb[0].mxu0 %v2984
        %v3181 = vpop.f32.mrb[0].mxu0
        %v3182 = vadd.f32 0.0, %v3181
        %v3183 = vpop.f32.mrb[0].mxu0
        %v3184 = vpop.f32.mrb[0].mxu0
        %v3185 = vadd.f32 0.0, %v3184
        %v3186 = vpop.f32.mrb[0].mxu0
        %3187 = vmatprep.mubr.bf16.mxu0 %v2987
        %3188 = vmatmul.mubr.bf16.gmra.mrb[0].mxu0 %v2986
        %v3189 = vpop.f32.mrb[0].mxu0
        %v3190 = vadd.f32 0.0, %v3189
        %v3191 = vpop.f32.mrb[0].mxu0
        %v3192 = vpop.f32.mrb[0].mxu0
        %v3193 = vadd.f32 0.0, %v3192
        %v3194 = vpop.f32.mrb[0].mxu0
        %3195 = vmatprep.mubr.bf16.mxu0 %v2989
        %3196 = vmatmul.mubr.bf16.gmra.mrb[0].mxu0 %v2988
        %v3197 = vpop.f32.mrb[0].mxu0
        %v3198 = vadd.f32 0.0, %v3197
        %v3199 = vpop.f32.mrb[0].mxu0
        %v3200 = vpop.f32.mrb[0].mxu0
        %v3201 = vadd.f32 0.0, %v3200
        %v3202 = vpop.f32.mrb[0].mxu0
        %3203 = vmatprep.mubr.bf16.mxu0 %v2991
        %3204 = vmatmul.mubr.bf16.gmra.mrb[0].mxu0 %v2990
        %v3205 = vpop.f32.mrb[0].mxu0
        %v3206 = vadd.f32 0.0, %v3205
        %v3207 = vpop.f32.mrb[0].mxu0
        %v3208 = vpop.f32.mrb[0].mxu0
        %v3209 = vadd.f32 0.0, %v3208
        %v3210 = vpop.f32.mrb[0].mxu0
        %3211 = vmatprep.mubr.bf16.mxu0 %v2993
        %3212 = vmatmul.mubr.bf16.gmra.mrb[0].mxu0 %v2992
        %v3213 = vpop.f32.mrb[0].mxu0
        %v3214 = vadd.f32 0.0, %v3213
        %v3215 = vpop.f32.mrb[0].mxu0
        %v3216 = vpop.f32.mrb[0].mxu0
        %v3217 = vadd.f32 0.0, %v3216
        %v3218 = vpop.f32.mrb[0].mxu0
        %3219 = vmatprep.mubr.bf16.mxu0 %v2995
        %3220 = vmatmul.mubr.bf16.gmra.mrb[0].mxu0 %v2994
        %v3221 = vpop.f32.mrb[0].mxu0
        %v3222 = vadd.f32 0.0, %v3221
        %v3223 = vpop.f32.mrb[0].mxu0
        %v3224 = vpop.f32.mrb[0].mxu0
        %v3225 = vadd.f32 0.0, %v3224
        %v3226 = vpop.f32.mrb[0].mxu0
        %3227 = vmatprep.mubr.bf16.mxu0 %v2997
        %3228 = vmatmul.mubr.bf16.gmra.mrb[0].mxu0 %v2996
        %v3229 = vpop.f32.mrb[0].mxu0
        %v3230 = vadd.f32 0.0, %v3229
        %v3231 = vpop.f32.mrb[0].mxu0
        %v3232 = vpop.f32.mrb[0].mxu0
        %v3233 = vadd.f32 0.0, %v3232
        %v3234 = vpop.f32.mrb[0].mxu0
        %3235 = vmatprep.mubr.bf16.mxu0 %v2999
        %3236 = vmatmul.mubr.bf16.gmra.mrb[0].mxu0 %v2998
        %v3237 = vpop.f32.mrb[0].mxu0
        %v3238 = vadd.f32 0.0, %v3237
        %v3239 = vpop.f32.mrb[0].mxu0
        %v3240 = vpop.f32.mrb[0].mxu0
        %v3241 = vadd.f32 0.0, %v3240
        %v3242 = vpop.f32.mrb[0].mxu0
        %3243 = vmatprep.mubr.bf16.mxu0 %v3001
        %3244 = vmatmul.mubr.bf16.gmra.mrb[0].mxu0 %v3000
        %v3245 = vpop.f32.mrb[0].mxu0
        %v3246 = vadd.f32 0.0, %v3245
        %v3247 = vpop.f32.mrb[0].mxu0
        %v3248 = vpop.f32.mrb[0].mxu0
        %v3249 = vadd.f32 0.0, %v3248
        %v3250 = vpop.f32.mrb[0].mxu0
        %3251 = vmatprep.mubr.bf16.mxu0 %v3003
        %3252 = vmatmul.mubr.bf16.gmra.mrb[0].mxu0 %v3002
        %v3253 = vpop.f32.mrb[0].mxu0
        %v3254 = vadd.f32 0.0, %v3253
        %v3255 = vpop.f32.mrb[0].mxu0
        %v3256 = vpop.f32.mrb[0].mxu0
        %v3257 = vadd.f32 0.0, %v3256
        %v3258 = vpop.f32.mrb[0].mxu0
        %3259 = vmatprep.mubr.bf16.mxu0 %v3005
        %3260 = vmatmul.mubr.bf16.gmra.mrb[0].mxu0 %v3004
        %v3261 = vpop.f32.mrb[0].mxu0
        %v3262 = vadd.f32 0.0, %v3261
        %v3263 = vpop.f32.mrb[0].mxu0
        %v3264 = vpop.f32.mrb[0].mxu0
        %v3265 = vadd.f32 0.0, %v3264
        %v3266 = vpop.f32.mrb[0].mxu0
        %3267 = vmatprep.mubr.bf16.mxu0 %v3007
        %3268 = vmatmul.mubr.bf16.gmra.mrb[0].mxu0 %v3006
        %v3269 = vpop.f32.mrb[0].mxu0
        %v3270 = vadd.f32 0.0, %v3269
        %v3271 = vpop.f32.mrb[0].mxu0
        %v3272 = vpop.f32.mrb[0].mxu0
        %v3273 = vadd.f32 0.0, %v3272
        %v3274 = vpop.f32.mrb[0].mxu0
        %3275 = vmatprep.mubr.bf16.mxu0 %v3009
        %3276 = vmatmul.mubr.bf16.gmra.mrb[0].mxu0 %v3008
        %v3277 = vpop.f32.mrb[0].mxu0
        %v3278 = vadd.f32 0.0, %v3277
        %v3279 = vpop.f32.mrb[0].mxu0
        %v3280 = vpop.f32.mrb[0].mxu0
        %v3281 = vadd.f32 0.0, %v3280
        %v3282 = vpop.f32.mrb[0].mxu0
        %3283 = vdwg.mxu0
        %v3284 = vadd.f32 %v2898, %v3174
        %v3285 = vadd.f32 %v2899, %v3177
        %v3286 = vadd.f32 %v2900, %v3182
        %v3287 = vadd.f32 %v2901, %v3185
        %v3288 = vadd.f32 %v2902, %v3190
        %v3289 = vadd.f32 %v2903, %v3193
        %v3290 = vadd.f32 %v2904, %v3198
        %v3291 = vadd.f32 %v2905, %v3201
        %v3292 = vadd.f32 %v2906, %v3206
        %v3293 = vadd.f32 %v2907, %v3209
        %v3294 = vadd.f32 %v2908, %v3214
        %v3295 = vadd.f32 %v2909, %v3217
        %v3296 = vadd.f32 %v2910, %v3222
        %v3297 = vadd.f32 %v2911, %v3225
        %v3298 = vadd.f32 %v2912, %v3230
        %v3299 = vadd.f32 %v2913, %v3233
        %v3300 = vadd.f32 %v2914, %v3238
        %v3301 = vadd.f32 %v2915, %v3241
        %v3302 = vadd.f32 %v2916, %v3246
        %v3303 = vadd.f32 %v2917, %v3249
        %v3304 = vadd.f32 %v2918, %v3254
        %v3305 = vadd.f32 %v2919, %v3257
        %v3306 = vadd.f32 %v2920, %v3262
        %v3307 = vadd.f32 %v2921, %v3265
        %v3308 = vadd.f32 %v2922, %v3270
        %v3309 = vadd.f32 %v2923, %v3273
        %v3310 = vadd.f32 %v2924, %v3278
        %v3311 = vadd.f32 %v2925, %v3281
        %v3312 = vld [vmem:[%s0 + $0x20] sm:$0xfe]
        %v3313 = vld [vmem:[%s0 + $0x28] sm:$0xfe]
        %v3314 = vld [vmem:[%s0 + $0x30] sm:$0xff]
        %v3315 = vld [vmem:[%s0 + $0x38] sm:$0xff]
        %v3316 = vld [vmem:[%s0 + $0x40] sm:$0xff]
        %v3317 = vld [vmem:[%s0 + $0x48] sm:$0xff]
        %v3318 = vld [vmem:[%s0 + $0x50] sm:$0xff]
        %v3319 = vld [vmem:[%s0 + $0x58] sm:$0xff]
        %v3320 = vld [vmem:[%s0 + $0x60] sm:$0xff]
        %v3321 = vld [vmem:[%s0 + $0x68] sm:$0xff]
        %v3322 = vld [vmem:[%s0 + $0x70] sm:$0xff]
        %v3323 = vld [vmem:[%s0 + $0x78] sm:$0xff]
        %v3324 = vld [vmem:[%s0 + $0x80] sm:$0xff]
        %v3325 = vld [vmem:[%s0 + $0x88] sm:$0xff]
        %v3326 = vld [vmem:[%s0 + $0x90] sm:$0xff]
        %v3327 = vld [vmem:[%s0 + $0x98] sm:$0xff]
        %v3328 = vld [vmem:[%s0 + $0xa0] sm:$0xff]
        %v3329 = vld [vmem:[%s0 + $0xa8] sm:$0xff]
        %v3330 = vld [vmem:[%s0 + $0xb0] sm:$0xff]
        %v3331 = vld [vmem:[%s0 + $0xb8] sm:$0xff]
        %v3332 = vld [vmem:[%s0 + $0xc0] sm:$0xff]
        %v3333 = vld [vmem:[%s0 + $0xc8] sm:$0xff]
        %v3334 = vld [vmem:[%s0 + $0xd0] sm:$0xff]
        %v3335 = vld [vmem:[%s0 + $0xd8] sm:$0xff]
        %v3336 = vld [vmem:[%s0 + $0xe0] sm:$0xff]
        %v3337 = vld [vmem:[%s0 + $0xe8] sm:$0xff]
        %v3338 = vld [vmem:[%s0 + $0xf0] sm:$0xff]
        %v3339 = vld [vmem:[%s0 + $0xf8] sm:$0xff]
        %v3340 = vld [vmem:[%s0 + $0x100] sm:$0xff]
        %v3341 = vld [vmem:[%s0 + $0x108] sm:$0xff]
        %v3342 = vld [vmem:[%s0 + $0x110] sm:$0xff]
        %v3343 = vld [vmem:[%s0 + $0x118] sm:$0xff]
        %v3344 = vld [vmem:[%s0 + $0x120] sm:$0xff]
        %v3345 = vld [vmem:[%s0 + $0x128] sm:$0xff]
        %v3346 = vld [vmem:[%s0 + $0x130] sm:$0xff]
        %v3347 = vld [vmem:[%s0 + $0x138] sm:$0xff]
        %v3348 = vld [vmem:[%s0 + $0x140] sm:$0xff]
        %v3349 = vld [vmem:[%s0 + $0x148] sm:$0xff]
        %v3350 = vld [vmem:[%s0 + $0x150] sm:$0xff]
        %v3351 = vld [vmem:[%s0 + $0x158] sm:$0xff]
        %v3352 = vld [vmem:[%s0 + $0x160] sm:$0xff]
        %v3353 = vld [vmem:[%s0 + $0x168] sm:$0xff]
        %v3354 = vld [vmem:[%s0 + $0x170] sm:$0xff]
        %v3355 = vld [vmem:[%s0 + $0x178] sm:$0xff]
        %v3356 = vld [vmem:[%s0 + $0x180] sm:$0xff]
        %v3357 = vld [vmem:[%s0 + $0x188] sm:$0xff]
        %v3358 = vld [vmem:[%s0 + $0x190] sm:$0xff]
        %v3359 = vld [vmem:[%s0 + $0x198] sm:$0xff]
        %v3360 = vld [vmem:[%s0 + $0x1a0] sm:$0xff]
        %v3361 = vld [vmem:[%s0 + $0x1a8] sm:$0xff]
        %v3362 = vld [vmem:[%s0 + $0x1b0] sm:$0xff]
        %v3363 = vld [vmem:[%s0 + $0x1b8] sm:$0xff]
        %v3364 = vld [vmem:[%s0 + $0x1c0] sm:$0xff]
        %v3365 = vld [vmem:[%s0 + $0x1c8] sm:$0xff]
        %v3366 = vld [vmem:[%s0 + $0x1d0] sm:$0xff]
        %v3367 = vld [vmem:[%s0 + $0x1d8] sm:$0xff]
        %v3368 = vld [vmem:[%s0 + $0x1e0] sm:$0x1]
        %v3369 = vld [vmem:[%s0 + $0x1e8] sm:$0x1]
        %v3370 = vpack.c.bf16 %v3314, %v3312
        %v3371 = vpack.c.bf16 %v3315, %v3313
        %v3372 = vpack.c.bf16 %v3318, %v3316
        %v3373 = vpack.c.bf16 %v3319, %v3317
        %v3374 = vpack.c.bf16 %v3322, %v3320
        %v3375 = vpack.c.bf16 %v3323, %v3321
        %v3376 = vpack.c.bf16 %v3326, %v3324
        %v3377 = vpack.c.bf16 %v3327, %v3325
        %v3378 = vpack.c.bf16 %v3330, %v3328
        %v3379 = vpack.c.bf16 %v3331, %v3329
        %v3380 = vpack.c.bf16 %v3334, %v3332
        %v3381 = vpack.c.bf16 %v3335, %v3333
        %v3382 = vpack.c.bf16 %v3338, %v3336
        %v3383 = vpack.c.bf16 %v3339, %v3337
        %v3384 = vpack.c.bf16 %v3342, %v3340
        %v3385 = vpack.c.bf16 %v3343, %v3341
        %v3386 = vpack.c.bf16 %v3346, %v3344
        %v3387 = vpack.c.bf16 %v3347, %v3345
        %v3388 = vpack.c.bf16 %v3350, %v3348
        %v3389 = vpack.c.bf16 %v3351, %v3349
        %v3390 = vpack.c.bf16 %v3354, %v3352
        %v3391 = vpack.c.bf16 %v3355, %v3353
        %v3392 = vpack.c.bf16 %v3358, %v3356
        %v3393 = vpack.c.bf16 %v3359, %v3357
        %v3394 = vpack.c.bf16 %v3362, %v3360
        %v3395 = vpack.c.bf16 %v3363, %v3361
        %v3396 = vpack.c.bf16 %v3366, %v3364
        %v3397 = vpack.c.bf16 %v3367, %v3365
        %v3398 = vpack.c.bf16 %v3368, %v3368
        %v3399 = vpack.c.bf16 %v3369, %v3369
        %s3400 = scalar_lea.vmem %s1551, 512 [#allocation2]
        %v3401 = vld [vmem:[%s3400] sm:$0xf]
        %v3402 = vld [vmem:[%s3400 + $0x4] sm:$0xf]
        %v3403 = vld [vmem:[%s3400 + $0x8] sm:$0xf]
        %v3404 = vld [vmem:[%s3400 + $0xc] sm:$0xf]
        %v3405 = vld [vmem:[%s3400 + $0x10] sm:$0xf]
        %v3406 = vld [vmem:[%s3400 + $0x14] sm:$0xf]
        %v3407 = vld [vmem:[%s3400 + $0x18] sm:$0xf]
        %v3408 = vld [vmem:[%s3400 + $0x1c] sm:$0xf]
        %v3409 = vld [vmem:[%s3400 + $0x20] sm:$0xf]
        %v3410 = vld [vmem:[%s3400 + $0x24] sm:$0xf]
        %v3411 = vld [vmem:[%s3400 + $0x28] sm:$0xf]
        %v3412 = vld [vmem:[%s3400 + $0x2c] sm:$0xf]
        %v3413 = vld [vmem:[%s3400 + $0x30] sm:$0xf]
        %v3414 = vld [vmem:[%s3400 + $0x34] sm:$0xf]
        %v3415 = vld [vmem:[%s3400 + $0x38] sm:$0xf]
        %v3416 = vld [vmem:[%s3400 + $0x3c] sm:$0xf]
        %v3417 = vld [vmem:[%s3400 + $0x40] sm:$0xf]
        %v3418 = vld [vmem:[%s3400 + $0x44] sm:$0xf]
        %v3419 = vld [vmem:[%s3400 + $0x48] sm:$0xf]
        %v3420 = vld [vmem:[%s3400 + $0x4c] sm:$0xf]
        %v3421 = vld [vmem:[%s3400 + $0x50] sm:$0xf]
        %v3422 = vld [vmem:[%s3400 + $0x54] sm:$0xf]
        %v3423 = vld [vmem:[%s3400 + $0x58] sm:$0xf]
        %v3424 = vld [vmem:[%s3400 + $0x5c] sm:$0xf]
        %v3425 = vld [vmem:[%s3400 + $0x60] sm:$0xf]
        %v3426 = vld [vmem:[%s3400 + $0x64] sm:$0xf]
        %v3427 = vld [vmem:[%s3400 + $0x68] sm:$0xf]
        %v3428 = vld [vmem:[%s3400 + $0x6c] sm:$0xf]
        %v3429 = vld [vmem:[%s3400 + $0x70] sm:$0xf]
        %v3430 = vld [vmem:[%s3400 + $0x74] sm:$0xf]
        %v3431 = vld [vmem:[%s3400 + $0x78] sm:$0xf]
        %v3432 = vld [vmem:[%s3400 + $0x7c] sm:$0xf]
        %v3434 = vshrl.u32 %v3370, 16
        %v3436 = vshll.u32 %v3370, 16
        %v3438 = vrot.slane %v3436, 1
        %v3439 = vor.u32 %v3434, %v3438
        %v3441 = vshll.u32 %v3372, 16
        %v3443 = vrot.slane %v3441, 1
        %v3444 = vsel %vm1756, %v3439, %v3443
        %v3446 = vshrl.u32 %v3371, 16
        %v3448 = vshll.u32 %v3371, 16
        %v3450 = vrot.slane %v3448, 1
        %v3451 = vor.u32 %v3446, %v3450
        %v3453 = vshll.u32 %v3373, 16
        %v3455 = vrot.slane %v3453, 1
        %v3456 = vsel %vm1756, %v3451, %v3455
        %v3457 = vshrl.u32 %v3372, 16
        %v3459 = vor.u32 %v3457, %v3443
        %v3461 = vshll.u32 %v3374, 16
        %v3463 = vrot.slane %v3461, 1
        %v3464 = vsel %vm1756, %v3459, %v3463
        %v3465 = vshrl.u32 %v3373, 16
        %v3467 = vor.u32 %v3465, %v3455
        %v3469 = vshll.u32 %v3375, 16
        %v3471 = vrot.slane %v3469, 1
        %v3472 = vsel %vm1756, %v3467, %v3471
        %v3473 = vshrl.u32 %v3374, 16
        %v3475 = vor.u32 %v3473, %v3463
        %v3477 = vshll.u32 %v3376, 16
        %v3479 = vrot.slane %v3477, 1
        %v3480 = vsel %vm1756, %v3475, %v3479
        %v3481 = vshrl.u32 %v3375, 16
        %v3483 = vor.u32 %v3481, %v3471
        %v3485 = vshll.u32 %v3377, 16
        %v3487 = vrot.slane %v3485, 1
        %v3488 = vsel %vm1756, %v3483, %v3487
        %v3489 = vshrl.u32 %v3376, 16
        %v3491 = vor.u32 %v3489, %v3479
        %v3493 = vshll.u32 %v3378, 16
        %v3495 = vrot.slane %v3493, 1
        %v3496 = vsel %vm1756, %v3491, %v3495
        %v3497 = vshrl.u32 %v3377, 16
        %v3499 = vor.u32 %v3497, %v3487
        %v3501 = vshll.u32 %v3379, 16
        %v3503 = vrot.slane %v3501, 1
        %v3504 = vsel %vm1756, %v3499, %v3503
        %v3505 = vshrl.u32 %v3378, 16
        %v3507 = vor.u32 %v3505, %v3495
        %v3509 = vshll.u32 %v3380, 16
        %v3511 = vrot.slane %v3509, 1
        %v3512 = vsel %vm1756, %v3507, %v3511
        %v3513 = vshrl.u32 %v3379, 16
        %v3515 = vor.u32 %v3513, %v3503
        %v3517 = vshll.u32 %v3381, 16
        %v3519 = vrot.slane %v3517, 1
        %v3520 = vsel %vm1756, %v3515, %v3519
        %v3521 = vshrl.u32 %v3380, 16
        %v3523 = vor.u32 %v3521, %v3511
        %v3525 = vshll.u32 %v3382, 16
        %v3527 = vrot.slane %v3525, 1
        %v3528 = vsel %vm1756, %v3523, %v3527
        %v3529 = vshrl.u32 %v3381, 16
        %v3531 = vor.u32 %v3529, %v3519
        %v3533 = vshll.u32 %v3383, 16
        %v3535 = vrot.slane %v3533, 1
        %v3536 = vsel %vm1756, %v3531, %v3535
        %v3537 = vshrl.u32 %v3382, 16
        %v3539 = vor.u32 %v3537, %v3527
        %v3541 = vshll.u32 %v3384, 16
        %v3543 = vrot.slane %v3541, 1
        %v3544 = vsel %vm1756, %v3539, %v3543
        %v3545 = vshrl.u32 %v3383, 16
        %v3547 = vor.u32 %v3545, %v3535
        %v3549 = vshll.u32 %v3385, 16
        %v3551 = vrot.slane %v3549, 1
        %v3552 = vsel %vm1756, %v3547, %v3551
        %v3553 = vshrl.u32 %v3384, 16
        %v3555 = vor.u32 %v3553, %v3543
        %v3557 = vshll.u32 %v3386, 16
        %v3559 = vrot.slane %v3557, 1
        %v3560 = vsel %vm1756, %v3555, %v3559
        %v3561 = vshrl.u32 %v3385, 16
        %v3563 = vor.u32 %v3561, %v3551
        %v3565 = vshll.u32 %v3387, 16
        %v3567 = vrot.slane %v3565, 1
        %v3568 = vsel %vm1756, %v3563, %v3567
        %v3569 = vshrl.u32 %v3386, 16
        %v3571 = vor.u32 %v3569, %v3559
        %v3573 = vshll.u32 %v3388, 16
        %v3575 = vrot.slane %v3573, 1
        %v3576 = vsel %vm1756, %v3571, %v3575
        %v3577 = vshrl.u32 %v3387, 16
        %v3579 = vor.u32 %v3577, %v3567
        %v3581 = vshll.u32 %v3389, 16
        %v3583 = vrot.slane %v3581, 1
        %v3584 = vsel %vm1756, %v3579, %v3583
        %v3585 = vshrl.u32 %v3388, 16
        %v3587 = vor.u32 %v3585, %v3575
        %v3589 = vshll.u32 %v3390, 16
        %v3591 = vrot.slane %v3589, 1
        %v3592 = vsel %vm1756, %v3587, %v3591
        %v3593 = vshrl.u32 %v3389, 16
        %v3595 = vor.u32 %v3593, %v3583
        %v3597 = vshll.u32 %v3391, 16
        %v3599 = vrot.slane %v3597, 1
        %v3600 = vsel %vm1756, %v3595, %v3599
        %v3601 = vshrl.u32 %v3390, 16
        %v3603 = vor.u32 %v3601, %v3591
        %v3605 = vshll.u32 %v3392, 16
        %v3607 = vrot.slane %v3605, 1
        %v3608 = vsel %vm1756, %v3603, %v3607
        %v3609 = vshrl.u32 %v3391, 16
        %v3611 = vor.u32 %v3609, %v3599
        %v3613 = vshll.u32 %v3393, 16
        %v3615 = vrot.slane %v3613, 1
        %v3616 = vsel %vm1756, %v3611, %v3615
        %v3617 = vshrl.u32 %v3392, 16
        %v3619 = vor.u32 %v3617, %v3607
        %v3621 = vshll.u32 %v3394, 16
        %v3623 = vrot.slane %v3621, 1
        %v3624 = vsel %vm1756, %v3619, %v3623
        %v3625 = vshrl.u32 %v3393, 16
        %v3627 = vor.u32 %v3625, %v3615
        %v3629 = vshll.u32 %v3395, 16
        %v3631 = vrot.slane %v3629, 1
        %v3632 = vsel %vm1756, %v3627, %v3631
        %v3633 = vshrl.u32 %v3394, 16
        %v3635 = vor.u32 %v3633, %v3623
        %v3637 = vshll.u32 %v3396, 16
        %v3639 = vrot.slane %v3637, 1
        %v3640 = vsel %vm1756, %v3635, %v3639
        %v3641 = vshrl.u32 %v3395, 16
        %v3643 = vor.u32 %v3641, %v3631
        %v3645 = vshll.u32 %v3397, 16
        %v3647 = vrot.slane %v3645, 1
        %v3648 = vsel %vm1756, %v3643, %v3647
        %v3649 = vshrl.u32 %v3396, 16
        %v3651 = vor.u32 %v3649, %v3639
        %v3653 = vshll.u32 %v3398, 16
        %v3655 = vrot.slane %v3653, 1
        %v3656 = vsel %vm1756, %v3651, %v3655
        %v3657 = vshrl.u32 %v3397, 16
        %v3659 = vor.u32 %v3657, %v3647
        %v3661 = vshll.u32 %v3399, 16
        %v3663 = vrot.slane %v3661, 1
        %v3664 = vsel %vm1756, %v3659, %v3663
        %v3725 = vunpack.c.l.b16 %v3401
        %v3726 = vunpack.c.l.b16 %v3402
        %v3727 = vunpack.c.l.b16 %v3403
        %v3728 = vunpack.c.l.b16 %v3404
        %v3729 = vunpack.c.l.b16 %v3405
        %v3730 = vunpack.c.l.b16 %v3406
        %v3731 = vunpack.c.l.b16 %v3407
        %v3732 = vunpack.c.l.b16 %v3408
        %v3733 = vunpack.c.l.b16 %v3409
        %v3734 = vunpack.c.l.b16 %v3410
        %v3735 = vunpack.c.l.b16 %v3411
        %v3736 = vunpack.c.l.b16 %v3412
        %v3737 = vunpack.c.l.b16 %v3413
        %v3738 = vunpack.c.l.b16 %v3414
        %v3739 = vunpack.c.l.b16 %v3415
        %v3740 = vunpack.c.l.b16 %v3416
        %v3741 = vunpack.c.l.b16 %v3417
        %v3742 = vunpack.c.l.b16 %v3418
        %v3743 = vunpack.c.l.b16 %v3419
        %v3744 = vunpack.c.l.b16 %v3420
        %v3745 = vunpack.c.l.b16 %v3421
        %v3746 = vunpack.c.l.b16 %v3422
        %v3747 = vunpack.c.l.b16 %v3423
        %v3748 = vunpack.c.l.b16 %v3424
        %v3749 = vunpack.c.l.b16 %v3425
        %v3750 = vunpack.c.l.b16 %v3426
        %v3751 = vunpack.c.l.b16 %v3427
        %v3752 = vunpack.c.l.b16 %v3428
        %v3753 = vunpack.c.l.b16 %v3429
        %v3754 = vunpack.c.l.b16 %v3430
        %v3755 = vunpack.c.l.b16 %v3431
        %v3756 = vunpack.c.l.b16 %v3432
        %v3757 = vpack.c.b16 %v3726, %v3725
        %v3758 = vpack.c.b16 %v3728, %v3727
        %v3759 = vpack.c.b16 %v3730, %v3729
        %v3760 = vpack.c.b16 %v3732, %v3731
        %v3761 = vpack.c.b16 %v3734, %v3733
        %v3762 = vpack.c.b16 %v3736, %v3735
        %v3763 = vpack.c.b16 %v3738, %v3737
        %v3764 = vpack.c.b16 %v3740, %v3739
        %v3765 = vpack.c.b16 %v3742, %v3741
        %v3766 = vpack.c.b16 %v3744, %v3743
        %v3767 = vpack.c.b16 %v3746, %v3745
        %v3768 = vpack.c.b16 %v3748, %v3747
        %v3769 = vpack.c.b16 %v3750, %v3749
        %v3770 = vpack.c.b16 %v3752, %v3751
        %v3771 = vpack.c.b16 %v3754, %v3753
        %v3772 = vpack.c.b16 %v3756, %v3755
        %3789 = vmatprep.subr.bf16.mxu0 0
        %3790 = vmatpush1.bf16.msra.mxu0 %v3757
        %3791 = vmatprep.subr.bf16.mxu0 0
        %3792 = vmatpush1.bf16.msra.mxu0 %v3758
        %3793 = vmatprep.subr.bf16.mxu0 0
        %3794 = vmatpush1.bf16.msra.mxu0 %v3759
        %3795 = vmatprep.subr.bf16.mxu0 0
        %3796 = vmatpush1.bf16.msra.mxu0 %v3760
        %3797 = vmatprep.subr.bf16.mxu0 0
        %3798 = vmatpush1.bf16.msra.mxu0 %v3761
        %3799 = vmatprep.subr.bf16.mxu0 0
        %3800 = vmatpush1.bf16.msra.mxu0 %v3762
        %3801 = vmatprep.subr.bf16.mxu0 0
        %3802 = vmatpush1.bf16.msra.mxu0 %v3763
        %3803 = vmatprep.subr.bf16.mxu0 0
        %3804 = vmatpush1.bf16.msra.mxu0 %v3764
        %3805 = vmatprep.subr.bf16.mxu0 0
        %3806 = vmatpush1.bf16.msra.mxu0 %v3765
        %3807 = vmatprep.subr.bf16.mxu0 0
        %3808 = vmatpush1.bf16.msra.mxu0 %v3766
        %3809 = vmatprep.subr.bf16.mxu0 0
        %3810 = vmatpush1.bf16.msra.mxu0 %v3767
        %3811 = vmatprep.subr.bf16.mxu0 0
        %3812 = vmatpush1.bf16.msra.mxu0 %v3768
        %3813 = vmatprep.subr.bf16.mxu0 0
        %3814 = vmatpush1.bf16.msra.mxu0 %v3769
        %3815 = vmatprep.subr.bf16.mxu0 0
        %3816 = vmatpush1.bf16.msra.mxu0 %v3770
        %3817 = vmatprep.subr.bf16.mxu0 0
        %3818 = vmatpush1.bf16.msra.mxu0 %v3771
        %3819 = vmatprep.subr.bf16.mxu0 0
        %3820 = vmatpush1.bf16.msra.mxu0 %v3772
        %3821 = vmatprep.mubr.bf16.mxu0 %v3456
        %3822 = vmatmul.mubr.bf16.gmra.mrb[0].mxu0 %v3444
        %v3823 = vpop.f32.mrb[0].mxu0
        %v3824 = vadd.f32 0.0, %v3823
        %v3825 = vpop.f32.mrb[0].mxu0
        %v3826 = vpop.f32.mrb[0].mxu0
        %v3827 = vadd.f32 0.0, %v3826
        %v3828 = vpop.f32.mrb[0].mxu0
        %3829 = vmatprep.mubr.bf16.mxu0 %v3472
        %3830 = vmatmul.mubr.bf16.gmra.mrb[0].mxu0 %v3464
        %v3831 = vpop.f32.mrb[0].mxu0
        %v3832 = vadd.f32 0.0, %v3831
        %v3833 = vpop.f32.mrb[0].mxu0
        %v3834 = vpop.f32.mrb[0].mxu0
        %v3835 = vadd.f32 0.0, %v3834
        %v3836 = vpop.f32.mrb[0].mxu0
        %3837 = vmatprep.mubr.bf16.mxu0 %v3488
        %3838 = vmatmul.mubr.bf16.gmra.mrb[0].mxu0 %v3480
        %v3839 = vpop.f32.mrb[0].mxu0
        %v3840 = vadd.f32 0.0, %v3839
        %v3841 = vpop.f32.mrb[0].mxu0
        %v3842 = vpop.f32.mrb[0].mxu0
        %v3843 = vadd.f32 0.0, %v3842
        %v3844 = vpop.f32.mrb[0].mxu0
        %3845 = vmatprep.mubr.bf16.mxu0 %v3504
        %3846 = vmatmul.mubr.bf16.gmra.mrb[0].mxu0 %v3496
        %v3847 = vpop.f32.mrb[0].mxu0
        %v3848 = vadd.f32 0.0, %v3847
        %v3849 = vpop.f32.mrb[0].mxu0
        %v3850 = vpop.f32.mrb[0].mxu0
        %v3851 = vadd.f32 0.0, %v3850
        %v3852 = vpop.f32.mrb[0].mxu0
        %3853 = vmatprep.mubr.bf16.mxu0 %v3520
        %3854 = vmatmul.mubr.bf16.gmra.mrb[0].mxu0 %v3512
        %v3855 = vpop.f32.mrb[0].mxu0
        %v3856 = vadd.f32 0.0, %v3855
        %v3857 = vpop.f32.mrb[0].mxu0
        %v3858 = vpop.f32.mrb[0].mxu0
        %v3859 = vadd.f32 0.0, %v3858
        %v3860 = vpop.f32.mrb[0].mxu0
        %3861 = vmatprep.mubr.bf16.mxu0 %v3536
        %3862 = vmatmul.mubr.bf16.gmra.mrb[0].mxu0 %v3528
        %v3863 = vpop.f32.mrb[0].mxu0
        %v3864 = vadd.f32 0.0, %v3863
        %v3865 = vpop.f32.mrb[0].mxu0
        %v3866 = vpop.f32.mrb[0].mxu0
        %v3867 = vadd.f32 0.0, %v3866
        %v3868 = vpop.f32.mrb[0].mxu0
        %3869 = vmatprep.mubr.bf16.mxu0 %v3552
        %3870 = vmatmul.mubr.bf16.gmra.mrb[0].mxu0 %v3544
        %v3871 = vpop.f32.mrb[0].mxu0
        %v3872 = vadd.f32 0.0, %v3871
        %v3873 = vpop.f32.mrb[0].mxu0
        %v3874 = vpop.f32.mrb[0].mxu0
        %v3875 = vadd.f32 0.0, %v3874
        %v3876 = vpop.f32.mrb[0].mxu0
        %3877 = vmatprep.mubr.bf16.mxu0 %v3568
        %3878 = vmatmul.mubr.bf16.gmra.mrb[0].mxu0 %v3560
        %v3879 = vpop.f32.mrb[0].mxu0
        %v3880 = vadd.f32 0.0, %v3879
        %v3881 = vpop.f32.mrb[0].mxu0
        %v3882 = vpop.f32.mrb[0].mxu0
        %v3883 = vadd.f32 0.0, %v3882
        %v3884 = vpop.f32.mrb[0].mxu0
        %3885 = vmatprep.mubr.bf16.mxu0 %v3584
        %3886 = vmatmul.mubr.bf16.gmra.mrb[0].mxu0 %v3576
        %v3887 = vpop.f32.mrb[0].mxu0
        %v3888 = vadd.f32 0.0, %v3887
        %v3889 = vpop.f32.mrb[0].mxu0
        %v3890 = vpop.f32.mrb[0].mxu0
        %v3891 = vadd.f32 0.0, %v3890
        %v3892 = vpop.f32.mrb[0].mxu0
        %3893 = vmatprep.mubr.bf16.mxu0 %v3600
        %3894 = vmatmul.mubr.bf16.gmra.mrb[0].mxu0 %v3592
        %v3895 = vpop.f32.mrb[0].mxu0
        %v3896 = vadd.f32 0.0, %v3895
        %v3897 = vpop.f32.mrb[0].mxu0
        %v3898 = vpop.f32.mrb[0].mxu0
        %v3899 = vadd.f32 0.0, %v3898
        %v3900 = vpop.f32.mrb[0].mxu0
        %3901 = vmatprep.mubr.bf16.mxu0 %v3616
        %3902 = vmatmul.mubr.bf16.gmra.mrb[0].mxu0 %v3608
        %v3903 = vpop.f32.mrb[0].mxu0
        %v3904 = vadd.f32 0.0, %v3903
        %v3905 = vpop.f32.mrb[0].mxu0
        %v3906 = vpop.f32.mrb[0].mxu0
        %v3907 = vadd.f32 0.0, %v3906
        %v3908 = vpop.f32.mrb[0].mxu0
        %3909 = vmatprep.mubr.bf16.mxu0 %v3632
        %3910 = vmatmul.mubr.bf16.gmra.mrb[0].mxu0 %v3624
        %v3911 = vpop.f32.mrb[0].mxu0
        %v3912 = vadd.f32 0.0, %v3911
        %v3913 = vpop.f32.mrb[0].mxu0
        %v3914 = vpop.f32.mrb[0].mxu0
        %v3915 = vadd.f32 0.0, %v3914
        %v3916 = vpop.f32.mrb[0].mxu0
        %3917 = vmatprep.mubr.bf16.mxu0 %v3648
        %3918 = vmatmul.mubr.bf16.gmra.mrb[0].mxu0 %v3640
        %v3919 = vpop.f32.mrb[0].mxu0
        %v3920 = vadd.f32 0.0, %v3919
        %v3921 = vpop.f32.mrb[0].mxu0
        %v3922 = vpop.f32.mrb[0].mxu0
        %v3923 = vadd.f32 0.0, %v3922
        %v3924 = vpop.f32.mrb[0].mxu0
        %3925 = vmatprep.mubr.bf16.mxu0 %v3664
        %3926 = vmatmul.mubr.bf16.gmra.mrb[0].mxu0 %v3656
        %v3927 = vpop.f32.mrb[0].mxu0
        %v3928 = vadd.f32 0.0, %v3927
        %v3929 = vpop.f32.mrb[0].mxu0
        %v3930 = vpop.f32.mrb[0].mxu0
        %v3931 = vadd.f32 0.0, %v3930
        %v3932 = vpop.f32.mrb[0].mxu0
        %3933 = vdwg.mxu0
        %v3934 = vadd.f32 %v3284, %v3824
        %v3935 = vadd.f32 %v3285, %v3827
        %v3936 = vadd.f32 %v3286, %v3832
        %v3937 = vadd.f32 %v3287, %v3835
        %v3938 = vadd.f32 %v3288, %v3840
        %v3939 = vadd.f32 %v3289, %v3843
        %v3940 = vadd.f32 %v3290, %v3848
        %v3941 = vadd.f32 %v3291, %v3851
        %v3942 = vadd.f32 %v3292, %v3856
        %v3943 = vadd.f32 %v3293, %v3859
        %v3944 = vadd.f32 %v3294, %v3864
        %v3945 = vadd.f32 %v3295, %v3867
        %v3946 = vadd.f32 %v3296, %v3872
        %v3947 = vadd.f32 %v3297, %v3875
        %v3948 = vadd.f32 %v3298, %v3880
        %v3949 = vadd.f32 %v3299, %v3883
        %v3950 = vadd.f32 %v3300, %v3888
        %v3951 = vadd.f32 %v3301, %v3891
        %v3952 = vadd.f32 %v3302, %v3896
        %v3953 = vadd.f32 %v3303, %v3899
        %v3954 = vadd.f32 %v3304, %v3904
        %v3955 = vadd.f32 %v3305, %v3907
        %v3956 = vadd.f32 %v3306, %v3912
        %v3957 = vadd.f32 %v3307, %v3915
        %v3958 = vadd.f32 %v3308, %v3920
        %v3959 = vadd.f32 %v3309, %v3923
        %v3960 = vadd.f32 %v3310, %v3928
        %v3961 = vadd.f32 %v3311, %v3931
        %v3962 = vld [vmem:[%s0 + $0x20] sm:$0xfc]
        %v3963 = vld [vmem:[%s0 + $0x28] sm:$0xfc]
        %v3964 = vld [vmem:[%s0 + $0x1e0] sm:$0x3]
        %v3965 = vld [vmem:[%s0 + $0x1e8] sm:$0x3]
        %v3966 = vpack.c.bf16 %v3314, %v3962
        %v3967 = vpack.c.bf16 %v3315, %v3963
        %v3968 = vpack.c.bf16 %v3964, %v3964
        %v3969 = vpack.c.bf16 %v3965, %v3965
        %s3970 = scalar_lea.vmem %s1551, 640 [#allocation2]
        %v3971 = vld [vmem:[%s3970] sm:$0xf]
        %v3972 = vld [vmem:[%s3970 + $0x4] sm:$0xf]
        %v3973 = vld [vmem:[%s3970 + $0x8] sm:$0xf]
        %v3974 = vld [vmem:[%s3970 + $0xc] sm:$0xf]
        %v3975 = vld [vmem:[%s3970 + $0x10] sm:$0xf]
        %v3976 = vld [vmem:[%s3970 + $0x14] sm:$0xf]
        %v3977 = vld [vmem:[%s3970 + $0x18] sm:$0xf]
        %v3978 = vld [vmem:[%s3970 + $0x1c] sm:$0xf]
        %v3979 = vld [vmem:[%s3970 + $0x20] sm:$0xf]
        %v3980 = vld [vmem:[%s3970 + $0x24] sm:$0xf]
        %v3981 = vld [vmem:[%s3970 + $0x28] sm:$0xf]
        %v3982 = vld [vmem:[%s3970 + $0x2c] sm:$0xf]
        %v3983 = vld [vmem:[%s3970 + $0x30] sm:$0xf]
        %v3984 = vld [vmem:[%s3970 + $0x34] sm:$0xf]
        %v3985 = vld [vmem:[%s3970 + $0x38] sm:$0xf]
        %v3986 = vld [vmem:[%s3970 + $0x3c] sm:$0xf]
        %v3987 = vld [vmem:[%s3970 + $0x40] sm:$0xf]
        %v3988 = vld [vmem:[%s3970 + $0x44] sm:$0xf]
        %v3989 = vld [vmem:[%s3970 + $0x48] sm:$0xf]
        %v3990 = vld [vmem:[%s3970 + $0x4c] sm:$0xf]
        %v3991 = vld [vmem:[%s3970 + $0x50] sm:$0xf]
        %v3992 = vld [vmem:[%s3970 + $0x54] sm:$0xf]
        %v3993 = vld [vmem:[%s3970 + $0x58] sm:$0xf]
        %v3994 = vld [vmem:[%s3970 + $0x5c] sm:$0xf]
        %v3995 = vld [vmem:[%s3970 + $0x60] sm:$0xf]
        %v3996 = vld [vmem:[%s3970 + $0x64] sm:$0xf]
        %v3997 = vld [vmem:[%s3970 + $0x68] sm:$0xf]
        %v3998 = vld [vmem:[%s3970 + $0x6c] sm:$0xf]
        %v3999 = vld [vmem:[%s3970 + $0x70] sm:$0xf]
        %v4000 = vld [vmem:[%s3970 + $0x74] sm:$0xf]
        %v4001 = vld [vmem:[%s3970 + $0x78] sm:$0xf]
        %v4002 = vld [vmem:[%s3970 + $0x7c] sm:$0xf]
        %v4033 = vrot.slane %v3966, 1
        %v4034 = vrot.slane %v3372, 1
        %v4035 = vsel %vm2570, %v4033, %v4034
        %v4036 = vrot.slane %v3967, 1
        %v4037 = vrot.slane %v3373, 1
        %v4038 = vsel %vm2570, %v4036, %v4037
        %v4039 = vrot.slane %v3374, 1
        %v4040 = vsel %vm2570, %v4034, %v4039
        %v4041 = vrot.slane %v3375, 1
        %v4042 = vsel %vm2570, %v4037, %v4041
        %v4043 = vrot.slane %v3376, 1
        %v4044 = vsel %vm2570, %v4039, %v4043
        %v4045 = vrot.slane %v3377, 1
        %v4046 = vsel %vm2570, %v4041, %v4045
        %v4047 = vrot.slane %v3378, 1
        %v4048 = vsel %vm2570, %v4043, %v4047
        %v4049 = vrot.slane %v3379, 1
        %v4050 = vsel %vm2570, %v4045, %v4049
        %v4051 = vrot.slane %v3380, 1
        %v4052 = vsel %vm2570, %v4047, %v4051
        %v4053 = vrot.slane %v3381, 1
        %v4054 = vsel %vm2570, %v4049, %v4053
        %v4055 = vrot.slane %v3382, 1
        %v4056 = vsel %vm2570, %v4051, %v4055
        %v4057 = vrot.slane %v3383, 1
        %v4058 = vsel %vm2570, %v4053, %v4057
        %v4059 = vrot.slane %v3384, 1
        %v4060 = vsel %vm2570, %v4055, %v4059
        %v4061 = vrot.slane %v3385, 1
        %v4062 = vsel %vm2570, %v4057, %v4061
        %v4063 = vrot.slane %v3386, 1
        %v4064 = vsel %vm2570, %v4059, %v4063
        %v4065 = vrot.slane %v3387, 1
        %v4066 = vsel %vm2570, %v4061, %v4065
        %v4067 = vrot.slane %v3388, 1
        %v4068 = vsel %vm2570, %v4063, %v4067
        %v4069 = vrot.slane %v3389, 1
        %v4070 = vsel %vm2570, %v4065, %v4069
        %v4071 = vrot.slane %v3390, 1
        %v4072 = vsel %vm2570, %v4067, %v4071
        %v4073 = vrot.slane %v3391, 1
        %v4074 = vsel %vm2570, %v4069, %v4073
        %v4075 = vrot.slane %v3392, 1
        %v4076 = vsel %vm2570, %v4071, %v4075
        %v4077 = vrot.slane %v3393, 1
        %v4078 = vsel %vm2570, %v4073, %v4077
        %v4079 = vrot.slane %v3394, 1
        %v4080 = vsel %vm2570, %v4075, %v4079
        %v4081 = vrot.slane %v3395, 1
        %v4082 = vsel %vm2570, %v4077, %v4081
        %v4083 = vrot.slane %v3396, 1
        %v4084 = vsel %vm2570, %v4079, %v4083
        %v4085 = vrot.slane %v3397, 1
        %v4086 = vsel %vm2570, %v4081, %v4085
        %v4087 = vrot.slane %v3968, 1
        %v4088 = vsel %vm2570, %v4083, %v4087
        %v4089 = vrot.slane %v3969, 1
        %v4090 = vsel %vm2570, %v4085, %v4089
        %v4151 = vunpack.c.l.b16 %v3971
        %v4152 = vunpack.c.l.b16 %v3972
        %v4153 = vunpack.c.l.b16 %v3973
        %v4154 = vunpack.c.l.b16 %v3974
        %v4155 = vunpack.c.l.b16 %v3975
        %v4156 = vunpack.c.l.b16 %v3976
        %v4157 = vunpack.c.l.b16 %v3977
        %v4158 = vunpack.c.l.b16 %v3978
        %v4159 = vunpack.c.l.b16 %v3979
        %v4160 = vunpack.c.l.b16 %v3980
        %v4161 = vunpack.c.l.b16 %v3981
        %v4162 = vunpack.c.l.b16 %v3982
        %v4163 = vunpack.c.l.b16 %v3983
        %v4164 = vunpack.c.l.b16 %v3984
        %v4165 = vunpack.c.l.b16 %v3985
        %v4166 = vunpack.c.l.b16 %v3986
        %v4167 = vunpack.c.l.b16 %v3987
        %v4168 = vunpack.c.l.b16 %v3988
        %v4169 = vunpack.c.l.b16 %v3989
        %v4170 = vunpack.c.l.b16 %v3990
        %v4171 = vunpack.c.l.b16 %v3991
        %v4172 = vunpack.c.l.b16 %v3992
        %v4173 = vunpack.c.l.b16 %v3993
        %v4174 = vunpack.c.l.b16 %v3994
        %v4175 = vunpack.c.l.b16 %v3995
        %v4176 = vunpack.c.l.b16 %v3996
        %v4177 = vunpack.c.l.b16 %v3997
        %v4178 = vunpack.c.l.b16 %v3998
        %v4179 = vunpack.c.l.b16 %v3999
        %v4180 = vunpack.c.l.b16 %v4000
        %v4181 = vunpack.c.l.b16 %v4001
        %v4182 = vunpack.c.l.b16 %v4002
        %v4183 = vpack.c.b16 %v4152, %v4151
        %v4184 = vpack.c.b16 %v4154, %v4153
        %v4185 = vpack.c.b16 %v4156, %v4155
        %v4186 = vpack.c.b16 %v4158, %v4157
        %v4187 = vpack.c.b16 %v4160, %v4159
        %v4188 = vpack.c.b16 %v4162, %v4161
        %v4189 = vpack.c.b16 %v4164, %v4163
        %v4190 = vpack.c.b16 %v4166, %v4165
        %v4191 = vpack.c.b16 %v4168, %v4167
        %v4192 = vpack.c.b16 %v4170, %v4169
        %v4193 = vpack.c.b16 %v4172, %v4171
        %v4194 = vpack.c.b16 %v4174, %v4173
        %v4195 = vpack.c.b16 %v4176, %v4175
        %v4196 = vpack.c.b16 %v4178, %v4177
        %v4197 = vpack.c.b16 %v4180, %v4179
        %v4198 = vpack.c.b16 %v4182, %v4181
        %4215 = vmatprep.subr.bf16.mxu0 0
        %4216 = vmatpush1.bf16.msra.mxu0 %v4183
        %4217 = vmatprep.subr.bf16.mxu0 0
        %4218 = vmatpush1.bf16.msra.mxu0 %v4184
        %4219 = vmatprep.subr.bf16.mxu0 0
        %4220 = vmatpush1.bf16.msra.mxu0 %v4185
        %4221 = vmatprep.subr.bf16.mxu0 0
        %4222 = vmatpush1.bf16.msra.mxu0 %v4186
        %4223 = vmatprep.subr.bf16.mxu0 0
        %4224 = vmatpush1.bf16.msra.mxu0 %v4187
        %4225 = vmatprep.subr.bf16.mxu0 0
        %4226 = vmatpush1.bf16.msra.mxu0 %v4188
        %4227 = vmatprep.subr.bf16.mxu0 0
        %4228 = vmatpush1.bf16.msra.mxu0 %v4189
        %4229 = vmatprep.subr.bf16.mxu0 0
        %4230 = vmatpush1.bf16.msra.mxu0 %v4190
        %4231 = vmatprep.subr.bf16.mxu0 0
        %4232 = vmatpush1.bf16.msra.mxu0 %v4191
        %4233 = vmatprep.subr.bf16.mxu0 0
        %4234 = vmatpush1.bf16.msra.mxu0 %v4192
        %4235 = vmatprep.subr.bf16.mxu0 0
        %4236 = vmatpush1.bf16.msra.mxu0 %v4193
        %4237 = vmatprep.subr.bf16.mxu0 0
        %4238 = vmatpush1.bf16.msra.mxu0 %v4194
        %4239 = vmatprep.subr.bf16.mxu0 0
        %4240 = vmatpush1.bf16.msra.mxu0 %v4195
        %4241 = vmatprep.subr.bf16.mxu0 0
        %4242 = vmatpush1.bf16.msra.mxu0 %v4196
        %4243 = vmatprep.subr.bf16.mxu0 0
        %4244 = vmatpush1.bf16.msra.mxu0 %v4197
        %4245 = vmatprep.subr.bf16.mxu0 0
        %4246 = vmatpush1.bf16.msra.mxu0 %v4198
        %4247 = vmatprep.mubr.bf16.mxu0 %v4038
        %4248 = vmatmul.mubr.bf16.gmra.mrb[0].mxu0 %v4035
        %v4249 = vpop.f32.mrb[0].mxu0
        %v4250 = vadd.f32 0.0, %v4249
        %v4251 = vpop.f32.mrb[0].mxu0
        %v4252 = vpop.f32.mrb[0].mxu0
        %v4253 = vadd.f32 0.0, %v4252
        %v4254 = vpop.f32.mrb[0].mxu0
        %4255 = vmatprep.mubr.bf16.mxu0 %v4042
        %4256 = vmatmul.mubr.bf16.gmra.mrb[0].mxu0 %v4040
        %v4257 = vpop.f32.mrb[0].mxu0
        %v4258 = vadd.f32 0.0, %v4257
        %v4259 = vpop.f32.mrb[0].mxu0
        %v4260 = vpop.f32.mrb[0].mxu0
        %v4261 = vadd.f32 0.0, %v4260
        %v4262 = vpop.f32.mrb[0].mxu0
        %4263 = vmatprep.mubr.bf16.mxu0 %v4046
        %4264 = vmatmul.mubr.bf16.gmra.mrb[0].mxu0 %v4044
        %v4265 = vpop.f32.mrb[0].mxu0
        %v4266 = vadd.f32 0.0, %v4265
        %v4267 = vpop.f32.mrb[0].mxu0
        %v4268 = vpop.f32.mrb[0].mxu0
        %v4269 = vadd.f32 0.0, %v4268
        %v4270 = vpop.f32.mrb[0].mxu0
        %4271 = vmatprep.mubr.bf16.mxu0 %v4050
        %4272 = vmatmul.mubr.bf16.gmra.mrb[0].mxu0 %v4048
        %v4273 = vpop.f32.mrb[0].mxu0
        %v4274 = vadd.f32 0.0, %v4273
        %v4275 = vpop.f32.mrb[0].mxu0
        %v4276 = vpop.f32.mrb[0].mxu0
        %v4277 = vadd.f32 0.0, %v4276
        %v4278 = vpop.f32.mrb[0].mxu0
        %4279 = vmatprep.mubr.bf16.mxu0 %v4054
        %4280 = vmatmul.mubr.bf16.gmra.mrb[0].mxu0 %v4052
        %v4281 = vpop.f32.mrb[0].mxu0
        %v4282 = vadd.f32 0.0, %v4281
        %v4283 = vpop.f32.mrb[0].mxu0
        %v4284 = vpop.f32.mrb[0].mxu0
        %v4285 = vadd.f32 0.0, %v4284
        %v4286 = vpop.f32.mrb[0].mxu0
        %4287 = vmatprep.mubr.bf16.mxu0 %v4058
        %4288 = vmatmul.mubr.bf16.gmra.mrb[0].mxu0 %v4056
        %v4289 = vpop.f32.mrb[0].mxu0
        %v4290 = vadd.f32 0.0, %v4289
        %v4291 = vpop.f32.mrb[0].mxu0
        %v4292 = vpop.f32.mrb[0].mxu0
        %v4293 = vadd.f32 0.0, %v4292
        %v4294 = vpop.f32.mrb[0].mxu0
        %4295 = vmatprep.mubr.bf16.mxu0 %v4062
        %4296 = vmatmul.mubr.bf16.gmra.mrb[0].mxu0 %v4060
        %v4297 = vpop.f32.mrb[0].mxu0
        %v4298 = vadd.f32 0.0, %v4297
        %v4299 = vpop.f32.mrb[0].mxu0
        %v4300 = vpop.f32.mrb[0].mxu0
        %v4301 = vadd.f32 0.0, %v4300
        %v4302 = vpop.f32.mrb[0].mxu0
        %4303 = vmatprep.mubr.bf16.mxu0 %v4066
        %4304 = vmatmul.mubr.bf16.gmra.mrb[0].mxu0 %v4064
        %v4305 = vpop.f32.mrb[0].mxu0
        %v4306 = vadd.f32 0.0, %v4305
        %v4307 = vpop.f32.mrb[0].mxu0
        %v4308 = vpop.f32.mrb[0].mxu0
        %v4309 = vadd.f32 0.0, %v4308
        %v4310 = vpop.f32.mrb[0].mxu0
        %4311 = vmatprep.mubr.bf16.mxu0 %v4070
        %4312 = vmatmul.mubr.bf16.gmra.mrb[0].mxu0 %v4068
        %v4313 = vpop.f32.mrb[0].mxu0
        %v4314 = vadd.f32 0.0, %v4313
        %v4315 = vpop.f32.mrb[0].mxu0
        %v4316 = vpop.f32.mrb[0].mxu0
        %v4317 = vadd.f32 0.0, %v4316
        %v4318 = vpop.f32.mrb[0].mxu0
        %4319 = vmatprep.mubr.bf16.mxu0 %v4074
        %4320 = vmatmul.mubr.bf16.gmra.mrb[0].mxu0 %v4072
        %v4321 = vpop.f32.mrb[0].mxu0
        %v4322 = vadd.f32 0.0, %v4321
        %v4323 = vpop.f32.mrb[0].mxu0
        %v4324 = vpop.f32.mrb[0].mxu0
        %v4325 = vadd.f32 0.0, %v4324
        %v4326 = vpop.f32.mrb[0].mxu0
        %4327 = vmatprep.mubr.bf16.mxu0 %v4078
        %4328 = vmatmul.mubr.bf16.gmra.mrb[0].mxu0 %v4076
        %v4329 = vpop.f32.mrb[0].mxu0
        %v4330 = vadd.f32 0.0, %v4329
        %v4331 = vpop.f32.mrb[0].mxu0
        %v4332 = vpop.f32.mrb[0].mxu0
        %v4333 = vadd.f32 0.0, %v4332
        %v4334 = vpop.f32.mrb[0].mxu0
        %4335 = vmatprep.mubr.bf16.mxu0 %v4082
        %4336 = vmatmul.mubr.bf16.gmra.mrb[0].mxu0 %v4080
        %v4337 = vpop.f32.mrb[0].mxu0
        %v4338 = vadd.f32 0.0, %v4337
        %v4339 = vpop.f32.mrb[0].mxu0
        %v4340 = vpop.f32.mrb[0].mxu0
        %v4341 = vadd.f32 0.0, %v4340
        %v4342 = vpop.f32.mrb[0].mxu0
        %4343 = vmatprep.mubr.bf16.mxu0 %v4086
        %4344 = vmatmul.mubr.bf16.gmra.mrb[0].mxu0 %v4084
        %v4345 = vpop.f32.mrb[0].mxu0
        %v4346 = vadd.f32 0.0, %v4345
        %v4347 = vpop.f32.mrb[0].mxu0
        %v4348 = vpop.f32.mrb[0].mxu0
        %v4349 = vadd.f32 0.0, %v4348
        %v4350 = vpop.f32.mrb[0].mxu0
        %4351 = vmatprep.mubr.bf16.mxu0 %v4090
        %4352 = vmatmul.mubr.bf16.gmra.mrb[0].mxu0 %v4088
        %v4353 = vpop.f32.mrb[0].mxu0
        %v4354 = vadd.f32 0.0, %v4353
        %v4355 = vpop.f32.mrb[0].mxu0
        %v4356 = vpop.f32.mrb[0].mxu0
        %v4357 = vadd.f32 0.0, %v4356
        %v4358 = vpop.f32.mrb[0].mxu0
        %4359 = vdwg.mxu0
        %v4360 = vadd.f32 %v3934, %v4250
        %v4361 = vadd.f32 %v3935, %v4253
        %v4362 = vadd.f32 %v3936, %v4258
        %v4363 = vadd.f32 %v3937, %v4261
        %v4364 = vadd.f32 %v3938, %v4266
        %v4365 = vadd.f32 %v3939, %v4269
        %v4366 = vadd.f32 %v3940, %v4274
        %v4367 = vadd.f32 %v3941, %v4277
        %v4368 = vadd.f32 %v3942, %v4282
        %v4369 = vadd.f32 %v3943, %v4285
        %v4370 = vadd.f32 %v3944, %v4290
        %v4371 = vadd.f32 %v3945, %v4293
        %v4372 = vadd.f32 %v3946, %v4298
        %v4373 = vadd.f32 %v3947, %v4301
        %v4374 = vadd.f32 %v3948, %v4306
        %v4375 = vadd.f32 %v3949, %v4309
        %v4376 = vadd.f32 %v3950, %v4314
        %v4377 = vadd.f32 %v3951, %v4317
        %v4378 = vadd.f32 %v3952, %v4322
        %v4379 = vadd.f32 %v3953, %v4325
        %v4380 = vadd.f32 %v3954, %v4330
        %v4381 = vadd.f32 %v3955, %v4333
        %v4382 = vadd.f32 %v3956, %v4338
        %v4383 = vadd.f32 %v3957, %v4341
        %v4384 = vadd.f32 %v3958, %v4346
        %v4385 = vadd.f32 %v3959, %v4349
        %v4386 = vadd.f32 %v3960, %v4354
        %v4387 = vadd.f32 %v3961, %v4357
        %v4388 = vld [vmem:[%s0 + $0x40] sm:$0xff]
        %v4389 = vld [vmem:[%s0 + $0x48] sm:$0xff]
        %v4390 = vld [vmem:[%s0 + $0x50] sm:$0xff]
        %v4391 = vld [vmem:[%s0 + $0x58] sm:$0xff]
        %v4392 = vld [vmem:[%s0 + $0x60] sm:$0xff]
        %v4393 = vld [vmem:[%s0 + $0x68] sm:$0xff]
        %v4394 = vld [vmem:[%s0 + $0x70] sm:$0xff]
        %v4395 = vld [vmem:[%s0 + $0x78] sm:$0xff]
        %v4396 = vld [vmem:[%s0 + $0x80] sm:$0xff]
        %v4397 = vld [vmem:[%s0 + $0x88] sm:$0xff]
        %v4398 = vld [vmem:[%s0 + $0x90] sm:$0xff]
        %v4399 = vld [vmem:[%s0 + $0x98] sm:$0xff]
        %v4400 = vld [vmem:[%s0 + $0xa0] sm:$0xff]
        %v4401 = vld [vmem:[%s0 + $0xa8] sm:$0xff]
        %v4402 = vld [vmem:[%s0 + $0xb0] sm:$0xff]
        %v4403 = vld [vmem:[%s0 + $0xb8] sm:$0xff]
        %v4404 = vld [vmem:[%s0 + $0xc0] sm:$0xff]
        %v4405 = vld [vmem:[%s0 + $0xc8] sm:$0xff]
        %v4406 = vld [vmem:[%s0 + $0xd0] sm:$0xff]
        %v4407 = vld [vmem:[%s0 + $0xd8] sm:$0xff]
        %v4408 = vld [vmem:[%s0 + $0xe0] sm:$0xff]
        %v4409 = vld [vmem:[%s0 + $0xe8] sm:$0xff]
        %v4410 = vld [vmem:[%s0 + $0xf0] sm:$0xff]
        %v4411 = vld [vmem:[%s0 + $0xf8] sm:$0xff]
        %v4412 = vld [vmem:[%s0 + $0x100] sm:$0xff]
        %v4413 = vld [vmem:[%s0 + $0x108] sm:$0xff]
        %v4414 = vld [vmem:[%s0 + $0x110] sm:$0xff]
        %v4415 = vld [vmem:[%s0 + $0x118] sm:$0xff]
        %v4416 = vld [vmem:[%s0 + $0x120] sm:$0xff]
        %v4417 = vld [vmem:[%s0 + $0x128] sm:$0xff]
        %v4418 = vld [vmem:[%s0 + $0x130] sm:$0xff]
        %v4419 = vld [vmem:[%s0 + $0x138] sm:$0xff]
        %v4420 = vld [vmem:[%s0 + $0x140] sm:$0xff]
        %v4421 = vld [vmem:[%s0 + $0x148] sm:$0xff]
        %v4422 = vld [vmem:[%s0 + $0x150] sm:$0xff]
        %v4423 = vld [vmem:[%s0 + $0x158] sm:$0xff]
        %v4424 = vld [vmem:[%s0 + $0x160] sm:$0xff]
        %v4425 = vld [vmem:[%s0 + $0x168] sm:$0xff]
        %v4426 = vld [vmem:[%s0 + $0x170] sm:$0xff]
        %v4427 = vld [vmem:[%s0 + $0x178] sm:$0xff]
        %v4428 = vld [vmem:[%s0 + $0x180] sm:$0xff]
        %v4429 = vld [vmem:[%s0 + $0x188] sm:$0xff]
        %v4430 = vld [vmem:[%s0 + $0x190] sm:$0xff]
        %v4431 = vld [vmem:[%s0 + $0x198] sm:$0xff]
        %v4432 = vld [vmem:[%s0 + $0x1a0] sm:$0xff]
        %v4433 = vld [vmem:[%s0 + $0x1a8] sm:$0xff]
        %v4434 = vld [vmem:[%s0 + $0x1b0] sm:$0xff]
        %v4435 = vld [vmem:[%s0 + $0x1b8] sm:$0xff]
        %v4436 = vld [vmem:[%s0 + $0x1c0] sm:$0xff]
        %v4437 = vld [vmem:[%s0 + $0x1c8] sm:$0xff]
        %v4438 = vld [vmem:[%s0 + $0x1d0] sm:$0xff]
        %v4439 = vld [vmem:[%s0 + $0x1d8] sm:$0xff]
        %v4440 = vld [vmem:[%s0 + $0x1e0] sm:$0xff]
        %v4441 = vld [vmem:[%s0 + $0x1e8] sm:$0xff]
        %v4442 = vld [vmem:[%s0 + $0x1f0] sm:$0xff]
        %v4443 = vld [vmem:[%s0 + $0x1f8] sm:$0xff]
        %v4444 = vpack.c.bf16 %v4390, %v4388
        %v4445 = vpack.c.bf16 %v4391, %v4389
        %v4446 = vpack.c.bf16 %v4394, %v4392
        %v4447 = vpack.c.bf16 %v4395, %v4393
        %v4448 = vpack.c.bf16 %v4398, %v4396
        %v4449 = vpack.c.bf16 %v4399, %v4397
        %v4450 = vpack.c.bf16 %v4402, %v4400
        %v4451 = vpack.c.bf16 %v4403, %v4401
        %v4452 = vpack.c.bf16 %v4406, %v4404
        %v4453 = vpack.c.bf16 %v4407, %v4405
        %v4454 = vpack.c.bf16 %v4410, %v4408
        %v4455 = vpack.c.bf16 %v4411, %v4409
        %v4456 = vpack.c.bf16 %v4414, %v4412
        %v4457 = vpack.c.bf16 %v4415, %v4413
        %v4458 = vpack.c.bf16 %v4418, %v4416
        %v4459 = vpack.c.bf16 %v4419, %v4417
        %v4460 = vpack.c.bf16 %v4422, %v4420
        %v4461 = vpack.c.bf16 %v4423, %v4421
        %v4462 = vpack.c.bf16 %v4426, %v4424
        %v4463 = vpack.c.bf16 %v4427, %v4425
        %v4464 = vpack.c.bf16 %v4430, %v4428
        %v4465 = vpack.c.bf16 %v4431, %v4429
        %v4466 = vpack.c.bf16 %v4434, %v4432
        %v4467 = vpack.c.bf16 %v4435, %v4433
        %v4468 = vpack.c.bf16 %v4438, %v4436
        %v4469 = vpack.c.bf16 %v4439, %v4437
        %v4470 = vpack.c.bf16 %v4442, %v4440
        %v4471 = vpack.c.bf16 %v4443, %v4441
        %s4472 = scalar_lea.vmem %s1551, 768 [#allocation2]
        %v4473 = vld [vmem:[%s4472] sm:$0xf]
        %v4474 = vld [vmem:[%s4472 + $0x4] sm:$0xf]
        %v4475 = vld [vmem:[%s4472 + $0x8] sm:$0xf]
        %v4476 = vld [vmem:[%s4472 + $0xc] sm:$0xf]
        %v4477 = vld [vmem:[%s4472 + $0x10] sm:$0xf]
        %v4478 = vld [vmem:[%s4472 + $0x14] sm:$0xf]
        %v4479 = vld [vmem:[%s4472 + $0x18] sm:$0xf]
        %v4480 = vld [vmem:[%s4472 + $0x1c] sm:$0xf]
        %v4481 = vld [vmem:[%s4472 + $0x20] sm:$0xf]
        %v4482 = vld [vmem:[%s4472 + $0x24] sm:$0xf]
        %v4483 = vld [vmem:[%s4472 + $0x28] sm:$0xf]
        %v4484 = vld [vmem:[%s4472 + $0x2c] sm:$0xf]
        %v4485 = vld [vmem:[%s4472 + $0x30] sm:$0xf]
        %v4486 = vld [vmem:[%s4472 + $0x34] sm:$0xf]
        %v4487 = vld [vmem:[%s4472 + $0x38] sm:$0xf]
        %v4488 = vld [vmem:[%s4472 + $0x3c] sm:$0xf]
        %v4489 = vld [vmem:[%s4472 + $0x40] sm:$0xf]
        %v4490 = vld [vmem:[%s4472 + $0x44] sm:$0xf]
        %v4491 = vld [vmem:[%s4472 + $0x48] sm:$0xf]
        %v4492 = vld [vmem:[%s4472 + $0x4c] sm:$0xf]
        %v4493 = vld [vmem:[%s4472 + $0x50] sm:$0xf]
        %v4494 = vld [vmem:[%s4472 + $0x54] sm:$0xf]
        %v4495 = vld [vmem:[%s4472 + $0x58] sm:$0xf]
        %v4496 = vld [vmem:[%s4472 + $0x5c] sm:$0xf]
        %v4497 = vld [vmem:[%s4472 + $0x60] sm:$0xf]
        %v4498 = vld [vmem:[%s4472 + $0x64] sm:$0xf]
        %v4499 = vld [vmem:[%s4472 + $0x68] sm:$0xf]
        %v4500 = vld [vmem:[%s4472 + $0x6c] sm:$0xf]
        %v4501 = vld [vmem:[%s4472 + $0x70] sm:$0xf]
        %v4502 = vld [vmem:[%s4472 + $0x74] sm:$0xf]
        %v4503 = vld [vmem:[%s4472 + $0x78] sm:$0xf]
        %v4504 = vld [vmem:[%s4472 + $0x7c] sm:$0xf]
        %v4537 = vunpack.c.l.b16 %v4473
        %v4538 = vunpack.c.l.b16 %v4474
        %v4539 = vunpack.c.l.b16 %v4475
        %v4540 = vunpack.c.l.b16 %v4476
        %v4541 = vunpack.c.l.b16 %v4477
        %v4542 = vunpack.c.l.b16 %v4478
        %v4543 = vunpack.c.l.b16 %v4479
        %v4544 = vunpack.c.l.b16 %v4480
        %v4545 = vunpack.c.l.b16 %v4481
        %v4546 = vunpack.c.l.b16 %v4482
        %v4547 = vunpack.c.l.b16 %v4483
        %v4548 = vunpack.c.l.b16 %v4484
        %v4549 = vunpack.c.l.b16 %v4485
        %v4550 = vunpack.c.l.b16 %v4486
        %v4551 = vunpack.c.l.b16 %v4487
        %v4552 = vunpack.c.l.b16 %v4488
        %v4553 = vunpack.c.l.b16 %v4489
        %v4554 = vunpack.c.l.b16 %v4490
        %v4555 = vunpack.c.l.b16 %v4491
        %v4556 = vunpack.c.l.b16 %v4492
        %v4557 = vunpack.c.l.b16 %v4493
        %v4558 = vunpack.c.l.b16 %v4494
        %v4559 = vunpack.c.l.b16 %v4495
        %v4560 = vunpack.c.l.b16 %v4496
        %v4561 = vunpack.c.l.b16 %v4497
        %v4562 = vunpack.c.l.b16 %v4498
        %v4563 = vunpack.c.l.b16 %v4499
        %v4564 = vunpack.c.l.b16 %v4500
        %v4565 = vunpack.c.l.b16 %v4501
        %v4566 = vunpack.c.l.b16 %v4502
        %v4567 = vunpack.c.l.b16 %v4503
        %v4568 = vunpack.c.l.b16 %v4504
        %v4569 = vpack.c.b16 %v4538, %v4537
        %v4570 = vpack.c.b16 %v4540, %v4539
        %v4571 = vpack.c.b16 %v4542, %v4541
        %v4572 = vpack.c.b16 %v4544, %v4543
        %v4573 = vpack.c.b16 %v4546, %v4545
        %v4574 = vpack.c.b16 %v4548, %v4547
        %v4575 = vpack.c.b16 %v4550, %v4549
        %v4576 = vpack.c.b16 %v4552, %v4551
        %v4577 = vpack.c.b16 %v4554, %v4553
        %v4578 = vpack.c.b16 %v4556, %v4555
        %v4579 = vpack.c.b16 %v4558, %v4557
        %v4580 = vpack.c.b16 %v4560, %v4559
        %v4581 = vpack.c.b16 %v4562, %v4561
        %v4582 = vpack.c.b16 %v4564, %v4563
        %v4583 = vpack.c.b16 %v4566, %v4565
        %v4584 = vpack.c.b16 %v4568, %v4567
        %4601 = vmatprep.subr.bf16.mxu0 0
        %4602 = vmatpush1.bf16.msra.mxu0 %v4569
        %4603 = vmatprep.subr.bf16.mxu0 0
        %4604 = vmatpush1.bf16.msra.mxu0 %v4570
        %4605 = vmatprep.subr.bf16.mxu0 0
        %4606 = vmatpush1.bf16.msra.mxu0 %v4571
        %4607 = vmatprep.subr.bf16.mxu0 0
        %4608 = vmatpush1.bf16.msra.mxu0 %v4572
        %4609 = vmatprep.subr.bf16.mxu0 0
        %4610 = vmatpush1.bf16.msra.mxu0 %v4573
        %4611 = vmatprep.subr.bf16.mxu0 0
        %4612 = vmatpush1.bf16.msra.mxu0 %v4574
        %4613 = vmatprep.subr.bf16.mxu0 0
        %4614 = vmatpush1.bf16.msra.mxu0 %v4575
        %4615 = vmatprep.subr.bf16.mxu0 0
        %4616 = vmatpush1.bf16.msra.mxu0 %v4576
        %4617 = vmatprep.subr.bf16.mxu0 0
        %4618 = vmatpush1.bf16.msra.mxu0 %v4577
        %4619 = vmatprep.subr.bf16.mxu0 0
        %4620 = vmatpush1.bf16.msra.mxu0 %v4578
        %4621 = vmatprep.subr.bf16.mxu0 0
        %4622 = vmatpush1.bf16.msra.mxu0 %v4579
        %4623 = vmatprep.subr.bf16.mxu0 0
        %4624 = vmatpush1.bf16.msra.mxu0 %v4580
        %4625 = vmatprep.subr.bf16.mxu0 0
        %4626 = vmatpush1.bf16.msra.mxu0 %v4581
        %4627 = vmatprep.subr.bf16.mxu0 0
        %4628 = vmatpush1.bf16.msra.mxu0 %v4582
        %4629 = vmatprep.subr.bf16.mxu0 0
        %4630 = vmatpush1.bf16.msra.mxu0 %v4583
        %4631 = vmatprep.subr.bf16.mxu0 0
        %4632 = vmatpush1.bf16.msra.mxu0 %v4584
        %4633 = vmatprep.mubr.bf16.mxu0 %v4445
        %4634 = vmatmul.mubr.bf16.gmra.mrb[0].mxu0 %v4444
        %v4635 = vpop.f32.mrb[0].mxu0
        %v4636 = vadd.f32 0.0, %v4635
        %v4637 = vpop.f32.mrb[0].mxu0
        %v4638 = vpop.f32.mrb[0].mxu0
        %v4639 = vadd.f32 0.0, %v4638
        %v4640 = vpop.f32.mrb[0].mxu0
        %4641 = vmatprep.mubr.bf16.mxu0 %v4447
        %4642 = vmatmul.mubr.bf16.gmra.mrb[0].mxu0 %v4446
        %v4643 = vpop.f32.mrb[0].mxu0
        %v4644 = vadd.f32 0.0, %v4643
        %v4645 = vpop.f32.mrb[0].mxu0
        %v4646 = vpop.f32.mrb[0].mxu0
        %v4647 = vadd.f32 0.0, %v4646
        %v4648 = vpop.f32.mrb[0].mxu0
        %4649 = vmatprep.mubr.bf16.mxu0 %v4449
        %4650 = vmatmul.mubr.bf16.gmra.mrb[0].mxu0 %v4448
        %v4651 = vpop.f32.mrb[0].mxu0
        %v4652 = vadd.f32 0.0, %v4651
        %v4653 = vpop.f32.mrb[0].mxu0
        %v4654 = vpop.f32.mrb[0].mxu0
        %v4655 = vadd.f32 0.0, %v4654
        %v4656 = vpop.f32.mrb[0].mxu0
        %4657 = vmatprep.mubr.bf16.mxu0 %v4451
        %4658 = vmatmul.mubr.bf16.gmra.mrb[0].mxu0 %v4450
        %v4659 = vpop.f32.mrb[0].mxu0
        %v4660 = vadd.f32 0.0, %v4659
        %v4661 = vpop.f32.mrb[0].mxu0
        %v4662 = vpop.f32.mrb[0].mxu0
        %v4663 = vadd.f32 0.0, %v4662
        %v4664 = vpop.f32.mrb[0].mxu0
        %4665 = vmatprep.mubr.bf16.mxu0 %v4453
        %4666 = vmatmul.mubr.bf16.gmra.mrb[0].mxu0 %v4452
        %v4667 = vpop.f32.mrb[0].mxu0
        %v4668 = vadd.f32 0.0, %v4667
        %v4669 = vpop.f32.mrb[0].mxu0
        %v4670 = vpop.f32.mrb[0].mxu0
        %v4671 = vadd.f32 0.0, %v4670
        %v4672 = vpop.f32.mrb[0].mxu0
        %4673 = vmatprep.mubr.bf16.mxu0 %v4455
        %4674 = vmatmul.mubr.bf16.gmra.mrb[0].mxu0 %v4454
        %v4675 = vpop.f32.mrb[0].mxu0
        %v4676 = vadd.f32 0.0, %v4675
        %v4677 = vpop.f32.mrb[0].mxu0
        %v4678 = vpop.f32.mrb[0].mxu0
        %v4679 = vadd.f32 0.0, %v4678
        %v4680 = vpop.f32.mrb[0].mxu0
        %4681 = vmatprep.mubr.bf16.mxu0 %v4457
        %4682 = vmatmul.mubr.bf16.gmra.mrb[0].mxu0 %v4456
        %v4683 = vpop.f32.mrb[0].mxu0
        %v4684 = vadd.f32 0.0, %v4683
        %v4685 = vpop.f32.mrb[0].mxu0
        %v4686 = vpop.f32.mrb[0].mxu0
        %v4687 = vadd.f32 0.0, %v4686
        %v4688 = vpop.f32.mrb[0].mxu0
        %4689 = vmatprep.mubr.bf16.mxu0 %v4459
        %4690 = vmatmul.mubr.bf16.gmra.mrb[0].mxu0 %v4458
        %v4691 = vpop.f32.mrb[0].mxu0
        %v4692 = vadd.f32 0.0, %v4691
        %v4693 = vpop.f32.mrb[0].mxu0
        %v4694 = vpop.f32.mrb[0].mxu0
        %v4695 = vadd.f32 0.0, %v4694
        %v4696 = vpop.f32.mrb[0].mxu0
        %4697 = vmatprep.mubr.bf16.mxu0 %v4461
        %4698 = vmatmul.mubr.bf16.gmra.mrb[0].mxu0 %v4460
        %v4699 = vpop.f32.mrb[0].mxu0
        %v4700 = vadd.f32 0.0, %v4699
        %v4701 = vpop.f32.mrb[0].mxu0
        %v4702 = vpop.f32.mrb[0].mxu0
        %v4703 = vadd.f32 0.0, %v4702
        %v4704 = vpop.f32.mrb[0].mxu0
        %4705 = vmatprep.mubr.bf16.mxu0 %v4463
        %4706 = vmatmul.mubr.bf16.gmra.mrb[0].mxu0 %v4462
        %v4707 = vpop.f32.mrb[0].mxu0
        %v4708 = vadd.f32 0.0, %v4707
        %v4709 = vpop.f32.mrb[0].mxu0
        %v4710 = vpop.f32.mrb[0].mxu0
        %v4711 = vadd.f32 0.0, %v4710
        %v4712 = vpop.f32.mrb[0].mxu0
        %4713 = vmatprep.mubr.bf16.mxu0 %v4465
        %4714 = vmatmul.mubr.bf16.gmra.mrb[0].mxu0 %v4464
        %v4715 = vpop.f32.mrb[0].mxu0
        %v4716 = vadd.f32 0.0, %v4715
        %v4717 = vpop.f32.mrb[0].mxu0
        %v4718 = vpop.f32.mrb[0].mxu0
        %v4719 = vadd.f32 0.0, %v4718
        %v4720 = vpop.f32.mrb[0].mxu0
        %4721 = vmatprep.mubr.bf16.mxu0 %v4467
        %4722 = vmatmul.mubr.bf16.gmra.mrb[0].mxu0 %v4466
        %v4723 = vpop.f32.mrb[0].mxu0
        %v4724 = vadd.f32 0.0, %v4723
        %v4725 = vpop.f32.mrb[0].mxu0
        %v4726 = vpop.f32.mrb[0].mxu0
        %v4727 = vadd.f32 0.0, %v4726
        %v4728 = vpop.f32.mrb[0].mxu0
        %4729 = vmatprep.mubr.bf16.mxu0 %v4469
        %4730 = vmatmul.mubr.bf16.gmra.mrb[0].mxu0 %v4468
        %v4731 = vpop.f32.mrb[0].mxu0
        %v4732 = vadd.f32 0.0, %v4731
        %v4733 = vpop.f32.mrb[0].mxu0
        %v4734 = vpop.f32.mrb[0].mxu0
        %v4735 = vadd.f32 0.0, %v4734
        %v4736 = vpop.f32.mrb[0].mxu0
        %4737 = vmatprep.mubr.bf16.mxu0 %v4471
        %4738 = vmatmul.mubr.bf16.gmra.mrb[0].mxu0 %v4470
        %v4739 = vpop.f32.mrb[0].mxu0
        %v4740 = vadd.f32 0.0, %v4739
        %v4741 = vpop.f32.mrb[0].mxu0
        %v4742 = vpop.f32.mrb[0].mxu0
        %v4743 = vadd.f32 0.0, %v4742
        %v4744 = vpop.f32.mrb[0].mxu0
        %4745 = vdwg.mxu0
        %v4746 = vadd.f32 %v4360, %v4636
        %v4747 = vadd.f32 %v4361, %v4639
        %v4748 = vadd.f32 %v4362, %v4644
        %v4749 = vadd.f32 %v4363, %v4647
        %v4750 = vadd.f32 %v4364, %v4652
        %v4751 = vadd.f32 %v4365, %v4655
        %v4752 = vadd.f32 %v4366, %v4660
        %v4753 = vadd.f32 %v4367, %v4663
        %v4754 = vadd.f32 %v4368, %v4668
        %v4755 = vadd.f32 %v4369, %v4671
        %v4756 = vadd.f32 %v4370, %v4676
        %v4757 = vadd.f32 %v4371, %v4679
        %v4758 = vadd.f32 %v4372, %v4684
        %v4759 = vadd.f32 %v4373, %v4687
        %v4760 = vadd.f32 %v4374, %v4692
        %v4761 = vadd.f32 %v4375, %v4695
        %v4762 = vadd.f32 %v4376, %v4700
        %v4763 = vadd.f32 %v4377, %v4703
        %v4764 = vadd.f32 %v4378, %v4708
        %v4765 = vadd.f32 %v4379, %v4711
        %v4766 = vadd.f32 %v4380, %v4716
        %v4767 = vadd.f32 %v4381, %v4719
        %v4768 = vadd.f32 %v4382, %v4724
        %v4769 = vadd.f32 %v4383, %v4727
        %v4770 = vadd.f32 %v4384, %v4732
        %v4771 = vadd.f32 %v4385, %v4735
        %v4772 = vadd.f32 %v4386, %v4740
        %v4773 = vadd.f32 %v4387, %v4743
        %v4774 = vld [vmem:[%s0 + $0x40] sm:$0xfe]
        %v4775 = vld [vmem:[%s0 + $0x48] sm:$0xfe]
        %v4776 = vld [vmem:[%s0 + $0x50] sm:$0xff]
        %v4777 = vld [vmem:[%s0 + $0x58] sm:$0xff]
        %v4778 = vld [vmem:[%s0 + $0x60] sm:$0xff]
        %v4779 = vld [vmem:[%s0 + $0x68] sm:$0xff]
        %v4780 = vld [vmem:[%s0 + $0x70] sm:$0xff]
        %v4781 = vld [vmem:[%s0 + $0x78] sm:$0xff]
        %v4782 = vld [vmem:[%s0 + $0x80] sm:$0xff]
        %v4783 = vld [vmem:[%s0 + $0x88] sm:$0xff]
        %v4784 = vld [vmem:[%s0 + $0x90] sm:$0xff]
        %v4785 = vld [vmem:[%s0 + $0x98] sm:$0xff]
        %v4786 = vld [vmem:[%s0 + $0xa0] sm:$0xff]
        %v4787 = vld [vmem:[%s0 + $0xa8] sm:$0xff]
        %v4788 = vld [vmem:[%s0 + $0xb0] sm:$0xff]
        %v4789 = vld [vmem:[%s0 + $0xb8] sm:$0xff]
        %v4790 = vld [vmem:[%s0 + $0xc0] sm:$0xff]
        %v4791 = vld [vmem:[%s0 + $0xc8] sm:$0xff]
        %v4792 = vld [vmem:[%s0 + $0xd0] sm:$0xff]
        %v4793 = vld [vmem:[%s0 + $0xd8] sm:$0xff]
        %v4794 = vld [vmem:[%s0 + $0xe0] sm:$0xff]
        %v4795 = vld [vmem:[%s0 + $0xe8] sm:$0xff]
        %v4796 = vld [vmem:[%s0 + $0xf0] sm:$0xff]
        %v4797 = vld [vmem:[%s0 + $0xf8] sm:$0xff]
        %v4798 = vld [vmem:[%s0 + $0x100] sm:$0xff]
        %v4799 = vld [vmem:[%s0 + $0x108] sm:$0xff]
        %v4800 = vld [vmem:[%s0 + $0x110] sm:$0xff]
        %v4801 = vld [vmem:[%s0 + $0x118] sm:$0xff]
        %v4802 = vld [vmem:[%s0 + $0x120] sm:$0xff]
        %v4803 = vld [vmem:[%s0 + $0x128] sm:$0xff]
        %v4804 = vld [vmem:[%s0 + $0x130] sm:$0xff]
        %v4805 = vld [vmem:[%s0 + $0x138] sm:$0xff]
        %v4806 = vld [vmem:[%s0 + $0x140] sm:$0xff]
        %v4807 = vld [vmem:[%s0 + $0x148] sm:$0xff]
        %v4808 = vld [vmem:[%s0 + $0x150] sm:$0xff]
        %v4809 = vld [vmem:[%s0 + $0x158] sm:$0xff]
        %v4810 = vld [vmem:[%s0 + $0x160] sm:$0xff]
        %v4811 = vld [vmem:[%s0 + $0x168] sm:$0xff]
        %v4812 = vld [vmem:[%s0 + $0x170] sm:$0xff]
        %v4813 = vld [vmem:[%s0 + $0x178] sm:$0xff]
        %v4814 = vld [vmem:[%s0 + $0x180] sm:$0xff]
        %v4815 = vld [vmem:[%s0 + $0x188] sm:$0xff]
        %v4816 = vld [vmem:[%s0 + $0x190] sm:$0xff]
        %v4817 = vld [vmem:[%s0 + $0x198] sm:$0xff]
        %v4818 = vld [vmem:[%s0 + $0x1a0] sm:$0xff]
        %v4819 = vld [vmem:[%s0 + $0x1a8] sm:$0xff]
        %v4820 = vld [vmem:[%s0 + $0x1b0] sm:$0xff]
        %v4821 = vld [vmem:[%s0 + $0x1b8] sm:$0xff]
        %v4822 = vld [vmem:[%s0 + $0x1c0] sm:$0xff]
        %v4823 = vld [vmem:[%s0 + $0x1c8] sm:$0xff]
        %v4824 = vld [vmem:[%s0 + $0x1d0] sm:$0xff]
        %v4825 = vld [vmem:[%s0 + $0x1d8] sm:$0xff]
        %v4826 = vld [vmem:[%s0 + $0x1e0] sm:$0xff]
        %v4827 = vld [vmem:[%s0 + $0x1e8] sm:$0xff]
        %v4828 = vld [vmem:[%s0 + $0x1f0] sm:$0xff]
        %v4829 = vld [vmem:[%s0 + $0x1f8] sm:$0xff]
        %v4830 = vld [vmem:[%s0 + $0x200] sm:$0x1]
        %v4831 = vld [vmem:[%s0 + $0x208] sm:$0x1]
        %v4832 = vpack.c.bf16 %v4776, %v4774
        %v4833 = vpack.c.bf16 %v4777, %v4775
        %v4834 = vpack.c.bf16 %v4780, %v4778
        %v4835 = vpack.c.bf16 %v4781, %v4779
        %v4836 = vpack.c.bf16 %v4784, %v4782
        %v4837 = vpack.c.bf16 %v4785, %v4783
        %v4838 = vpack.c.bf16 %v4788, %v4786
        %v4839 = vpack.c.bf16 %v4789, %v4787
        %v4840 = vpack.c.bf16 %v4792, %v4790
        %v4841 = vpack.c.bf16 %v4793, %v4791
        %v4842 = vpack.c.bf16 %v4796, %v4794
        %v4843 = vpack.c.bf16 %v4797, %v4795
        %v4844 = vpack.c.bf16 %v4800, %v4798
        %v4845 = vpack.c.bf16 %v4801, %v4799
        %v4846 = vpack.c.bf16 %v4804, %v4802
        %v4847 = vpack.c.bf16 %v4805, %v4803
        %v4848 = vpack.c.bf16 %v4808, %v4806
        %v4849 = vpack.c.bf16 %v4809, %v4807
        %v4850 = vpack.c.bf16 %v4812, %v4810
        %v4851 = vpack.c.bf16 %v4813, %v4811
        %v4852 = vpack.c.bf16 %v4816, %v4814
        %v4853 = vpack.c.bf16 %v4817, %v4815
        %v4854 = vpack.c.bf16 %v4820, %v4818
        %v4855 = vpack.c.bf16 %v4821, %v4819
        %v4856 = vpack.c.bf16 %v4824, %v4822
        %v4857 = vpack.c.bf16 %v4825, %v4823
        %v4858 = vpack.c.bf16 %v4828, %v4826
        %v4859 = vpack.c.bf16 %v4829, %v4827
        %v4860 = vpack.c.bf16 %v4830, %v4830
        %v4861 = vpack.c.bf16 %v4831, %v4831
        %s4862 = scalar_lea.vmem %s1551, 896 [#allocation2]
        %v4863 = vld [vmem:[%s4862] sm:$0xf]
        %v4864 = vld [vmem:[%s4862 + $0x4] sm:$0xf]
        %v4865 = vld [vmem:[%s4862 + $0x8] sm:$0xf]
        %v4866 = vld [vmem:[%s4862 + $0xc] sm:$0xf]
        %v4867 = vld [vmem:[%s4862 + $0x10] sm:$0xf]
        %v4868 = vld [vmem:[%s4862 + $0x14] sm:$0xf]
        %v4869 = vld [vmem:[%s4862 + $0x18] sm:$0xf]
        %v4870 = vld [vmem:[%s4862 + $0x1c] sm:$0xf]
        %v4871 = vld [vmem:[%s4862 + $0x20] sm:$0xf]
        %v4872 = vld [vmem:[%s4862 + $0x24] sm:$0xf]
        %v4873 = vld [vmem:[%s4862 + $0x28] sm:$0xf]
        %v4874 = vld [vmem:[%s4862 + $0x2c] sm:$0xf]
        %v4875 = vld [vmem:[%s4862 + $0x30] sm:$0xf]
        %v4876 = vld [vmem:[%s4862 + $0x34] sm:$0xf]
        %v4877 = vld [vmem:[%s4862 + $0x38] sm:$0xf]
        %v4878 = vld [vmem:[%s4862 + $0x3c] sm:$0xf]
        %v4879 = vld [vmem:[%s4862 + $0x40] sm:$0xf]
        %v4880 = vld [vmem:[%s4862 + $0x44] sm:$0xf]
        %v4881 = vld [vmem:[%s4862 + $0x48] sm:$0xf]
        %v4882 = vld [vmem:[%s4862 + $0x4c] sm:$0xf]
        %v4883 = vld [vmem:[%s4862 + $0x50] sm:$0xf]
        %v4884 = vld [vmem:[%s4862 + $0x54] sm:$0xf]
        %v4885 = vld [vmem:[%s4862 + $0x58] sm:$0xf]
        %v4886 = vld [vmem:[%s4862 + $0x5c] sm:$0xf]
        %v4887 = vld [vmem:[%s4862 + $0x60] sm:$0xf]
        %v4888 = vld [vmem:[%s4862 + $0x64] sm:$0xf]
        %v4889 = vld [vmem:[%s4862 + $0x68] sm:$0xf]
        %v4890 = vld [vmem:[%s4862 + $0x6c] sm:$0xf]
        %v4891 = vld [vmem:[%s4862 + $0x70] sm:$0xf]
        %v4892 = vld [vmem:[%s4862 + $0x74] sm:$0xf]
        %v4893 = vld [vmem:[%s4862 + $0x78] sm:$0xf]
        %v4894 = vld [vmem:[%s4862 + $0x7c] sm:$0xf]
        %v4896 = vshrl.u32 %v4832, 16
        %v4898 = vshll.u32 %v4832, 16
        %v4900 = vrot.slane %v4898, 1
        %v4901 = vor.u32 %v4896, %v4900
        %v4903 = vshll.u32 %v4834, 16
        %v4905 = vrot.slane %v4903, 1
        %v4906 = vsel %vm1756, %v4901, %v4905
        %v4908 = vshrl.u32 %v4833, 16
        %v4910 = vshll.u32 %v4833, 16
        %v4912 = vrot.slane %v4910, 1
        %v4913 = vor.u32 %v4908, %v4912
        %v4915 = vshll.u32 %v4835, 16
        %v4917 = vrot.slane %v4915, 1
        %v4918 = vsel %vm1756, %v4913, %v4917
        %v4919 = vshrl.u32 %v4834, 16
        %v4921 = vor.u32 %v4919, %v4905
        %v4923 = vshll.u32 %v4836, 16
        %v4925 = vrot.slane %v4923, 1
        %v4926 = vsel %vm1756, %v4921, %v4925
        %v4927 = vshrl.u32 %v4835, 16
        %v4929 = vor.u32 %v4927, %v4917
        %v4931 = vshll.u32 %v4837, 16
        %v4933 = vrot.slane %v4931, 1
        %v4934 = vsel %vm1756, %v4929, %v4933
        %v4935 = vshrl.u32 %v4836, 16
        %v4937 = vor.u32 %v4935, %v4925
        %v4939 = vshll.u32 %v4838, 16
        %v4941 = vrot.slane %v4939, 1
        %v4942 = vsel %vm1756, %v4937, %v4941
        %v4943 = vshrl.u32 %v4837, 16
        %v4945 = vor.u32 %v4943, %v4933
        %v4947 = vshll.u32 %v4839, 16
        %v4949 = vrot.slane %v4947, 1
        %v4950 = vsel %vm1756, %v4945, %v4949
        %v4951 = vshrl.u32 %v4838, 16
        %v4953 = vor.u32 %v4951, %v4941
        %v4955 = vshll.u32 %v4840, 16
        %v4957 = vrot.slane %v4955, 1
        %v4958 = vsel %vm1756, %v4953, %v4957
        %v4959 = vshrl.u32 %v4839, 16
        %v4961 = vor.u32 %v4959, %v4949
        %v4963 = vshll.u32 %v4841, 16
        %v4965 = vrot.slane %v4963, 1
        %v4966 = vsel %vm1756, %v4961, %v4965
        %v4967 = vshrl.u32 %v4840, 16
        %v4969 = vor.u32 %v4967, %v4957
        %v4971 = vshll.u32 %v4842, 16
        %v4973 = vrot.slane %v4971, 1
        %v4974 = vsel %vm1756, %v4969, %v4973
        %v4975 = vshrl.u32 %v4841, 16
        %v4977 = vor.u32 %v4975, %v4965
        %v4979 = vshll.u32 %v4843, 16
        %v4981 = vrot.slane %v4979, 1
        %v4982 = vsel %vm1756, %v4977, %v4981
        %v4983 = vshrl.u32 %v4842, 16
        %v4985 = vor.u32 %v4983, %v4973
        %v4987 = vshll.u32 %v4844, 16
        %v4989 = vrot.slane %v4987, 1
        %v4990 = vsel %vm1756, %v4985, %v4989
        %v4991 = vshrl.u32 %v4843, 16
        %v4993 = vor.u32 %v4991, %v4981
        %v4995 = vshll.u32 %v4845, 16
        %v4997 = vrot.slane %v4995, 1
        %v4998 = vsel %vm1756, %v4993, %v4997
        %v4999 = vshrl.u32 %v4844, 16
        %v5001 = vor.u32 %v4999, %v4989
        %v5003 = vshll.u32 %v4846, 16
        %v5005 = vrot.slane %v5003, 1
        %v5006 = vsel %vm1756, %v5001, %v5005
        %v5007 = vshrl.u32 %v4845, 16
        %v5009 = vor.u32 %v5007, %v4997
        %v5011 = vshll.u32 %v4847, 16
        %v5013 = vrot.slane %v5011, 1
        %v5014 = vsel %vm1756, %v5009, %v5013
        %v5015 = vshrl.u32 %v4846, 16
        %v5017 = vor.u32 %v5015, %v5005
        %v5019 = vshll.u32 %v4848, 16
        %v5021 = vrot.slane %v5019, 1
        %v5022 = vsel %vm1756, %v5017, %v5021
        %v5023 = vshrl.u32 %v4847, 16
        %v5025 = vor.u32 %v5023, %v5013
        %v5027 = vshll.u32 %v4849, 16
        %v5029 = vrot.slane %v5027, 1
        %v5030 = vsel %vm1756, %v5025, %v5029
        %v5031 = vshrl.u32 %v4848, 16
        %v5033 = vor.u32 %v5031, %v5021
        %v5035 = vshll.u32 %v4850, 16
        %v5037 = vrot.slane %v5035, 1
        %v5038 = vsel %vm1756, %v5033, %v5037
        %v5039 = vshrl.u32 %v4849, 16
        %v5041 = vor.u32 %v5039, %v5029
        %v5043 = vshll.u32 %v4851, 16
        %v5045 = vrot.slane %v5043, 1
        %v5046 = vsel %vm1756, %v5041, %v5045
        %v5047 = vshrl.u32 %v4850, 16
        %v5049 = vor.u32 %v5047, %v5037
        %v5051 = vshll.u32 %v4852, 16
        %v5053 = vrot.slane %v5051, 1
        %v5054 = vsel %vm1756, %v5049, %v5053
        %v5055 = vshrl.u32 %v4851, 16
        %v5057 = vor.u32 %v5055, %v5045
        %v5059 = vshll.u32 %v4853, 16
        %v5061 = vrot.slane %v5059, 1
        %v5062 = vsel %vm1756, %v5057, %v5061
        %v5063 = vshrl.u32 %v4852, 16
        %v5065 = vor.u32 %v5063, %v5053
        %v5067 = vshll.u32 %v4854, 16
        %v5069 = vrot.slane %v5067, 1
        %v5070 = vsel %vm1756, %v5065, %v5069
        %v5071 = vshrl.u32 %v4853, 16
        %v5073 = vor.u32 %v5071, %v5061
        %v5075 = vshll.u32 %v4855, 16
        %v5077 = vrot.slane %v5075, 1
        %v5078 = vsel %vm1756, %v5073, %v5077
        %v5079 = vshrl.u32 %v4854, 16
        %v5081 = vor.u32 %v5079, %v5069
        %v5083 = vshll.u32 %v4856, 16
        %v5085 = vrot.slane %v5083, 1
        %v5086 = vsel %vm1756, %v5081, %v5085
        %v5087 = vshrl.u32 %v4855, 16
        %v5089 = vor.u32 %v5087, %v5077
        %v5091 = vshll.u32 %v4857, 16
        %v5093 = vrot.slane %v5091, 1
        %v5094 = vsel %vm1756, %v5089, %v5093
        %v5095 = vshrl.u32 %v4856, 16
        %v5097 = vor.u32 %v5095, %v5085
        %v5099 = vshll.u32 %v4858, 16
        %v5101 = vrot.slane %v5099, 1
        %v5102 = vsel %vm1756, %v5097, %v5101
        %v5103 = vshrl.u32 %v4857, 16
        %v5105 = vor.u32 %v5103, %v5093
        %v5107 = vshll.u32 %v4859, 16
        %v5109 = vrot.slane %v5107, 1
        %v5110 = vsel %vm1756, %v5105, %v5109
        %v5111 = vshrl.u32 %v4858, 16
        %v5113 = vor.u32 %v5111, %v5101
        %v5115 = vshll.u32 %v4860, 16
        %v5117 = vrot.slane %v5115, 1
        %v5118 = vsel %vm1756, %v5113, %v5117
        %v5119 = vshrl.u32 %v4859, 16
        %v5121 = vor.u32 %v5119, %v5109
        %v5123 = vshll.u32 %v4861, 16
        %v5125 = vrot.slane %v5123, 1
        %v5126 = vsel %vm1756, %v5121, %v5125
        %v5187 = vunpack.c.l.b16 %v4863
        %v5188 = vunpack.c.l.b16 %v4864
        %v5189 = vunpack.c.l.b16 %v4865
        %v5190 = vunpack.c.l.b16 %v4866
        %v5191 = vunpack.c.l.b16 %v4867
        %v5192 = vunpack.c.l.b16 %v4868
        %v5193 = vunpack.c.l.b16 %v4869
        %v5194 = vunpack.c.l.b16 %v4870
        %v5195 = vunpack.c.l.b16 %v4871
        %v5196 = vunpack.c.l.b16 %v4872
        %v5197 = vunpack.c.l.b16 %v4873
        %v5198 = vunpack.c.l.b16 %v4874
        %v5199 = vunpack.c.l.b16 %v4875
        %v5200 = vunpack.c.l.b16 %v4876
        %v5201 = vunpack.c.l.b16 %v4877
        %v5202 = vunpack.c.l.b16 %v4878
        %v5203 = vunpack.c.l.b16 %v4879
        %v5204 = vunpack.c.l.b16 %v4880
        %v5205 = vunpack.c.l.b16 %v4881
        %v5206 = vunpack.c.l.b16 %v4882
        %v5207 = vunpack.c.l.b16 %v4883
        %v5208 = vunpack.c.l.b16 %v4884
        %v5209 = vunpack.c.l.b16 %v4885
        %v5210 = vunpack.c.l.b16 %v4886
        %v5211 = vunpack.c.l.b16 %v4887
        %v5212 = vunpack.c.l.b16 %v4888
        %v5213 = vunpack.c.l.b16 %v4889
        %v5214 = vunpack.c.l.b16 %v4890
        %v5215 = vunpack.c.l.b16 %v4891
        %v5216 = vunpack.c.l.b16 %v4892
        %v5217 = vunpack.c.l.b16 %v4893
        %v5218 = vunpack.c.l.b16 %v4894
        %v5219 = vpack.c.b16 %v5188, %v5187
        %v5220 = vpack.c.b16 %v5190, %v5189
        %v5221 = vpack.c.b16 %v5192, %v5191
        %v5222 = vpack.c.b16 %v5194, %v5193
        %v5223 = vpack.c.b16 %v5196, %v5195
        %v5224 = vpack.c.b16 %v5198, %v5197
        %v5225 = vpack.c.b16 %v5200, %v5199
        %v5226 = vpack.c.b16 %v5202, %v5201
        %v5227 = vpack.c.b16 %v5204, %v5203
        %v5228 = vpack.c.b16 %v5206, %v5205
        %v5229 = vpack.c.b16 %v5208, %v5207
        %v5230 = vpack.c.b16 %v5210, %v5209
        %v5231 = vpack.c.b16 %v5212, %v5211
        %v5232 = vpack.c.b16 %v5214, %v5213
        %v5233 = vpack.c.b16 %v5216, %v5215
        %v5234 = vpack.c.b16 %v5218, %v5217
        %5251 = vmatprep.subr.bf16.mxu0 0
        %5252 = vmatpush1.bf16.msra.mxu0 %v5219
        %5253 = vmatprep.subr.bf16.mxu0 0
        %5254 = vmatpush1.bf16.msra.mxu0 %v5220
        %5255 = vmatprep.subr.bf16.mxu0 0
        %5256 = vmatpush1.bf16.msra.mxu0 %v5221
        %5257 = vmatprep.subr.bf16.mxu0 0
        %5258 = vmatpush1.bf16.msra.mxu0 %v5222
        %5259 = vmatprep.subr.bf16.mxu0 0
        %5260 = vmatpush1.bf16.msra.mxu0 %v5223
        %5261 = vmatprep.subr.bf16.mxu0 0
        %5262 = vmatpush1.bf16.msra.mxu0 %v5224
        %5263 = vmatprep.subr.bf16.mxu0 0
        %5264 = vmatpush1.bf16.msra.mxu0 %v5225
        %5265 = vmatprep.subr.bf16.mxu0 0
        %5266 = vmatpush1.bf16.msra.mxu0 %v5226
        %5267 = vmatprep.subr.bf16.mxu0 0
        %5268 = vmatpush1.bf16.msra.mxu0 %v5227
        %5269 = vmatprep.subr.bf16.mxu0 0
        %5270 = vmatpush1.bf16.msra.mxu0 %v5228
        %5271 = vmatprep.subr.bf16.mxu0 0
        %5272 = vmatpush1.bf16.msra.mxu0 %v5229
        %5273 = vmatprep.subr.bf16.mxu0 0
        %5274 = vmatpush1.bf16.msra.mxu0 %v5230
        %5275 = vmatprep.subr.bf16.mxu0 0
        %5276 = vmatpush1.bf16.msra.mxu0 %v5231
        %5277 = vmatprep.subr.bf16.mxu0 0
        %5278 = vmatpush1.bf16.msra.mxu0 %v5232
        %5279 = vmatprep.subr.bf16.mxu0 0
        %5280 = vmatpush1.bf16.msra.mxu0 %v5233
        %5281 = vmatprep.subr.bf16.mxu0 0
        %5282 = vmatpush1.bf16.msra.mxu0 %v5234
        %5283 = vmatprep.mubr.bf16.mxu0 %v4918
        %5284 = vmatmul.mubr.bf16.gmra.mrb[0].mxu0 %v4906
        %v5285 = vpop.f32.mrb[0].mxu0
        %v5286 = vadd.f32 0.0, %v5285
        %v5287 = vpop.f32.mrb[0].mxu0
        %v5288 = vpop.f32.mrb[0].mxu0
        %v5289 = vadd.f32 0.0, %v5288
        %v5290 = vpop.f32.mrb[0].mxu0
        %5291 = vmatprep.mubr.bf16.mxu0 %v4934
        %5292 = vmatmul.mubr.bf16.gmra.mrb[0].mxu0 %v4926
        %v5293 = vpop.f32.mrb[0].mxu0
        %v5294 = vadd.f32 0.0, %v5293
        %v5295 = vpop.f32.mrb[0].mxu0
        %v5296 = vpop.f32.mrb[0].mxu0
        %v5297 = vadd.f32 0.0, %v5296
        %v5298 = vpop.f32.mrb[0].mxu0
        %5299 = vmatprep.mubr.bf16.mxu0 %v4950
        %5300 = vmatmul.mubr.bf16.gmra.mrb[0].mxu0 %v4942
        %v5301 = vpop.f32.mrb[0].mxu0
        %v5302 = vadd.f32 0.0, %v5301
        %v5303 = vpop.f32.mrb[0].mxu0
        %v5304 = vpop.f32.mrb[0].mxu0
        %v5305 = vadd.f32 0.0, %v5304
        %v5306 = vpop.f32.mrb[0].mxu0
        %5307 = vmatprep.mubr.bf16.mxu0 %v4966
        %5308 = vmatmul.mubr.bf16.gmra.mrb[0].mxu0 %v4958
        %v5309 = vpop.f32.mrb[0].mxu0
        %v5310 = vadd.f32 0.0, %v5309
        %v5311 = vpop.f32.mrb[0].mxu0
        %v5312 = vpop.f32.mrb[0].mxu0
        %v5313 = vadd.f32 0.0, %v5312
        %v5314 = vpop.f32.mrb[0].mxu0
        %5315 = vmatprep.mubr.bf16.mxu0 %v4982
        %5316 = vmatmul.mubr.bf16.gmra.mrb[0].mxu0 %v4974
        %v5317 = vpop.f32.mrb[0].mxu0
        %v5318 = vadd.f32 0.0, %v5317
        %v5319 = vpop.f32.mrb[0].mxu0
        %v5320 = vpop.f32.mrb[0].mxu0
        %v5321 = vadd.f32 0.0, %v5320
        %v5322 = vpop.f32.mrb[0].mxu0
        %5323 = vmatprep.mubr.bf16.mxu0 %v4998
        %5324 = vmatmul.mubr.bf16.gmra.mrb[0].mxu0 %v4990
        %v5325 = vpop.f32.mrb[0].mxu0
        %v5326 = vadd.f32 0.0, %v5325
        %v5327 = vpop.f32.mrb[0].mxu0
        %v5328 = vpop.f32.mrb[0].mxu0
        %v5329 = vadd.f32 0.0, %v5328
        %v5330 = vpop.f32.mrb[0].mxu0
        %5331 = vmatprep.mubr.bf16.mxu0 %v5014
        %5332 = vmatmul.mubr.bf16.gmra.mrb[0].mxu0 %v5006
        %v5333 = vpop.f32.mrb[0].mxu0
        %v5334 = vadd.f32 0.0, %v5333
        %v5335 = vpop.f32.mrb[0].mxu0
        %v5336 = vpop.f32.mrb[0].mxu0
        %v5337 = vadd.f32 0.0, %v5336
        %v5338 = vpop.f32.mrb[0].mxu0
        %5339 = vmatprep.mubr.bf16.mxu0 %v5030
        %5340 = vmatmul.mubr.bf16.gmra.mrb[0].mxu0 %v5022
        %v5341 = vpop.f32.mrb[0].mxu0
        %v5342 = vadd.f32 0.0, %v5341
        %v5343 = vpop.f32.mrb[0].mxu0
        %v5344 = vpop.f32.mrb[0].mxu0
        %v5345 = vadd.f32 0.0, %v5344
        %v5346 = vpop.f32.mrb[0].mxu0
        %5347 = vmatprep.mubr.bf16.mxu0 %v5046
        %5348 = vmatmul.mubr.bf16.gmra.mrb[0].mxu0 %v5038
        %v5349 = vpop.f32.mrb[0].mxu0
        %v5350 = vadd.f32 0.0, %v5349
        %v5351 = vpop.f32.mrb[0].mxu0
        %v5352 = vpop.f32.mrb[0].mxu0
        %v5353 = vadd.f32 0.0, %v5352
        %v5354 = vpop.f32.mrb[0].mxu0
        %5355 = vmatprep.mubr.bf16.mxu0 %v5062
        %5356 = vmatmul.mubr.bf16.gmra.mrb[0].mxu0 %v5054
        %v5357 = vpop.f32.mrb[0].mxu0
        %v5358 = vadd.f32 0.0, %v5357
        %v5359 = vpop.f32.mrb[0].mxu0
        %v5360 = vpop.f32.mrb[0].mxu0
        %v5361 = vadd.f32 0.0, %v5360
        %v5362 = vpop.f32.mrb[0].mxu0
        %5363 = vmatprep.mubr.bf16.mxu0 %v5078
        %5364 = vmatmul.mubr.bf16.gmra.mrb[0].mxu0 %v5070
        %v5365 = vpop.f32.mrb[0].mxu0
        %v5366 = vadd.f32 0.0, %v5365
        %v5367 = vpop.f32.mrb[0].mxu0
        %v5368 = vpop.f32.mrb[0].mxu0
        %v5369 = vadd.f32 0.0, %v5368
        %v5370 = vpop.f32.mrb[0].mxu0
        %5371 = vmatprep.mubr.bf16.mxu0 %v5094
        %5372 = vmatmul.mubr.bf16.gmra.mrb[0].mxu0 %v5086
        %v5373 = vpop.f32.mrb[0].mxu0
        %v5374 = vadd.f32 0.0, %v5373
        %v5375 = vpop.f32.mrb[0].mxu0
        %v5376 = vpop.f32.mrb[0].mxu0
        %v5377 = vadd.f32 0.0, %v5376
        %v5378 = vpop.f32.mrb[0].mxu0
        %5379 = vmatprep.mubr.bf16.mxu0 %v5110
        %5380 = vmatmul.mubr.bf16.gmra.mrb[0].mxu0 %v5102
        %v5381 = vpop.f32.mrb[0].mxu0
        %v5382 = vadd.f32 0.0, %v5381
        %v5383 = vpop.f32.mrb[0].mxu0
        %v5384 = vpop.f32.mrb[0].mxu0
        %v5385 = vadd.f32 0.0, %v5384
        %v5386 = vpop.f32.mrb[0].mxu0
        %5387 = vmatprep.mubr.bf16.mxu0 %v5126
        %5388 = vmatmul.mubr.bf16.gmra.mrb[0].mxu0 %v5118
        %v5389 = vpop.f32.mrb[0].mxu0
        %v5390 = vadd.f32 0.0, %v5389
        %v5391 = vpop.f32.mrb[0].mxu0
        %v5392 = vpop.f32.mrb[0].mxu0
        %v5393 = vadd.f32 0.0, %v5392
        %v5394 = vpop.f32.mrb[0].mxu0
        %5395 = vdwg.mxu0
        %v5396 = vadd.f32 %v4746, %v5286
        %v5397 = vadd.f32 %v4747, %v5289
        %v5398 = vadd.f32 %v4748, %v5294
        %v5399 = vadd.f32 %v4749, %v5297
        %v5400 = vadd.f32 %v4750, %v5302
        %v5401 = vadd.f32 %v4751, %v5305
        %v5402 = vadd.f32 %v4752, %v5310
        %v5403 = vadd.f32 %v4753, %v5313
        %v5404 = vadd.f32 %v4754, %v5318
        %v5405 = vadd.f32 %v4755, %v5321
        %v5406 = vadd.f32 %v4756, %v5326
        %v5407 = vadd.f32 %v4757, %v5329
        %v5408 = vadd.f32 %v4758, %v5334
        %v5409 = vadd.f32 %v4759, %v5337
        %v5410 = vadd.f32 %v4760, %v5342
        %v5411 = vadd.f32 %v4761, %v5345
        %v5412 = vadd.f32 %v4762, %v5350
        %v5413 = vadd.f32 %v4763, %v5353
        %v5414 = vadd.f32 %v4764, %v5358
        %v5415 = vadd.f32 %v4765, %v5361
        %v5416 = vadd.f32 %v4766, %v5366
        %v5417 = vadd.f32 %v4767, %v5369
        %v5418 = vadd.f32 %v4768, %v5374
        %v5419 = vadd.f32 %v4769, %v5377
        %v5420 = vadd.f32 %v4770, %v5382
        %v5421 = vadd.f32 %v4771, %v5385
        %v5422 = vadd.f32 %v4772, %v5390
        %v5423 = vadd.f32 %v4773, %v5393
        %v5424 = vld [vmem:[%s0 + $0x40] sm:$0xfc]
        %v5425 = vld [vmem:[%s0 + $0x48] sm:$0xfc]
        %v5426 = vld [vmem:[%s0 + $0x200] sm:$0x3]
        %v5427 = vld [vmem:[%s0 + $0x208] sm:$0x3]
        %v5428 = vpack.c.bf16 %v4776, %v5424
        %v5429 = vpack.c.bf16 %v4777, %v5425
        %v5430 = vpack.c.bf16 %v5426, %v5426
        %v5431 = vpack.c.bf16 %v5427, %v5427
        %s5432 = scalar_lea.vmem %s1551, 1024 [#allocation2]
        %v5433 = vld [vmem:[%s5432] sm:$0xf]
        %v5434 = vld [vmem:[%s5432 + $0x4] sm:$0xf]
        %v5435 = vld [vmem:[%s5432 + $0x8] sm:$0xf]
        %v5436 = vld [vmem:[%s5432 + $0xc] sm:$0xf]
        %v5437 = vld [vmem:[%s5432 + $0x10] sm:$0xf]
        %v5438 = vld [vmem:[%s5432 + $0x14] sm:$0xf]
        %v5439 = vld [vmem:[%s5432 + $0x18] sm:$0xf]
        %v5440 = vld [vmem:[%s5432 + $0x1c] sm:$0xf]
        %v5441 = vld [vmem:[%s5432 + $0x20] sm:$0xf]
        %v5442 = vld [vmem:[%s5432 + $0x24] sm:$0xf]
        %v5443 = vld [vmem:[%s5432 + $0x28] sm:$0xf]
        %v5444 = vld [vmem:[%s5432 + $0x2c] sm:$0xf]
        %v5445 = vld [vmem:[%s5432 + $0x30] sm:$0xf]
        %v5446 = vld [vmem:[%s5432 + $0x34] sm:$0xf]
        %v5447 = vld [vmem:[%s5432 + $0x38] sm:$0xf]
        %v5448 = vld [vmem:[%s5432 + $0x3c] sm:$0xf]
        %v5449 = vld [vmem:[%s5432 + $0x40] sm:$0xf]
        %v5450 = vld [vmem:[%s5432 + $0x44] sm:$0xf]
        %v5451 = vld [vmem:[%s5432 + $0x48] sm:$0xf]
        %v5452 = vld [vmem:[%s5432 + $0x4c] sm:$0xf]
        %v5453 = vld [vmem:[%s5432 + $0x50] sm:$0xf]
        %v5454 = vld [vmem:[%s5432 + $0x54] sm:$0xf]
        %v5455 = vld [vmem:[%s5432 + $0x58] sm:$0xf]
        %v5456 = vld [vmem:[%s5432 + $0x5c] sm:$0xf]
        %v5457 = vld [vmem:[%s5432 + $0x60] sm:$0xf]
        %v5458 = vld [vmem:[%s5432 + $0x64] sm:$0xf]
        %v5459 = vld [vmem:[%s5432 + $0x68] sm:$0xf]
        %v5460 = vld [vmem:[%s5432 + $0x6c] sm:$0xf]
        %v5461 = vld [vmem:[%s5432 + $0x70] sm:$0xf]
        %v5462 = vld [vmem:[%s5432 + $0x74] sm:$0xf]
        %v5463 = vld [vmem:[%s5432 + $0x78] sm:$0xf]
        %v5464 = vld [vmem:[%s5432 + $0x7c] sm:$0xf]
        %v5495 = vrot.slane %v5428, 1
        %v5496 = vrot.slane %v4834, 1
        %v5497 = vsel %vm2570, %v5495, %v5496
        %v5498 = vrot.slane %v5429, 1
        %v5499 = vrot.slane %v4835, 1
        %v5500 = vsel %vm2570, %v5498, %v5499
        %v5501 = vrot.slane %v4836, 1
        %v5502 = vsel %vm2570, %v5496, %v5501
        %v5503 = vrot.slane %v4837, 1
        %v5504 = vsel %vm2570, %v5499, %v5503
        %v5505 = vrot.slane %v4838, 1
        %v5506 = vsel %vm2570, %v5501, %v5505
        %v5507 = vrot.slane %v4839, 1
        %v5508 = vsel %vm2570, %v5503, %v5507
        %v5509 = vrot.slane %v4840, 1
        %v5510 = vsel %vm2570, %v5505, %v5509
        %v5511 = vrot.slane %v4841, 1
        %v5512 = vsel %vm2570, %v5507, %v5511
        %v5513 = vrot.slane %v4842, 1
        %v5514 = vsel %vm2570, %v5509, %v5513
        %v5515 = vrot.slane %v4843, 1
        %v5516 = vsel %vm2570, %v5511, %v5515
        %v5517 = vrot.slane %v4844, 1
        %v5518 = vsel %vm2570, %v5513, %v5517
        %v5519 = vrot.slane %v4845, 1
        %v5520 = vsel %vm2570, %v5515, %v5519
        %v5521 = vrot.slane %v4846, 1
        %v5522 = vsel %vm2570, %v5517, %v5521
        %v5523 = vrot.slane %v4847, 1
        %v5524 = vsel %vm2570, %v5519, %v5523
        %v5525 = vrot.slane %v4848, 1
        %v5526 = vsel %vm2570, %v5521, %v5525
        %v5527 = vrot.slane %v4849, 1
        %v5528 = vsel %vm2570, %v5523, %v5527
        %v5529 = vrot.slane %v4850, 1
        %v5530 = vsel %vm2570, %v5525, %v5529
        %v5531 = vrot.slane %v4851, 1
        %v5532 = vsel %vm2570, %v5527, %v5531
        %v5533 = vrot.slane %v4852, 1
        %v5534 = vsel %vm2570, %v5529, %v5533
        %v5535 = vrot.slane %v4853, 1
        %v5536 = vsel %vm2570, %v5531, %v5535
        %v5537 = vrot.slane %v4854, 1
        %v5538 = vsel %vm2570, %v5533, %v5537
        %v5539 = vrot.slane %v4855, 1
        %v5540 = vsel %vm2570, %v5535, %v5539
        %v5541 = vrot.slane %v4856, 1
        %v5542 = vsel %vm2570, %v5537, %v5541
        %v5543 = vrot.slane %v4857, 1
        %v5544 = vsel %vm2570, %v5539, %v5543
        %v5545 = vrot.slane %v4858, 1
        %v5546 = vsel %vm2570, %v5541, %v5545
        %v5547 = vrot.slane %v4859, 1
        %v5548 = vsel %vm2570, %v5543, %v5547
        %v5549 = vrot.slane %v5430, 1
        %v5550 = vsel %vm2570, %v5545, %v5549
        %v5551 = vrot.slane %v5431, 1
        %v5552 = vsel %vm2570, %v5547, %v5551
        %v5613 = vunpack.c.l.b16 %v5433
        %v5614 = vunpack.c.l.b16 %v5434
        %v5615 = vunpack.c.l.b16 %v5435
        %v5616 = vunpack.c.l.b16 %v5436
        %v5617 = vunpack.c.l.b16 %v5437
        %v5618 = vunpack.c.l.b16 %v5438
        %v5619 = vunpack.c.l.b16 %v5439
        %v5620 = vunpack.c.l.b16 %v5440
        %v5621 = vunpack.c.l.b16 %v5441
        %v5622 = vunpack.c.l.b16 %v5442
        %v5623 = vunpack.c.l.b16 %v5443
        %v5624 = vunpack.c.l.b16 %v5444
        %v5625 = vunpack.c.l.b16 %v5445
        %v5626 = vunpack.c.l.b16 %v5446
        %v5627 = vunpack.c.l.b16 %v5447
        %v5628 = vunpack.c.l.b16 %v5448
        %v5629 = vunpack.c.l.b16 %v5449
        %v5630 = vunpack.c.l.b16 %v5450
        %v5631 = vunpack.c.l.b16 %v5451
        %v5632 = vunpack.c.l.b16 %v5452
        %v5633 = vunpack.c.l.b16 %v5453
        %v5634 = vunpack.c.l.b16 %v5454
        %v5635 = vunpack.c.l.b16 %v5455
        %v5636 = vunpack.c.l.b16 %v5456
        %v5637 = vunpack.c.l.b16 %v5457
        %v5638 = vunpack.c.l.b16 %v5458
        %v5639 = vunpack.c.l.b16 %v5459
        %v5640 = vunpack.c.l.b16 %v5460
        %v5641 = vunpack.c.l.b16 %v5461
        %v5642 = vunpack.c.l.b16 %v5462
        %v5643 = vunpack.c.l.b16 %v5463
        %v5644 = vunpack.c.l.b16 %v5464
        %v5645 = vpack.c.b16 %v5614, %v5613
        %v5646 = vpack.c.b16 %v5616, %v5615
        %v5647 = vpack.c.b16 %v5618, %v5617
        %v5648 = vpack.c.b16 %v5620, %v5619
        %v5649 = vpack.c.b16 %v5622, %v5621
        %v5650 = vpack.c.b16 %v5624, %v5623
        %v5651 = vpack.c.b16 %v5626, %v5625
        %v5652 = vpack.c.b16 %v5628, %v5627
        %v5653 = vpack.c.b16 %v5630, %v5629
        %v5654 = vpack.c.b16 %v5632, %v5631
        %v5655 = vpack.c.b16 %v5634, %v5633
        %v5656 = vpack.c.b16 %v5636, %v5635
        %v5657 = vpack.c.b16 %v5638, %v5637
        %v5658 = vpack.c.b16 %v5640, %v5639
        %v5659 = vpack.c.b16 %v5642, %v5641
        %v5660 = vpack.c.b16 %v5644, %v5643
        %5677 = vmatprep.subr.bf16.mxu0 0
        %5678 = vmatpush1.bf16.msra.mxu0 %v5645
        %5679 = vmatprep.subr.bf16.mxu0 0
        %5680 = vmatpush1.bf16.msra.mxu0 %v5646
        %5681 = vmatprep.subr.bf16.mxu0 0
        %5682 = vmatpush1.bf16.msra.mxu0 %v5647
        %5683 = vmatprep.subr.bf16.mxu0 0
        %5684 = vmatpush1.bf16.msra.mxu0 %v5648
        %5685 = vmatprep.subr.bf16.mxu0 0
        %5686 = vmatpush1.bf16.msra.mxu0 %v5649
        %5687 = vmatprep.subr.bf16.mxu0 0
        %5688 = vmatpush1.bf16.msra.mxu0 %v5650
        %5689 = vmatprep.subr.bf16.mxu0 0
        %5690 = vmatpush1.bf16.msra.mxu0 %v5651
        %5691 = vmatprep.subr.bf16.mxu0 0
        %5692 = vmatpush1.bf16.msra.mxu0 %v5652
        %5693 = vmatprep.subr.bf16.mxu0 0
        %5694 = vmatpush1.bf16.msra.mxu0 %v5653
        %5695 = vmatprep.subr.bf16.mxu0 0
        %5696 = vmatpush1.bf16.msra.mxu0 %v5654
        %5697 = vmatprep.subr.bf16.mxu0 0
        %5698 = vmatpush1.bf16.msra.mxu0 %v5655
        %5699 = vmatprep.subr.bf16.mxu0 0
        %5700 = vmatpush1.bf16.msra.mxu0 %v5656
        %5701 = vmatprep.subr.bf16.mxu0 0
        %5702 = vmatpush1.bf16.msra.mxu0 %v5657
        %5703 = vmatprep.subr.bf16.mxu0 0
        %5704 = vmatpush1.bf16.msra.mxu0 %v5658
        %5705 = vmatprep.subr.bf16.mxu0 0
        %5706 = vmatpush1.bf16.msra.mxu0 %v5659
        %5707 = vmatprep.subr.bf16.mxu0 0
        %5708 = vmatpush1.bf16.msra.mxu0 %v5660
        %5709 = vmatprep.mubr.bf16.mxu0 %v5500
        %5710 = vmatmul.mubr.bf16.gmra.mrb[0].mxu0 %v5497
        %v5711 = vpop.f32.mrb[0].mxu0
        %v5712 = vadd.f32 0.0, %v5711
        %v5713 = vpop.f32.mrb[0].mxu0
        %v5714 = vpop.f32.mrb[0].mxu0
        %v5715 = vadd.f32 0.0, %v5714
        %v5716 = vpop.f32.mrb[0].mxu0
        %5717 = vmatprep.mubr.bf16.mxu0 %v5504
        %5718 = vmatmul.mubr.bf16.gmra.mrb[0].mxu0 %v5502
        %v5719 = vpop.f32.mrb[0].mxu0
        %v5720 = vadd.f32 0.0, %v5719
        %v5721 = vpop.f32.mrb[0].mxu0
        %v5722 = vpop.f32.mrb[0].mxu0
        %v5723 = vadd.f32 0.0, %v5722
        %v5724 = vpop.f32.mrb[0].mxu0
        %5725 = vmatprep.mubr.bf16.mxu0 %v5508
        %5726 = vmatmul.mubr.bf16.gmra.mrb[0].mxu0 %v5506
        %v5727 = vpop.f32.mrb[0].mxu0
        %v5728 = vadd.f32 0.0, %v5727
        %v5729 = vpop.f32.mrb[0].mxu0
        %v5730 = vpop.f32.mrb[0].mxu0
        %v5731 = vadd.f32 0.0, %v5730
        %v5732 = vpop.f32.mrb[0].mxu0
        %5733 = vmatprep.mubr.bf16.mxu0 %v5512
        %5734 = vmatmul.mubr.bf16.gmra.mrb[0].mxu0 %v5510
        %v5735 = vpop.f32.mrb[0].mxu0
        %v5736 = vadd.f32 0.0, %v5735
        %v5737 = vpop.f32.mrb[0].mxu0
        %v5738 = vpop.f32.mrb[0].mxu0
        %v5739 = vadd.f32 0.0, %v5738
        %v5740 = vpop.f32.mrb[0].mxu0
        %5741 = vmatprep.mubr.bf16.mxu0 %v5516
        %5742 = vmatmul.mubr.bf16.gmra.mrb[0].mxu0 %v5514
        %v5743 = vpop.f32.mrb[0].mxu0
        %v5744 = vadd.f32 0.0, %v5743
        %v5745 = vpop.f32.mrb[0].mxu0
        %v5746 = vpop.f32.mrb[0].mxu0
        %v5747 = vadd.f32 0.0, %v5746
        %v5748 = vpop.f32.mrb[0].mxu0
        %5749 = vmatprep.mubr.bf16.mxu0 %v5520
        %5750 = vmatmul.mubr.bf16.gmra.mrb[0].mxu0 %v5518
        %v5751 = vpop.f32.mrb[0].mxu0
        %v5752 = vadd.f32 0.0, %v5751
        %v5753 = vpop.f32.mrb[0].mxu0
        %v5754 = vpop.f32.mrb[0].mxu0
        %v5755 = vadd.f32 0.0, %v5754
        %v5756 = vpop.f32.mrb[0].mxu0
        %5757 = vmatprep.mubr.bf16.mxu0 %v5524
        %5758 = vmatmul.mubr.bf16.gmra.mrb[0].mxu0 %v5522
        %v5759 = vpop.f32.mrb[0].mxu0
        %v5760 = vadd.f32 0.0, %v5759
        %v5761 = vpop.f32.mrb[0].mxu0
        %v5762 = vpop.f32.mrb[0].mxu0
        %v5763 = vadd.f32 0.0, %v5762
        %v5764 = vpop.f32.mrb[0].mxu0
        %5765 = vmatprep.mubr.bf16.mxu0 %v5528
        %5766 = vmatmul.mubr.bf16.gmra.mrb[0].mxu0 %v5526
        %v5767 = vpop.f32.mrb[0].mxu0
        %v5768 = vadd.f32 0.0, %v5767
        %v5769 = vpop.f32.mrb[0].mxu0
        %v5770 = vpop.f32.mrb[0].mxu0
        %v5771 = vadd.f32 0.0, %v5770
        %v5772 = vpop.f32.mrb[0].mxu0
        %5773 = vmatprep.mubr.bf16.mxu0 %v5532
        %5774 = vmatmul.mubr.bf16.gmra.mrb[0].mxu0 %v5530
        %v5775 = vpop.f32.mrb[0].mxu0
        %v5776 = vadd.f32 0.0, %v5775
        %v5777 = vpop.f32.mrb[0].mxu0
        %v5778 = vpop.f32.mrb[0].mxu0
        %v5779 = vadd.f32 0.0, %v5778
        %v5780 = vpop.f32.mrb[0].mxu0
        %5781 = vmatprep.mubr.bf16.mxu0 %v5536
        %5782 = vmatmul.mubr.bf16.gmra.mrb[0].mxu0 %v5534
        %v5783 = vpop.f32.mrb[0].mxu0
        %v5784 = vadd.f32 0.0, %v5783
        %v5785 = vpop.f32.mrb[0].mxu0
        %v5786 = vpop.f32.mrb[0].mxu0
        %v5787 = vadd.f32 0.0, %v5786
        %v5788 = vpop.f32.mrb[0].mxu0
        %5789 = vmatprep.mubr.bf16.mxu0 %v5540
        %5790 = vmatmul.mubr.bf16.gmra.mrb[0].mxu0 %v5538
        %v5791 = vpop.f32.mrb[0].mxu0
        %v5792 = vadd.f32 0.0, %v5791
        %v5793 = vpop.f32.mrb[0].mxu0
        %v5794 = vpop.f32.mrb[0].mxu0
        %v5795 = vadd.f32 0.0, %v5794
        %v5796 = vpop.f32.mrb[0].mxu0
        %5797 = vmatprep.mubr.bf16.mxu0 %v5544
        %5798 = vmatmul.mubr.bf16.gmra.mrb[0].mxu0 %v5542
        %v5799 = vpop.f32.mrb[0].mxu0
        %v5800 = vadd.f32 0.0, %v5799
        %v5801 = vpop.f32.mrb[0].mxu0
        %v5802 = vpop.f32.mrb[0].mxu0
        %v5803 = vadd.f32 0.0, %v5802
        %v5804 = vpop.f32.mrb[0].mxu0
        %5805 = vmatprep.mubr.bf16.mxu0 %v5548
        %5806 = vmatmul.mubr.bf16.gmra.mrb[0].mxu0 %v5546
        %v5807 = vpop.f32.mrb[0].mxu0
        %v5808 = vadd.f32 0.0, %v5807
        %v5809 = vpop.f32.mrb[0].mxu0
        %v5810 = vpop.f32.mrb[0].mxu0
        %v5811 = vadd.f32 0.0, %v5810
        %v5812 = vpop.f32.mrb[0].mxu0
        %5813 = vmatprep.mubr.bf16.mxu0 %v5552
        %5814 = vmatmul.mubr.bf16.gmra.mrb[0].mxu0 %v5550
        %v5815 = vpop.f32.mrb[0].mxu0
        %v5816 = vadd.f32 0.0, %v5815
        %v5817 = vpop.f32.mrb[0].mxu0
        %v5818 = vpop.f32.mrb[0].mxu0
        %v5819 = vadd.f32 0.0, %v5818
        %v5820 = vpop.f32.mrb[0].mxu0
        %5821 = vdwg.mxu0
        %v5822 = vadd.f32 %v5396, %v5712
        %v5823 = vadd.f32 %v5397, %v5715
        %v5824 = vadd.f32 %v5398, %v5720
        %v5825 = vadd.f32 %v5399, %v5723
        %v5826 = vadd.f32 %v5400, %v5728
        %v5827 = vadd.f32 %v5401, %v5731
        %v5828 = vadd.f32 %v5402, %v5736
        %v5829 = vadd.f32 %v5403, %v5739
        %v5830 = vadd.f32 %v5404, %v5744
        %v5831 = vadd.f32 %v5405, %v5747
        %v5832 = vadd.f32 %v5406, %v5752
        %v5833 = vadd.f32 %v5407, %v5755
        %v5834 = vadd.f32 %v5408, %v5760
        %v5835 = vadd.f32 %v5409, %v5763
        %v5836 = vadd.f32 %v5410, %v5768
        %v5837 = vadd.f32 %v5411, %v5771
        %v5838 = vadd.f32 %v5412, %v5776
        %v5839 = vadd.f32 %v5413, %v5779
        %v5840 = vadd.f32 %v5414, %v5784
        %v5841 = vadd.f32 %v5415, %v5787
        %v5842 = vadd.f32 %v5416, %v5792
        %v5843 = vadd.f32 %v5417, %v5795
        %v5844 = vadd.f32 %v5418, %v5800
        %v5845 = vadd.f32 %v5419, %v5803
        %v5846 = vadd.f32 %v5420, %v5808
        %v5847 = vadd.f32 %v5421, %v5811
        %v5848 = vadd.f32 %v5422, %v5816
        %v5849 = vadd.f32 %v5423, %v5819
        %v5850 = vlaneseq
        %v5851 = vshrl.u32 %v5850, 7
        %v5852 = vadd.s32 %v5851, 8
        %v5853 = vadd.s32 %v5851, 16
        %v5854 = vadd.s32 %v5851, 24
        %v5855 = vadd.s32 %v5851, 32
        %v5856 = vadd.s32 %v5851, 40
        %v5857 = vadd.s32 %v5851, 48
        %v5858 = vadd.s32 %v5851, 56
        %v5859 = vadd.s32 %v5851, 64
        %v5860 = vadd.s32 %v5851, 72
        %v5861 = vadd.s32 %v5851, 80
        %v5862 = vadd.s32 %v5851, 88
        %v5863 = vadd.s32 %v5851, 96
        %v5864 = vadd.s32 %v5851, 104
        %v5865 = vadd.s32 %v5851, 112
        %v5866 = vadd.s32 %v5851, 120
        %v5867 = vadd.s32 %v5851, 128
        %v5868 = vadd.s32 %v5851, 136
        %v5869 = vadd.s32 %v5851, 144
        %v5870 = vadd.s32 %v5851, 152
        %v5871 = vadd.s32 %v5851, 160
        %v5872 = vadd.s32 %v5851, 168
        %v5873 = vadd.s32 %v5851, 176
        %v5874 = vadd.s32 %v5851, 184
        %v5875 = vadd.s32 %v5851, 192
        %v5876 = vadd.s32 %v5851, 200
        %v5877 = vadd.s32 %v5851, 208
        %v5878 = vadd.s32 %v5851, 216
        %vm5879 = vcmp.lt.s32.totalorder %v5851, 0
        %v5880 = vsub.s32 0, %v5851
        %v5881 = vsel %vm5879, %v5880, %v5851
        %v5882 = vshrl.u32 %v5881, 4
        %v5883 = vand.u32 %v5881, 15
        %v5884 = vsub.s32 0, %v5883
        %v5885 = vsel %vm5879, %v5884, %v5883
        %vm5886 = vcmp.lt.s32.totalorder %v5852, 0
        %v5887 = vsub.s32 0, %v5852
        %v5888 = vsel %vm5886, %v5887, %v5852
        %v5889 = vshrl.u32 %v5888, 4
        %v5890 = vand.u32 %v5888, 15
        %v5891 = vsub.s32 0, %v5890
        %v5892 = vsel %vm5886, %v5891, %v5890
        %vm5893 = vcmp.lt.s32.totalorder %v5853, 0
        %v5894 = vsub.s32 0, %v5853
        %v5895 = vsel %vm5893, %v5894, %v5853
        %v5896 = vshrl.u32 %v5895, 4
        %v5897 = vand.u32 %v5895, 15
        %v5898 = vsub.s32 0, %v5897
        %v5899 = vsel %vm5893, %v5898, %v5897
        %vm5900 = vcmp.lt.s32.totalorder %v5854, 0
        %v5901 = vsub.s32 0, %v5854
        %v5902 = vsel %vm5900, %v5901, %v5854
        %v5903 = vshrl.u32 %v5902, 4
        %v5904 = vand.u32 %v5902, 15
        %v5905 = vsub.s32 0, %v5904
        %v5906 = vsel %vm5900, %v5905, %v5904
        %vm5907 = vcmp.lt.s32.totalorder %v5855, 0
        %v5908 = vsub.s32 0, %v5855
        %v5909 = vsel %vm5907, %v5908, %v5855
        %v5910 = vshrl.u32 %v5909, 4
        %v5911 = vand.u32 %v5909, 15
        %v5912 = vsub.s32 0, %v5911
        %v5913 = vsel %vm5907, %v5912, %v5911
        %vm5914 = vcmp.lt.s32.totalorder %v5856, 0
        %v5915 = vsub.s32 0, %v5856
        %v5916 = vsel %vm5914, %v5915, %v5856
        %v5917 = vshrl.u32 %v5916, 4
        %v5918 = vand.u32 %v5916, 15
        %v5919 = vsub.s32 0, %v5918
        %v5920 = vsel %vm5914, %v5919, %v5918
        %vm5921 = vcmp.lt.s32.totalorder %v5857, 0
        %v5922 = vsub.s32 0, %v5857
        %v5923 = vsel %vm5921, %v5922, %v5857
        %v5924 = vshrl.u32 %v5923, 4
        %v5925 = vand.u32 %v5923, 15
        %v5926 = vsub.s32 0, %v5925
        %v5927 = vsel %vm5921, %v5926, %v5925
        %vm5928 = vcmp.lt.s32.totalorder %v5858, 0
        %v5929 = vsub.s32 0, %v5858
        %v5930 = vsel %vm5928, %v5929, %v5858
        %v5931 = vshrl.u32 %v5930, 4
        %v5932 = vand.u32 %v5930, 15
        %v5933 = vsub.s32 0, %v5932
        %v5934 = vsel %vm5928, %v5933, %v5932
        %vm5935 = vcmp.lt.s32.totalorder %v5859, 0
        %v5936 = vsub.s32 0, %v5859
        %v5937 = vsel %vm5935, %v5936, %v5859
        %v5938 = vshrl.u32 %v5937, 4
        %v5939 = vand.u32 %v5937, 15
        %v5940 = vsub.s32 0, %v5939
        %v5941 = vsel %vm5935, %v5940, %v5939
        %vm5942 = vcmp.lt.s32.totalorder %v5860, 0
        %v5943 = vsub.s32 0, %v5860
        %v5944 = vsel %vm5942, %v5943, %v5860
        %v5945 = vshrl.u32 %v5944, 4
        %v5946 = vand.u32 %v5944, 15
        %v5947 = vsub.s32 0, %v5946
        %v5948 = vsel %vm5942, %v5947, %v5946
        %vm5949 = vcmp.lt.s32.totalorder %v5861, 0
        %v5950 = vsub.s32 0, %v5861
        %v5951 = vsel %vm5949, %v5950, %v5861
        %v5952 = vshrl.u32 %v5951, 4
        %v5953 = vand.u32 %v5951, 15
        %v5954 = vsub.s32 0, %v5953
        %v5955 = vsel %vm5949, %v5954, %v5953
        %vm5956 = vcmp.lt.s32.totalorder %v5862, 0
        %v5957 = vsub.s32 0, %v5862
        %v5958 = vsel %vm5956, %v5957, %v5862
        %v5959 = vshrl.u32 %v5958, 4
        %v5960 = vand.u32 %v5958, 15
        %v5961 = vsub.s32 0, %v5960
        %v5962 = vsel %vm5956, %v5961, %v5960
        %vm5963 = vcmp.lt.s32.totalorder %v5863, 0
        %v5964 = vsub.s32 0, %v5863
        %v5965 = vsel %vm5963, %v5964, %v5863
        %v5966 = vshrl.u32 %v5965, 4
        %v5967 = vand.u32 %v5965, 15
        %v5968 = vsub.s32 0, %v5967
        %v5969 = vsel %vm5963, %v5968, %v5967
        %vm5970 = vcmp.lt.s32.totalorder %v5864, 0
        %v5971 = vsub.s32 0, %v5864
        %v5972 = vsel %vm5970, %v5971, %v5864
        %v5973 = vshrl.u32 %v5972, 4
        %v5974 = vand.u32 %v5972, 15
        %v5975 = vsub.s32 0, %v5974
        %v5976 = vsel %vm5970, %v5975, %v5974
        %vm5977 = vcmp.lt.s32.totalorder %v5865, 0
        %v5978 = vsub.s32 0, %v5865
        %v5979 = vsel %vm5977, %v5978, %v5865
        %v5980 = vshrl.u32 %v5979, 4
        %v5981 = vand.u32 %v5979, 15
        %v5982 = vsub.s32 0, %v5981
        %v5983 = vsel %vm5977, %v5982, %v5981
        %vm5984 = vcmp.lt.s32.totalorder %v5866, 0
        %v5985 = vsub.s32 0, %v5866
        %v5986 = vsel %vm5984, %v5985, %v5866
        %v5987 = vshrl.u32 %v5986, 4
        %v5988 = vand.u32 %v5986, 15
        %v5989 = vsub.s32 0, %v5988
        %v5990 = vsel %vm5984, %v5989, %v5988
        %vm5991 = vcmp.lt.s32.totalorder %v5867, 0
        %v5992 = vsub.s32 0, %v5867
        %v5993 = vsel %vm5991, %v5992, %v5867
        %v5994 = vshrl.u32 %v5993, 4
        %v5995 = vand.u32 %v5993, 15
        %v5996 = vsub.s32 0, %v5995
        %v5997 = vsel %vm5991, %v5996, %v5995
        %vm5998 = vcmp.lt.s32.totalorder %v5868, 0
        %v5999 = vsub.s32 0, %v5868
        %v6000 = vsel %vm5998, %v5999, %v5868
        %v6001 = vshrl.u32 %v6000, 4
        %v6002 = vand.u32 %v6000, 15
        %v6003 = vsub.s32 0, %v6002
        %v6004 = vsel %vm5998, %v6003, %v6002
        %vm6005 = vcmp.lt.s32.totalorder %v5869, 0
        %v6006 = vsub.s32 0, %v5869
        %v6007 = vsel %vm6005, %v6006, %v5869
        %v6008 = vshrl.u32 %v6007, 4
        %v6009 = vand.u32 %v6007, 15
        %v6010 = vsub.s32 0, %v6009
        %v6011 = vsel %vm6005, %v6010, %v6009
        %vm6012 = vcmp.lt.s32.totalorder %v5870, 0
        %v6013 = vsub.s32 0, %v5870
        %v6014 = vsel %vm6012, %v6013, %v5870
        %v6015 = vshrl.u32 %v6014, 4
        %v6016 = vand.u32 %v6014, 15
        %v6017 = vsub.s32 0, %v6016
        %v6018 = vsel %vm6012, %v6017, %v6016
        %vm6019 = vcmp.lt.s32.totalorder %v5871, 0
        %v6020 = vsub.s32 0, %v5871
        %v6021 = vsel %vm6019, %v6020, %v5871
        %v6022 = vshrl.u32 %v6021, 4
        %v6023 = vand.u32 %v6021, 15
        %v6024 = vsub.s32 0, %v6023
        %v6025 = vsel %vm6019, %v6024, %v6023
        %vm6026 = vcmp.lt.s32.totalorder %v5872, 0
        %v6027 = vsub.s32 0, %v5872
        %v6028 = vsel %vm6026, %v6027, %v5872
        %v6029 = vshrl.u32 %v6028, 4
        %v6030 = vand.u32 %v6028, 15
        %v6031 = vsub.s32 0, %v6030
        %v6032 = vsel %vm6026, %v6031, %v6030
        %vm6033 = vcmp.lt.s32.totalorder %v5873, 0
        %v6034 = vsub.s32 0, %v5873
        %v6035 = vsel %vm6033, %v6034, %v5873
        %v6036 = vshrl.u32 %v6035, 4
        %v6037 = vand.u32 %v6035, 15
        %v6038 = vsub.s32 0, %v6037
        %v6039 = vsel %vm6033, %v6038, %v6037
        %vm6040 = vcmp.lt.s32.totalorder %v5874, 0
        %v6041 = vsub.s32 0, %v5874
        %v6042 = vsel %vm6040, %v6041, %v5874
        %v6043 = vshrl.u32 %v6042, 4
        %v6044 = vand.u32 %v6042, 15
        %v6045 = vsub.s32 0, %v6044
        %v6046 = vsel %vm6040, %v6045, %v6044
        %vm6047 = vcmp.lt.s32.totalorder %v5875, 0
        %v6048 = vsub.s32 0, %v5875
        %v6049 = vsel %vm6047, %v6048, %v5875
        %v6050 = vshrl.u32 %v6049, 4
        %v6051 = vand.u32 %v6049, 15
        %v6052 = vsub.s32 0, %v6051
        %v6053 = vsel %vm6047, %v6052, %v6051
        %vm6054 = vcmp.lt.s32.totalorder %v5876, 0
        %v6055 = vsub.s32 0, %v5876
        %v6056 = vsel %vm6054, %v6055, %v5876
        %v6057 = vshrl.u32 %v6056, 4
        %v6058 = vand.u32 %v6056, 15
        %v6059 = vsub.s32 0, %v6058
        %v6060 = vsel %vm6054, %v6059, %v6058
        %vm6061 = vcmp.lt.s32.totalorder %v5877, 0
        %v6062 = vsub.s32 0, %v5877
        %v6063 = vsel %vm6061, %v6062, %v5877
        %v6064 = vshrl.u32 %v6063, 4
        %v6065 = vand.u32 %v6063, 15
        %v6066 = vsub.s32 0, %v6065
        %v6067 = vsel %vm6061, %v6066, %v6065
        %vm6068 = vcmp.lt.s32.totalorder %v5878, 0
        %v6069 = vsub.s32 0, %v5878
        %v6070 = vsel %vm6068, %v6069, %v5878
        %v6071 = vshrl.u32 %v6070, 4
        %v6072 = vand.u32 %v6070, 15
        %v6073 = vsub.s32 0, %v6072
        %v6074 = vsel %vm6068, %v6073, %v6072
        %vm6075 = vcmp.ne.s32.totalorder %v5885, 0
        %vm6076 = vcmp.ne.s32.totalorder %v5892, 0
        %vm6077 = vcmp.ne.s32.totalorder %v5899, 0
        %vm6078 = vcmp.ne.s32.totalorder %v5906, 0
        %vm6079 = vcmp.ne.s32.totalorder %v5913, 0
        %vm6080 = vcmp.ne.s32.totalorder %v5920, 0
        %vm6081 = vcmp.ne.s32.totalorder %v5927, 0
        %vm6082 = vcmp.ne.s32.totalorder %v5934, 0
        %vm6083 = vcmp.ne.s32.totalorder %v5941, 0
        %vm6084 = vcmp.ne.s32.totalorder %v5948, 0
        %vm6085 = vcmp.ne.s32.totalorder %v5955, 0
        %vm6086 = vcmp.ne.s32.totalorder %v5962, 0
        %vm6087 = vcmp.ne.s32.totalorder %v5969, 0
        %vm6088 = vcmp.ne.s32.totalorder %v5976, 0
        %vm6089 = vcmp.ne.s32.totalorder %v5983, 0
        %vm6090 = vcmp.ne.s32.totalorder %v5990, 0
        %vm6091 = vcmp.ne.s32.totalorder %v5997, 0
        %vm6092 = vcmp.ne.s32.totalorder %v6004, 0
        %vm6093 = vcmp.ne.s32.totalorder %v6011, 0
        %vm6094 = vcmp.ne.s32.totalorder %v6018, 0
        %vm6095 = vcmp.ne.s32.totalorder %v6025, 0
        %vm6096 = vcmp.ne.s32.totalorder %v6032, 0
        %vm6097 = vcmp.ne.s32.totalorder %v6039, 0
        %vm6098 = vcmp.ne.s32.totalorder %v6046, 0
        %vm6099 = vcmp.ne.s32.totalorder %v6053, 0
        %vm6100 = vcmp.ne.s32.totalorder %v6060, 0
        %vm6101 = vcmp.ne.s32.totalorder %v6067, 0
        %vm6102 = vcmp.ne.s32.totalorder %v6074, 0
        %vm6103 = vcmp.lt.s32.totalorder %v5885, 0
        %vm6104 = vcmp.lt.s32.totalorder %v5892, 0
        %vm6105 = vcmp.lt.s32.totalorder %v5899, 0
        %vm6106 = vcmp.lt.s32.totalorder %v5906, 0
        %vm6107 = vcmp.lt.s32.totalorder %v5913, 0
        %vm6108 = vcmp.lt.s32.totalorder %v5920, 0
        %vm6109 = vcmp.lt.s32.totalorder %v5927, 0
        %vm6110 = vcmp.lt.s32.totalorder %v5934, 0
        %vm6111 = vcmp.lt.s32.totalorder %v5941, 0
        %vm6112 = vcmp.lt.s32.totalorder %v5948, 0
        %vm6113 = vcmp.lt.s32.totalorder %v5955, 0
        %vm6114 = vcmp.lt.s32.totalorder %v5962, 0
        %vm6115 = vcmp.lt.s32.totalorder %v5969, 0
        %vm6116 = vcmp.lt.s32.totalorder %v5976, 0
        %vm6117 = vcmp.lt.s32.totalorder %v5983, 0
        %vm6118 = vcmp.lt.s32.totalorder %v5990, 0
        %vm6119 = vcmp.lt.s32.totalorder %v5997, 0
        %vm6120 = vcmp.lt.s32.totalorder %v6004, 0
        %vm6121 = vcmp.lt.s32.totalorder %v6011, 0
        %vm6122 = vcmp.lt.s32.totalorder %v6018, 0
        %vm6123 = vcmp.lt.s32.totalorder %v6025, 0
        %vm6124 = vcmp.lt.s32.totalorder %v6032, 0
        %vm6125 = vcmp.lt.s32.totalorder %v6039, 0
        %vm6126 = vcmp.lt.s32.totalorder %v6046, 0
        %vm6127 = vcmp.lt.s32.totalorder %v6053, 0
        %vm6128 = vcmp.lt.s32.totalorder %v6060, 0
        %vm6129 = vcmp.lt.s32.totalorder %v6067, 0
        %vm6130 = vcmp.lt.s32.totalorder %v6074, 0
        %vm6131 = vmand %vm6103, %vm6075
        %vm6132 = vmand %vm6104, %vm6076
        %vm6133 = vmand %vm6105, %vm6077
        %vm6134 = vmand %vm6106, %vm6078
        %vm6135 = vmand %vm6107, %vm6079
        %vm6136 = vmand %vm6108, %vm6080
        %vm6137 = vmand %vm6109, %vm6081
        %vm6138 = vmand %vm6110, %vm6082
        %vm6139 = vmand %vm6111, %vm6083
        %vm6140 = vmand %vm6112, %vm6084
        %vm6141 = vmand %vm6113, %vm6085
        %vm6142 = vmand %vm6114, %vm6086
        %vm6143 = vmand %vm6115, %vm6087
        %vm6144 = vmand %vm6116, %vm6088
        %vm6145 = vmand %vm6117, %vm6089
        %vm6146 = vmand %vm6118, %vm6090
        %vm6147 = vmand %vm6119, %vm6091
        %vm6148 = vmand %vm6120, %vm6092
        %vm6149 = vmand %vm6121, %vm6093
        %vm6150 = vmand %vm6122, %vm6094
        %vm6151 = vmand %vm6123, %vm6095
        %vm6152 = vmand %vm6124, %vm6096
        %vm6153 = vmand %vm6125, %vm6097
        %vm6154 = vmand %vm6126, %vm6098
        %vm6155 = vmand %vm6127, %vm6099
        %vm6156 = vmand %vm6128, %vm6100
        %vm6157 = vmand %vm6129, %vm6101
        %vm6158 = vmand %vm6130, %vm6102
        %v6159 = vadd.s32 %v5885, 16
        %v6160 = vadd.s32 %v5892, 16
        %v6161 = vadd.s32 %v5899, 16
        %v6162 = vadd.s32 %v5906, 16
        %v6163 = vadd.s32 %v5913, 16
        %v6164 = vadd.s32 %v5920, 16
        %v6165 = vadd.s32 %v5927, 16
        %v6166 = vadd.s32 %v5934, 16
        %v6167 = vadd.s32 %v5941, 16
        %v6168 = vadd.s32 %v5948, 16
        %v6169 = vadd.s32 %v5955, 16
        %v6170 = vadd.s32 %v5962, 16
        %v6171 = vadd.s32 %v5969, 16
        %v6172 = vadd.s32 %v5976, 16
        %v6173 = vadd.s32 %v5983, 16
        %v6174 = vadd.s32 %v5990, 16
        %v6175 = vadd.s32 %v5997, 16
        %v6176 = vadd.s32 %v6004, 16
        %v6177 = vadd.s32 %v6011, 16
        %v6178 = vadd.s32 %v6018, 16
        %v6179 = vadd.s32 %v6025, 16
        %v6180 = vadd.s32 %v6032, 16
        %v6181 = vadd.s32 %v6039, 16
        %v6182 = vadd.s32 %v6046, 16
        %v6183 = vadd.s32 %v6053, 16
        %v6184 = vadd.s32 %v6060, 16
        %v6185 = vadd.s32 %v6067, 16
        %v6186 = vadd.s32 %v6074, 16
        %v6187 = vsel %vm6131, %v6159, %v5885
        %v6188 = vsel %vm6132, %v6160, %v5892
        %v6189 = vsel %vm6133, %v6161, %v5899
        %v6190 = vsel %vm6134, %v6162, %v5906
        %v6191 = vsel %vm6135, %v6163, %v5913
        %v6192 = vsel %vm6136, %v6164, %v5920
        %v6193 = vsel %vm6137, %v6165, %v5927
        %v6194 = vsel %vm6138, %v6166, %v5934
        %v6195 = vsel %vm6139, %v6167, %v5941
        %v6196 = vsel %vm6140, %v6168, %v5948
        %v6197 = vsel %vm6141, %v6169, %v5955
        %v6198 = vsel %vm6142, %v6170, %v5962
        %v6199 = vsel %vm6143, %v6171, %v5969
        %v6200 = vsel %vm6144, %v6172, %v5976
        %v6201 = vsel %vm6145, %v6173, %v5983
        %v6202 = vsel %vm6146, %v6174, %v5990
        %v6203 = vsel %vm6147, %v6175, %v5997
        %v6204 = vsel %vm6148, %v6176, %v6004
        %v6205 = vsel %vm6149, %v6177, %v6011
        %v6206 = vsel %vm6150, %v6178, %v6018
        %v6207 = vsel %vm6151, %v6179, %v6025
        %v6208 = vsel %vm6152, %v6180, %v6032
        %v6209 = vsel %vm6153, %v6181, %v6039
        %v6210 = vsel %vm6154, %v6182, %v6046
        %v6211 = vsel %vm6155, %v6183, %v6053
        %v6212 = vsel %vm6156, %v6184, %v6060
        %v6213 = vsel %vm6157, %v6185, %v6067
        %v6214 = vsel %vm6158, %v6186, %v6074
        %vm6215 = vcmp.lt.s32.totalorder %v6187, 14
        %vm6216 = vcmp.lt.s32.totalorder %v6188, 14
        %vm6217 = vcmp.lt.s32.totalorder %v6189, 14
        %vm6218 = vcmp.lt.s32.totalorder %v6190, 14
        %vm6219 = vcmp.lt.s32.totalorder %v6191, 14
        %vm6220 = vcmp.lt.s32.totalorder %v6192, 14
        %vm6221 = vcmp.lt.s32.totalorder %v6193, 14
        %vm6222 = vcmp.lt.s32.totalorder %v6194, 14
        %vm6223 = vcmp.lt.s32.totalorder %v6195, 14
        %vm6224 = vcmp.lt.s32.totalorder %v6196, 14
        %vm6225 = vcmp.lt.s32.totalorder %v6197, 14
        %vm6226 = vcmp.lt.s32.totalorder %v6198, 14
        %vm6227 = vcmp.lt.s32.totalorder %v6199, 14
        %vm6228 = vcmp.lt.s32.totalorder %v6200, 14
        %vm6229 = vcmp.lt.s32.totalorder %v6201, 14
        %vm6230 = vcmp.lt.s32.totalorder %v6202, 14
        %vm6231 = vcmp.lt.s32.totalorder %v6203, 14
        %vm6232 = vcmp.lt.s32.totalorder %v6204, 14
        %vm6233 = vcmp.lt.s32.totalorder %v6205, 14
        %vm6234 = vcmp.lt.s32.totalorder %v6206, 14
        %vm6235 = vcmp.lt.s32.totalorder %v6207, 14
        %vm6236 = vcmp.lt.s32.totalorder %v6208, 14
        %vm6237 = vcmp.lt.s32.totalorder %v6209, 14
        %vm6238 = vcmp.lt.s32.totalorder %v6210, 14
        %vm6239 = vcmp.lt.s32.totalorder %v6211, 14
        %vm6240 = vcmp.lt.s32.totalorder %v6212, 14
        %vm6241 = vcmp.lt.s32.totalorder %v6213, 14
        %vm6242 = vcmp.lt.s32.totalorder %v6214, 14
        %v6243 = vsel %vm6215, 1, 0
        %v6244 = vsel %vm6216, 1, 0
        %v6245 = vsel %vm6217, 1, 0
        %v6246 = vsel %vm6218, 1, 0
        %v6247 = vsel %vm6219, 1, 0
        %v6248 = vsel %vm6220, 1, 0
        %v6249 = vsel %vm6221, 1, 0
        %v6250 = vsel %vm6222, 1, 0
        %v6251 = vsel %vm6223, 1, 0
        %v6252 = vsel %vm6224, 1, 0
        %v6253 = vsel %vm6225, 1, 0
        %v6254 = vsel %vm6226, 1, 0
        %v6255 = vsel %vm6227, 1, 0
        %v6256 = vsel %vm6228, 1, 0
        %v6257 = vsel %vm6229, 1, 0
        %v6258 = vsel %vm6230, 1, 0
        %v6259 = vsel %vm6231, 1, 0
        %v6260 = vsel %vm6232, 1, 0
        %v6261 = vsel %vm6233, 1, 0
        %v6262 = vsel %vm6234, 1, 0
        %v6263 = vsel %vm6235, 1, 0
        %v6264 = vsel %vm6236, 1, 0
        %v6265 = vsel %vm6237, 1, 0
        %v6266 = vsel %vm6238, 1, 0
        %v6267 = vsel %vm6239, 1, 0
        %v6268 = vsel %vm6240, 1, 0
        %v6269 = vsel %vm6241, 1, 0
        %v6270 = vsel %vm6242, 1, 0
        %vm6271 = vcmp.eq.s32.totalorder %v6243, 1
        %vm6272 = vcmp.eq.s32.totalorder %v6244, 1
        %vm6273 = vcmp.eq.s32.totalorder %v6245, 1
        %vm6274 = vcmp.eq.s32.totalorder %v6246, 1
        %vm6275 = vcmp.eq.s32.totalorder %v6247, 1
        %vm6276 = vcmp.eq.s32.totalorder %v6248, 1
        %vm6277 = vcmp.eq.s32.totalorder %v6249, 1
        %vm6278 = vcmp.eq.s32.totalorder %v6250, 1
        %vm6279 = vcmp.eq.s32.totalorder %v6251, 1
        %vm6280 = vcmp.eq.s32.totalorder %v6252, 1
        %vm6281 = vcmp.eq.s32.totalorder %v6253, 1
        %vm6282 = vcmp.eq.s32.totalorder %v6254, 1
        %vm6283 = vcmp.eq.s32.totalorder %v6255, 1
        %vm6284 = vcmp.eq.s32.totalorder %v6256, 1
        %vm6285 = vcmp.eq.s32.totalorder %v6257, 1
        %vm6286 = vcmp.eq.s32.totalorder %v6258, 1
        %vm6287 = vcmp.eq.s32.totalorder %v6259, 1
        %vm6288 = vcmp.eq.s32.totalorder %v6260, 1
        %vm6289 = vcmp.eq.s32.totalorder %v6261, 1
        %vm6290 = vcmp.eq.s32.totalorder %v6262, 1
        %vm6291 = vcmp.eq.s32.totalorder %v6263, 1
        %vm6292 = vcmp.eq.s32.totalorder %v6264, 1
        %vm6293 = vcmp.eq.s32.totalorder %v6265, 1
        %vm6294 = vcmp.eq.s32.totalorder %v6266, 1
        %vm6295 = vcmp.eq.s32.totalorder %v6267, 1
        %vm6296 = vcmp.eq.s32.totalorder %v6268, 1
        %vm6297 = vcmp.eq.s32.totalorder %v6269, 1
        %vm6298 = vcmp.eq.s32.totalorder %v6270, 1
        %v6299 = vsel %vm6271, %v5822, 0.0
        %v6300 = vsel %vm6272, %v5823, 0.0
        %v6301 = vsel %vm6273, %v5824, 0.0
        %v6302 = vsel %vm6274, %v5825, 0.0
        %v6303 = vsel %vm6275, %v5826, 0.0
        %v6304 = vsel %vm6276, %v5827, 0.0
        %v6305 = vsel %vm6277, %v5828, 0.0
        %v6306 = vsel %vm6278, %v5829, 0.0
        %v6307 = vsel %vm6279, %v5830, 0.0
        %v6308 = vsel %vm6280, %v5831, 0.0
        %v6309 = vsel %vm6281, %v5832, 0.0
        %v6310 = vsel %vm6282, %v5833, 0.0
        %v6311 = vsel %vm6283, %v5834, 0.0
        %v6312 = vsel %vm6284, %v5835, 0.0
        %v6313 = vsel %vm6285, %v5836, 0.0
        %v6314 = vsel %vm6286, %v5837, 0.0
        %v6315 = vsel %vm6287, %v5838, 0.0
        %v6316 = vsel %vm6288, %v5839, 0.0
        %v6317 = vsel %vm6289, %v5840, 0.0
        %v6318 = vsel %vm6290, %v5841, 0.0
        %v6319 = vsel %vm6291, %v5842, 0.0
        %v6320 = vsel %vm6292, %v5843, 0.0
        %v6321 = vsel %vm6293, %v5844, 0.0
        %v6322 = vsel %vm6294, %v5845, 0.0
        %v6323 = vsel %vm6295, %v5846, 0.0
        %v6324 = vsel %vm6296, %v5847, 0.0
        %v6325 = vsel %vm6297, %v5848, 0.0
        %v6326 = vsel %vm6298, %v5849, 0.0
        %v6327 = vadd.f32 %v6299, %v6300
        %v6328 = vadd.f32 %v6327, %v6301
        %v6329 = vadd.f32 %v6328, %v6302
        %v6330 = vadd.f32 %v6329, %v6303
        %v6331 = vadd.f32 %v6330, %v6304
        %v6332 = vadd.f32 %v6331, %v6305
        %v6333 = vadd.f32 %v6332, %v6306
        %v6334 = vadd.f32 %v6333, %v6307
        %v6335 = vadd.f32 %v6334, %v6308
        %v6336 = vadd.f32 %v6335, %v6309
        %v6337 = vadd.f32 %v6336, %v6310
        %v6338 = vadd.f32 %v6337, %v6311
        %v6339 = vadd.f32 %v6338, %v6312
        %v6340 = vadd.f32 %v6339, %v6313
        %v6341 = vadd.f32 %v6340, %v6314
        %v6342 = vadd.f32 %v6341, %v6315
        %v6343 = vadd.f32 %v6342, %v6316
        %v6344 = vadd.f32 %v6343, %v6317
        %v6345 = vadd.f32 %v6344, %v6318
        %v6346 = vadd.f32 %v6345, %v6319
        %v6347 = vadd.f32 %v6346, %v6320
        %v6348 = vadd.f32 %v6347, %v6321
        %v6349 = vadd.f32 %v6348, %v6322
        %v6350 = vadd.f32 %v6349, %v6323
        %v6351 = vadd.f32 %v6350, %v6324
        %v6352 = vadd.f32 %v6351, %v6325
        %v6353 = vadd.f32 %v6352, %v6326
        %v6354 = vrot.slane %v6353, 4
        %v6355 = vadd.f32 %v6353, %v6354
        %v6356 = vrot.slane %v6355, 2
        %v6357 = vadd.f32 %v6355, %v6356
        %v6358 = vrot.slane %v6357, 1
        %v6359 = vadd.f32 %v6357, %v6358
        %v6360 = vrcp.pop 196.0
        %v6361 = vmul.f32 %v6359, %v6360
        %v6362 = vsub.f32 %v5822, %v6361
        %v6363 = vsub.f32 %v5823, %v6361
        %v6364 = vsub.f32 %v5824, %v6361
        %v6365 = vsub.f32 %v5825, %v6361
        %v6366 = vsub.f32 %v5826, %v6361
        %v6367 = vsub.f32 %v5827, %v6361
        %v6368 = vsub.f32 %v5828, %v6361
        %v6369 = vsub.f32 %v5829, %v6361
        %v6370 = vsub.f32 %v5830, %v6361
        %v6371 = vsub.f32 %v5831, %v6361
        %v6372 = vsub.f32 %v5832, %v6361
        %v6373 = vsub.f32 %v5833, %v6361
        %v6374 = vsub.f32 %v5834, %v6361
        %v6375 = vsub.f32 %v5835, %v6361
        %v6376 = vsub.f32 %v5836, %v6361
        %v6377 = vsub.f32 %v5837, %v6361
        %v6378 = vsub.f32 %v5838, %v6361
        %v6379 = vsub.f32 %v5839, %v6361
        %v6380 = vsub.f32 %v5840, %v6361
        %v6381 = vsub.f32 %v5841, %v6361
        %v6382 = vsub.f32 %v5842, %v6361
        %v6383 = vsub.f32 %v5843, %v6361
        %v6384 = vsub.f32 %v5844, %v6361
        %v6385 = vsub.f32 %v5845, %v6361
        %v6386 = vsub.f32 %v5846, %v6361
        %v6387 = vsub.f32 %v5847, %v6361
        %v6388 = vsub.f32 %v5848, %v6361
        %v6389 = vsub.f32 %v5849, %v6361
        %v6390 = vsel %vm6271, %v6362, 0.0
        %v6391 = vsel %vm6272, %v6363, 0.0
        %v6392 = vsel %vm6273, %v6364, 0.0
        %v6393 = vsel %vm6274, %v6365, 0.0
        %v6394 = vsel %vm6275, %v6366, 0.0
        %v6395 = vsel %vm6276, %v6367, 0.0
        %v6396 = vsel %vm6277, %v6368, 0.0
        %v6397 = vsel %vm6278, %v6369, 0.0
        %v6398 = vsel %vm6279, %v6370, 0.0
        %v6399 = vsel %vm6280, %v6371, 0.0
        %v6400 = vsel %vm6281, %v6372, 0.0
        %v6401 = vsel %vm6282, %v6373, 0.0
        %v6402 = vsel %vm6283, %v6374, 0.0
        %v6403 = vsel %vm6284, %v6375, 0.0
        %v6404 = vsel %vm6285, %v6376, 0.0
        %v6405 = vsel %vm6286, %v6377, 0.0
        %v6406 = vsel %vm6287, %v6378, 0.0
        %v6407 = vsel %vm6288, %v6379, 0.0
        %v6408 = vsel %vm6289, %v6380, 0.0
        %v6409 = vsel %vm6290, %v6381, 0.0
        %v6410 = vsel %vm6291, %v6382, 0.0
        %v6411 = vsel %vm6292, %v6383, 0.0
        %v6412 = vsel %vm6293, %v6384, 0.0
        %v6413 = vsel %vm6294, %v6385, 0.0
        %v6414 = vsel %vm6295, %v6386, 0.0
        %v6415 = vsel %vm6296, %v6387, 0.0
        %v6416 = vsel %vm6297, %v6388, 0.0
        %v6417 = vsel %vm6298, %v6389, 0.0
        %v6418 = vmul.f32 %v6390, %v6390
        %v6419 = vmul.f32 %v6391, %v6391
        %v6420 = vmul.f32 %v6392, %v6392
        %v6421 = vmul.f32 %v6393, %v6393
        %v6422 = vmul.f32 %v6394, %v6394
        %v6423 = vmul.f32 %v6395, %v6395
        %v6424 = vmul.f32 %v6396, %v6396
        %v6425 = vmul.f32 %v6397, %v6397
        %v6426 = vmul.f32 %v6398, %v6398
        %v6427 = vmul.f32 %v6399, %v6399
        %v6428 = vmul.f32 %v6400, %v6400
        %v6429 = vmul.f32 %v6401, %v6401
        %v6430 = vmul.f32 %v6402, %v6402
        %v6431 = vmul.f32 %v6403, %v6403
        %v6432 = vmul.f32 %v6404, %v6404
        %v6433 = vmul.f32 %v6405, %v6405
        %v6434 = vmul.f32 %v6406, %v6406
        %v6435 = vmul.f32 %v6407, %v6407
        %v6436 = vmul.f32 %v6408, %v6408
        %v6437 = vmul.f32 %v6409, %v6409
        %v6438 = vmul.f32 %v6410, %v6410
        %v6439 = vmul.f32 %v6411, %v6411
        %v6440 = vmul.f32 %v6412, %v6412
        %v6441 = vmul.f32 %v6413, %v6413
        %v6442 = vmul.f32 %v6414, %v6414
        %v6443 = vmul.f32 %v6415, %v6415
        %v6444 = vmul.f32 %v6416, %v6416
        %v6445 = vmul.f32 %v6417, %v6417
        %v6446 = vadd.f32 %v6418, %v6419
        %v6447 = vadd.f32 %v6446, %v6420
        %v6448 = vadd.f32 %v6447, %v6421
        %v6449 = vadd.f32 %v6448, %v6422
        %v6450 = vadd.f32 %v6449, %v6423
        %v6451 = vadd.f32 %v6450, %v6424
        %v6452 = vadd.f32 %v6451, %v6425
        %v6453 = vadd.f32 %v6452, %v6426
        %v6454 = vadd.f32 %v6453, %v6427
        %v6455 = vadd.f32 %v6454, %v6428
        %v6456 = vadd.f32 %v6455, %v6429
        %v6457 = vadd.f32 %v6456, %v6430
        %v6458 = vadd.f32 %v6457, %v6431
        %v6459 = vadd.f32 %v6458, %v6432
        %v6460 = vadd.f32 %v6459, %v6433
        %v6461 = vadd.f32 %v6460, %v6434
        %v6462 = vadd.f32 %v6461, %v6435
        %v6463 = vadd.f32 %v6462, %v6436
        %v6464 = vadd.f32 %v6463, %v6437
        %v6465 = vadd.f32 %v6464, %v6438
        %v6466 = vadd.f32 %v6465, %v6439
        %v6467 = vadd.f32 %v6466, %v6440
        %v6468 = vadd.f32 %v6467, %v6441
        %v6469 = vadd.f32 %v6468, %v6442
        %v6470 = vadd.f32 %v6469, %v6443
        %v6471 = vadd.f32 %v6470, %v6444
        %v6472 = vadd.f32 %v6471, %v6445
        %v6473 = vrot.slane %v6472, 4
        %v6474 = vadd.f32 %v6472, %v6473
        %v6475 = vrot.slane %v6474, 2
        %v6476 = vadd.f32 %v6474, %v6475
        %v6477 = vrot.slane %v6476, 1
        %v6478 = vadd.f32 %v6476, %v6477
        %v6479 = vmul.f32 %v6478, %v6360
        %v6480 = vadd.f32 %v6479, 1e-05
        %v6481 = vrsqrt.pop %v6480
        %v6482 = vld [vmem:[%s1594] sm:$0x1]
        %v6483 = vmul.f32 %v6481, %v6482
        %v6484 = vlaneseq
        %v6485 = vshrl.u32 %v6484, 7
        %v6486 = vsub.s32 0, %v6485
        %v6487 = vrot.slane %v6483, %v6486
        %v6488 = vmul.f32 %v6362, %v6487
        %v6489 = vmul.f32 %v6363, %v6487
        %v6490 = vmul.f32 %v6364, %v6487
        %v6491 = vmul.f32 %v6365, %v6487
        %v6492 = vmul.f32 %v6366, %v6487
        %v6493 = vmul.f32 %v6367, %v6487
        %v6494 = vmul.f32 %v6368, %v6487
        %v6495 = vmul.f32 %v6369, %v6487
        %v6496 = vmul.f32 %v6370, %v6487
        %v6497 = vmul.f32 %v6371, %v6487
        %v6498 = vmul.f32 %v6372, %v6487
        %v6499 = vmul.f32 %v6373, %v6487
        %v6500 = vmul.f32 %v6374, %v6487
        %v6501 = vmul.f32 %v6375, %v6487
        %v6502 = vmul.f32 %v6376, %v6487
        %v6503 = vmul.f32 %v6377, %v6487
        %v6504 = vmul.f32 %v6378, %v6487
        %v6505 = vmul.f32 %v6379, %v6487
        %v6506 = vmul.f32 %v6380, %v6487
        %v6507 = vmul.f32 %v6381, %v6487
        %v6508 = vmul.f32 %v6382, %v6487
        %v6509 = vmul.f32 %v6383, %v6487
        %v6510 = vmul.f32 %v6384, %v6487
        %v6511 = vmul.f32 %v6385, %v6487
        %v6512 = vmul.f32 %v6386, %v6487
        %v6513 = vmul.f32 %v6387, %v6487
        %v6514 = vmul.f32 %v6388, %v6487
        %v6515 = vmul.f32 %v6389, %v6487
        %v6516 = vld [vmem:[%s1597] sm:$0x1]
        %v6518 = vlaneseq
        %v6519 = vshrl.u32 %v6518, 7
        %v6520 = vsub.s32 0, %v6519
        %v6521 = vrot.slane %v6516, %v6520
        %v6523 = vadd.f32 %v6488, %v6521
        %v6524 = vadd.f32 %v6489, %v6521
        %v6525 = vadd.f32 %v6490, %v6521
        %v6526 = vadd.f32 %v6491, %v6521
        %v6527 = vadd.f32 %v6492, %v6521
        %v6528 = vadd.f32 %v6493, %v6521
        %v6529 = vadd.f32 %v6494, %v6521
        %v6530 = vadd.f32 %v6495, %v6521
        %v6531 = vadd.f32 %v6496, %v6521
        %v6532 = vadd.f32 %v6497, %v6521
        %v6533 = vadd.f32 %v6498, %v6521
        %v6534 = vadd.f32 %v6499, %v6521
        %v6535 = vadd.f32 %v6500, %v6521
        %v6536 = vadd.f32 %v6501, %v6521
        %v6537 = vadd.f32 %v6502, %v6521
        %v6538 = vadd.f32 %v6503, %v6521
        %v6539 = vadd.f32 %v6504, %v6521
        %v6540 = vadd.f32 %v6505, %v6521
        %v6541 = vadd.f32 %v6506, %v6521
        %v6542 = vadd.f32 %v6507, %v6521
        %v6543 = vadd.f32 %v6508, %v6521
        %v6544 = vadd.f32 %v6509, %v6521
        %v6545 = vadd.f32 %v6510, %v6521
        %v6546 = vadd.f32 %v6511, %v6521
        %v6547 = vadd.f32 %v6512, %v6521
        %v6548 = vadd.f32 %v6513, %v6521
        %v6549 = vadd.f32 %v6514, %v6521
        %v6550 = vadd.f32 %v6515, %v6521
        %v6551 = vld [vmem:[%s1558] sm:$0xff]
        %v6552 = vld [vmem:[%s1558 + $0x8] sm:$0xff]
        %v6553 = vld [vmem:[%s1558 + $0x10] sm:$0xff]
        %v6554 = vld [vmem:[%s1558 + $0x18] sm:$0xff]
        %v6555 = vld [vmem:[%s1558 + $0x20] sm:$0xff]
        %v6556 = vld [vmem:[%s1558 + $0x28] sm:$0xff]
        %v6557 = vld [vmem:[%s1558 + $0x30] sm:$0xff]
        %v6558 = vld [vmem:[%s1558 + $0x38] sm:$0xff]
        %v6559 = vld [vmem:[%s1558 + $0x40] sm:$0xff]
        %v6560 = vld [vmem:[%s1558 + $0x48] sm:$0xff]
        %v6561 = vld [vmem:[%s1558 + $0x50] sm:$0xff]
        %v6562 = vld [vmem:[%s1558 + $0x58] sm:$0xff]
        %v6563 = vld [vmem:[%s1558 + $0x60] sm:$0xff]
        %v6564 = vld [vmem:[%s1558 + $0x68] sm:$0xff]
        %v6565 = vld [vmem:[%s1558 + $0x70] sm:$0xff]
        %v6566 = vld [vmem:[%s1558 + $0x78] sm:$0xff]
        %v6567 = vld [vmem:[%s1558 + $0x80] sm:$0xff]
        %v6568 = vld [vmem:[%s1558 + $0x88] sm:$0xff]
        %v6569 = vld [vmem:[%s1558 + $0x90] sm:$0xff]
        %v6570 = vld [vmem:[%s1558 + $0x98] sm:$0xff]
        %v6571 = vld [vmem:[%s1558 + $0xa0] sm:$0xff]
        %v6572 = vld [vmem:[%s1558 + $0xa8] sm:$0xff]
        %v6573 = vld [vmem:[%s1558 + $0xb0] sm:$0xff]
        %v6574 = vld [vmem:[%s1558 + $0xb8] sm:$0xff]
        %v6575 = vld [vmem:[%s1558 + $0xc0] sm:$0xff]
        %v6576 = vld [vmem:[%s1558 + $0xc8] sm:$0xff]
        %v6577 = vld [vmem:[%s1558 + $0xd0] sm:$0xff]
        %v6578 = vld [vmem:[%s1558 + $0xd8] sm:$0xff]
        %v6579 = vadd.f32 %v6523, %v6551
        %v6580 = vadd.f32 %v6524, %v6552
        %v6581 = vadd.f32 %v6525, %v6553
        %v6582 = vadd.f32 %v6526, %v6554
        %v6583 = vadd.f32 %v6527, %v6555
        %v6584 = vadd.f32 %v6528, %v6556
        %v6585 = vadd.f32 %v6529, %v6557
        %v6586 = vadd.f32 %v6530, %v6558
        %v6587 = vadd.f32 %v6531, %v6559
        %v6588 = vadd.f32 %v6532, %v6560
        %v6589 = vadd.f32 %v6533, %v6561
        %v6590 = vadd.f32 %v6534, %v6562
        %v6591 = vadd.f32 %v6535, %v6563
        %v6592 = vadd.f32 %v6536, %v6564
        %v6593 = vadd.f32 %v6537, %v6565
        %v6594 = vadd.f32 %v6538, %v6566
        %v6595 = vadd.f32 %v6539, %v6567
        %v6596 = vadd.f32 %v6540, %v6568
        %v6597 = vadd.f32 %v6541, %v6569
        %v6598 = vadd.f32 %v6542, %v6570
        %v6599 = vadd.f32 %v6543, %v6571
        %v6600 = vadd.f32 %v6544, %v6572
        %v6601 = vadd.f32 %v6545, %v6573
        %v6602 = vadd.f32 %v6546, %v6574
        %v6603 = vadd.f32 %v6547, %v6575
        %v6604 = vadd.f32 %v6548, %v6576
        %v6605 = vadd.f32 %v6549, %v6577
        %v6606 = vadd.f32 %v6550, %v6578
        %6607 = vst [vmem:[%s1591] sm:$0xff] %v6579
        %6608 = vst [vmem:[%s1591 + $0x8] sm:$0xff] %v6580
        %6609 = vst [vmem:[%s1591 + $0x10] sm:$0xff] %v6581
        %6610 = vst [vmem:[%s1591 + $0x18] sm:$0xff] %v6582
        %6611 = vst [vmem:[%s1591 + $0x20] sm:$0xff] %v6583
        %6612 = vst [vmem:[%s1591 + $0x28] sm:$0xff] %v6584
        %6613 = vst [vmem:[%s1591 + $0x30] sm:$0xff] %v6585
        %6614 = vst [vmem:[%s1591 + $0x38] sm:$0xff] %v6586
        %6615 = vst [vmem:[%s1591 + $0x40] sm:$0xff] %v6587
        %6616 = vst [vmem:[%s1591 + $0x48] sm:$0xff] %v6588
        %6617 = vst [vmem:[%s1591 + $0x50] sm:$0xff] %v6589
        %6618 = vst [vmem:[%s1591 + $0x58] sm:$0xff] %v6590
        %6619 = vst [vmem:[%s1591 + $0x60] sm:$0xff] %v6591
        %6620 = vst [vmem:[%s1591 + $0x68] sm:$0xff] %v6592
        %6621 = vst [vmem:[%s1591 + $0x70] sm:$0xff] %v6593
        %6622 = vst [vmem:[%s1591 + $0x78] sm:$0xff] %v6594
        %6623 = vst [vmem:[%s1591 + $0x80] sm:$0xff] %v6595
        %6624 = vst [vmem:[%s1591 + $0x88] sm:$0xff] %v6596
        %6625 = vst [vmem:[%s1591 + $0x90] sm:$0xff] %v6597
        %6626 = vst [vmem:[%s1591 + $0x98] sm:$0xff] %v6598
        %6627 = vst [vmem:[%s1591 + $0xa0] sm:$0xff] %v6599
        %6628 = vst [vmem:[%s1591 + $0xa8] sm:$0xff] %v6600
        %6629 = vst [vmem:[%s1591 + $0xb0] sm:$0xff] %v6601
        %6630 = vst [vmem:[%s1591 + $0xb8] sm:$0xff] %v6602
        %6631 = vst [vmem:[%s1591 + $0xc0] sm:$0xff] %v6603
        %6632 = vst [vmem:[%s1591 + $0xc8] sm:$0xff] %v6604
        %6633 = vst [vmem:[%s1591 + $0xd0] sm:$0xff] %v6605
        %6634 = vst [vmem:[%s1591 + $0xd8] sm:$0xff] %v6606
        %s6635 = sand.u32 %s149, 1
        %s6636 = sand.u32 %s149, 1
        %s6637 = smul.addr %s6636, 224
        %s6638 = scalar_lea.vmem [#allocation4], %s6637
        // Predicated region
        $region120: #{conv_bn_add.1} parent=110 // pred_check
          %p6639 = pneg %p159
        $region121: #{conv_bn_add.1} parent=110 // pred_check_branch
          %6641 = sbr.rel (%p6639) target = $region123
        $region122: #{conv_bn_add.1} parent=110 // pred_region
          %s6642 = smul.addr %s16, 8
          %s6643 = scalar_lea.vmem %s5, %s6642
          // Predicated region
          $region124: #{conv_bn_add.1} parent=122 // pred_check
            _
          $region125: #{conv_bn_add.1} parent=122 // pred_check_branch
            %6645 = sbr.rel (0) target = $region127
          $region126: #{conv_bn_add.1} parent=122 // pred_region
            // Predicated region
            $region128: #{conv_bn_add.1} parent=126 // pred_check
              _
            $region129: #{conv_bn_add.1} parent=126 // pred_check_branch
              %6647 = sbr.rel (0) target = $region131
            $region130: #{conv_bn_add.1} parent=126 // pred_region
              // Predicated region
              $region143: #{conv_bn_add.1} parent=130 // pred_check
                _
              $region144: #{conv_bn_add.1} parent=130 // pred_check_branch
                %6716 = sbr.rel (0) target = $region146
              $region145: #{conv_bn_add.1} parent=130 // pred_region
                loop: start=0, step=1, limit=1
                $region147: #{conv_bn_add.1} parent=145 // loop_pre_header
                  _
                $region148: #{conv_bn_add.1} parent=145 // loop_header
                  %s6718 = sphi 0, %s6722
                  %p6719 = scmp.ge.s32.totalorder %s6718, 1
                  %s6723 = sphi %s6638, %s6638
                  %s6724 = sphi %s6643, %s6643
                $region149: #{conv_bn_add.1} parent=145 // loop_header_branch
                  %6721 = sbr.rel (%p6719) target = $region153
                $region150: #{conv_bn_add.1} parent=145 // loop_body
                  %v6725 = vld [vmem:[%s6723] sm:$0xff]
                  %6726 = vst [vmem:[%s6724] sm:$0xff] %v6725
                  %v6727 = vld [vmem:[%s6723 + $0x8] sm:$0xff]
                  %6728 = vst [vmem:[%s6724 + $0x10] sm:$0xff] %v6727
                  %v6729 = vld [vmem:[%s6723 + $0x10] sm:$0xff]
                  %6730 = vst [vmem:[%s6724 + $0x20] sm:$0xff] %v6729
                  %v6731 = vld [vmem:[%s6723 + $0x18] sm:$0xff]
                  %6732 = vst [vmem:[%s6724 + $0x30] sm:$0xff] %v6731
                  %v6733 = vld [vmem:[%s6723 + $0x20] sm:$0xff]
                  %6734 = vst [vmem:[%s6724 + $0x40] sm:$0xff] %v6733
                  %v6735 = vld [vmem:[%s6723 + $0x28] sm:$0xff]
                  %6736 = vst [vmem:[%s6724 + $0x50] sm:$0xff] %v6735
                  %v6737 = vld [vmem:[%s6723 + $0x30] sm:$0xff]
                  %6738 = vst [vmem:[%s6724 + $0x60] sm:$0xff] %v6737
                  %v6739 = vld [vmem:[%s6723 + $0x38] sm:$0xff]
                  %6740 = vst [vmem:[%s6724 + $0x70] sm:$0xff] %v6739
                  %v6741 = vld [vmem:[%s6723 + $0x40] sm:$0xff]
                  %6742 = vst [vmem:[%s6724 + $0x80] sm:$0xff] %v6741
                  %v6743 = vld [vmem:[%s6723 + $0x48] sm:$0xff]
                  %6744 = vst [vmem:[%s6724 + $0x90] sm:$0xff] %v6743
                  %v6745 = vld [vmem:[%s6723 + $0x50] sm:$0xff]
                  %6746 = vst [vmem:[%s6724 + $0xa0] sm:$0xff] %v6745
                  %v6747 = vld [vmem:[%s6723 + $0x58] sm:$0xff]
                  %6748 = vst [vmem:[%s6724 + $0xb0] sm:$0xff] %v6747
                  %v6749 = vld [vmem:[%s6723 + $0x60] sm:$0xff]
                  %6750 = vst [vmem:[%s6724 + $0xc0] sm:$0xff] %v6749
                  %v6751 = vld [vmem:[%s6723 + $0x68] sm:$0xff]
                  %6752 = vst [vmem:[%s6724 + $0xd0] sm:$0xff] %v6751
                  %v6753 = vld [vmem:[%s6723 + $0x70] sm:$0xff]
                  %6754 = vst [vmem:[%s6724 + $0xe0] sm:$0xff] %v6753
                  %v6755 = vld [vmem:[%s6723 + $0x78] sm:$0xff]
                  %6756 = vst [vmem:[%s6724 + $0xf0] sm:$0xff] %v6755
                  %v6757 = vld [vmem:[%s6723 + $0x80] sm:$0xff]
                  %6758 = vst [vmem:[%s6724 + $0x100] sm:$0xff] %v6757
                  %v6759 = vld [vmem:[%s6723 + $0x88] sm:$0xff]
                  %6760 = vst [vmem:[%s6724 + $0x110] sm:$0xff] %v6759
                  %v6761 = vld [vmem:[%s6723 + $0x90] sm:$0xff]
                  %6762 = vst [vmem:[%s6724 + $0x120] sm:$0xff] %v6761
                  %v6763 = vld [vmem:[%s6723 + $0x98] sm:$0xff]
                  %6764 = vst [vmem:[%s6724 + $0x130] sm:$0xff] %v6763
                  %v6765 = vld [vmem:[%s6723 + $0xa0] sm:$0xff]
                  %6766 = vst [vmem:[%s6724 + $0x140] sm:$0xff] %v6765
                  %v6767 = vld [vmem:[%s6723 + $0xa8] sm:$0xff]
                  %6768 = vst [vmem:[%s6724 + $0x150] sm:$0xff] %v6767
                  %v6769 = vld [vmem:[%s6723 + $0xb0] sm:$0xff]
                  %6770 = vst [vmem:[%s6724 + $0x160] sm:$0xff] %v6769
                  %v6771 = vld [vmem:[%s6723 + $0xb8] sm:$0xff]
                  %6772 = vst [vmem:[%s6724 + $0x170] sm:$0xff] %v6771
                  %v6773 = vld [vmem:[%s6723 + $0xc0] sm:$0xff]
                  %6774 = vst [vmem:[%s6724 + $0x180] sm:$0xff] %v6773
                  %v6775 = vld [vmem:[%s6723 + $0xc8] sm:$0xff]
                  %6776 = vst [vmem:[%s6724 + $0x190] sm:$0xff] %v6775
                  %v6777 = vld [vmem:[%s6723 + $0xd0] sm:$0xff]
                  %6778 = vst [vmem:[%s6724 + $0x1a0] sm:$0xff] %v6777
                  %v6779 = vld [vmem:[%s6723 + $0xd8] sm:$0xff]
                  %6780 = vst [vmem:[%s6724 + $0x1b0] sm:$0xff] %v6779
                $region151: #{conv_bn_add.1} parent=145 // loop_footer
                  %s6722 = sadd.s32 1, %s6718
                $region152: #{conv_bn_add.1} parent=145 // loop_footer_branch
                  %6717 = sbr.rel target = $region148
                $region153: #{conv_bn_add.1} parent=145 // loop_exit
                  _
              $region146: #{conv_bn_add.1} parent=130 // pred_fallthru
                _
              // Predicated region
              $region154: #{conv_bn_add.1} parent=130 // pred_check
                _
              $region155: #{conv_bn_add.1} parent=130 // pred_check_branch
                %6782 = sbr.rel target = $region157
              $region156: #{conv_bn_add.1} parent=130 // pred_region
                _
              $region157: #{conv_bn_add.1} parent=130 // pred_fallthru
                _
            $region131: #{conv_bn_add.1} parent=126 // pred_fallthru
              _
            // Predicated region
            $region132: #{conv_bn_add.1} parent=126 // pred_check
              _
            $region133: #{conv_bn_add.1} parent=126 // pred_check_branch
              %6649 = sbr.rel target = $region135
            $region134: #{conv_bn_add.1} parent=126 // pred_region
              loop: start=0, step=1, limit=1
              $region136: #{conv_bn_add.1} parent=134 // loop_pre_header
                _
              $region137: #{conv_bn_add.1} parent=134 // loop_header
                %s6652 = sphi 0, %s6656
                %p6653 = scmp.ge.s32.totalorder %s6652, 1
                %s6657 = sphi %s6638, %s6638
                %s6658 = sphi %s6643, %s6643
              $region138: #{conv_bn_add.1} parent=134 // loop_header_branch
                %6655 = sbr.rel (%p6653) target = $region142
              $region139: #{conv_bn_add.1} parent=134 // loop_body
                %v6659 = vld [vmem:[%s6657] sm:$0xff]
                %6660 = vst [vmem:[%s6658] sm:$0xff] %v6659
                %v6661 = vld [vmem:[%s6657 + $0x8] sm:$0xff]
                %6662 = vst [vmem:[%s6658 + $0x10] sm:$0xff] %v6661
                %v6663 = vld [vmem:[%s6657 + $0x10] sm:$0xff]
                %6664 = vst [vmem:[%s6658 + $0x20] sm:$0xff] %v6663
                %v6665 = vld [vmem:[%s6657 + $0x18] sm:$0xff]
                %6666 = vst [vmem:[%s6658 + $0x30] sm:$0xff] %v6665
                %v6667 = vld [vmem:[%s6657 + $0x20] sm:$0xff]
                %6668 = vst [vmem:[%s6658 + $0x40] sm:$0xff] %v6667
                %v6669 = vld [vmem:[%s6657 + $0x28] sm:$0xff]
                %6670 = vst [vmem:[%s6658 + $0x50] sm:$0xff] %v6669
                %v6671 = vld [vmem:[%s6657 + $0x30] sm:$0xff]
                %6672 = vst [vmem:[%s6658 + $0x60] sm:$0xff] %v6671
                %v6673 = vld [vmem:[%s6657 + $0x38] sm:$0xff]
                %6674 = vst [vmem:[%s6658 + $0x70] sm:$0xff] %v6673
                %v6675 = vld [vmem:[%s6657 + $0x40] sm:$0xff]
                %6676 = vst [vmem:[%s6658 + $0x80] sm:$0xff] %v6675
                %v6677 = vld [vmem:[%s6657 + $0x48] sm:$0xff]
                %6678 = vst [vmem:[%s6658 + $0x90] sm:$0xff] %v6677
                %v6679 = vld [vmem:[%s6657 + $0x50] sm:$0xff]
                %6680 = vst [vmem:[%s6658 + $0xa0] sm:$0xff] %v6679
                %v6681 = vld [vmem:[%s6657 + $0x58] sm:$0xff]
                %6682 = vst [vmem:[%s6658 + $0xb0] sm:$0xff] %v6681
                %v6683 = vld [vmem:[%s6657 + $0x60] sm:$0xff]
                %6684 = vst [vmem:[%s6658 + $0xc0] sm:$0xff] %v6683
                %v6685 = vld [vmem:[%s6657 + $0x68] sm:$0xff]
                %6686 = vst [vmem:[%s6658 + $0xd0] sm:$0xff] %v6685
                %v6687 = vld [vmem:[%s6657 + $0x70] sm:$0xff]
                %6688 = vst [vmem:[%s6658 + $0xe0] sm:$0xff] %v6687
                %v6689 = vld [vmem:[%s6657 + $0x78] sm:$0xff]
                %6690 = vst [vmem:[%s6658 + $0xf0] sm:$0xff] %v6689
                %v6691 = vld [vmem:[%s6657 + $0x80] sm:$0xff]
                %6692 = vst [vmem:[%s6658 + $0x100] sm:$0xff] %v6691
                %v6693 = vld [vmem:[%s6657 + $0x88] sm:$0xff]
                %6694 = vst [vmem:[%s6658 + $0x110] sm:$0xff] %v6693
                %v6695 = vld [vmem:[%s6657 + $0x90] sm:$0xff]
                %6696 = vst [vmem:[%s6658 + $0x120] sm:$0xff] %v6695
                %v6697 = vld [vmem:[%s6657 + $0x98] sm:$0xff]
                %6698 = vst [vmem:[%s6658 + $0x130] sm:$0xff] %v6697
                %v6699 = vld [vmem:[%s6657 + $0xa0] sm:$0xff]
                %6700 = vst [vmem:[%s6658 + $0x140] sm:$0xff] %v6699
                %v6701 = vld [vmem:[%s6657 + $0xa8] sm:$0xff]
                %6702 = vst [vmem:[%s6658 + $0x150] sm:$0xff] %v6701
                %v6703 = vld [vmem:[%s6657 + $0xb0] sm:$0xff]
                %6704 = vst [vmem:[%s6658 + $0x160] sm:$0xff] %v6703
                %v6705 = vld [vmem:[%s6657 + $0xb8] sm:$0xff]
                %6706 = vst [vmem:[%s6658 + $0x170] sm:$0xff] %v6705
                %v6707 = vld [vmem:[%s6657 + $0xc0] sm:$0xff]
                %6708 = vst [vmem:[%s6658 + $0x180] sm:$0xff] %v6707
                %v6709 = vld [vmem:[%s6657 + $0xc8] sm:$0xff]
                %6710 = vst [vmem:[%s6658 + $0x190] sm:$0xff] %v6709
                %v6711 = vld [vmem:[%s6657 + $0xd0] sm:$0xff]
                %6712 = vst [vmem:[%s6658 + $0x1a0] sm:$0xff] %v6711
                %v6713 = vld [vmem:[%s6657 + $0xd8] sm:$0xff]
                %6714 = vst [vmem:[%s6658 + $0x1b0] sm:$0xff] %v6713
              $region140: #{conv_bn_add.1} parent=134 // loop_footer
                %s6656 = sadd.s32 1, %s6652
              $region141: #{conv_bn_add.1} parent=134 // loop_footer_branch
                %6651 = sbr.rel target = $region137
              $region142: #{conv_bn_add.1} parent=134 // loop_exit
                _
            $region135: #{conv_bn_add.1} parent=126 // pred_fallthru
              _
          $region127: #{conv_bn_add.1} parent=122 // pred_fallthru
            _
          %6783 = vnop
        $region123: #{conv_bn_add.1} parent=110 // pred_fallthru
          _
      $region111: #{conv_bn_add.1} parent=5 // pred_fallthru
        _
      %p6784 = scmp.le.s32.totalorder 2, %s11
      // Predicated region
      $region158: #{conv_bn_add.1} parent=5 // pred_check
        %p6785 = pneg %p6784
      $region159: #{conv_bn_add.1} parent=5 // pred_check_branch
        %6787 = sbr.rel (%p6785) target = $region161
      $region160: #{conv_bn_add.1} parent=5 // pred_region
        %s6788 = ssub.s32 %s11, 2
        // Predicated region
        $region162: #{conv_bn_add.1} parent=160 // pred_check
          %p6789 = pneg %p165
        $region163: #{conv_bn_add.1} parent=160 // pred_check_branch
          %6791 = sbr.rel (%p6789) target = $region165
        $region164: #{conv_bn_add.1} parent=160 // pred_region
          %s6792 = sand.u32 %s150, 1
          %s6793 = sand.u32 %s150, 1
          %s6794 = smul.addr %s6793, 224
          %s6795 = scalar_lea.vmem [#allocation4], %s6794
        $region165: #{conv_bn_add.1} parent=160 // pred_fallthru
          _
      $region161: #{conv_bn_add.1} parent=5 // pred_fallthru
        _
    $region6: #{conv_bn_add.1} parent=1 // loop_footer
      %s15 = sadd.s32 1, %s11
    $region7: #{conv_bn_add.1} parent=1 // loop_footer_branch
      %10 = sbr.rel target = $region3
    $region8: #{conv_bn_add.1} parent=1 // loop_exit
      _

</llo_original>
